<compile_context>
chip_gen: v7x
topology: tpu7x:2x2x1
jax: 0.10.0
libtpu: 0.0.40
codegen_flags: <defaults>
</compile_context>

<pallas_src>
import functools

import jax
import jax.numpy as jnp
from jax.experimental import pallas as pl
from jax.experimental.pallas import tpu as pltpu

_EPS = 1e-5


# ----------------------------- in-kernel helpers -----------------------------

def _zero_pad_border(pad_ref):
    """Zero only the 1-pixel border of the persistent pad scratch (interior is
    fully overwritten before every conv read)."""
    Hp, Wp, C = pad_ref.shape
    pad_ref[0:1, :, :] = jnp.zeros((1, Wp, C), jnp.float32)
    pad_ref[Hp - 1:Hp, :, :] = jnp.zeros((1, Wp, C), jnp.float32)
    pad_ref[:, 0:1, :] = jnp.zeros((Hp, 1, C), jnp.float32)
    pad_ref[:, Wp - 1:Wp, :] = jnp.zeros((Hp, 1, C), jnp.float32)


def _conv3x3(pad_ref, w_ref, bias, x):
    """3x3 / stride-1 / pad-1 conv for one image.

    x:       (H*W, Cin) f32 (channels-last, rows = pixels)
    w_ref:   (3, 3*Cin, Cout) bf16 ref; slab di has rows ordered dj*Cin + c
    bias:    (1, Cout) f32
    pad_ref: (H+2, W+2, Cin) f32 scratch with a zero border
    Three K=3*Cin matmuls (one per row tap) instead of nine K=Cin matmuls.
    """
    Hp, Wp, Cin = pad_ref.shape
    H, W = Hp - 2, Wp - 2
    Cout = w_ref.shape[-1]
    pad_ref[1:H + 1, 1:W + 1, :] = x.reshape(H, W, Cin)
    acc = jnp.zeros((H * W, Cout), jnp.float32)
    for di in range(3):
        patch = jnp.concatenate(
            [pad_ref[di:di + H, dj:dj + W, :] for dj in range(3)], axis=-1)
        patch = patch.reshape(H * W, 3 * Cin).astype(jnp.bfloat16)
        acc = acc + jnp.dot(patch, w_ref[di], preferred_element_type=jnp.float32)
    return acc + bias


def _group_norm(x, gamma, beta, gavg, eps, silu):
    """GroupNorm for one image.  x: (S, C) f32; gamma/beta: (1, C) f32;
    gavg: constant (C, C) group-averaging matrix (1/(C//G) within a group).
    Single-pass statistics; group-reduce and broadcast-back folded into one
    matmul per statistic."""
    m1 = jnp.mean(x, axis=0, keepdims=True)                       # (1, C)
    m2 = jnp.mean(x * x, axis=0, keepdims=True)                   # (1, C)
    mean_c = jnp.dot(m1, gavg, preferred_element_type=jnp.float32)
    ex2_c = jnp.dot(m2, gavg, preferred_element_type=jnp.float32)
    var_c = jnp.maximum(ex2_c - mean_c * mean_c, 0.0)
    inv_c = jax.lax.rsqrt(var_c + eps)
    y = (x - mean_c) * (inv_c * gamma) + beta
    if silu:
        y = y * jax.nn.sigmoid(y)
    return y


def _res_block(x, tvec, pad_ref, c1w_ref, c1b, g1g, g1b, c2w_ref, c2b, g2g, g2b,
               gavg, eps):
    """conv3x3 -> GN -> SiLU -> +time -> conv3x3 -> GN -> +x -> SiLU."""
    h = _conv3x3(pad_ref, c1w_ref, c1b, x)
    h = _group_norm(h, g1g, g1b, gavg, eps, silu=True)
    h = h + tvec
    h = _conv3x3(pad_ref, c2w_ref, c2b, h)
    h = _group_norm(h, g2g, g2b, gavg, eps, silu=False)
    y = h + x                       # res_conv = Identity (in_ch == out_ch in MidBlock)
    return y * jax.nn.sigmoid(y)    # F.silu


def _attention(x, gavg, ng, nb, wq_ref, wk_ref, wv_ref, wout_ref, out_b,
               heads, dim_head, scale, eps):
    """GN -> to_qkv -> per-head softmax attention -> single out-proj -> +x."""
    xn = _group_norm(x, ng, nb, gavg, eps, silu=False)
    xb = xn.astype(jnp.bfloat16)
    q_all = jnp.dot(xb, wq_ref[...], preferred_element_type=jnp.float32)   # (S, hidden)
    k_all = jnp.dot(xb, wk_ref[...], preferred_element_type=jnp.float32)
    v_all = jnp.dot(xb, wv_ref[...], preferred_element_type=jnp.float32)
    # TODO(synk): for S >= ~1024 switch to a KV-tiled online-softmax (flash)
    # accumulator to cap the (S, S) working set; full materialization is fine
    # at typical mid-block spatial sizes.
    oh = []
    for hd in range(heads):
        lo = hd * dim_head
        q = (q_all[:, lo:lo + dim_head] * scale).astype(jnp.bfloat16)
        k = k_all[:, lo:lo + dim_head].astype(jnp.bfloat16)
        v = v_all[:, lo:lo + dim_head].astype(jnp.bfloat16)
        sim = jax.lax.dot_general(q, k, (((1,), (1,)), ((), ())),
                                  preferred_element_type=jnp.float32)       # (S, S)
        sim = sim - jnp.max(sim, axis=-1, keepdims=True)
        p = jnp.exp(sim)
        attn = p * pl.reciprocal(jnp.sum(p, axis=-1, keepdims=True), approx=True)
        oh.append(jnp.dot(attn.astype(jnp.bfloat16), v,
                          preferred_element_type=jnp.float32))               # (S, D)
    # one output projection with K = heads*dim_head instead of `heads` K=32 matmuls
    oh_all = jnp.concatenate(oh, axis=-1).astype(jnp.bfloat16)               # (S, hidden)
    proj = jnp.dot(oh_all, wout_ref[...], preferred_element_type=jnp.float32) + out_b
    return x + proj                  # MidBlock: out + out_attn


# --------------------------------- fused kernel ------------------------------

def _mid_block_kernel(*refs, heads, dim_head, scale, eps):
    (x_ref, temb_ref, gavg_ref,
     r1c1w, r1c1b, r1g1g, r1g1b, r1tw, r1tb, r1c2w, r1c2b, r1g2g, r1g2b,
     ang, anb, wq, wk, wv, wout, wob,
     r2c1w, r2c1b, r2g1g, r2g1b, r2tw, r2tb, r2c2w, r2c2b, r2g2g, r2g2b,
     fcw, fcb,
     o_ref, pad_ref) = refs

    _, H, W, C = x_ref.shape
    S = H * W

    _zero_pad_border(pad_ref)

    x0 = x_ref[0].reshape(S, C)
    gavg = gavg_ref[...]

    # time embedding: SiLU shared by both residual blocks, then per-block Linear
    t = temb_ref[0]                                    # (1, Tdim)
    t = t * jax.nn.sigmoid(t)
    tvec1 = jnp.dot(t, r1tw[...], preferred_element_type=jnp.float32) + r1tb[...]
    tvec2 = jnp.dot(t, r2tw[...], preferred_element_type=jnp.float32) + r2tb[...]

    r1 = _res_block(x0, tvec1, pad_ref, r1c1w, r1c1b[...], r1g1g[...], r1g1b[...],
                    r1c2w, r1c2b[...], r1g2g[...], r1g2b[...], gavg, eps)
    a = _attention(r1, gavg, ang[...], anb[...], wq, wk, wv, wout, wob[...],
                   heads, dim_head, scale, eps)
    r2 = _res_block(a, tvec2, pad_ref, r2c1w, r2c1b[...], r2g1g[...], r2g1b[...],
                    r2c2w, r2c2b[...], r2g2g[...], r2g2b[...], gavg, eps)
    y = _conv3x3(pad_ref, fcw, fcb[...], r2)           # final conv, no activation
    o_ref[0] = y.reshape(H, W, fcw.shape[-1])


# -------------------------------- wrappers ------------------------------------

def _bcast_spec(shape):
    """Whole-array block, same for every grid step (weights / small constants)."""
    return pl.BlockSpec(shape, lambda b: (0,) * len(shape))


def _vmem_limit_bytes(H, W, C, Cout, Tdim, hidden, weight_bytes):
    """Derive the VMEM limit from actual block + scratch + working-set sizes."""
    S = H * W
    block_bytes = (H * W * C + H * W * Cout + Tdim) * 4 + weight_bytes
    scratch = (H + 2) * (W + 2) * C * 4
    work = 4 * (12 * S * C + 8 * S * hidden + 3 * S * S + 6 * S * C)
    limit = 2 * block_bytes + scratch + 2 * work
    return int(max(32 << 20, min(limit, 96 << 20)))


def mid_block_nhwc(x_nhwc, t_emb, params, *, heads, dim_head, eps=_EPS):
    B, H, W, C = x_nhwc.shape
    Cout = params['conv_w'].shape[-1]
    Tdim = t_emb.shape[-1]
    hidden = heads * dim_head
    scale = float(dim_head) ** (-0.5)
    temb3 = t_emb.reshape(B, 1, Tdim).astype(jnp.float32)

    r1, at, r2 = params['res1'], params['attn'], params['res2']
    weight_args = (
        params['gavg'],
        r1['conv1_w'], r1['conv1_b'], r1['gn1_g'], r1['gn1_b'],
        r1['time_w'], r1['time_b'],
        r1['conv2_w'], r1['conv2_b'], r1['gn2_g'], r1['gn2_b'],
        at['norm_g'], at['norm_b'], at['wq'], at['wk'], at['wv'],
        at['wout'], at['out_b'],
        r2['conv1_w'], r2['conv1_b'], r2['gn1_g'], r2['gn1_b'],
        r2['time_w'], r2['time_b'],
        r2['conv2_w'], r2['conv2_b'], r2['gn2_g'], r2['gn2_b'],
        params['conv_w'], params['conv_b'],
    )
    weight_bytes = sum(int(w.size) * w.dtype.itemsize for w in weight_args)

    in_specs = ([pl.BlockSpec((1, H, W, C), lambda b: (b, 0, 0, 0)),
                 pl.BlockSpec((1, 1, Tdim), lambda b: (b, 0, 0))]
                + [_bcast_spec(w.shape) for w in weight_args])

    return pl.pallas_call(
        functools.partial(_mid_block_kernel, heads=heads, dim_head=dim_head,
                          scale=scale, eps=eps),
        grid=(B,),
        in_specs=in_specs,
        out_specs=pl.BlockSpec((1, H, W, Cout), lambda b: (b, 0, 0, 0)),
        out_shape=jax.ShapeDtypeStruct((B, H, W, Cout), jnp.float32),
        scratch_shapes=[pltpu.VMEM((H + 2, W + 2, C), jnp.float32)],
        compiler_params=pltpu.CompilerParams(
            dimension_semantics=("parallel",),
            vmem_limit_bytes=_vmem_limit_bytes(H, W, C, Cout, Tdim, hidden,
                                               weight_bytes)),
    )(x_nhwc, temb3, *weight_args)


@functools.partial(jax.jit, static_argnames=("heads", "dim_head"))
def mid_block_nchw(x_nchw, t_emb, params, *, heads, dim_head):
    # PyTorch interface is NCHW; the kernel runs channels-last.  In a full
    # UNet these two transposes disappear by keeping activations NHWC.
    x = jnp.transpose(x_nchw, (0, 2, 3, 1)).astype(jnp.float32)
    y = mid_block_nhwc(x, t_emb, params, heads=heads, dim_head=dim_head)
    return jnp.transpose(y, (0, 3, 1, 2))


# ----------------------------- parameter setup --------------------------------

def init_params_torch(key, in_ch, out_ch, t_dim, heads=4, dim_head=32):
    """Random parameters laid out exactly like the reference PyTorch MidBlock."""
    keys = iter(jax.random.split(key, 32))

    def w(shape, scale=0.05):
        return scale * jax.random.normal(next(keys), shape, dtype=jnp.float32)

    def res():
        return dict(
            conv1_w=w((in_ch, in_ch, 3, 3)), conv1_b=w((in_ch,)),
            gn1_g=1.0 + w((in_ch,)), gn1_b=w((in_ch,)),
            time_w=w((in_ch, t_dim)), time_b=w((in_ch,)),
            conv2_w=w((in_ch, in_ch, 3, 3)), conv2_b=w((in_ch,)),
            gn2_g=1.0 + w((in_ch,)), gn2_b=w((in_ch,)),
        )

    hidden = heads * dim_head
    attn = dict(
        norm_g=1.0 + w((in_ch,)), norm_b=w((in_ch,)),
        qkv_w=w((hidden * 3, in_ch, 1, 1)),             # to_qkv has bias=False
        out_w=w((in_ch, hidden, 1, 1)), out_b=w((in_ch,)),
    )
    return dict(res1=res(), attn=attn, res2=res(),
                conv_w=w((out_ch, in_ch, 3, 3)), conv_b=w((out_ch,)))


def prepare_params(pt, heads, dim_head, num_groups):
    """Convert PyTorch layouts to kernel layouts: bf16 channels-last weight
    slabs, (1, C) f32 bias/affine rows, and the constant group-average matrix."""
    def conv_w(wt):              # (Cout, Cin, 3, 3) -> (3, 3*Cin, Cout) bf16
        wt = jnp.transpose(wt, (2, 3, 1, 0))            # (kh, kw, Cin, Cout)
        kh, kw, cin, cout = wt.shape
        return wt.reshape(kh, kw * cin, cout).astype(jnp.bfloat16)

    def row(v):                  # (C,) -> (1, C) f32
        return v.reshape(1, -1).astype(jnp.float32)

    def res(p):
        return dict(
            conv1_w=conv_w(p['conv1_w']), conv1_b=row(p['conv1_b']),
            gn1_g=row(p['gn1_g']), gn1_b=row(p['gn1_b']),
            time_w=jnp.transpose(p['time_w']).astype(jnp.float32),   # (Tdim, C)
            time_b=row(p['time_b']),
            conv2_w=conv_w(p['conv2_w']), conv2_b=row(p['conv2_b']),
            gn2_g=row(p['gn2_g']), gn2_b=row(p['gn2_b']),
        )

    hidden = heads * dim_head
    C = pt['attn']['norm_g'].shape[0]
    assert C % num_groups == 0
    qkv = pt['attn']['qkv_w'].reshape(3 * hidden, C)
    attn = dict(
        norm_g=row(pt['attn']['norm_g']), norm_b=row(pt['attn']['norm_b']),
        wq=jnp.transpose(qkv[:hidden]).astype(jnp.bfloat16),           # (C, hidden)
        wk=jnp.transpose(qkv[hidden:2 * hidden]).astype(jnp.bfloat16),
        wv=jnp.transpose(qkv[2 * hidden:]).astype(jnp.bfloat16),
        wout=jnp.transpose(pt['attn']['out_w'].reshape(C, hidden)
                           ).astype(jnp.bfloat16),                     # (hidden, C)
        out_b=row(pt['attn']['out_b']),
    )
    onehot = (jnp.arange(C)[:, None] // (C // num_groups) ==
              jnp.arange(num_groups)[None, :]).astype(jnp.float32)     # (C, G)
    gavg = (onehot @ onehot.T) / float(C // num_groups)                # (C, C)
    return dict(res1=res(pt['res1']), attn=attn, res2=res(pt['res2']),
                conv_w=conv_w(pt['conv_w']), conv_b=row(pt['conv_b']),
                gavg=gavg)


# ----------------------------- pure-JAX reference ------------------------------

def _ref_group_norm(x, gamma, beta, G, eps):
    B, C, H, W = x.shape
    xg = x.reshape(B, G, C // G, H, W)
    mean = xg.mean(axis=(2, 3, 4), keepdims=True)
    var = xg.var(axis=(2, 3, 4), keepdims=True)
    xn = ((xg - mean) / jnp.sqrt(var + eps)).reshape(B, C, H, W)
    return xn * gamma.reshape(1, C, 1, 1) + beta.reshape(1, C, 1, 1)


def _ref_conv3x3(x, w, b):
    y = jax.lax.conv_general_dilated(
        x, w, (1, 1), ((1, 1), (1, 1)),
        dimension_numbers=('NCHW', 'OIHW', 'NCHW'))
    return y + b.reshape(1, -1, 1, 1)


def _ref_res_block(x, temb, p, G, eps):
    h = _ref_conv3x3(x, p['conv1_w'], p['conv1_b'])
    h = jax.nn.silu(_ref_group_norm(h, p['gn1_g'], p['gn1_b'], G, eps))
    t = jax.nn.silu(temb) @ p['time_w'].T + p['time_b']
    h = h + t[:, :, None, None]
    h = _ref_conv3x3(h, p['conv2_w'], p['conv2_b'])
    h = _ref_group_norm(h, p['gn2_g'], p['gn2_b'], G, eps)
    return jax.nn.silu(h + x)


def _ref_attention(x, p, heads, dim_head, G, eps):
    B, C, H, W = x.shape
    S = H * W
    hidden = heads * dim_head
    xn = _ref_group_norm(x, p['norm_g'], p['norm_b'], G, eps)
    qkv_w = p['qkv_w'].reshape(3 * hidden, C)
    qkv = jnp.einsum('oc,bchw->bohw', qkv_w, xn)
    q, k, v = qkv[:, :hidden], qkv[:, hidden:2 * hidden], qkv[:, 2 * hidden:]

    def r(t):
        return t.reshape(B, heads, dim_head, S)

    q = r(q) * (float(dim_head) ** -0.5)
    k, v = r(k), r(v)
    sim = jnp.einsum('bhdi,bhdj->bhij', q, k)
    sim = sim - sim.max(axis=-1, keepdims=True)
    attn = jax.nn.softmax(sim, axis=-1)
    out = jnp.einsum('bhij,bhdj->bhid', attn, v)          # (B, h, S, d)
    out = jnp.transpose(out, (0, 1, 3, 2)).reshape(B, hidden, H, W)
    out_w = p['out_w'].reshape(C, hidden)
    return jnp.einsum('oc,bchw->bohw', out_w, out) + p['out_b'].reshape(1, C, 1, 1)


def ref_mid_block(x, temb, pt, heads, dim_head, G, eps=_EPS):
    out = _ref_res_block(x, temb, pt['res1'], G, eps)
    out = out + _ref_attention(out, pt['attn'], heads, dim_head, G, eps)
    out = _ref_res_block(out, temb, pt['res2'], G, eps)
    return _ref_conv3x3(out, pt['conv_w'], pt['conv_b'])


# ----------------------------------- main -------------------------------------

if __name__ == "__main__":
    # TODO(synk): dropout / attn_dropout default to 0 in the reference -> no-ops.
    # TODO(synk): this covers the MidBlock; the surrounding UNet (Down/Up blocks,
    # sinusoidal time embedding + t_proj MLP) composes the same kernels.
    B, Cin, Cout, H, W, Tdim = 2, 8, 16, 8, 8, 16
    heads, dim_head, num_groups = 4, 32, 8

    key = jax.random.PRNGKey(0)
    kx, kt, kp = jax.random.split(key, 3)
    x = jax.random.normal(kx, (B, Cin, H, W), dtype=jnp.float32)   # NCHW like PyTorch
    t_emb = jax.random.normal(kt, (B, Tdim), dtype=jnp.float32)

    pt_params = init_params_torch(kp, Cin, Cout, Tdim, heads=heads, dim_head=dim_head)
    params = prepare_params(pt_params, heads, dim_head, num_groups)

    out = mid_block_nchw(x, t_emb, params, heads=heads, dim_head=dim_head)
    out = jax.block_until_ready(out)
    assert out.shape == (B, Cout, H, W), out.shape
    assert bool(jnp.all(jnp.isfinite(out)))

    ref = jax.block_until_ready(ref_mid_block(x, t_emb, pt_params, heads, dim_head,
                                              num_groups))
    err = float(jnp.max(jnp.abs(out - ref)) / (jnp.max(jnp.abs(ref)) + 1e-6))
    assert err < 0.1, f"mismatch vs. f32 reference (rel-to-max err {err})"

    print("KERNEL_OK")
</pallas_src>

<mosaic_0001>
module attributes {stable_mosaic.version = 11 : i64} {
  func.func @_mid_block_kernel(%arg0: i32, %arg1: memref<1x8x8x8xf32, #tpu.memory_space<vmem>>, %arg2: memref<1x1x16xf32, #tpu.memory_space<vmem>>, %arg3: memref<8x8xf32, #tpu.memory_space<vmem>>, %arg4: memref<3x24x8xbf16, #tpu.memory_space<vmem>>, %arg5: memref<1x8xf32, #tpu.memory_space<vmem>>, %arg6: memref<1x8xf32, #tpu.memory_space<vmem>>, %arg7: memref<1x8xf32, #tpu.memory_space<vmem>>, %arg8: memref<16x8xf32, #tpu.memory_space<vmem>>, %arg9: memref<1x8xf32, #tpu.memory_space<vmem>>, %arg10: memref<3x24x8xbf16, #tpu.memory_space<vmem>>, %arg11: memref<1x8xf32, #tpu.memory_space<vmem>>, %arg12: memref<1x8xf32, #tpu.memory_space<vmem>>, %arg13: memref<1x8xf32, #tpu.memory_space<vmem>>, %arg14: memref<1x8xf32, #tpu.memory_space<vmem>>, %arg15: memref<1x8xf32, #tpu.memory_space<vmem>>, %arg16: memref<8x128xbf16, #tpu.memory_space<vmem>>, %arg17: memref<8x128xbf16, #tpu.memory_space<vmem>>, %arg18: memref<8x128xbf16, #tpu.memory_space<vmem>>, %arg19: memref<128x8xbf16, #tpu.memory_space<vmem>>, %arg20: memref<1x8xf32, #tpu.memory_space<vmem>>, %arg21: memref<3x24x8xbf16, #tpu.memory_space<vmem>>, %arg22: memref<1x8xf32, #tpu.memory_space<vmem>>, %arg23: memref<1x8xf32, #tpu.memory_space<vmem>>, %arg24: memref<1x8xf32, #tpu.memory_space<vmem>>, %arg25: memref<16x8xf32, #tpu.memory_space<vmem>>, %arg26: memref<1x8xf32, #tpu.memory_space<vmem>>, %arg27: memref<3x24x8xbf16, #tpu.memory_space<vmem>>, %arg28: memref<1x8xf32, #tpu.memory_space<vmem>>, %arg29: memref<1x8xf32, #tpu.memory_space<vmem>>, %arg30: memref<1x8xf32, #tpu.memory_space<vmem>>, %arg31: memref<3x24x16xbf16, #tpu.memory_space<vmem>>, %arg32: memref<1x16xf32, #tpu.memory_space<vmem>>, %arg33: memref<1x8x8x16xf32, #tpu.memory_space<vmem>>, %arg34: memref<10x10x8xf32, #tpu.memory_space<vmem>>) attributes {dimension_semantics = [#tpu.dimension_semantics<parallel>], iteration_bounds = array<i64: 2>, scalar_prefetch = 0 : i64, scratch_operands = 1 : i64, tpu.core_type = #tpu.core_type<tc>, window_params = [{transform_indices = @transform_0, window_bounds = array<i64: 1, 8, 8, 8>}, {transform_indices = @transform_1, window_bounds = array<i64: 1, 1, 16>}, {pipeline_mode = #tpu.pipeline_mode<synchronous>, transform_indices = @transform_2, window_bounds = array<i64: 8, 8>}, {pipeline_mode = #tpu.pipeline_mode<synchronous>, transform_indices = @transform_3, window_bounds = array<i64: 3, 24, 8>}, {pipeline_mode = #tpu.pipeline_mode<synchronous>, transform_indices = @transform_4, window_bounds = array<i64: 1, 8>}, {pipeline_mode = #tpu.pipeline_mode<synchronous>, transform_indices = @transform_5, window_bounds = array<i64: 1, 8>}, {pipeline_mode = #tpu.pipeline_mode<synchronous>, transform_indices = @transform_6, window_bounds = array<i64: 1, 8>}, {pipeline_mode = #tpu.pipeline_mode<synchronous>, transform_indices = @transform_7, window_bounds = array<i64: 16, 8>}, {pipeline_mode = #tpu.pipeline_mode<synchronous>, transform_indices = @transform_8, window_bounds = array<i64: 1, 8>}, {pipeline_mode = #tpu.pipeline_mode<synchronous>, transform_indices = @transform_9, window_bounds = array<i64: 3, 24, 8>}, {pipeline_mode = #tpu.pipeline_mode<synchronous>, transform_indices = @transform_10, window_bounds = array<i64: 1, 8>}, {pipeline_mode = #tpu.pipeline_mode<synchronous>, transform_indices = @transform_11, window_bounds = array<i64: 1, 8>}, {pipeline_mode = #tpu.pipeline_mode<synchronous>, transform_indices = @transform_12, window_bounds = array<i64: 1, 8>}, {pipeline_mode = #tpu.pipeline_mode<synchronous>, transform_indices = @transform_13, window_bounds = array<i64: 1, 8>}, {pipeline_mode = #tpu.pipeline_mode<synchronous>, transform_indices = @transform_14, window_bounds = array<i64: 1, 8>}, {pipeline_mode = #tpu.pipeline_mode<synchronous>, transform_indices = @transform_15, window_bounds = array<i64: 8, 128>}, {pipeline_mode = #tpu.pipeline_mode<synchronous>, transform_indices = @transform_16, window_bounds = array<i64: 8, 128>}, {pipeline_mode = #tpu.pipeline_mode<synchronous>, transform_indices = @transform_17, window_bounds = array<i64: 8, 128>}, {pipeline_mode = #tpu.pipeline_mode<synchronous>, transform_indices = @transform_18, window_bounds = array<i64: 128, 8>}, {pipeline_mode = #tpu.pipeline_mode<synchronous>, transform_indices = @transform_19, window_bounds = array<i64: 1, 8>}, {pipeline_mode = #tpu.pipeline_mode<synchronous>, transform_indices = @transform_20, window_bounds = array<i64: 3, 24, 8>}, {pipeline_mode = #tpu.pipeline_mode<synchronous>, transform_indices = @transform_21, window_bounds = array<i64: 1, 8>}, {pipeline_mode = #tpu.pipeline_mode<synchronous>, transform_indices = @transform_22, window_bounds = array<i64: 1, 8>}, {pipeline_mode = #tpu.pipeline_mode<synchronous>, transform_indices = @transform_23, window_bounds = array<i64: 1, 8>}, {pipeline_mode = #tpu.pipeline_mode<synchronous>, transform_indices = @transform_24, window_bounds = array<i64: 16, 8>}, {pipeline_mode = #tpu.pipeline_mode<synchronous>, transform_indices = @transform_25, window_bounds = array<i64: 1, 8>}, {pipeline_mode = #tpu.pipeline_mode<synchronous>, transform_indices = @transform_26, window_bounds = array<i64: 3, 24, 8>}, {pipeline_mode = #tpu.pipeline_mode<synchronous>, transform_indices = @transform_27, window_bounds = array<i64: 1, 8>}, {pipeline_mode = #tpu.pipeline_mode<synchronous>, transform_indices = @transform_28, window_bounds = array<i64: 1, 8>}, {pipeline_mode = #tpu.pipeline_mode<synchronous>, transform_indices = @transform_29, window_bounds = array<i64: 1, 8>}, {pipeline_mode = #tpu.pipeline_mode<synchronous>, transform_indices = @transform_30, window_bounds = array<i64: 3, 24, 16>}, {pipeline_mode = #tpu.pipeline_mode<synchronous>, transform_indices = @transform_31, window_bounds = array<i64: 1, 16>}, {transform_indices = @transform_32, window_bounds = array<i64: 1, 8, 8, 16>}]} {
    %cst = arith.constant 0.000000e+00 : f32
    %0 = vector.broadcast %cst : f32 to vector<1x10x8xf32>
    %c0 = arith.constant 0 : index
    %c0_0 = arith.constant 0 : index
    %c0_1 = arith.constant 0 : index
    %1 = vector.load %arg34[%c0, %c0_0, %c0_1] : memref<10x10x8xf32, #tpu.memory_space<vmem>>, vector<1x10x8xf32>
    tpu.vector_store %arg34[%c0, %c0_0, %c0_1], %0 {strides = array<i32>} : memref<10x10x8xf32, #tpu.memory_space<vmem>>, vector<1x10x8xf32>,
    %cst_2 = arith.constant 0.000000e+00 : f32
    %2 = vector.broadcast %cst_2 : f32 to vector<1x10x8xf32>
    %c9 = arith.constant 9 : index
    %c0_3 = arith.constant 0 : index
    %c0_4 = arith.constant 0 : index
    %3 = vector.load %arg34[%c9, %c0_3, %c0_4] : memref<10x10x8xf32, #tpu.memory_space<vmem>>, vector<1x10x8xf32>
    tpu.vector_store %arg34[%c9, %c0_3, %c0_4], %2 {strides = array<i32>} : memref<10x10x8xf32, #tpu.memory_space<vmem>>, vector<1x10x8xf32>,
    %cst_5 = arith.constant 0.000000e+00 : f32
    %4 = vector.broadcast %cst_5 : f32 to vector<10x1x8xf32>
    %c0_6 = arith.constant 0 : index
    %c0_7 = arith.constant 0 : index
    %c0_8 = arith.constant 0 : index
    %5 = vector.load %arg34[%c0_6, %c0_7, %c0_8] : memref<10x10x8xf32, #tpu.memory_space<vmem>>, vector<10x1x8xf32>
    tpu.vector_store %arg34[%c0_6, %c0_7, %c0_8], %4 {strides = array<i32>} : memref<10x10x8xf32, #tpu.memory_space<vmem>>, vector<10x1x8xf32>,
    %cst_9 = arith.constant 0.000000e+00 : f32
    %6 = vector.broadcast %cst_9 : f32 to vector<10x1x8xf32>
    %c0_10 = arith.constant 0 : index
    %c9_11 = arith.constant 9 : index
    %c0_12 = arith.constant 0 : index
    %7 = vector.load %arg34[%c0_10, %c9_11, %c0_12] : memref<10x10x8xf32, #tpu.memory_space<vmem>>, vector<10x1x8xf32>
    tpu.vector_store %arg34[%c0_10, %c9_11, %c0_12], %6 {strides = array<i32>} : memref<10x10x8xf32, #tpu.memory_space<vmem>>, vector<10x1x8xf32>,
    %c0_13 = arith.constant 0 : index
    %c0_14 = arith.constant 0 : index
    %c0_15 = arith.constant 0 : index
    %c0_16 = arith.constant 0 : index
    %8 = vector.load %arg1[%c0_13, %c0_14, %c0_15, %c0_16] : memref<1x8x8x8xf32, #tpu.memory_space<vmem>>, vector<1x8x8x8xf32>
    %9 = vector.shape_cast %8 : vector<1x8x8x8xf32> to vector<8x8x8xf32>
    %10 = vector.shape_cast %9 : vector<8x8x8xf32> to vector<64x8xf32>
    %c0_17 = arith.constant 0 : index
    %c0_18 = arith.constant 0 : index
    %11 = vector.load %arg3[%c0_17, %c0_18] : memref<8x8xf32, #tpu.memory_space<vmem>>, vector<8x8xf32>
    %c0_19 = arith.constant 0 : index
    %c0_20 = arith.constant 0 : index
    %c0_21 = arith.constant 0 : index
    %12 = vector.load %arg2[%c0_19, %c0_20, %c0_21] : memref<1x1x16xf32, #tpu.memory_space<vmem>>, vector<1x1x16xf32>
    %13 = vector.shape_cast %12 : vector<1x1x16xf32> to vector<1x16xf32>
    %14 = arith.negf %13 : vector<1x16xf32>
    %15 = math.exp %14 : vector<1x16xf32>
    %cst_22 = arith.constant 1.000000e+00 : f32
    %16 = vector.broadcast %cst_22 : f32 to vector<1x16xf32>
    %17 = arith.addf %16, %15 : vector<1x16xf32>
    %18 = arith.divf %16, %17 : vector<1x16xf32>
    %19 = arith.mulf %13, %18 : vector<1x16xf32>
    %c0_23 = arith.constant 0 : index
    %c0_24 = arith.constant 0 : index
    %20 = vector.load %arg8[%c0_23, %c0_24] : memref<16x8xf32, #tpu.memory_space<vmem>>, vector<16x8xf32>
    %cst_25 = arith.constant dense<0.000000e+00> : vector<1x8xf32>
    %21 = tpu.matmul %19, %20, %cst_25 {dimension_numbers = #tpu.dot_dimension_numbers<[1], [0], [0], [1], [0, 0, 1, 1], [], []>} : vector<1x16xf32>, vector<16x8xf32>, vector<1x8xf32> -> vector<1x8xf32>
    %c0_26 = arith.constant 0 : index
    %c0_27 = arith.constant 0 : index
    %22 = vector.load %arg9[%c0_26, %c0_27] : memref<1x8xf32, #tpu.memory_space<vmem>>, vector<1x8xf32>
    %23 = arith.addf %21, %22 : vector<1x8xf32>
    %c0_28 = arith.constant 0 : index
    %c0_29 = arith.constant 0 : index
    %24 = vector.load %arg25[%c0_28, %c0_29] : memref<16x8xf32, #tpu.memory_space<vmem>>, vector<16x8xf32>
    %cst_30 = arith.constant dense<0.000000e+00> : vector<1x8xf32>
    %25 = tpu.matmul %19, %24, %cst_30 {dimension_numbers = #tpu.dot_dimension_numbers<[1], [0], [0], [1], [0, 0, 1, 1], [], []>} : vector<1x16xf32>, vector<16x8xf32>, vector<1x8xf32> -> vector<1x8xf32>
    %c0_31 = arith.constant 0 : index
    %c0_32 = arith.constant 0 : index
    %26 = vector.load %arg26[%c0_31, %c0_32] : memref<1x8xf32, #tpu.memory_space<vmem>>, vector<1x8xf32>
    %27 = arith.addf %25, %26 : vector<1x8xf32>
    %c0_33 = arith.constant 0 : index
    %c0_34 = arith.constant 0 : index
    %28 = vector.load %arg5[%c0_33, %c0_34] : memref<1x8xf32, #tpu.memory_space<vmem>>, vector<1x8xf32>
    %c0_35 = arith.constant 0 : index
    %c0_36 = arith.constant 0 : index
    %29 = vector.load %arg6[%c0_35, %c0_36] : memref<1x8xf32, #tpu.memory_space<vmem>>, vector<1x8xf32>
    %c0_37 = arith.constant 0 : index
    %c0_38 = arith.constant 0 : index
    %30 = vector.load %arg7[%c0_37, %c0_38] : memref<1x8xf32, #tpu.memory_space<vmem>>, vector<1x8xf32>
    %c0_39 = arith.constant 0 : index
    %c0_40 = arith.constant 0 : index
    %31 = vector.load %arg11[%c0_39, %c0_40] : memref<1x8xf32, #tpu.memory_space<vmem>>, vector<1x8xf32>
    %c0_41 = arith.constant 0 : index
    %c0_42 = arith.constant 0 : index
    %32 = vector.load %arg12[%c0_41, %c0_42] : memref<1x8xf32, #tpu.memory_space<vmem>>, vector<1x8xf32>
    %c0_43 = arith.constant 0 : index
    %c0_44 = arith.constant 0 : index
    %33 = vector.load %arg13[%c0_43, %c0_44] : memref<1x8xf32, #tpu.memory_space<vmem>>, vector<1x8xf32>
    %34 = vector.shape_cast %10 : vector<64x8xf32> to vector<8x8x8xf32>
    %c1 = arith.constant 1 : index
    %c1_45 = arith.constant 1 : index
    %c0_46 = arith.constant 0 : index
    %35 = vector.load %arg34[%c1, %c1_45, %c0_46] : memref<10x10x8xf32, #tpu.memory_space<vmem>>, vector<8x8x8xf32>
    tpu.vector_store %arg34[%c1, %c1_45, %c0_46], %34 {strides = array<i32>} : memref<10x10x8xf32, #tpu.memory_space<vmem>>, vector<8x8x8xf32>,
    %cst_47 = arith.constant 0.000000e+00 : f32
    %36 = vector.broadcast %cst_47 : f32 to vector<64x8xf32>
    %c0_48 = arith.constant 0 : index
    %c0_49 = arith.constant 0 : index
    %c0_50 = arith.constant 0 : index
    %37 = vector.load %arg34[%c0_48, %c0_49, %c0_50] : memref<10x10x8xf32, #tpu.memory_space<vmem>>, vector<8x8x8xf32>
    %c0_51 = arith.constant 0 : index
    %c1_52 = arith.constant 1 : index
    %c0_53 = arith.constant 0 : index
    %38 = vector.load %arg34[%c0_51, %c1_52, %c0_53] : memref<10x10x8xf32, #tpu.memory_space<vmem>>, vector<8x8x8xf32>
    %c0_54 = arith.constant 0 : index
    %c2 = arith.constant 2 : index
    %c0_55 = arith.constant 0 : index
    %39 = vector.load %arg34[%c0_54, %c2, %c0_55] : memref<10x10x8xf32, #tpu.memory_space<vmem>>, vector<8x8x8xf32>
    %40 = tpu.concatenate %37, %38, %39 in 2 : vector<8x8x8xf32>, vector<8x8x8xf32>, vector<8x8x8xf32> -> vector<8x8x24xf32>
    %41 = vector.shape_cast %40 : vector<8x8x24xf32> to vector<64x24xf32>
    %42 = arith.truncf %41 : vector<64x24xf32> to vector<64x24xbf16>
    %c0_56 = arith.constant 0 : index
    %c0_57 = arith.constant 0 : index
    %c0_58 = arith.constant 0 : index
    %43 = vector.load %arg4[%c0_56, %c0_57, %c0_58] : memref<3x24x8xbf16, #tpu.memory_space<vmem>>, vector<1x24x8xbf16>
    %44 = vector.shape_cast %43 : vector<1x24x8xbf16> to vector<24x8xbf16>
    %cst_59 = arith.constant dense<0.000000e+00> : vector<64x8xf32>
    %45 = tpu.matmul %42, %44, %cst_59 {dimension_numbers = #tpu.dot_dimension_numbers<[1], [0], [0], [1], [0, 0, 1, 1], [], []>} : vector<64x24xbf16>, vector<24x8xbf16>, vector<64x8xf32> -> vector<64x8xf32>
    %46 = arith.addf %36, %45 : vector<64x8xf32>
    %c1_60 = arith.constant 1 : index
    %c0_61 = arith.constant 0 : index
    %c0_62 = arith.constant 0 : index
    %47 = vector.load %arg34[%c1_60, %c0_61, %c0_62] : memref<10x10x8xf32, #tpu.memory_space<vmem>>, vector<8x8x8xf32>
    %c1_63 = arith.constant 1 : index
    %c1_64 = arith.constant 1 : index
    %c0_65 = arith.constant 0 : index
    %48 = vector.load %arg34[%c1_63, %c1_64, %c0_65] : memref<10x10x8xf32, #tpu.memory_space<vmem>>, vector<8x8x8xf32>
    %c1_66 = arith.constant 1 : index
    %c2_67 = arith.constant 2 : index
    %c0_68 = arith.constant 0 : index
    %49 = vector.load %arg34[%c1_66, %c2_67, %c0_68] : memref<10x10x8xf32, #tpu.memory_space<vmem>>, vector<8x8x8xf32>
    %50 = tpu.concatenate %47, %48, %49 in 2 : vector<8x8x8xf32>, vector<8x8x8xf32>, vector<8x8x8xf32> -> vector<8x8x24xf32>
    %51 = vector.shape_cast %50 : vector<8x8x24xf32> to vector<64x24xf32>
    %52 = arith.truncf %51 : vector<64x24xf32> to vector<64x24xbf16>
    %c1_69 = arith.constant 1 : index
    %c0_70 = arith.constant 0 : index
    %c0_71 = arith.constant 0 : index
    %53 = vector.load %arg4[%c1_69, %c0_70, %c0_71] : memref<3x24x8xbf16, #tpu.memory_space<vmem>>, vector<1x24x8xbf16>
    %54 = vector.shape_cast %53 : vector<1x24x8xbf16> to vector<24x8xbf16>
    %cst_72 = arith.constant dense<0.000000e+00> : vector<64x8xf32>
    %55 = tpu.matmul %52, %54, %cst_72 {dimension_numbers = #tpu.dot_dimension_numbers<[1], [0], [0], [1], [0, 0, 1, 1], [], []>} : vector<64x24xbf16>, vector<24x8xbf16>, vector<64x8xf32> -> vector<64x8xf32>
    %56 = arith.addf %46, %55 : vector<64x8xf32>
    %c2_73 = arith.constant 2 : index
    %c0_74 = arith.constant 0 : index
    %c0_75 = arith.constant 0 : index
    %57 = vector.load %arg34[%c2_73, %c0_74, %c0_75] : memref<10x10x8xf32, #tpu.memory_space<vmem>>, vector<8x8x8xf32>
    %c2_76 = arith.constant 2 : index
    %c1_77 = arith.constant 1 : index
    %c0_78 = arith.constant 0 : index
    %58 = vector.load %arg34[%c2_76, %c1_77, %c0_78] : memref<10x10x8xf32, #tpu.memory_space<vmem>>, vector<8x8x8xf32>
    %c2_79 = arith.constant 2 : index
    %c2_80 = arith.constant 2 : index
    %c0_81 = arith.constant 0 : index
    %59 = vector.load %arg34[%c2_79, %c2_80, %c0_81] : memref<10x10x8xf32, #tpu.memory_space<vmem>>, vector<8x8x8xf32>
    %60 = tpu.concatenate %57, %58, %59 in 2 : vector<8x8x8xf32>, vector<8x8x8xf32>, vector<8x8x8xf32> -> vector<8x8x24xf32>
    %61 = vector.shape_cast %60 : vector<8x8x24xf32> to vector<64x24xf32>
    %62 = arith.truncf %61 : vector<64x24xf32> to vector<64x24xbf16>
    %c2_82 = arith.constant 2 : index
    %c0_83 = arith.constant 0 : index
    %c0_84 = arith.constant 0 : index
    %63 = vector.load %arg4[%c2_82, %c0_83, %c0_84] : memref<3x24x8xbf16, #tpu.memory_space<vmem>>, vector<1x24x8xbf16>
    %64 = vector.shape_cast %63 : vector<1x24x8xbf16> to vector<24x8xbf16>
    %cst_85 = arith.constant dense<0.000000e+00> : vector<64x8xf32>
    %65 = tpu.matmul %62, %64, %cst_85 {dimension_numbers = #tpu.dot_dimension_numbers<[1], [0], [0], [1], [0, 0, 1, 1], [], []>} : vector<64x24xbf16>, vector<24x8xbf16>, vector<64x8xf32> -> vector<64x8xf32>
    %66 = arith.addf %56, %65 : vector<64x8xf32>
    %67 = vector.broadcast %28 : vector<1x8xf32> to vector<64x8xf32>
    %68 = arith.addf %66, %67 : vector<64x8xf32>
    %cst_86 = arith.constant dense<0.000000e+00> : vector<8xf32>
    %69 = vector.multi_reduction <add>, %68, %cst_86 [0] : vector<64x8xf32> to vector<8xf32>
    %70 = vector.shape_cast %69 : vector<8xf32> to vector<1x8xf32>
    %cst_87 = arith.constant 6.400000e+01 : f32
    %71 = vector.broadcast %cst_87 : f32 to vector<1x8xf32>
    %72 = arith.divf %70, %71 : vector<1x8xf32>
    %73 = arith.mulf %68, %68 : vector<64x8xf32>
    %cst_88 = arith.constant dense<0.000000e+00> : vector<8xf32>
    %74 = vector.multi_reduction <add>, %73, %cst_88 [0] : vector<64x8xf32> to vector<8xf32>
    %75 = vector.shape_cast %74 : vector<8xf32> to vector<1x8xf32>
    %cst_89 = arith.constant 6.400000e+01 : f32
    %76 = vector.broadcast %cst_89 : f32 to vector<1x8xf32>
    %77 = arith.divf %75, %76 : vector<1x8xf32>
    %cst_90 = arith.constant dense<0.000000e+00> : vector<1x8xf32>
    %78 = tpu.matmul %72, %11, %cst_90 {dimension_numbers = #tpu.dot_dimension_numbers<[1], [0], [0], [1], [0, 0, 1, 1], [], []>} : vector<1x8xf32>, vector<8x8xf32>, vector<1x8xf32> -> vector<1x8xf32>
    %cst_91 = arith.constant dense<0.000000e+00> : vector<1x8xf32>
    %79 = tpu.matmul %77, %11, %cst_91 {dimension_numbers = #tpu.dot_dimension_numbers<[1], [0], [0], [1], [0, 0, 1, 1], [], []>} : vector<1x8xf32>, vector<8x8xf32>, vector<1x8xf32> -> vector<1x8xf32>
    %80 = arith.mulf %78, %78 : vector<1x8xf32>
    %81 = arith.subf %79, %80 : vector<1x8xf32>
    %cst_92 = arith.constant 0.000000e+00 : f32
    %82 = vector.broadcast %cst_92 : f32 to vector<1x8xf32>
    %83 = arith.maximumf %81, %82 : vector<1x8xf32>
    %cst_93 = arith.constant 9.99999974E-6 : f32
    %84 = vector.broadcast %cst_93 : f32 to vector<1x8xf32>
    %85 = arith.addf %83, %84 : vector<1x8xf32>
    %86 = math.rsqrt %85 : vector<1x8xf32>
    %87 = vector.broadcast %78 : vector<1x8xf32> to vector<64x8xf32>
    %88 = arith.subf %68, %87 : vector<64x8xf32>
    %89 = arith.mulf %86, %29 : vector<1x8xf32>
    %90 = vector.broadcast %89 : vector<1x8xf32> to vector<64x8xf32>
    %91 = arith.mulf %88, %90 : vector<64x8xf32>
    %92 = vector.broadcast %30 : vector<1x8xf32> to vector<64x8xf32>
    %93 = arith.addf %91, %92 : vector<64x8xf32>
    %94 = arith.negf %93 : vector<64x8xf32>
    %95 = math.exp %94 : vector<64x8xf32>
    %cst_94 = arith.constant 1.000000e+00 : f32
    %96 = vector.broadcast %cst_94 : f32 to vector<64x8xf32>
    %97 = arith.addf %96, %95 : vector<64x8xf32>
    %98 = arith.divf %96, %97 : vector<64x8xf32>
    %99 = arith.mulf %93, %98 : vector<64x8xf32>
    %100 = vector.broadcast %23 : vector<1x8xf32> to vector<64x8xf32>
    %101 = arith.addf %99, %100 : vector<64x8xf32>
    %102 = vector.shape_cast %101 : vector<64x8xf32> to vector<8x8x8xf32>
    %c1_95 = arith.constant 1 : index
    %c1_96 = arith.constant 1 : index
    %c0_97 = arith.constant 0 : index
    %103 = vector.load %arg34[%c1_95, %c1_96, %c0_97] : memref<10x10x8xf32, #tpu.memory_space<vmem>>, vector<8x8x8xf32>
    tpu.vector_store %arg34[%c1_95, %c1_96, %c0_97], %102 {strides = array<i32>} : memref<10x10x8xf32, #tpu.memory_space<vmem>>, vector<8x8x8xf32>,
    %cst_98 = arith.constant 0.000000e+00 : f32
    %104 = vector.broadcast %cst_98 : f32 to vector<64x8xf32>
    %c0_99 = arith.constant 0 : index
    %c0_100 = arith.constant 0 : index
    %c0_101 = arith.constant 0 : index
    %105 = vector.load %arg34[%c0_99, %c0_100, %c0_101] : memref<10x10x8xf32, #tpu.memory_space<vmem>>, vector<8x8x8xf32>
    %c0_102 = arith.constant 0 : index
    %c1_103 = arith.constant 1 : index
    %c0_104 = arith.constant 0 : index
    %106 = vector.load %arg34[%c0_102, %c1_103, %c0_104] : memref<10x10x8xf32, #tpu.memory_space<vmem>>, vector<8x8x8xf32>
    %c0_105 = arith.constant 0 : index
    %c2_106 = arith.constant 2 : index
    %c0_107 = arith.constant 0 : index
    %107 = vector.load %arg34[%c0_105, %c2_106, %c0_107] : memref<10x10x8xf32, #tpu.memory_space<vmem>>, vector<8x8x8xf32>
    %108 = tpu.concatenate %105, %106, %107 in 2 : vector<8x8x8xf32>, vector<8x8x8xf32>, vector<8x8x8xf32> -> vector<8x8x24xf32>
    %109 = vector.shape_cast %108 : vector<8x8x24xf32> to vector<64x24xf32>
    %110 = arith.truncf %109 : vector<64x24xf32> to vector<64x24xbf16>
    %c0_108 = arith.constant 0 : index
    %c0_109 = arith.constant 0 : index
    %c0_110 = arith.constant 0 : index
    %111 = vector.load %arg10[%c0_108, %c0_109, %c0_110] : memref<3x24x8xbf16, #tpu.memory_space<vmem>>, vector<1x24x8xbf16>
    %112 = vector.shape_cast %111 : vector<1x24x8xbf16> to vector<24x8xbf16>
    %cst_111 = arith.constant dense<0.000000e+00> : vector<64x8xf32>
    %113 = tpu.matmul %110, %112, %cst_111 {dimension_numbers = #tpu.dot_dimension_numbers<[1], [0], [0], [1], [0, 0, 1, 1], [], []>} : vector<64x24xbf16>, vector<24x8xbf16>, vector<64x8xf32> -> vector<64x8xf32>
    %114 = arith.addf %104, %113 : vector<64x8xf32>
    %c1_112 = arith.constant 1 : index
    %c0_113 = arith.constant 0 : index
    %c0_114 = arith.constant 0 : index
    %115 = vector.load %arg34[%c1_112, %c0_113, %c0_114] : memref<10x10x8xf32, #tpu.memory_space<vmem>>, vector<8x8x8xf32>
    %c1_115 = arith.constant 1 : index
    %c1_116 = arith.constant 1 : index
    %c0_117 = arith.constant 0 : index
    %116 = vector.load %arg34[%c1_115, %c1_116, %c0_117] : memref<10x10x8xf32, #tpu.memory_space<vmem>>, vector<8x8x8xf32>
    %c1_118 = arith.constant 1 : index
    %c2_119 = arith.constant 2 : index
    %c0_120 = arith.constant 0 : index
    %117 = vector.load %arg34[%c1_118, %c2_119, %c0_120] : memref<10x10x8xf32, #tpu.memory_space<vmem>>, vector<8x8x8xf32>
    %118 = tpu.concatenate %115, %116, %117 in 2 : vector<8x8x8xf32>, vector<8x8x8xf32>, vector<8x8x8xf32> -> vector<8x8x24xf32>
    %119 = vector.shape_cast %118 : vector<8x8x24xf32> to vector<64x24xf32>
    %120 = arith.truncf %119 : vector<64x24xf32> to vector<64x24xbf16>
    %c1_121 = arith.constant 1 : index
    %c0_122 = arith.constant 0 : index
    %c0_123 = arith.constant 0 : index
    %121 = vector.load %arg10[%c1_121, %c0_122, %c0_123] : memref<3x24x8xbf16, #tpu.memory_space<vmem>>, vector<1x24x8xbf16>
    %122 = vector.shape_cast %121 : vector<1x24x8xbf16> to vector<24x8xbf16>
    %cst_124 = arith.constant dense<0.000000e+00> : vector<64x8xf32>
    %123 = tpu.matmul %120, %122, %cst_124 {dimension_numbers = #tpu.dot_dimension_numbers<[1], [0], [0], [1], [0, 0, 1, 1], [], []>} : vector<64x24xbf16>, vector<24x8xbf16>, vector<64x8xf32> -> vector<64x8xf32>
    %124 = arith.addf %114, %123 : vector<64x8xf32>
    %c2_125 = arith.constant 2 : index
    %c0_126 = arith.constant 0 : index
    %c0_127 = arith.constant 0 : index
    %125 = vector.load %arg34[%c2_125, %c0_126, %c0_127] : memref<10x10x8xf32, #tpu.memory_space<vmem>>, vector<8x8x8xf32>
    %c2_128 = arith.constant 2 : index
    %c1_129 = arith.constant 1 : index
    %c0_130 = arith.constant 0 : index
    %126 = vector.load %arg34[%c2_128, %c1_129, %c0_130] : memref<10x10x8xf32, #tpu.memory_space<vmem>>, vector<8x8x8xf32>
    %c2_131 = arith.constant 2 : index
    %c2_132 = arith.constant 2 : index
    %c0_133 = arith.constant 0 : index
    %127 = vector.load %arg34[%c2_131, %c2_132, %c0_133] : memref<10x10x8xf32, #tpu.memory_space<vmem>>, vector<8x8x8xf32>
    %128 = tpu.concatenate %125, %126, %127 in 2 : vector<8x8x8xf32>, vector<8x8x8xf32>, vector<8x8x8xf32> -> vector<8x8x24xf32>
    %129 = vector.shape_cast %128 : vector<8x8x24xf32> to vector<64x24xf32>
    %130 = arith.truncf %129 : vector<64x24xf32> to vector<64x24xbf16>
    %c2_134 = arith.constant 2 : index
    %c0_135 = arith.constant 0 : index
    %c0_136 = arith.constant 0 : index
    %131 = vector.load %arg10[%c2_134, %c0_135, %c0_136] : memref<3x24x8xbf16, #tpu.memory_space<vmem>>, vector<1x24x8xbf16>
    %132 = vector.shape_cast %131 : vector<1x24x8xbf16> to vector<24x8xbf16>
    %cst_137 = arith.constant dense<0.000000e+00> : vector<64x8xf32>
    %133 = tpu.matmul %130, %132, %cst_137 {dimension_numbers = #tpu.dot_dimension_numbers<[1], [0], [0], [1], [0, 0, 1, 1], [], []>} : vector<64x24xbf16>, vector<24x8xbf16>, vector<64x8xf32> -> vector<64x8xf32>
    %134 = arith.addf %124, %133 : vector<64x8xf32>
    %135 = vector.broadcast %31 : vector<1x8xf32> to vector<64x8xf32>
    %136 = arith.addf %134, %135 : vector<64x8xf32>
    %cst_138 = arith.constant dense<0.000000e+00> : vector<8xf32>
    %137 = vector.multi_reduction <add>, %136, %cst_138 [0] : vector<64x8xf32> to vector<8xf32>
    %138 = vector.shape_cast %137 : vector<8xf32> to vector<1x8xf32>
    %cst_139 = arith.constant 6.400000e+01 : f32
    %139 = vector.broadcast %cst_139 : f32 to vector<1x8xf32>
    %140 = arith.divf %138, %139 : vector<1x8xf32>
    %141 = arith.mulf %136, %136 : vector<64x8xf32>
    %cst_140 = arith.constant dense<0.000000e+00> : vector<8xf32>
    %142 = vector.multi_reduction <add>, %141, %cst_140 [0] : vector<64x8xf32> to vector<8xf32>
    %143 = vector.shape_cast %142 : vector<8xf32> to vector<1x8xf32>
    %cst_141 = arith.constant 6.400000e+01 : f32
    %144 = vector.broadcast %cst_141 : f32 to vector<1x8xf32>
    %145 = arith.divf %143, %144 : vector<1x8xf32>
    %cst_142 = arith.constant dense<0.000000e+00> : vector<1x8xf32>
    %146 = tpu.matmul %140, %11, %cst_142 {dimension_numbers = #tpu.dot_dimension_numbers<[1], [0], [0], [1], [0, 0, 1, 1], [], []>} : vector<1x8xf32>, vector<8x8xf32>, vector<1x8xf32> -> vector<1x8xf32>
    %cst_143 = arith.constant dense<0.000000e+00> : vector<1x8xf32>
    %147 = tpu.matmul %145, %11, %cst_143 {dimension_numbers = #tpu.dot_dimension_numbers<[1], [0], [0], [1], [0, 0, 1, 1], [], []>} : vector<1x8xf32>, vector<8x8xf32>, vector<1x8xf32> -> vector<1x8xf32>
    %148 = arith.mulf %146, %146 : vector<1x8xf32>
    %149 = arith.subf %147, %148 : vector<1x8xf32>
    %cst_144 = arith.constant 0.000000e+00 : f32
    %150 = vector.broadcast %cst_144 : f32 to vector<1x8xf32>
    %151 = arith.maximumf %149, %150 : vector<1x8xf32>
    %cst_145 = arith.constant 9.99999974E-6 : f32
    %152 = vector.broadcast %cst_145 : f32 to vector<1x8xf32>
    %153 = arith.addf %151, %152 : vector<1x8xf32>
    %154 = math.rsqrt %153 : vector<1x8xf32>
    %155 = vector.broadcast %146 : vector<1x8xf32> to vector<64x8xf32>
    %156 = arith.subf %136, %155 : vector<64x8xf32>
    %157 = arith.mulf %154, %32 : vector<1x8xf32>
    %158 = vector.broadcast %157 : vector<1x8xf32> to vector<64x8xf32>
    %159 = arith.mulf %156, %158 : vector<64x8xf32>
    %160 = vector.broadcast %33 : vector<1x8xf32> to vector<64x8xf32>
    %161 = arith.addf %159, %160 : vector<64x8xf32>
    %162 = arith.addf %161, %10 : vector<64x8xf32>
    %163 = arith.negf %162 : vector<64x8xf32>
    %164 = math.exp %163 : vector<64x8xf32>
    %cst_146 = arith.constant 1.000000e+00 : f32
    %165 = vector.broadcast %cst_146 : f32 to vector<64x8xf32>
    %166 = arith.addf %165, %164 : vector<64x8xf32>
    %167 = arith.divf %165, %166 : vector<64x8xf32>
    %168 = arith.mulf %162, %167 : vector<64x8xf32>
    %c0_147 = arith.constant 0 : index
    %c0_148 = arith.constant 0 : index
    %169 = vector.load %arg14[%c0_147, %c0_148] : memref<1x8xf32, #tpu.memory_space<vmem>>, vector<1x8xf32>
    %c0_149 = arith.constant 0 : index
    %c0_150 = arith.constant 0 : index
    %170 = vector.load %arg15[%c0_149, %c0_150] : memref<1x8xf32, #tpu.memory_space<vmem>>, vector<1x8xf32>
    %c0_151 = arith.constant 0 : index
    %c0_152 = arith.constant 0 : index
    %171 = vector.load %arg20[%c0_151, %c0_152] : memref<1x8xf32, #tpu.memory_space<vmem>>, vector<1x8xf32>
    %cst_153 = arith.constant dense<0.000000e+00> : vector<8xf32>
    %172 = vector.multi_reduction <add>, %168, %cst_153 [0] : vector<64x8xf32> to vector<8xf32>
    %173 = vector.shape_cast %172 : vector<8xf32> to vector<1x8xf32>
    %cst_154 = arith.constant 6.400000e+01 : f32
    %174 = vector.broadcast %cst_154 : f32 to vector<1x8xf32>
    %175 = arith.divf %173, %174 : vector<1x8xf32>
    %176 = arith.mulf %168, %168 : vector<64x8xf32>
    %cst_155 = arith.constant dense<0.000000e+00> : vector<8xf32>
    %177 = vector.multi_reduction <add>, %176, %cst_155 [0] : vector<64x8xf32> to vector<8xf32>
    %178 = vector.shape_cast %177 : vector<8xf32> to vector<1x8xf32>
    %cst_156 = arith.constant 6.400000e+01 : f32
    %179 = vector.broadcast %cst_156 : f32 to vector<1x8xf32>
    %180 = arith.divf %178, %179 : vector<1x8xf32>
    %cst_157 = arith.constant dense<0.000000e+00> : vector<1x8xf32>
    %181 = tpu.matmul %175, %11, %cst_157 {dimension_numbers = #tpu.dot_dimension_numbers<[1], [0], [0], [1], [0, 0, 1, 1], [], []>} : vector<1x8xf32>, vector<8x8xf32>, vector<1x8xf32> -> vector<1x8xf32>
    %cst_158 = arith.constant dense<0.000000e+00> : vector<1x8xf32>
    %182 = tpu.matmul %180, %11, %cst_158 {dimension_numbers = #tpu.dot_dimension_numbers<[1], [0], [0], [1], [0, 0, 1, 1], [], []>} : vector<1x8xf32>, vector<8x8xf32>, vector<1x8xf32> -> vector<1x8xf32>
    %183 = arith.mulf %181, %181 : vector<1x8xf32>
    %184 = arith.subf %182, %183 : vector<1x8xf32>
    %cst_159 = arith.constant 0.000000e+00 : f32
    %185 = vector.broadcast %cst_159 : f32 to vector<1x8xf32>
    %186 = arith.maximumf %184, %185 : vector<1x8xf32>
    %cst_160 = arith.constant 9.99999974E-6 : f32
    %187 = vector.broadcast %cst_160 : f32 to vector<1x8xf32>
    %188 = arith.addf %186, %187 : vector<1x8xf32>
    %189 = math.rsqrt %188 : vector<1x8xf32>
    %190 = vector.broadcast %181 : vector<1x8xf32> to vector<64x8xf32>
    %191 = arith.subf %168, %190 : vector<64x8xf32>
    %192 = arith.mulf %189, %169 : vector<1x8xf32>
    %193 = vector.broadcast %192 : vector<1x8xf32> to vector<64x8xf32>
    %194 = arith.mulf %191, %193 : vector<64x8xf32>
    %195 = vector.broadcast %170 : vector<1x8xf32> to vector<64x8xf32>
    %196 = arith.addf %194, %195 : vector<64x8xf32>
    %197 = arith.truncf %196 : vector<64x8xf32> to vector<64x8xbf16>
    %c0_161 = arith.constant 0 : index
    %c0_162 = arith.constant 0 : index
    %198 = vector.load %arg16[%c0_161, %c0_162] : memref<8x128xbf16, #tpu.memory_space<vmem>>, vector<8x128xbf16>
    %cst_163 = arith.constant dense<0.000000e+00> : vector<64x128xf32>
    %199 = tpu.matmul %197, %198, %cst_163 {dimension_numbers = #tpu.dot_dimension_numbers<[1], [0], [0], [1], [0, 0, 1, 1], [], []>} : vector<64x8xbf16>, vector<8x128xbf16>, vector<64x128xf32> -> vector<64x128xf32>
    %c0_164 = arith.constant 0 : index
    %c0_165 = arith.constant 0 : index
    %200 = vector.load %arg17[%c0_164, %c0_165] : memref<8x128xbf16, #tpu.memory_space<vmem>>, vector<8x128xbf16>
    %cst_166 = arith.constant dense<0.000000e+00> : vector<64x128xf32>
    %201 = tpu.matmul %197, %200, %cst_166 {dimension_numbers = #tpu.dot_dimension_numbers<[1], [0], [0], [1], [0, 0, 1, 1], [], []>} : vector<64x8xbf16>, vector<8x128xbf16>, vector<64x128xf32> -> vector<64x128xf32>
    %c0_167 = arith.constant 0 : index
    %c0_168 = arith.constant 0 : index
    %202 = vector.load %arg18[%c0_167, %c0_168] : memref<8x128xbf16, #tpu.memory_space<vmem>>, vector<8x128xbf16>
    %cst_169 = arith.constant dense<0.000000e+00> : vector<64x128xf32>
    %203 = tpu.matmul %197, %202, %cst_169 {dimension_numbers = #tpu.dot_dimension_numbers<[1], [0], [0], [1], [0, 0, 1, 1], [], []>} : vector<64x8xbf16>, vector<8x128xbf16>, vector<64x128xf32> -> vector<64x128xf32>
    %204 = vector.extract_strided_slice %199 {offsets = [0, 0], sizes = [64, 32], strides = [1, 1]} : vector<64x128xf32> to vector<64x32xf32>
    %cst_170 = arith.constant 0.176776692 : f32
    %205 = vector.broadcast %cst_170 : f32 to vector<64x32xf32>
    %206 = arith.mulf %204, %205 : vector<64x32xf32>
    %207 = arith.truncf %206 : vector<64x32xf32> to vector<64x32xbf16>
    %208 = vector.extract_strided_slice %201 {offsets = [0, 0], sizes = [64, 32], strides = [1, 1]} : vector<64x128xf32> to vector<64x32xf32>
    %209 = arith.truncf %208 : vector<64x32xf32> to vector<64x32xbf16>
    %210 = vector.extract_strided_slice %203 {offsets = [0, 0], sizes = [64, 32], strides = [1, 1]} : vector<64x128xf32> to vector<64x32xf32>
    %211 = arith.truncf %210 : vector<64x32xf32> to vector<64x32xbf16>
    %cst_171 = arith.constant dense<0.000000e+00> : vector<64x64xf32>
    %212 = tpu.matmul %207, %209, %cst_171 {dimension_numbers = #tpu.dot_dimension_numbers<[1], [1], [0], [0], [0, 0, 1, 0], [], []>} : vector<64x32xbf16>, vector<64x32xbf16>, vector<64x64xf32> -> vector<64x64xf32>
    %cst_172 = arith.constant dense<0xFF800000> : vector<64xf32>
    %213 = vector.multi_reduction <maximumf>, %212, %cst_172 [1] : vector<64x64xf32> to vector<64xf32>
    %214 = vector.shape_cast %213 : vector<64xf32> to vector<64x1xf32>
    %215 = vector.broadcast %214 : vector<64x1xf32> to vector<64x64xf32>
    %216 = arith.subf %212, %215 : vector<64x64xf32>
    %217 = math.exp %216 : vector<64x64xf32>
    %cst_173 = arith.constant dense<0.000000e+00> : vector<64xf32>
    %218 = vector.multi_reduction <add>, %217, %cst_173 [1] : vector<64x64xf32> to vector<64xf32>
    %219 = vector.shape_cast %218 : vector<64xf32> to vector<64x1xf32>
    %220 = tpu.reciprocal %219 {approx = true} : vector<64x1xf32> -> vector<64x1xf32>
    %221 = vector.broadcast %220 : vector<64x1xf32> to vector<64x64xf32>
    %222 = arith.mulf %217, %221 : vector<64x64xf32>
    %223 = arith.truncf %222 : vector<64x64xf32> to vector<64x64xbf16>
    %cst_174 = arith.constant dense<0.000000e+00> : vector<64x32xf32>
    %224 = tpu.matmul %223, %211, %cst_174 {dimension_numbers = #tpu.dot_dimension_numbers<[1], [0], [0], [1], [0, 0, 1, 1], [], []>} : vector<64x64xbf16>, vector<64x32xbf16>, vector<64x32xf32> -> vector<64x32xf32>
    %225 = vector.extract_strided_slice %199 {offsets = [0, 32], sizes = [64, 32], strides = [1, 1]} : vector<64x128xf32> to vector<64x32xf32>
    %cst_175 = arith.constant 0.176776692 : f32
    %226 = vector.broadcast %cst_175 : f32 to vector<64x32xf32>
    %227 = arith.mulf %225, %226 : vector<64x32xf32>
    %228 = arith.truncf %227 : vector<64x32xf32> to vector<64x32xbf16>
    %229 = vector.extract_strided_slice %201 {offsets = [0, 32], sizes = [64, 32], strides = [1, 1]} : vector<64x128xf32> to vector<64x32xf32>
    %230 = arith.truncf %229 : vector<64x32xf32> to vector<64x32xbf16>
    %231 = vector.extract_strided_slice %203 {offsets = [0, 32], sizes = [64, 32], strides = [1, 1]} : vector<64x128xf32> to vector<64x32xf32>
    %232 = arith.truncf %231 : vector<64x32xf32> to vector<64x32xbf16>
    %cst_176 = arith.constant dense<0.000000e+00> : vector<64x64xf32>
    %233 = tpu.matmul %228, %230, %cst_176 {dimension_numbers = #tpu.dot_dimension_numbers<[1], [1], [0], [0], [0, 0, 1, 0], [], []>} : vector<64x32xbf16>, vector<64x32xbf16>, vector<64x64xf32> -> vector<64x64xf32>
    %cst_177 = arith.constant dense<0xFF800000> : vector<64xf32>
    %234 = vector.multi_reduction <maximumf>, %233, %cst_177 [1] : vector<64x64xf32> to vector<64xf32>
    %235 = vector.shape_cast %234 : vector<64xf32> to vector<64x1xf32>
    %236 = vector.broadcast %235 : vector<64x1xf32> to vector<64x64xf32>
    %237 = arith.subf %233, %236 : vector<64x64xf32>
    %238 = math.exp %237 : vector<64x64xf32>
    %cst_178 = arith.constant dense<0.000000e+00> : vector<64xf32>
    %239 = vector.multi_reduction <add>, %238, %cst_178 [1] : vector<64x64xf32> to vector<64xf32>
    %240 = vector.shape_cast %239 : vector<64xf32> to vector<64x1xf32>
    %241 = tpu.reciprocal %240 {approx = true} : vector<64x1xf32> -> vector<64x1xf32>
    %242 = vector.broadcast %241 : vector<64x1xf32> to vector<64x64xf32>
    %243 = arith.mulf %238, %242 : vector<64x64xf32>
    %244 = arith.truncf %243 : vector<64x64xf32> to vector<64x64xbf16>
    %cst_179 = arith.constant dense<0.000000e+00> : vector<64x32xf32>
    %245 = tpu.matmul %244, %232, %cst_179 {dimension_numbers = #tpu.dot_dimension_numbers<[1], [0], [0], [1], [0, 0, 1, 1], [], []>} : vector<64x64xbf16>, vector<64x32xbf16>, vector<64x32xf32> -> vector<64x32xf32>
    %246 = vector.extract_strided_slice %199 {offsets = [0, 64], sizes = [64, 32], strides = [1, 1]} : vector<64x128xf32> to vector<64x32xf32>
    %cst_180 = arith.constant 0.176776692 : f32
    %247 = vector.broadcast %cst_180 : f32 to vector<64x32xf32>
    %248 = arith.mulf %246, %247 : vector<64x32xf32>
    %249 = arith.truncf %248 : vector<64x32xf32> to vector<64x32xbf16>
    %250 = vector.extract_strided_slice %201 {offsets = [0, 64], sizes = [64, 32], strides = [1, 1]} : vector<64x128xf32> to vector<64x32xf32>
    %251 = arith.truncf %250 : vector<64x32xf32> to vector<64x32xbf16>
    %252 = vector.extract_strided_slice %203 {offsets = [0, 64], sizes = [64, 32], strides = [1, 1]} : vector<64x128xf32> to vector<64x32xf32>
    %253 = arith.truncf %252 : vector<64x32xf32> to vector<64x32xbf16>
    %cst_181 = arith.constant dense<0.000000e+00> : vector<64x64xf32>
    %254 = tpu.matmul %249, %251, %cst_181 {dimension_numbers = #tpu.dot_dimension_numbers<[1], [1], [0], [0], [0, 0, 1, 0], [], []>} : vector<64x32xbf16>, vector<64x32xbf16>, vector<64x64xf32> -> vector<64x64xf32>
    %cst_182 = arith.constant dense<0xFF800000> : vector<64xf32>
    %255 = vector.multi_reduction <maximumf>, %254, %cst_182 [1] : vector<64x64xf32> to vector<64xf32>
    %256 = vector.shape_cast %255 : vector<64xf32> to vector<64x1xf32>
    %257 = vector.broadcast %256 : vector<64x1xf32> to vector<64x64xf32>
    %258 = arith.subf %254, %257 : vector<64x64xf32>
    %259 = math.exp %258 : vector<64x64xf32>
    %cst_183 = arith.constant dense<0.000000e+00> : vector<64xf32>
    %260 = vector.multi_reduction <add>, %259, %cst_183 [1] : vector<64x64xf32> to vector<64xf32>
    %261 = vector.shape_cast %260 : vector<64xf32> to vector<64x1xf32>
    %262 = tpu.reciprocal %261 {approx = true} : vector<64x1xf32> -> vector<64x1xf32>
    %263 = vector.broadcast %262 : vector<64x1xf32> to vector<64x64xf32>
    %264 = arith.mulf %259, %263 : vector<64x64xf32>
    %265 = arith.truncf %264 : vector<64x64xf32> to vector<64x64xbf16>
    %cst_184 = arith.constant dense<0.000000e+00> : vector<64x32xf32>
    %266 = tpu.matmul %265, %253, %cst_184 {dimension_numbers = #tpu.dot_dimension_numbers<[1], [0], [0], [1], [0, 0, 1, 1], [], []>} : vector<64x64xbf16>, vector<64x32xbf16>, vector<64x32xf32> -> vector<64x32xf32>
    %267 = vector.extract_strided_slice %199 {offsets = [0, 96], sizes = [64, 32], strides = [1, 1]} : vector<64x128xf32> to vector<64x32xf32>
    %cst_185 = arith.constant 0.176776692 : f32
    %268 = vector.broadcast %cst_185 : f32 to vector<64x32xf32>
    %269 = arith.mulf %267, %268 : vector<64x32xf32>
    %270 = arith.truncf %269 : vector<64x32xf32> to vector<64x32xbf16>
    %271 = vector.extract_strided_slice %201 {offsets = [0, 96], sizes = [64, 32], strides = [1, 1]} : vector<64x128xf32> to vector<64x32xf32>
    %272 = arith.truncf %271 : vector<64x32xf32> to vector<64x32xbf16>
    %273 = vector.extract_strided_slice %203 {offsets = [0, 96], sizes = [64, 32], strides = [1, 1]} : vector<64x128xf32> to vector<64x32xf32>
    %274 = arith.truncf %273 : vector<64x32xf32> to vector<64x32xbf16>
    %cst_186 = arith.constant dense<0.000000e+00> : vector<64x64xf32>
    %275 = tpu.matmul %270, %272, %cst_186 {dimension_numbers = #tpu.dot_dimension_numbers<[1], [1], [0], [0], [0, 0, 1, 0], [], []>} : vector<64x32xbf16>, vector<64x32xbf16>, vector<64x64xf32> -> vector<64x64xf32>
    %cst_187 = arith.constant dense<0xFF800000> : vector<64xf32>
    %276 = vector.multi_reduction <maximumf>, %275, %cst_187 [1] : vector<64x64xf32> to vector<64xf32>
    %277 = vector.shape_cast %276 : vector<64xf32> to vector<64x1xf32>
    %278 = vector.broadcast %277 : vector<64x1xf32> to vector<64x64xf32>
    %279 = arith.subf %275, %278 : vector<64x64xf32>
    %280 = math.exp %279 : vector<64x64xf32>
    %cst_188 = arith.constant dense<0.000000e+00> : vector<64xf32>
    %281 = vector.multi_reduction <add>, %280, %cst_188 [1] : vector<64x64xf32> to vector<64xf32>
    %282 = vector.shape_cast %281 : vector<64xf32> to vector<64x1xf32>
    %283 = tpu.reciprocal %282 {approx = true} : vector<64x1xf32> -> vector<64x1xf32>
    %284 = vector.broadcast %283 : vector<64x1xf32> to vector<64x64xf32>
    %285 = arith.mulf %280, %284 : vector<64x64xf32>
    %286 = arith.truncf %285 : vector<64x64xf32> to vector<64x64xbf16>
    %cst_189 = arith.constant dense<0.000000e+00> : vector<64x32xf32>
    %287 = tpu.matmul %286, %274, %cst_189 {dimension_numbers = #tpu.dot_dimension_numbers<[1], [0], [0], [1], [0, 0, 1, 1], [], []>} : vector<64x64xbf16>, vector<64x32xbf16>, vector<64x32xf32> -> vector<64x32xf32>
    %288 = tpu.concatenate %224, %245, %266, %287 in 1 : vector<64x32xf32>, vector<64x32xf32>, vector<64x32xf32>, vector<64x32xf32> -> vector<64x128xf32>
    %289 = arith.truncf %288 : vector<64x128xf32> to vector<64x128xbf16>
    %c0_190 = arith.constant 0 : index
    %c0_191 = arith.constant 0 : index
    %290 = vector.load %arg19[%c0_190, %c0_191] : memref<128x8xbf16, #tpu.memory_space<vmem>>, vector<128x8xbf16>
    %cst_192 = arith.constant dense<0.000000e+00> : vector<64x8xf32>
    %291 = tpu.matmul %289, %290, %cst_192 {dimension_numbers = #tpu.dot_dimension_numbers<[1], [0], [0], [1], [0, 0, 1, 1], [], []>} : vector<64x128xbf16>, vector<128x8xbf16>, vector<64x8xf32> -> vector<64x8xf32>
    %292 = vector.broadcast %171 : vector<1x8xf32> to vector<64x8xf32>
    %293 = arith.addf %291, %292 : vector<64x8xf32>
    %294 = arith.addf %168, %293 : vector<64x8xf32>
    %c0_193 = arith.constant 0 : index
    %c0_194 = arith.constant 0 : index
    %295 = vector.load %arg22[%c0_193, %c0_194] : memref<1x8xf32, #tpu.memory_space<vmem>>, vector<1x8xf32>
    %c0_195 = arith.constant 0 : index
    %c0_196 = arith.constant 0 : index
    %296 = vector.load %arg23[%c0_195, %c0_196] : memref<1x8xf32, #tpu.memory_space<vmem>>, vector<1x8xf32>
    %c0_197 = arith.constant 0 : index
    %c0_198 = arith.constant 0 : index
    %297 = vector.load %arg24[%c0_197, %c0_198] : memref<1x8xf32, #tpu.memory_space<vmem>>, vector<1x8xf32>
    %c0_199 = arith.constant 0 : index
    %c0_200 = arith.constant 0 : index
    %298 = vector.load %arg28[%c0_199, %c0_200] : memref<1x8xf32, #tpu.memory_space<vmem>>, vector<1x8xf32>
    %c0_201 = arith.constant 0 : index
    %c0_202 = arith.constant 0 : index
    %299 = vector.load %arg29[%c0_201, %c0_202] : memref<1x8xf32, #tpu.memory_space<vmem>>, vector<1x8xf32>
    %c0_203 = arith.constant 0 : index
    %c0_204 = arith.constant 0 : index
    %300 = vector.load %arg30[%c0_203, %c0_204] : memref<1x8xf32, #tpu.memory_space<vmem>>, vector<1x8xf32>
    %301 = vector.shape_cast %294 : vector<64x8xf32> to vector<8x8x8xf32>
    %c1_205 = arith.constant 1 : index
    %c1_206 = arith.constant 1 : index
    %c0_207 = arith.constant 0 : index
    %302 = vector.load %arg34[%c1_205, %c1_206, %c0_207] : memref<10x10x8xf32, #tpu.memory_space<vmem>>, vector<8x8x8xf32>
    tpu.vector_store %arg34[%c1_205, %c1_206, %c0_207], %301 {strides = array<i32>} : memref<10x10x8xf32, #tpu.memory_space<vmem>>, vector<8x8x8xf32>,
    %cst_208 = arith.constant 0.000000e+00 : f32
    %303 = vector.broadcast %cst_208 : f32 to vector<64x8xf32>
    %c0_209 = arith.constant 0 : index
    %c0_210 = arith.constant 0 : index
    %c0_211 = arith.constant 0 : index
    %304 = vector.load %arg34[%c0_209, %c0_210, %c0_211] : memref<10x10x8xf32, #tpu.memory_space<vmem>>, vector<8x8x8xf32>
    %c0_212 = arith.constant 0 : index
    %c1_213 = arith.constant 1 : index
    %c0_214 = arith.constant 0 : index
    %305 = vector.load %arg34[%c0_212, %c1_213, %c0_214] : memref<10x10x8xf32, #tpu.memory_space<vmem>>, vector<8x8x8xf32>
    %c0_215 = arith.constant 0 : index
    %c2_216 = arith.constant 2 : index
    %c0_217 = arith.constant 0 : index
    %306 = vector.load %arg34[%c0_215, %c2_216, %c0_217] : memref<10x10x8xf32, #tpu.memory_space<vmem>>, vector<8x8x8xf32>
    %307 = tpu.concatenate %304, %305, %306 in 2 : vector<8x8x8xf32>, vector<8x8x8xf32>, vector<8x8x8xf32> -> vector<8x8x24xf32>
    %308 = vector.shape_cast %307 : vector<8x8x24xf32> to vector<64x24xf32>
    %309 = arith.truncf %308 : vector<64x24xf32> to vector<64x24xbf16>
    %c0_218 = arith.constant 0 : index
    %c0_219 = arith.constant 0 : index
    %c0_220 = arith.constant 0 : index
    %310 = vector.load %arg21[%c0_218, %c0_219, %c0_220] : memref<3x24x8xbf16, #tpu.memory_space<vmem>>, vector<1x24x8xbf16>
    %311 = vector.shape_cast %310 : vector<1x24x8xbf16> to vector<24x8xbf16>
    %cst_221 = arith.constant dense<0.000000e+00> : vector<64x8xf32>
    %312 = tpu.matmul %309, %311, %cst_221 {dimension_numbers = #tpu.dot_dimension_numbers<[1], [0], [0], [1], [0, 0, 1, 1], [], []>} : vector<64x24xbf16>, vector<24x8xbf16>, vector<64x8xf32> -> vector<64x8xf32>
    %313 = arith.addf %303, %312 : vector<64x8xf32>
    %c1_222 = arith.constant 1 : index
    %c0_223 = arith.constant 0 : index
    %c0_224 = arith.constant 0 : index
    %314 = vector.load %arg34[%c1_222, %c0_223, %c0_224] : memref<10x10x8xf32, #tpu.memory_space<vmem>>, vector<8x8x8xf32>
    %c1_225 = arith.constant 1 : index
    %c1_226 = arith.constant 1 : index
    %c0_227 = arith.constant 0 : index
    %315 = vector.load %arg34[%c1_225, %c1_226, %c0_227] : memref<10x10x8xf32, #tpu.memory_space<vmem>>, vector<8x8x8xf32>
    %c1_228 = arith.constant 1 : index
    %c2_229 = arith.constant 2 : index
    %c0_230 = arith.constant 0 : index
    %316 = vector.load %arg34[%c1_228, %c2_229, %c0_230] : memref<10x10x8xf32, #tpu.memory_space<vmem>>, vector<8x8x8xf32>
    %317 = tpu.concatenate %314, %315, %316 in 2 : vector<8x8x8xf32>, vector<8x8x8xf32>, vector<8x8x8xf32> -> vector<8x8x24xf32>
    %318 = vector.shape_cast %317 : vector<8x8x24xf32> to vector<64x24xf32>
    %319 = arith.truncf %318 : vector<64x24xf32> to vector<64x24xbf16>
    %c1_231 = arith.constant 1 : index
    %c0_232 = arith.constant 0 : index
    %c0_233 = arith.constant 0 : index
    %320 = vector.load %arg21[%c1_231, %c0_232, %c0_233] : memref<3x24x8xbf16, #tpu.memory_space<vmem>>, vector<1x24x8xbf16>
    %321 = vector.shape_cast %320 : vector<1x24x8xbf16> to vector<24x8xbf16>
    %cst_234 = arith.constant dense<0.000000e+00> : vector<64x8xf32>
    %322 = tpu.matmul %319, %321, %cst_234 {dimension_numbers = #tpu.dot_dimension_numbers<[1], [0], [0], [1], [0, 0, 1, 1], [], []>} : vector<64x24xbf16>, vector<24x8xbf16>, vector<64x8xf32> -> vector<64x8xf32>
    %323 = arith.addf %313, %322 : vector<64x8xf32>
    %c2_235 = arith.constant 2 : index
    %c0_236 = arith.constant 0 : index
    %c0_237 = arith.constant 0 : index
    %324 = vector.load %arg34[%c2_235, %c0_236, %c0_237] : memref<10x10x8xf32, #tpu.memory_space<vmem>>, vector<8x8x8xf32>
    %c2_238 = arith.constant 2 : index
    %c1_239 = arith.constant 1 : index
    %c0_240 = arith.constant 0 : index
    %325 = vector.load %arg34[%c2_238, %c1_239, %c0_240] : memref<10x10x8xf32, #tpu.memory_space<vmem>>, vector<8x8x8xf32>
    %c2_241 = arith.constant 2 : index
    %c2_242 = arith.constant 2 : index
    %c0_243 = arith.constant 0 : index
    %326 = vector.load %arg34[%c2_241, %c2_242, %c0_243] : memref<10x10x8xf32, #tpu.memory_space<vmem>>, vector<8x8x8xf32>
    %327 = tpu.concatenate %324, %325, %326 in 2 : vector<8x8x8xf32>, vector<8x8x8xf32>, vector<8x8x8xf32> -> vector<8x8x24xf32>
    %328 = vector.shape_cast %327 : vector<8x8x24xf32> to vector<64x24xf32>
    %329 = arith.truncf %328 : vector<64x24xf32> to vector<64x24xbf16>
    %c2_244 = arith.constant 2 : index
    %c0_245 = arith.constant 0 : index
    %c0_246 = arith.constant 0 : index
    %330 = vector.load %arg21[%c2_244, %c0_245, %c0_246] : memref<3x24x8xbf16, #tpu.memory_space<vmem>>, vector<1x24x8xbf16>
    %331 = vector.shape_cast %330 : vector<1x24x8xbf16> to vector<24x8xbf16>
    %cst_247 = arith.constant dense<0.000000e+00> : vector<64x8xf32>
    %332 = tpu.matmul %329, %331, %cst_247 {dimension_numbers = #tpu.dot_dimension_numbers<[1], [0], [0], [1], [0, 0, 1, 1], [], []>} : vector<64x24xbf16>, vector<24x8xbf16>, vector<64x8xf32> -> vector<64x8xf32>
    %333 = arith.addf %323, %332 : vector<64x8xf32>
    %334 = vector.broadcast %295 : vector<1x8xf32> to vector<64x8xf32>
    %335 = arith.addf %333, %334 : vector<64x8xf32>
    %cst_248 = arith.constant dense<0.000000e+00> : vector<8xf32>
    %336 = vector.multi_reduction <add>, %335, %cst_248 [0] : vector<64x8xf32> to vector<8xf32>
    %337 = vector.shape_cast %336 : vector<8xf32> to vector<1x8xf32>
    %cst_249 = arith.constant 6.400000e+01 : f32
    %338 = vector.broadcast %cst_249 : f32 to vector<1x8xf32>
    %339 = arith.divf %337, %338 : vector<1x8xf32>
    %340 = arith.mulf %335, %335 : vector<64x8xf32>
    %cst_250 = arith.constant dense<0.000000e+00> : vector<8xf32>
    %341 = vector.multi_reduction <add>, %340, %cst_250 [0] : vector<64x8xf32> to vector<8xf32>
    %342 = vector.shape_cast %341 : vector<8xf32> to vector<1x8xf32>
    %cst_251 = arith.constant 6.400000e+01 : f32
    %343 = vector.broadcast %cst_251 : f32 to vector<1x8xf32>
    %344 = arith.divf %342, %343 : vector<1x8xf32>
    %cst_252 = arith.constant dense<0.000000e+00> : vector<1x8xf32>
    %345 = tpu.matmul %339, %11, %cst_252 {dimension_numbers = #tpu.dot_dimension_numbers<[1], [0], [0], [1], [0, 0, 1, 1], [], []>} : vector<1x8xf32>, vector<8x8xf32>, vector<1x8xf32> -> vector<1x8xf32>
    %cst_253 = arith.constant dense<0.000000e+00> : vector<1x8xf32>
    %346 = tpu.matmul %344, %11, %cst_253 {dimension_numbers = #tpu.dot_dimension_numbers<[1], [0], [0], [1], [0, 0, 1, 1], [], []>} : vector<1x8xf32>, vector<8x8xf32>, vector<1x8xf32> -> vector<1x8xf32>
    %347 = arith.mulf %345, %345 : vector<1x8xf32>
    %348 = arith.subf %346, %347 : vector<1x8xf32>
    %cst_254 = arith.constant 0.000000e+00 : f32
    %349 = vector.broadcast %cst_254 : f32 to vector<1x8xf32>
    %350 = arith.maximumf %348, %349 : vector<1x8xf32>
    %cst_255 = arith.constant 9.99999974E-6 : f32
    %351 = vector.broadcast %cst_255 : f32 to vector<1x8xf32>
    %352 = arith.addf %350, %351 : vector<1x8xf32>
    %353 = math.rsqrt %352 : vector<1x8xf32>
    %354 = vector.broadcast %345 : vector<1x8xf32> to vector<64x8xf32>
    %355 = arith.subf %335, %354 : vector<64x8xf32>
    %356 = arith.mulf %353, %296 : vector<1x8xf32>
    %357 = vector.broadcast %356 : vector<1x8xf32> to vector<64x8xf32>
    %358 = arith.mulf %355, %357 : vector<64x8xf32>
    %359 = vector.broadcast %297 : vector<1x8xf32> to vector<64x8xf32>
    %360 = arith.addf %358, %359 : vector<64x8xf32>
    %361 = arith.negf %360 : vector<64x8xf32>
    %362 = math.exp %361 : vector<64x8xf32>
    %cst_256 = arith.constant 1.000000e+00 : f32
    %363 = vector.broadcast %cst_256 : f32 to vector<64x8xf32>
    %364 = arith.addf %363, %362 : vector<64x8xf32>
    %365 = arith.divf %363, %364 : vector<64x8xf32>
    %366 = arith.mulf %360, %365 : vector<64x8xf32>
    %367 = vector.broadcast %27 : vector<1x8xf32> to vector<64x8xf32>
    %368 = arith.addf %366, %367 : vector<64x8xf32>
    %369 = vector.shape_cast %368 : vector<64x8xf32> to vector<8x8x8xf32>
    %c1_257 = arith.constant 1 : index
    %c1_258 = arith.constant 1 : index
    %c0_259 = arith.constant 0 : index
    %370 = vector.load %arg34[%c1_257, %c1_258, %c0_259] : memref<10x10x8xf32, #tpu.memory_space<vmem>>, vector<8x8x8xf32>
    tpu.vector_store %arg34[%c1_257, %c1_258, %c0_259], %369 {strides = array<i32>} : memref<10x10x8xf32, #tpu.memory_space<vmem>>, vector<8x8x8xf32>,
    %cst_260 = arith.constant 0.000000e+00 : f32
    %371 = vector.broadcast %cst_260 : f32 to vector<64x8xf32>
    %c0_261 = arith.constant 0 : index
    %c0_262 = arith.constant 0 : index
    %c0_263 = arith.constant 0 : index
    %372 = vector.load %arg34[%c0_261, %c0_262, %c0_263] : memref<10x10x8xf32, #tpu.memory_space<vmem>>, vector<8x8x8xf32>
    %c0_264 = arith.constant 0 : index
    %c1_265 = arith.constant 1 : index
    %c0_266 = arith.constant 0 : index
    %373 = vector.load %arg34[%c0_264, %c1_265, %c0_266] : memref<10x10x8xf32, #tpu.memory_space<vmem>>, vector<8x8x8xf32>
    %c0_267 = arith.constant 0 : index
    %c2_268 = arith.constant 2 : index
    %c0_269 = arith.constant 0 : index
    %374 = vector.load %arg34[%c0_267, %c2_268, %c0_269] : memref<10x10x8xf32, #tpu.memory_space<vmem>>, vector<8x8x8xf32>
    %375 = tpu.concatenate %372, %373, %374 in 2 : vector<8x8x8xf32>, vector<8x8x8xf32>, vector<8x8x8xf32> -> vector<8x8x24xf32>
    %376 = vector.shape_cast %375 : vector<8x8x24xf32> to vector<64x24xf32>
    %377 = arith.truncf %376 : vector<64x24xf32> to vector<64x24xbf16>
    %c0_270 = arith.constant 0 : index
    %c0_271 = arith.constant 0 : index
    %c0_272 = arith.constant 0 : index
    %378 = vector.load %arg27[%c0_270, %c0_271, %c0_272] : memref<3x24x8xbf16, #tpu.memory_space<vmem>>, vector<1x24x8xbf16>
    %379 = vector.shape_cast %378 : vector<1x24x8xbf16> to vector<24x8xbf16>
    %cst_273 = arith.constant dense<0.000000e+00> : vector<64x8xf32>
    %380 = tpu.matmul %377, %379, %cst_273 {dimension_numbers = #tpu.dot_dimension_numbers<[1], [0], [0], [1], [0, 0, 1, 1], [], []>} : vector<64x24xbf16>, vector<24x8xbf16>, vector<64x8xf32> -> vector<64x8xf32>
    %381 = arith.addf %371, %380 : vector<64x8xf32>
    %c1_274 = arith.constant 1 : index
    %c0_275 = arith.constant 0 : index
    %c0_276 = arith.constant 0 : index
    %382 = vector.load %arg34[%c1_274, %c0_275, %c0_276] : memref<10x10x8xf32, #tpu.memory_space<vmem>>, vector<8x8x8xf32>
    %c1_277 = arith.constant 1 : index
    %c1_278 = arith.constant 1 : index
    %c0_279 = arith.constant 0 : index
    %383 = vector.load %arg34[%c1_277, %c1_278, %c0_279] : memref<10x10x8xf32, #tpu.memory_space<vmem>>, vector<8x8x8xf32>
    %c1_280 = arith.constant 1 : index
    %c2_281 = arith.constant 2 : index
    %c0_282 = arith.constant 0 : index
    %384 = vector.load %arg34[%c1_280, %c2_281, %c0_282] : memref<10x10x8xf32, #tpu.memory_space<vmem>>, vector<8x8x8xf32>
    %385 = tpu.concatenate %382, %383, %384 in 2 : vector<8x8x8xf32>, vector<8x8x8xf32>, vector<8x8x8xf32> -> vector<8x8x24xf32>
    %386 = vector.shape_cast %385 : vector<8x8x24xf32> to vector<64x24xf32>
    %387 = arith.truncf %386 : vector<64x24xf32> to vector<64x24xbf16>
    %c1_283 = arith.constant 1 : index
    %c0_284 = arith.constant 0 : index
    %c0_285 = arith.constant 0 : index
    %388 = vector.load %arg27[%c1_283, %c0_284, %c0_285] : memref<3x24x8xbf16, #tpu.memory_space<vmem>>, vector<1x24x8xbf16>
    %389 = vector.shape_cast %388 : vector<1x24x8xbf16> to vector<24x8xbf16>
    %cst_286 = arith.constant dense<0.000000e+00> : vector<64x8xf32>
    %390 = tpu.matmul %387, %389, %cst_286 {dimension_numbers = #tpu.dot_dimension_numbers<[1], [0], [0], [1], [0, 0, 1, 1], [], []>} : vector<64x24xbf16>, vector<24x8xbf16>, vector<64x8xf32> -> vector<64x8xf32>
    %391 = arith.addf %381, %390 : vector<64x8xf32>
    %c2_287 = arith.constant 2 : index
    %c0_288 = arith.constant 0 : index
    %c0_289 = arith.constant 0 : index
    %392 = vector.load %arg34[%c2_287, %c0_288, %c0_289] : memref<10x10x8xf32, #tpu.memory_space<vmem>>, vector<8x8x8xf32>
    %c2_290 = arith.constant 2 : index
    %c1_291 = arith.constant 1 : index
    %c0_292 = arith.constant 0 : index
    %393 = vector.load %arg34[%c2_290, %c1_291, %c0_292] : memref<10x10x8xf32, #tpu.memory_space<vmem>>, vector<8x8x8xf32>
    %c2_293 = arith.constant 2 : index
    %c2_294 = arith.constant 2 : index
    %c0_295 = arith.constant 0 : index
    %394 = vector.load %arg34[%c2_293, %c2_294, %c0_295] : memref<10x10x8xf32, #tpu.memory_space<vmem>>, vector<8x8x8xf32>
    %395 = tpu.concatenate %392, %393, %394 in 2 : vector<8x8x8xf32>, vector<8x8x8xf32>, vector<8x8x8xf32> -> vector<8x8x24xf32>
    %396 = vector.shape_cast %395 : vector<8x8x24xf32> to vector<64x24xf32>
    %397 = arith.truncf %396 : vector<64x24xf32> to vector<64x24xbf16>
    %c2_296 = arith.constant 2 : index
    %c0_297 = arith.constant 0 : index
    %c0_298 = arith.constant 0 : index
    %398 = vector.load %arg27[%c2_296, %c0_297, %c0_298] : memref<3x24x8xbf16, #tpu.memory_space<vmem>>, vector<1x24x8xbf16>
    %399 = vector.shape_cast %398 : vector<1x24x8xbf16> to vector<24x8xbf16>
    %cst_299 = arith.constant dense<0.000000e+00> : vector<64x8xf32>
    %400 = tpu.matmul %397, %399, %cst_299 {dimension_numbers = #tpu.dot_dimension_numbers<[1], [0], [0], [1], [0, 0, 1, 1], [], []>} : vector<64x24xbf16>, vector<24x8xbf16>, vector<64x8xf32> -> vector<64x8xf32>
    %401 = arith.addf %391, %400 : vector<64x8xf32>
    %402 = vector.broadcast %298 : vector<1x8xf32> to vector<64x8xf32>
    %403 = arith.addf %401, %402 : vector<64x8xf32>
    %cst_300 = arith.constant dense<0.000000e+00> : vector<8xf32>
    %404 = vector.multi_reduction <add>, %403, %cst_300 [0] : vector<64x8xf32> to vector<8xf32>
    %405 = vector.shape_cast %404 : vector<8xf32> to vector<1x8xf32>
    %cst_301 = arith.constant 6.400000e+01 : f32
    %406 = vector.broadcast %cst_301 : f32 to vector<1x8xf32>
    %407 = arith.divf %405, %406 : vector<1x8xf32>
    %408 = arith.mulf %403, %403 : vector<64x8xf32>
    %cst_302 = arith.constant dense<0.000000e+00> : vector<8xf32>
    %409 = vector.multi_reduction <add>, %408, %cst_302 [0] : vector<64x8xf32> to vector<8xf32>
    %410 = vector.shape_cast %409 : vector<8xf32> to vector<1x8xf32>
    %cst_303 = arith.constant 6.400000e+01 : f32
    %411 = vector.broadcast %cst_303 : f32 to vector<1x8xf32>
    %412 = arith.divf %410, %411 : vector<1x8xf32>
    %cst_304 = arith.constant dense<0.000000e+00> : vector<1x8xf32>
    %413 = tpu.matmul %407, %11, %cst_304 {dimension_numbers = #tpu.dot_dimension_numbers<[1], [0], [0], [1], [0, 0, 1, 1], [], []>} : vector<1x8xf32>, vector<8x8xf32>, vector<1x8xf32> -> vector<1x8xf32>
    %cst_305 = arith.constant dense<0.000000e+00> : vector<1x8xf32>
    %414 = tpu.matmul %412, %11, %cst_305 {dimension_numbers = #tpu.dot_dimension_numbers<[1], [0], [0], [1], [0, 0, 1, 1], [], []>} : vector<1x8xf32>, vector<8x8xf32>, vector<1x8xf32> -> vector<1x8xf32>
    %415 = arith.mulf %413, %413 : vector<1x8xf32>
    %416 = arith.subf %414, %415 : vector<1x8xf32>
    %cst_306 = arith.constant 0.000000e+00 : f32
    %417 = vector.broadcast %cst_306 : f32 to vector<1x8xf32>
    %418 = arith.maximumf %416, %417 : vector<1x8xf32>
    %cst_307 = arith.constant 9.99999974E-6 : f32
    %419 = vector.broadcast %cst_307 : f32 to vector<1x8xf32>
    %420 = arith.addf %418, %419 : vector<1x8xf32>
    %421 = math.rsqrt %420 : vector<1x8xf32>
    %422 = vector.broadcast %413 : vector<1x8xf32> to vector<64x8xf32>
    %423 = arith.subf %403, %422 : vector<64x8xf32>
    %424 = arith.mulf %421, %299 : vector<1x8xf32>
    %425 = vector.broadcast %424 : vector<1x8xf32> to vector<64x8xf32>
    %426 = arith.mulf %423, %425 : vector<64x8xf32>
    %427 = vector.broadcast %300 : vector<1x8xf32> to vector<64x8xf32>
    %428 = arith.addf %426, %427 : vector<64x8xf32>
    %429 = arith.addf %428, %294 : vector<64x8xf32>
    %430 = arith.negf %429 : vector<64x8xf32>
    %431 = math.exp %430 : vector<64x8xf32>
    %cst_308 = arith.constant 1.000000e+00 : f32
    %432 = vector.broadcast %cst_308 : f32 to vector<64x8xf32>
    %433 = arith.addf %432, %431 : vector<64x8xf32>
    %434 = arith.divf %432, %433 : vector<64x8xf32>
    %435 = arith.mulf %429, %434 : vector<64x8xf32>
    %c0_309 = arith.constant 0 : index
    %c0_310 = arith.constant 0 : index
    %436 = vector.load %arg32[%c0_309, %c0_310] : memref<1x16xf32, #tpu.memory_space<vmem>>, vector<1x16xf32>
    %437 = vector.shape_cast %435 : vector<64x8xf32> to vector<8x8x8xf32>
    %c1_311 = arith.constant 1 : index
    %c1_312 = arith.constant 1 : index
    %c0_313 = arith.constant 0 : index
    %438 = vector.load %arg34[%c1_311, %c1_312, %c0_313] : memref<10x10x8xf32, #tpu.memory_space<vmem>>, vector<8x8x8xf32>
    tpu.vector_store %arg34[%c1_311, %c1_312, %c0_313], %437 {strides = array<i32>} : memref<10x10x8xf32, #tpu.memory_space<vmem>>, vector<8x8x8xf32>,
    %cst_314 = arith.constant 0.000000e+00 : f32
    %439 = vector.broadcast %cst_314 : f32 to vector<64x16xf32>
    %c0_315 = arith.constant 0 : index
    %c0_316 = arith.constant 0 : index
    %c0_317 = arith.constant 0 : index
    %440 = vector.load %arg34[%c0_315, %c0_316, %c0_317] : memref<10x10x8xf32, #tpu.memory_space<vmem>>, vector<8x8x8xf32>
    %c0_318 = arith.constant 0 : index
    %c1_319 = arith.constant 1 : index
    %c0_320 = arith.constant 0 : index
    %441 = vector.load %arg34[%c0_318, %c1_319, %c0_320] : memref<10x10x8xf32, #tpu.memory_space<vmem>>, vector<8x8x8xf32>
    %c0_321 = arith.constant 0 : index
    %c2_322 = arith.constant 2 : index
    %c0_323 = arith.constant 0 : index
    %442 = vector.load %arg34[%c0_321, %c2_322, %c0_323] : memref<10x10x8xf32, #tpu.memory_space<vmem>>, vector<8x8x8xf32>
    %443 = tpu.concatenate %440, %441, %442 in 2 : vector<8x8x8xf32>, vector<8x8x8xf32>, vector<8x8x8xf32> -> vector<8x8x24xf32>
    %444 = vector.shape_cast %443 : vector<8x8x24xf32> to vector<64x24xf32>
    %445 = arith.truncf %444 : vector<64x24xf32> to vector<64x24xbf16>
    %c0_324 = arith.constant 0 : index
    %c0_325 = arith.constant 0 : index
    %c0_326 = arith.constant 0 : index
    %446 = vector.load %arg31[%c0_324, %c0_325, %c0_326] : memref<3x24x16xbf16, #tpu.memory_space<vmem>>, vector<1x24x16xbf16>
    %447 = vector.shape_cast %446 : vector<1x24x16xbf16> to vector<24x16xbf16>
    %cst_327 = arith.constant dense<0.000000e+00> : vector<64x16xf32>
    %448 = tpu.matmul %445, %447, %cst_327 {dimension_numbers = #tpu.dot_dimension_numbers<[1], [0], [0], [1], [0, 0, 1, 1], [], []>} : vector<64x24xbf16>, vector<24x16xbf16>, vector<64x16xf32> -> vector<64x16xf32>
    %449 = arith.addf %439, %448 : vector<64x16xf32>
    %c1_328 = arith.constant 1 : index
    %c0_329 = arith.constant 0 : index
    %c0_330 = arith.constant 0 : index
    %450 = vector.load %arg34[%c1_328, %c0_329, %c0_330] : memref<10x10x8xf32, #tpu.memory_space<vmem>>, vector<8x8x8xf32>
    %c1_331 = arith.constant 1 : index
    %c1_332 = arith.constant 1 : index
    %c0_333 = arith.constant 0 : index
    %451 = vector.load %arg34[%c1_331, %c1_332, %c0_333] : memref<10x10x8xf32, #tpu.memory_space<vmem>>, vector<8x8x8xf32>
    %c1_334 = arith.constant 1 : index
    %c2_335 = arith.constant 2 : index
    %c0_336 = arith.constant 0 : index
    %452 = vector.load %arg34[%c1_334, %c2_335, %c0_336] : memref<10x10x8xf32, #tpu.memory_space<vmem>>, vector<8x8x8xf32>
    %453 = tpu.concatenate %450, %451, %452 in 2 : vector<8x8x8xf32>, vector<8x8x8xf32>, vector<8x8x8xf32> -> vector<8x8x24xf32>
    %454 = vector.shape_cast %453 : vector<8x8x24xf32> to vector<64x24xf32>
    %455 = arith.truncf %454 : vector<64x24xf32> to vector<64x24xbf16>
    %c1_337 = arith.constant 1 : index
    %c0_338 = arith.constant 0 : index
    %c0_339 = arith.constant 0 : index
    %456 = vector.load %arg31[%c1_337, %c0_338, %c0_339] : memref<3x24x16xbf16, #tpu.memory_space<vmem>>, vector<1x24x16xbf16>
    %457 = vector.shape_cast %456 : vector<1x24x16xbf16> to vector<24x16xbf16>
    %cst_340 = arith.constant dense<0.000000e+00> : vector<64x16xf32>
    %458 = tpu.matmul %455, %457, %cst_340 {dimension_numbers = #tpu.dot_dimension_numbers<[1], [0], [0], [1], [0, 0, 1, 1], [], []>} : vector<64x24xbf16>, vector<24x16xbf16>, vector<64x16xf32> -> vector<64x16xf32>
    %459 = arith.addf %449, %458 : vector<64x16xf32>
    %c2_341 = arith.constant 2 : index
    %c0_342 = arith.constant 0 : index
    %c0_343 = arith.constant 0 : index
    %460 = vector.load %arg34[%c2_341, %c0_342, %c0_343] : memref<10x10x8xf32, #tpu.memory_space<vmem>>, vector<8x8x8xf32>
    %c2_344 = arith.constant 2 : index
    %c1_345 = arith.constant 1 : index
    %c0_346 = arith.constant 0 : index
    %461 = vector.load %arg34[%c2_344, %c1_345, %c0_346] : memref<10x10x8xf32, #tpu.memory_space<vmem>>, vector<8x8x8xf32>
    %c2_347 = arith.constant 2 : index
    %c2_348 = arith.constant 2 : index
    %c0_349 = arith.constant 0 : index
    %462 = vector.load %arg34[%c2_347, %c2_348, %c0_349] : memref<10x10x8xf32, #tpu.memory_space<vmem>>, vector<8x8x8xf32>
    %463 = tpu.concatenate %460, %461, %462 in 2 : vector<8x8x8xf32>, vector<8x8x8xf32>, vector<8x8x8xf32> -> vector<8x8x24xf32>
    %464 = vector.shape_cast %463 : vector<8x8x24xf32> to vector<64x24xf32>
    %465 = arith.truncf %464 : vector<64x24xf32> to vector<64x24xbf16>
    %c2_350 = arith.constant 2 : index
    %c0_351 = arith.constant 0 : index
    %c0_352 = arith.constant 0 : index
    %466 = vector.load %arg31[%c2_350, %c0_351, %c0_352] : memref<3x24x16xbf16, #tpu.memory_space<vmem>>, vector<1x24x16xbf16>
    %467 = vector.shape_cast %466 : vector<1x24x16xbf16> to vector<24x16xbf16>
    %cst_353 = arith.constant dense<0.000000e+00> : vector<64x16xf32>
    %468 = tpu.matmul %465, %467, %cst_353 {dimension_numbers = #tpu.dot_dimension_numbers<[1], [0], [0], [1], [0, 0, 1, 1], [], []>} : vector<64x24xbf16>, vector<24x16xbf16>, vector<64x16xf32> -> vector<64x16xf32>
    %469 = arith.addf %459, %468 : vector<64x16xf32>
    %470 = vector.broadcast %436 : vector<1x16xf32> to vector<64x16xf32>
    %471 = arith.addf %469, %470 : vector<64x16xf32>
    %472 = vector.shape_cast %471 : vector<64x16xf32> to vector<8x8x16xf32>
    %c0_354 = arith.constant 0 : index
    %c0_355 = arith.constant 0 : index
    %c0_356 = arith.constant 0 : index
    %c0_357 = arith.constant 0 : index
    %473 = vector.load %arg33[%c0_354, %c0_355, %c0_356, %c0_357] : memref<1x8x8x16xf32, #tpu.memory_space<vmem>>, vector<1x8x8x16xf32>
    %474 = vector.shape_cast %473 : vector<1x8x8x16xf32> to vector<8x8x16xf32>
    %475 = vector.shape_cast %472 : vector<8x8x16xf32> to vector<1x8x8x16xf32>
    tpu.vector_store %arg33[%c0_354, %c0_355, %c0_356, %c0_357], %475 {strides = array<i32>} : memref<1x8x8x16xf32, #tpu.memory_space<vmem>>, vector<1x8x8x16xf32>,
    return
  }
  func.func @transform_0(%arg0: i32) -> (i32, i32, i32, i32) {
    %c0_i32 = arith.constant 0 : i32
    %c0_i32_0 = arith.constant 0 : i32
    %c0_i32_1 = arith.constant 0 : i32
    %c0_i32_2 = arith.constant 0 : i32
    return %arg0, %c0_i32, %c0_i32_0, %c0_i32_1 : i32, i32, i32, i32
  }
  func.func @transform_1(%arg0: i32) -> (i32, i32, i32) {
    %c0_i32 = arith.constant 0 : i32
    %c0_i32_0 = arith.constant 0 : i32
    %c0_i32_1 = arith.constant 0 : i32
    return %arg0, %c0_i32, %c0_i32_0 : i32, i32, i32
  }
  func.func @transform_2(%arg0: i32) -> (i32, i32) {
    %c0_i32 = arith.constant 0 : i32
    %c0_i32_0 = arith.constant 0 : i32
    %c0_i32_1 = arith.constant 0 : i32
    return %c0_i32, %c0_i32_0 : i32, i32
  }
  func.func @transform_3(%arg0: i32) -> (i32, i32, i32) {
    %c0_i32 = arith.constant 0 : i32
    %c0_i32_0 = arith.constant 0 : i32
    %c0_i32_1 = arith.constant 0 : i32
    %c0_i32_2 = arith.constant 0 : i32
    return %c0_i32, %c0_i32_0, %c0_i32_1 : i32, i32, i32
  }
  func.func @transform_4(%arg0: i32) -> (i32, i32) {
    %c0_i32 = arith.constant 0 : i32
    %c0_i32_0 = arith.constant 0 : i32
    %c0_i32_1 = arith.constant 0 : i32
    return %c0_i32, %c0_i32_0 : i32, i32
  }
  func.func @transform_5(%arg0: i32) -> (i32, i32) {
    %c0_i32 = arith.constant 0 : i32
    %c0_i32_0 = arith.constant 0 : i32
    %c0_i32_1 = arith.constant 0 : i32
    return %c0_i32, %c0_i32_0 : i32, i32
  }
  func.func @transform_6(%arg0: i32) -> (i32, i32) {
    %c0_i32 = arith.constant 0 : i32
    %c0_i32_0 = arith.constant 0 : i32
    %c0_i32_1 = arith.constant 0 : i32
    return %c0_i32, %c0_i32_0 : i32, i32
  }
  func.func @transform_7(%arg0: i32) -> (i32, i32) {
    %c0_i32 = arith.constant 0 : i32
    %c0_i32_0 = arith.constant 0 : i32
    %c0_i32_1 = arith.constant 0 : i32
    return %c0_i32, %c0_i32_0 : i32, i32
  }
  func.func @transform_8(%arg0: i32) -> (i32, i32) {
    %c0_i32 = arith.constant 0 : i32
    %c0_i32_0 = arith.constant 0 : i32
    %c0_i32_1 = arith.constant 0 : i32
    return %c0_i32, %c0_i32_0 : i32, i32
  }
  func.func @transform_9(%arg0: i32) -> (i32, i32, i32) {
    %c0_i32 = arith.constant 0 : i32
    %c0_i32_0 = arith.constant 0 : i32
    %c0_i32_1 = arith.constant 0 : i32
    %c0_i32_2 = arith.constant 0 : i32
    return %c0_i32, %c0_i32_0, %c0_i32_1 : i32, i32, i32
  }
  func.func @transform_10(%arg0: i32) -> (i32, i32) {
    %c0_i32 = arith.constant 0 : i32
    %c0_i32_0 = arith.constant 0 : i32
    %c0_i32_1 = arith.constant 0 : i32
    return %c0_i32, %c0_i32_0 : i32, i32
  }
  func.func @transform_11(%arg0: i32) -> (i32, i32) {
    %c0_i32 = arith.constant 0 : i32
    %c0_i32_0 = arith.constant 0 : i32
    %c0_i32_1 = arith.constant 0 : i32
    return %c0_i32, %c0_i32_0 : i32, i32
  }
  func.func @transform_12(%arg0: i32) -> (i32, i32) {
    %c0_i32 = arith.constant 0 : i32
    %c0_i32_0 = arith.constant 0 : i32
    %c0_i32_1 = arith.constant 0 : i32
    return %c0_i32, %c0_i32_0 : i32, i32
  }
  func.func @transform_13(%arg0: i32) -> (i32, i32) {
    %c0_i32 = arith.constant 0 : i32
    %c0_i32_0 = arith.constant 0 : i32
    %c0_i32_1 = arith.constant 0 : i32
    return %c0_i32, %c0_i32_0 : i32, i32
  }
  func.func @transform_14(%arg0: i32) -> (i32, i32) {
    %c0_i32 = arith.constant 0 : i32
    %c0_i32_0 = arith.constant 0 : i32
    %c0_i32_1 = arith.constant 0 : i32
    return %c0_i32, %c0_i32_0 : i32, i32
  }
  func.func @transform_15(%arg0: i32) -> (i32, i32) {
    %c0_i32 = arith.constant 0 : i32
    %c0_i32_0 = arith.constant 0 : i32
    %c0_i32_1 = arith.constant 0 : i32
    return %c0_i32, %c0_i32_0 : i32, i32
  }
  func.func @transform_16(%arg0: i32) -> (i32, i32) {
    %c0_i32 = arith.constant 0 : i32
    %c0_i32_0 = arith.constant 0 : i32
    %c0_i32_1 = arith.constant 0 : i32
    return %c0_i32, %c0_i32_0 : i32, i32
  }
  func.func @transform_17(%arg0: i32) -> (i32, i32) {
    %c0_i32 = arith.constant 0 : i32
    %c0_i32_0 = arith.constant 0 : i32
    %c0_i32_1 = arith.constant 0 : i32
    return %c0_i32, %c0_i32_0 : i32, i32
  }
  func.func @transform_18(%arg0: i32) -> (i32, i32) {
    %c0_i32 = arith.constant 0 : i32
    %c0_i32_0 = arith.constant 0 : i32
    %c0_i32_1 = arith.constant 0 : i32
    return %c0_i32, %c0_i32_0 : i32, i32
  }
  func.func @transform_19(%arg0: i32) -> (i32, i32) {
    %c0_i32 = arith.constant 0 : i32
    %c0_i32_0 = arith.constant 0 : i32
    %c0_i32_1 = arith.constant 0 : i32
    return %c0_i32, %c0_i32_0 : i32, i32
  }
  func.func @transform_20(%arg0: i32) -> (i32, i32, i32) {
    %c0_i32 = arith.constant 0 : i32
    %c0_i32_0 = arith.constant 0 : i32
    %c0_i32_1 = arith.constant 0 : i32
    %c0_i32_2 = arith.constant 0 : i32
    return %c0_i32, %c0_i32_0, %c0_i32_1 : i32, i32, i32
  }
  func.func @transform_21(%arg0: i32) -> (i32, i32) {
    %c0_i32 = arith.constant 0 : i32
    %c0_i32_0 = arith.constant 0 : i32
    %c0_i32_1 = arith.constant 0 : i32
    return %c0_i32, %c0_i32_0 : i32, i32
  }
  func.func @transform_22(%arg0: i32) -> (i32, i32) {
    %c0_i32 = arith.constant 0 : i32
    %c0_i32_0 = arith.constant 0 : i32
    %c0_i32_1 = arith.constant 0 : i32
    return %c0_i32, %c0_i32_0 : i32, i32
  }
  func.func @transform_23(%arg0: i32) -> (i32, i32) {
    %c0_i32 = arith.constant 0 : i32
    %c0_i32_0 = arith.constant 0 : i32
    %c0_i32_1 = arith.constant 0 : i32
    return %c0_i32, %c0_i32_0 : i32, i32
  }
  func.func @transform_24(%arg0: i32) -> (i32, i32) {
    %c0_i32 = arith.constant 0 : i32
    %c0_i32_0 = arith.constant 0 : i32
    %c0_i32_1 = arith.constant 0 : i32
    return %c0_i32, %c0_i32_0 : i32, i32
  }
  func.func @transform_25(%arg0: i32) -> (i32, i32) {
    %c0_i32 = arith.constant 0 : i32
    %c0_i32_0 = arith.constant 0 : i32
    %c0_i32_1 = arith.constant 0 : i32
    return %c0_i32, %c0_i32_0 : i32, i32
  }
  func.func @transform_26(%arg0: i32) -> (i32, i32, i32) {
    %c0_i32 = arith.constant 0 : i32
    %c0_i32_0 = arith.constant 0 : i32
    %c0_i32_1 = arith.constant 0 : i32
    %c0_i32_2 = arith.constant 0 : i32
    return %c0_i32, %c0_i32_0, %c0_i32_1 : i32, i32, i32
  }
  func.func @transform_27(%arg0: i32) -> (i32, i32) {
    %c0_i32 = arith.constant 0 : i32
    %c0_i32_0 = arith.constant 0 : i32
    %c0_i32_1 = arith.constant 0 : i32
    return %c0_i32, %c0_i32_0 : i32, i32
  }
  func.func @transform_28(%arg0: i32) -> (i32, i32) {
    %c0_i32 = arith.constant 0 : i32
    %c0_i32_0 = arith.constant 0 : i32
    %c0_i32_1 = arith.constant 0 : i32
    return %c0_i32, %c0_i32_0 : i32, i32
  }
  func.func @transform_29(%arg0: i32) -> (i32, i32) {
    %c0_i32 = arith.constant 0 : i32
    %c0_i32_0 = arith.constant 0 : i32
    %c0_i32_1 = arith.constant 0 : i32
    return %c0_i32, %c0_i32_0 : i32, i32
  }
  func.func @transform_30(%arg0: i32) -> (i32, i32, i32) {
    %c0_i32 = arith.constant 0 : i32
    %c0_i32_0 = arith.constant 0 : i32
    %c0_i32_1 = arith.constant 0 : i32
    %c0_i32_2 = arith.constant 0 : i32
    return %c0_i32, %c0_i32_0, %c0_i32_1 : i32, i32, i32
  }
  func.func @transform_31(%arg0: i32) -> (i32, i32) {
    %c0_i32 = arith.constant 0 : i32
    %c0_i32_0 = arith.constant 0 : i32
    %c0_i32_1 = arith.constant 0 : i32
    return %c0_i32, %c0_i32_0 : i32, i32
  }
  func.func @transform_32(%arg0: i32) -> (i32, i32, i32, i32) {
    %c0_i32 = arith.constant 0 : i32
    %c0_i32_0 = arith.constant 0 : i32
    %c0_i32_1 = arith.constant 0 : i32
    %c0_i32_2 = arith.constant 0 : i32
    return %arg0, %c0_i32, %c0_i32_0, %c0_i32_1 : i32, i32, i32, i32
  }
}

</mosaic_0001>

<llo_original>
// kernel: mid_block_nchw.1
$region0: #{mid_block_nchw.1}
  #allocation0 [shape = 'u32[]', space=smem, size = 0x4, offset = 0x4, fixed_abs, tag = 'smem constant byte address 0x4 - core index']
  #allocation1 [shape = 'u32[144,128]{1,0:T(1,128)}', space=vmem, size = 0x12000, scoped, tag = 'internal scratch']
  #allocation2 [shape = 'f32[10,10,8]{2,1,0:T(8,128)}', space=vmem, size = 0x14000, scoped, tag = 'scratch operand']
  %s0 = inlined_call_operand.smem [shape: u32[33], index: -1, kind: input, shape index: {}]
  %s1 = sld [smem:[%s0]]
  %s2 = scalar_lea.smem %s0, 1
  %s3 = sld [smem:[%s2]]
  %s4 = scalar_lea.smem %s0, 2
  %s5 = sld [smem:[%s4]]
  %s6 = scalar_lea.smem %s0, 3
  %s7 = sld [smem:[%s6]]
  %s8 = scalar_lea.smem %s0, 4
  %s9 = sld [smem:[%s8]]
  %s10 = scalar_lea.smem %s0, 5
  %s11 = sld [smem:[%s10]]
  %s12 = scalar_lea.smem %s0, 6
  %s13 = sld [smem:[%s12]]
  %s14 = scalar_lea.smem %s0, 7
  %s15 = sld [smem:[%s14]]
  %s16 = scalar_lea.smem %s0, 8
  %s17 = sld [smem:[%s16]]
  %s18 = scalar_lea.smem %s0, 9
  %s19 = sld [smem:[%s18]]
  %s20 = scalar_lea.smem %s0, 10
  %s21 = sld [smem:[%s20]]
  %s22 = scalar_lea.smem %s0, 11
  %s23 = sld [smem:[%s22]]
  %s24 = scalar_lea.smem %s0, 12
  %s25 = sld [smem:[%s24]]
  %s26 = scalar_lea.smem %s0, 13
  %s27 = sld [smem:[%s26]]
  %s28 = scalar_lea.smem %s0, 14
  %s29 = sld [smem:[%s28]]
  %s30 = scalar_lea.smem %s0, 15
  %s31 = sld [smem:[%s30]]
  %s32 = scalar_lea.smem %s0, 16
  %s33 = sld [smem:[%s32]]
  %s34 = scalar_lea.smem %s0, 17
  %s35 = sld [smem:[%s34]]
  %s36 = scalar_lea.smem %s0, 18
  %s37 = sld [smem:[%s36]]
  %s38 = scalar_lea.smem %s0, 19
  %s39 = sld [smem:[%s38]]
  %s40 = scalar_lea.smem %s0, 20
  %s41 = sld [smem:[%s40]]
  %s42 = scalar_lea.smem %s0, 21
  %s43 = sld [smem:[%s42]]
  %s44 = scalar_lea.smem %s0, 22
  %s45 = sld [smem:[%s44]]
  %s46 = scalar_lea.smem %s0, 23
  %s47 = sld [smem:[%s46]]
  %s48 = scalar_lea.smem %s0, 24
  %s49 = sld [smem:[%s48]]
  %s50 = scalar_lea.smem %s0, 25
  %s51 = sld [smem:[%s50]]
  %s52 = scalar_lea.smem %s0, 26
  %s53 = sld [smem:[%s52]]
  %s54 = scalar_lea.smem %s0, 27
  %s55 = sld [smem:[%s54]]
  %s56 = scalar_lea.smem %s0, 28
  %s57 = sld [smem:[%s56]]
  %s58 = scalar_lea.smem %s0, 29
  %s59 = sld [smem:[%s58]]
  %s60 = scalar_lea.smem %s0, 30
  %s61 = sld [smem:[%s60]]
  %s62 = scalar_lea.smem %s0, 31
  %s63 = sld [smem:[%s62]]
  %s64 = scalar_lea.smem %s0, 32
  %s65 = sld [smem:[%s64]]
  %s66 = sld [smem:[#allocation0]]
  $region161: #{mid_block_nchw.1} parent=0
    _
  %s68 = ssub.s32 1, %s66
  %s69 = scalar_select 0, %s68, %s66
  $region1: #{mid_block_nchw.1} parent=0
    #allocation3 [shape = 'u8[65536]{0}', space=vmem, size = 0x10000, scoped, tag = 'output window, operand 0']
    #allocation4 [shape = 's32[2]{0}', space=sflag, size = 0x8, scoped, tag = 'scoped memory for mid_block_nchw.1']
    %70 = vsyncpa [#allocation4], 0
    %s71 = scalar_lea.sflag [#allocation4], 1
    %72 = vsyncpa %s71, 0
    loop: start=0, step=1, limit=4
    $region2: #{mid_block_nchw.1} parent=1 // loop_pre_header
      _
    $region3: #{mid_block_nchw.1} parent=1 // loop_header
      %s74 = sphi 0, %s78
      %p75 = scmp.ge.s32.totalorder %s74, 4
      %s84 = sphi 0, %s86
      %s87 = sphi 0, %s84
      %s88 = sphi 0, %s87
      %s104 = sphi 0, %s88
      %s110 = sphi 0, %s112
      %s113 = sphi 0, %s110
      %s114 = sphi 0, %s113
      %s130 = sphi 0, %s114
      %s134 = sphi 0, %s134
      %s136 = sphi 0, %s134
      %s137 = sphi 0, %s136
      %s151 = sphi 0, %s137
      %s155 = sphi 0, %s155
      %s157 = sphi 0, %s155
      %s158 = sphi 0, %s157
      %s172 = sphi 0, %s158
      %s176 = sphi 0, %s176
      %s178 = sphi 0, %s176
      %s179 = sphi 0, %s178
      %s193 = sphi 0, %s179
      %s197 = sphi 0, %s197
      %s199 = sphi 0, %s197
      %s200 = sphi 0, %s199
      %s214 = sphi 0, %s200
      %s218 = sphi 0, %s218
      %s220 = sphi 0, %s218
      %s221 = sphi 0, %s220
      %s235 = sphi 0, %s221
      %s239 = sphi 0, %s239
      %s241 = sphi 0, %s239
      %s242 = sphi 0, %s241
      %s256 = sphi 0, %s242
      %s260 = sphi 0, %s260
      %s262 = sphi 0, %s260
      %s263 = sphi 0, %s262
      %s277 = sphi 0, %s263
      %s281 = sphi 0, %s281
      %s283 = sphi 0, %s281
      %s284 = sphi 0, %s283
      %s298 = sphi 0, %s284
      %s302 = sphi 0, %s302
      %s304 = sphi 0, %s302
      %s305 = sphi 0, %s304
      %s319 = sphi 0, %s305
      %s323 = sphi 0, %s323
      %s325 = sphi 0, %s323
      %s326 = sphi 0, %s325
      %s340 = sphi 0, %s326
      %s344 = sphi 0, %s344
      %s346 = sphi 0, %s344
      %s347 = sphi 0, %s346
      %s361 = sphi 0, %s347
      %s365 = sphi 0, %s365
      %s367 = sphi 0, %s365
      %s368 = sphi 0, %s367
      %s382 = sphi 0, %s368
      %s386 = sphi 0, %s386
      %s388 = sphi 0, %s386
      %s389 = sphi 0, %s388
      %s403 = sphi 0, %s389
      %s407 = sphi 0, %s407
      %s409 = sphi 0, %s407
      %s410 = sphi 0, %s409
      %s424 = sphi 0, %s410
      %s428 = sphi 0, %s428
      %s430 = sphi 0, %s428
      %s431 = sphi 0, %s430
      %s445 = sphi 0, %s431
      %s449 = sphi 0, %s449
      %s451 = sphi 0, %s449
      %s452 = sphi 0, %s451
      %s466 = sphi 0, %s452
      %s470 = sphi 0, %s470
      %s472 = sphi 0, %s470
      %s473 = sphi 0, %s472
      %s487 = sphi 0, %s473
      %s491 = sphi 0, %s491
      %s493 = sphi 0, %s491
      %s494 = sphi 0, %s493
      %s508 = sphi 0, %s494
      %s512 = sphi 0, %s512
      %s514 = sphi 0, %s512
      %s515 = sphi 0, %s514
      %s529 = sphi 0, %s515
      %s533 = sphi 0, %s533
      %s535 = sphi 0, %s533
      %s536 = sphi 0, %s535
      %s550 = sphi 0, %s536
      %s554 = sphi 0, %s554
      %s556 = sphi 0, %s554
      %s557 = sphi 0, %s556
      %s571 = sphi 0, %s557
      %s575 = sphi 0, %s575
      %s577 = sphi 0, %s575
      %s578 = sphi 0, %s577
      %s592 = sphi 0, %s578
      %s596 = sphi 0, %s596
      %s598 = sphi 0, %s596
      %s599 = sphi 0, %s598
      %s613 = sphi 0, %s599
      %s617 = sphi 0, %s617
      %s619 = sphi 0, %s617
      %s620 = sphi 0, %s619
      %s634 = sphi 0, %s620
      %s638 = sphi 0, %s638
      %s640 = sphi 0, %s638
      %s641 = sphi 0, %s640
      %s655 = sphi 0, %s641
      %s659 = sphi 0, %s659
      %s661 = sphi 0, %s659
      %s662 = sphi 0, %s661
      %s676 = sphi 0, %s662
      %s680 = sphi 0, %s680
      %s682 = sphi 0, %s680
      %s683 = sphi 0, %s682
      %s697 = sphi 0, %s683
      %s701 = sphi 0, %s701
      %s703 = sphi 0, %s701
      %s704 = sphi 0, %s703
      %s718 = sphi 0, %s704
      %s722 = sphi 0, %s722
      %s724 = sphi 0, %s722
      %s725 = sphi 0, %s724
      %s739 = sphi 0, %s725
      %s743 = sphi 0, %s743
      %s745 = sphi 0, %s743
      %s746 = sphi 0, %s745
      %s760 = sphi 0, %s746
      %s766 = sphi 0, %s768
      %s769 = sphi 0, %s766
      %s770 = sphi 0, %s769
      %s786 = sphi 0, %s770
    $region4: #{mid_block_nchw.1} parent=1 // loop_header_branch
      %77 = sbr.rel (%p75) target = $region8
    $region5: #{mid_block_nchw.1} parent=1 // loop_body
      %s79 = ssub.s32 %s74, 1
      %s80 = ssub.s32 %s74, 2
      %s81 = sadd.s32 %s74, 1
      %s82 = ssub.s32 %s74, %s81
      %p83 = scmp.eq.s32.totalorder %s82, 0
      %s85 = sadd.s32 %s84, 1
      %s86 = scalar_select %p83, %s84, %s85
      %p89 = pneg %p83
      %p90 = scmp.eq.s32.totalorder %s74, 1
      %p91 = por %p89, %p90
      %p92 = scmp.ne.s32.totalorder %s84, %s87
      %p93 = scmp.eq.s32.totalorder %s74, 0
      %p94 = por %p92, %p93
      %p95 = scmp.ne.s32.totalorder %s84, %s87
      %p96 = scmp.eq.s32.totalorder %s79, 1
      %p97 = por %p95, %p96
      %p98 = scmp.ne.s32.totalorder %s87, %s88
      %p99 = scmp.eq.s32.totalorder %s79, 0
      %p100 = por %p98, %p99
      %p101 = scmp.ne.s32.totalorder %s87, %s88
      %p102 = scmp.eq.s32.totalorder %s80, 1
      %p103 = por %p101, %p102
      %p105 = scmp.ne.s32.totalorder %s88, %s104
      %p106 = scmp.eq.s32.totalorder %s80, 0
      %p107 = por %p105, %p106
      %s108 = ssub.s32 %s74, %s81
      %p109 = scmp.eq.s32.totalorder %s108, 0
      %s111 = sadd.s32 %s110, 1
      %s112 = scalar_select %p109, %s110, %s111
      %p115 = pneg %p109
      %p116 = scmp.eq.s32.totalorder %s74, 1
      %p117 = por %p115, %p116
      %p118 = scmp.ne.s32.totalorder %s110, %s113
      %p119 = scmp.eq.s32.totalorder %s74, 0
      %p120 = por %p118, %p119
      %p121 = scmp.ne.s32.totalorder %s110, %s113
      %p122 = scmp.eq.s32.totalorder %s79, 1
      %p123 = por %p121, %p122
      %p124 = scmp.ne.s32.totalorder %s113, %s114
      %p125 = scmp.eq.s32.totalorder %s79, 0
      %p126 = por %p124, %p125
      %p127 = scmp.ne.s32.totalorder %s113, %s114
      %p128 = scmp.eq.s32.totalorder %s80, 1
      %p129 = por %p127, %p128
      %p131 = scmp.ne.s32.totalorder %s114, %s130
      %p132 = scmp.eq.s32.totalorder %s80, 0
      %p133 = por %p131, %p132
      %s135 = sadd.s32 %s134, 1
      %p138 = scmp.eq.s32.totalorder %s74, 1
      %p139 = scmp.ne.s32.totalorder %s134, %s136
      %p140 = scmp.eq.s32.totalorder %s74, 0
      %p141 = por %p139, %p140
      %p142 = scmp.ne.s32.totalorder %s134, %s136
      %p143 = scmp.eq.s32.totalorder %s79, 1
      %p144 = por %p142, %p143
      %p145 = scmp.ne.s32.totalorder %s136, %s137
      %p146 = scmp.eq.s32.totalorder %s79, 0
      %p147 = por %p145, %p146
      %p148 = scmp.ne.s32.totalorder %s136, %s137
      %p149 = scmp.eq.s32.totalorder %s80, 1
      %p150 = por %p148, %p149
      %p152 = scmp.ne.s32.totalorder %s137, %s151
      %p153 = scmp.eq.s32.totalorder %s80, 0
      %p154 = por %p152, %p153
      %s156 = sadd.s32 %s155, 1
      %p159 = scmp.eq.s32.totalorder %s74, 1
      %p160 = scmp.ne.s32.totalorder %s155, %s157
      %p161 = scmp.eq.s32.totalorder %s74, 0
      %p162 = por %p160, %p161
      %p163 = scmp.ne.s32.totalorder %s155, %s157
      %p164 = scmp.eq.s32.totalorder %s79, 1
      %p165 = por %p163, %p164
      %p166 = scmp.ne.s32.totalorder %s157, %s158
      %p167 = scmp.eq.s32.totalorder %s79, 0
      %p168 = por %p166, %p167
      %p169 = scmp.ne.s32.totalorder %s157, %s158
      %p170 = scmp.eq.s32.totalorder %s80, 1
      %p171 = por %p169, %p170
      %p173 = scmp.ne.s32.totalorder %s158, %s172
      %p174 = scmp.eq.s32.totalorder %s80, 0
      %p175 = por %p173, %p174
      %s177 = sadd.s32 %s176, 1
      %p180 = scmp.eq.s32.totalorder %s74, 1
      %p181 = scmp.ne.s32.totalorder %s176, %s178
      %p182 = scmp.eq.s32.totalorder %s74, 0
      %p183 = por %p181, %p182
      %p184 = scmp.ne.s32.totalorder %s176, %s178
      %p185 = scmp.eq.s32.totalorder %s79, 1
      %p186 = por %p184, %p185
      %p187 = scmp.ne.s32.totalorder %s178, %s179
      %p188 = scmp.eq.s32.totalorder %s79, 0
      %p189 = por %p187, %p188
      %p190 = scmp.ne.s32.totalorder %s178, %s179
      %p191 = scmp.eq.s32.totalorder %s80, 1
      %p192 = por %p190, %p191
      %p194 = scmp.ne.s32.totalorder %s179, %s193
      %p195 = scmp.eq.s32.totalorder %s80, 0
      %p196 = por %p194, %p195
      %s198 = sadd.s32 %s197, 1
      %p201 = scmp.eq.s32.totalorder %s74, 1
      %p202 = scmp.ne.s32.totalorder %s197, %s199
      %p203 = scmp.eq.s32.totalorder %s74, 0
      %p204 = por %p202, %p203
      %p205 = scmp.ne.s32.totalorder %s197, %s199
      %p206 = scmp.eq.s32.totalorder %s79, 1
      %p207 = por %p205, %p206
      %p208 = scmp.ne.s32.totalorder %s199, %s200
      %p209 = scmp.eq.s32.totalorder %s79, 0
      %p210 = por %p208, %p209
      %p211 = scmp.ne.s32.totalorder %s199, %s200
      %p212 = scmp.eq.s32.totalorder %s80, 1
      %p213 = por %p211, %p212
      %p215 = scmp.ne.s32.totalorder %s200, %s214
      %p216 = scmp.eq.s32.totalorder %s80, 0
      %p217 = por %p215, %p216
      %s219 = sadd.s32 %s218, 1
      %p222 = scmp.eq.s32.totalorder %s74, 1
      %p223 = scmp.ne.s32.totalorder %s218, %s220
      %p224 = scmp.eq.s32.totalorder %s74, 0
      %p225 = por %p223, %p224
      %p226 = scmp.ne.s32.totalorder %s218, %s220
      %p227 = scmp.eq.s32.totalorder %s79, 1
      %p228 = por %p226, %p227
      %p229 = scmp.ne.s32.totalorder %s220, %s221
      %p230 = scmp.eq.s32.totalorder %s79, 0
      %p231 = por %p229, %p230
      %p232 = scmp.ne.s32.totalorder %s220, %s221
      %p233 = scmp.eq.s32.totalorder %s80, 1
      %p234 = por %p232, %p233
      %p236 = scmp.ne.s32.totalorder %s221, %s235
      %p237 = scmp.eq.s32.totalorder %s80, 0
      %p238 = por %p236, %p237
      %s240 = sadd.s32 %s239, 1
      %p243 = scmp.eq.s32.totalorder %s74, 1
      %p244 = scmp.ne.s32.totalorder %s239, %s241
      %p245 = scmp.eq.s32.totalorder %s74, 0
      %p246 = por %p244, %p245
      %p247 = scmp.ne.s32.totalorder %s239, %s241
      %p248 = scmp.eq.s32.totalorder %s79, 1
      %p249 = por %p247, %p248
      %p250 = scmp.ne.s32.totalorder %s241, %s242
      %p251 = scmp.eq.s32.totalorder %s79, 0
      %p252 = por %p250, %p251
      %p253 = scmp.ne.s32.totalorder %s241, %s242
      %p254 = scmp.eq.s32.totalorder %s80, 1
      %p255 = por %p253, %p254
      %p257 = scmp.ne.s32.totalorder %s242, %s256
      %p258 = scmp.eq.s32.totalorder %s80, 0
      %p259 = por %p257, %p258
      %s261 = sadd.s32 %s260, 1
      %p264 = scmp.eq.s32.totalorder %s74, 1
      %p265 = scmp.ne.s32.totalorder %s260, %s262
      %p266 = scmp.eq.s32.totalorder %s74, 0
      %p267 = por %p265, %p266
      %p268 = scmp.ne.s32.totalorder %s260, %s262
      %p269 = scmp.eq.s32.totalorder %s79, 1
      %p270 = por %p268, %p269
      %p271 = scmp.ne.s32.totalorder %s262, %s263
      %p272 = scmp.eq.s32.totalorder %s79, 0
      %p273 = por %p271, %p272
      %p274 = scmp.ne.s32.totalorder %s262, %s263
      %p275 = scmp.eq.s32.totalorder %s80, 1
      %p276 = por %p274, %p275
      %p278 = scmp.ne.s32.totalorder %s263, %s277
      %p279 = scmp.eq.s32.totalorder %s80, 0
      %p280 = por %p278, %p279
      %s282 = sadd.s32 %s281, 1
      %p285 = scmp.eq.s32.totalorder %s74, 1
      %p286 = scmp.ne.s32.totalorder %s281, %s283
      %p287 = scmp.eq.s32.totalorder %s74, 0
      %p288 = por %p286, %p287
      %p289 = scmp.ne.s32.totalorder %s281, %s283
      %p290 = scmp.eq.s32.totalorder %s79, 1
      %p291 = por %p289, %p290
      %p292 = scmp.ne.s32.totalorder %s283, %s284
      %p293 = scmp.eq.s32.totalorder %s79, 0
      %p294 = por %p292, %p293
      %p295 = scmp.ne.s32.totalorder %s283, %s284
      %p296 = scmp.eq.s32.totalorder %s80, 1
      %p297 = por %p295, %p296
      %p299 = scmp.ne.s32.totalorder %s284, %s298
      %p300 = scmp.eq.s32.totalorder %s80, 0
      %p301 = por %p299, %p300
      %s303 = sadd.s32 %s302, 1
      %p306 = scmp.eq.s32.totalorder %s74, 1
      %p307 = scmp.ne.s32.totalorder %s302, %s304
      %p308 = scmp.eq.s32.totalorder %s74, 0
      %p309 = por %p307, %p308
      %p310 = scmp.ne.s32.totalorder %s302, %s304
      %p311 = scmp.eq.s32.totalorder %s79, 1
      %p312 = por %p310, %p311
      %p313 = scmp.ne.s32.totalorder %s304, %s305
      %p314 = scmp.eq.s32.totalorder %s79, 0
      %p315 = por %p313, %p314
      %p316 = scmp.ne.s32.totalorder %s304, %s305
      %p317 = scmp.eq.s32.totalorder %s80, 1
      %p318 = por %p316, %p317
      %p320 = scmp.ne.s32.totalorder %s305, %s319
      %p321 = scmp.eq.s32.totalorder %s80, 0
      %p322 = por %p320, %p321
      %s324 = sadd.s32 %s323, 1
      %p327 = scmp.eq.s32.totalorder %s74, 1
      %p328 = scmp.ne.s32.totalorder %s323, %s325
      %p329 = scmp.eq.s32.totalorder %s74, 0
      %p330 = por %p328, %p329
      %p331 = scmp.ne.s32.totalorder %s323, %s325
      %p332 = scmp.eq.s32.totalorder %s79, 1
      %p333 = por %p331, %p332
      %p334 = scmp.ne.s32.totalorder %s325, %s326
      %p335 = scmp.eq.s32.totalorder %s79, 0
      %p336 = por %p334, %p335
      %p337 = scmp.ne.s32.totalorder %s325, %s326
      %p338 = scmp.eq.s32.totalorder %s80, 1
      %p339 = por %p337, %p338
      %p341 = scmp.ne.s32.totalorder %s326, %s340
      %p342 = scmp.eq.s32.totalorder %s80, 0
      %p343 = por %p341, %p342
      %s345 = sadd.s32 %s344, 1
      %p348 = scmp.eq.s32.totalorder %s74, 1
      %p349 = scmp.ne.s32.totalorder %s344, %s346
      %p350 = scmp.eq.s32.totalorder %s74, 0
      %p351 = por %p349, %p350
      %p352 = scmp.ne.s32.totalorder %s344, %s346
      %p353 = scmp.eq.s32.totalorder %s79, 1
      %p354 = por %p352, %p353
      %p355 = scmp.ne.s32.totalorder %s346, %s347
      %p356 = scmp.eq.s32.totalorder %s79, 0
      %p357 = por %p355, %p356
      %p358 = scmp.ne.s32.totalorder %s346, %s347
      %p359 = scmp.eq.s32.totalorder %s80, 1
      %p360 = por %p358, %p359
      %p362 = scmp.ne.s32.totalorder %s347, %s361
      %p363 = scmp.eq.s32.totalorder %s80, 0
      %p364 = por %p362, %p363
      %s366 = sadd.s32 %s365, 1
      %p369 = scmp.eq.s32.totalorder %s74, 1
      %p370 = scmp.ne.s32.totalorder %s365, %s367
      %p371 = scmp.eq.s32.totalorder %s74, 0
      %p372 = por %p370, %p371
      %p373 = scmp.ne.s32.totalorder %s365, %s367
      %p374 = scmp.eq.s32.totalorder %s79, 1
      %p375 = por %p373, %p374
      %p376 = scmp.ne.s32.totalorder %s367, %s368
      %p377 = scmp.eq.s32.totalorder %s79, 0
      %p378 = por %p376, %p377
      %p379 = scmp.ne.s32.totalorder %s367, %s368
      %p380 = scmp.eq.s32.totalorder %s80, 1
      %p381 = por %p379, %p380
      %p383 = scmp.ne.s32.totalorder %s368, %s382
      %p384 = scmp.eq.s32.totalorder %s80, 0
      %p385 = por %p383, %p384
      %s387 = sadd.s32 %s386, 1
      %p390 = scmp.eq.s32.totalorder %s74, 1
      %p391 = scmp.ne.s32.totalorder %s386, %s388
      %p392 = scmp.eq.s32.totalorder %s74, 0
      %p393 = por %p391, %p392
      %p394 = scmp.ne.s32.totalorder %s386, %s388
      %p395 = scmp.eq.s32.totalorder %s79, 1
      %p396 = por %p394, %p395
      %p397 = scmp.ne.s32.totalorder %s388, %s389
      %p398 = scmp.eq.s32.totalorder %s79, 0
      %p399 = por %p397, %p398
      %p400 = scmp.ne.s32.totalorder %s388, %s389
      %p401 = scmp.eq.s32.totalorder %s80, 1
      %p402 = por %p400, %p401
      %p404 = scmp.ne.s32.totalorder %s389, %s403
      %p405 = scmp.eq.s32.totalorder %s80, 0
      %p406 = por %p404, %p405
      %s408 = sadd.s32 %s407, 1
      %p411 = scmp.eq.s32.totalorder %s74, 1
      %p412 = scmp.ne.s32.totalorder %s407, %s409
      %p413 = scmp.eq.s32.totalorder %s74, 0
      %p414 = por %p412, %p413
      %p415 = scmp.ne.s32.totalorder %s407, %s409
      %p416 = scmp.eq.s32.totalorder %s79, 1
      %p417 = por %p415, %p416
      %p418 = scmp.ne.s32.totalorder %s409, %s410
      %p419 = scmp.eq.s32.totalorder %s79, 0
      %p420 = por %p418, %p419
      %p421 = scmp.ne.s32.totalorder %s409, %s410
      %p422 = scmp.eq.s32.totalorder %s80, 1
      %p423 = por %p421, %p422
      %p425 = scmp.ne.s32.totalorder %s410, %s424
      %p426 = scmp.eq.s32.totalorder %s80, 0
      %p427 = por %p425, %p426
      %s429 = sadd.s32 %s428, 1
      %p432 = scmp.eq.s32.totalorder %s74, 1
      %p433 = scmp.ne.s32.totalorder %s428, %s430
      %p434 = scmp.eq.s32.totalorder %s74, 0
      %p435 = por %p433, %p434
      %p436 = scmp.ne.s32.totalorder %s428, %s430
      %p437 = scmp.eq.s32.totalorder %s79, 1
      %p438 = por %p436, %p437
      %p439 = scmp.ne.s32.totalorder %s430, %s431
      %p440 = scmp.eq.s32.totalorder %s79, 0
      %p441 = por %p439, %p440
      %p442 = scmp.ne.s32.totalorder %s430, %s431
      %p443 = scmp.eq.s32.totalorder %s80, 1
      %p444 = por %p442, %p443
      %p446 = scmp.ne.s32.totalorder %s431, %s445
      %p447 = scmp.eq.s32.totalorder %s80, 0
      %p448 = por %p446, %p447
      %s450 = sadd.s32 %s449, 1
      %p453 = scmp.eq.s32.totalorder %s74, 1
      %p454 = scmp.ne.s32.totalorder %s449, %s451
      %p455 = scmp.eq.s32.totalorder %s74, 0
      %p456 = por %p454, %p455
      %p457 = scmp.ne.s32.totalorder %s449, %s451
      %p458 = scmp.eq.s32.totalorder %s79, 1
      %p459 = por %p457, %p458
      %p460 = scmp.ne.s32.totalorder %s451, %s452
      %p461 = scmp.eq.s32.totalorder %s79, 0
      %p462 = por %p460, %p461
      %p463 = scmp.ne.s32.totalorder %s451, %s452
      %p464 = scmp.eq.s32.totalorder %s80, 1
      %p465 = por %p463, %p464
      %p467 = scmp.ne.s32.totalorder %s452, %s466
      %p468 = scmp.eq.s32.totalorder %s80, 0
      %p469 = por %p467, %p468
      %s471 = sadd.s32 %s470, 1
      %p474 = scmp.eq.s32.totalorder %s74, 1
      %p475 = scmp.ne.s32.totalorder %s470, %s472
      %p476 = scmp.eq.s32.totalorder %s74, 0
      %p477 = por %p475, %p476
      %p478 = scmp.ne.s32.totalorder %s470, %s472
      %p479 = scmp.eq.s32.totalorder %s79, 1
      %p480 = por %p478, %p479
      %p481 = scmp.ne.s32.totalorder %s472, %s473
      %p482 = scmp.eq.s32.totalorder %s79, 0
      %p483 = por %p481, %p482
      %p484 = scmp.ne.s32.totalorder %s472, %s473
      %p485 = scmp.eq.s32.totalorder %s80, 1
      %p486 = por %p484, %p485
      %p488 = scmp.ne.s32.totalorder %s473, %s487
      %p489 = scmp.eq.s32.totalorder %s80, 0
      %p490 = por %p488, %p489
      %s492 = sadd.s32 %s491, 1
      %p495 = scmp.eq.s32.totalorder %s74, 1
      %p496 = scmp.ne.s32.totalorder %s491, %s493
      %p497 = scmp.eq.s32.totalorder %s74, 0
      %p498 = por %p496, %p497
      %p499 = scmp.ne.s32.totalorder %s491, %s493
      %p500 = scmp.eq.s32.totalorder %s79, 1
      %p501 = por %p499, %p500
      %p502 = scmp.ne.s32.totalorder %s493, %s494
      %p503 = scmp.eq.s32.totalorder %s79, 0
      %p504 = por %p502, %p503
      %p505 = scmp.ne.s32.totalorder %s493, %s494
      %p506 = scmp.eq.s32.totalorder %s80, 1
      %p507 = por %p505, %p506
      %p509 = scmp.ne.s32.totalorder %s494, %s508
      %p510 = scmp.eq.s32.totalorder %s80, 0
      %p511 = por %p509, %p510
      %s513 = sadd.s32 %s512, 1
      %p516 = scmp.eq.s32.totalorder %s74, 1
      %p517 = scmp.ne.s32.totalorder %s512, %s514
      %p518 = scmp.eq.s32.totalorder %s74, 0
      %p519 = por %p517, %p518
      %p520 = scmp.ne.s32.totalorder %s512, %s514
      %p521 = scmp.eq.s32.totalorder %s79, 1
      %p522 = por %p520, %p521
      %p523 = scmp.ne.s32.totalorder %s514, %s515
      %p524 = scmp.eq.s32.totalorder %s79, 0
      %p525 = por %p523, %p524
      %p526 = scmp.ne.s32.totalorder %s514, %s515
      %p527 = scmp.eq.s32.totalorder %s80, 1
      %p528 = por %p526, %p527
      %p530 = scmp.ne.s32.totalorder %s515, %s529
      %p531 = scmp.eq.s32.totalorder %s80, 0
      %p532 = por %p530, %p531
      %s534 = sadd.s32 %s533, 1
      %p537 = scmp.eq.s32.totalorder %s74, 1
      %p538 = scmp.ne.s32.totalorder %s533, %s535
      %p539 = scmp.eq.s32.totalorder %s74, 0
      %p540 = por %p538, %p539
      %p541 = scmp.ne.s32.totalorder %s533, %s535
      %p542 = scmp.eq.s32.totalorder %s79, 1
      %p543 = por %p541, %p542
      %p544 = scmp.ne.s32.totalorder %s535, %s536
      %p545 = scmp.eq.s32.totalorder %s79, 0
      %p546 = por %p544, %p545
      %p547 = scmp.ne.s32.totalorder %s535, %s536
      %p548 = scmp.eq.s32.totalorder %s80, 1
      %p549 = por %p547, %p548
      %p551 = scmp.ne.s32.totalorder %s536, %s550
      %p552 = scmp.eq.s32.totalorder %s80, 0
      %p553 = por %p551, %p552
      %s555 = sadd.s32 %s554, 1
      %p558 = scmp.eq.s32.totalorder %s74, 1
      %p559 = scmp.ne.s32.totalorder %s554, %s556
      %p560 = scmp.eq.s32.totalorder %s74, 0
      %p561 = por %p559, %p560
      %p562 = scmp.ne.s32.totalorder %s554, %s556
      %p563 = scmp.eq.s32.totalorder %s79, 1
      %p564 = por %p562, %p563
      %p565 = scmp.ne.s32.totalorder %s556, %s557
      %p566 = scmp.eq.s32.totalorder %s79, 0
      %p567 = por %p565, %p566
      %p568 = scmp.ne.s32.totalorder %s556, %s557
      %p569 = scmp.eq.s32.totalorder %s80, 1
      %p570 = por %p568, %p569
      %p572 = scmp.ne.s32.totalorder %s557, %s571
      %p573 = scmp.eq.s32.totalorder %s80, 0
      %p574 = por %p572, %p573
      %s576 = sadd.s32 %s575, 1
      %p579 = scmp.eq.s32.totalorder %s74, 1
      %p580 = scmp.ne.s32.totalorder %s575, %s577
      %p581 = scmp.eq.s32.totalorder %s74, 0
      %p582 = por %p580, %p581
      %p583 = scmp.ne.s32.totalorder %s575, %s577
      %p584 = scmp.eq.s32.totalorder %s79, 1
      %p585 = por %p583, %p584
      %p586 = scmp.ne.s32.totalorder %s577, %s578
      %p587 = scmp.eq.s32.totalorder %s79, 0
      %p588 = por %p586, %p587
      %p589 = scmp.ne.s32.totalorder %s577, %s578
      %p590 = scmp.eq.s32.totalorder %s80, 1
      %p591 = por %p589, %p590
      %p593 = scmp.ne.s32.totalorder %s578, %s592
      %p594 = scmp.eq.s32.totalorder %s80, 0
      %p595 = por %p593, %p594
      %s597 = sadd.s32 %s596, 1
      %p600 = scmp.eq.s32.totalorder %s74, 1
      %p601 = scmp.ne.s32.totalorder %s596, %s598
      %p602 = scmp.eq.s32.totalorder %s74, 0
      %p603 = por %p601, %p602
      %p604 = scmp.ne.s32.totalorder %s596, %s598
      %p605 = scmp.eq.s32.totalorder %s79, 1
      %p606 = por %p604, %p605
      %p607 = scmp.ne.s32.totalorder %s598, %s599
      %p608 = scmp.eq.s32.totalorder %s79, 0
      %p609 = por %p607, %p608
      %p610 = scmp.ne.s32.totalorder %s598, %s599
      %p611 = scmp.eq.s32.totalorder %s80, 1
      %p612 = por %p610, %p611
      %p614 = scmp.ne.s32.totalorder %s599, %s613
      %p615 = scmp.eq.s32.totalorder %s80, 0
      %p616 = por %p614, %p615
      %s618 = sadd.s32 %s617, 1
      %p621 = scmp.eq.s32.totalorder %s74, 1
      %p622 = scmp.ne.s32.totalorder %s617, %s619
      %p623 = scmp.eq.s32.totalorder %s74, 0
      %p624 = por %p622, %p623
      %p625 = scmp.ne.s32.totalorder %s617, %s619
      %p626 = scmp.eq.s32.totalorder %s79, 1
      %p627 = por %p625, %p626
      %p628 = scmp.ne.s32.totalorder %s619, %s620
      %p629 = scmp.eq.s32.totalorder %s79, 0
      %p630 = por %p628, %p629
      %p631 = scmp.ne.s32.totalorder %s619, %s620
      %p632 = scmp.eq.s32.totalorder %s80, 1
      %p633 = por %p631, %p632
      %p635 = scmp.ne.s32.totalorder %s620, %s634
      %p636 = scmp.eq.s32.totalorder %s80, 0
      %p637 = por %p635, %p636
      %s639 = sadd.s32 %s638, 1
      %p642 = scmp.eq.s32.totalorder %s74, 1
      %p643 = scmp.ne.s32.totalorder %s638, %s640
      %p644 = scmp.eq.s32.totalorder %s74, 0
      %p645 = por %p643, %p644
      %p646 = scmp.ne.s32.totalorder %s638, %s640
      %p647 = scmp.eq.s32.totalorder %s79, 1
      %p648 = por %p646, %p647
      %p649 = scmp.ne.s32.totalorder %s640, %s641
      %p650 = scmp.eq.s32.totalorder %s79, 0
      %p651 = por %p649, %p650
      %p652 = scmp.ne.s32.totalorder %s640, %s641
      %p653 = scmp.eq.s32.totalorder %s80, 1
      %p654 = por %p652, %p653
      %p656 = scmp.ne.s32.totalorder %s641, %s655
      %p657 = scmp.eq.s32.totalorder %s80, 0
      %p658 = por %p656, %p657
      %s660 = sadd.s32 %s659, 1
      %p663 = scmp.eq.s32.totalorder %s74, 1
      %p664 = scmp.ne.s32.totalorder %s659, %s661
      %p665 = scmp.eq.s32.totalorder %s74, 0
      %p666 = por %p664, %p665
      %p667 = scmp.ne.s32.totalorder %s659, %s661
      %p668 = scmp.eq.s32.totalorder %s79, 1
      %p669 = por %p667, %p668
      %p670 = scmp.ne.s32.totalorder %s661, %s662
      %p671 = scmp.eq.s32.totalorder %s79, 0
      %p672 = por %p670, %p671
      %p673 = scmp.ne.s32.totalorder %s661, %s662
      %p674 = scmp.eq.s32.totalorder %s80, 1
      %p675 = por %p673, %p674
      %p677 = scmp.ne.s32.totalorder %s662, %s676
      %p678 = scmp.eq.s32.totalorder %s80, 0
      %p679 = por %p677, %p678
      %s681 = sadd.s32 %s680, 1
      %p684 = scmp.eq.s32.totalorder %s74, 1
      %p685 = scmp.ne.s32.totalorder %s680, %s682
      %p686 = scmp.eq.s32.totalorder %s74, 0
      %p687 = por %p685, %p686
      %p688 = scmp.ne.s32.totalorder %s680, %s682
      %p689 = scmp.eq.s32.totalorder %s79, 1
      %p690 = por %p688, %p689
      %p691 = scmp.ne.s32.totalorder %s682, %s683
      %p692 = scmp.eq.s32.totalorder %s79, 0
      %p693 = por %p691, %p692
      %p694 = scmp.ne.s32.totalorder %s682, %s683
      %p695 = scmp.eq.s32.totalorder %s80, 1
      %p696 = por %p694, %p695
      %p698 = scmp.ne.s32.totalorder %s683, %s697
      %p699 = scmp.eq.s32.totalorder %s80, 0
      %p700 = por %p698, %p699
      %s702 = sadd.s32 %s701, 1
      %p705 = scmp.eq.s32.totalorder %s74, 1
      %p706 = scmp.ne.s32.totalorder %s701, %s703
      %p707 = scmp.eq.s32.totalorder %s74, 0
      %p708 = por %p706, %p707
      %p709 = scmp.ne.s32.totalorder %s701, %s703
      %p710 = scmp.eq.s32.totalorder %s79, 1
      %p711 = por %p709, %p710
      %p712 = scmp.ne.s32.totalorder %s703, %s704
      %p713 = scmp.eq.s32.totalorder %s79, 0
      %p714 = por %p712, %p713
      %p715 = scmp.ne.s32.totalorder %s703, %s704
      %p716 = scmp.eq.s32.totalorder %s80, 1
      %p717 = por %p715, %p716
      %p719 = scmp.ne.s32.totalorder %s704, %s718
      %p720 = scmp.eq.s32.totalorder %s80, 0
      %p721 = por %p719, %p720
      %s723 = sadd.s32 %s722, 1
      %p726 = scmp.eq.s32.totalorder %s74, 1
      %p727 = scmp.ne.s32.totalorder %s722, %s724
      %p728 = scmp.eq.s32.totalorder %s74, 0
      %p729 = por %p727, %p728
      %p730 = scmp.ne.s32.totalorder %s722, %s724
      %p731 = scmp.eq.s32.totalorder %s79, 1
      %p732 = por %p730, %p731
      %p733 = scmp.ne.s32.totalorder %s724, %s725
      %p734 = scmp.eq.s32.totalorder %s79, 0
      %p735 = por %p733, %p734
      %p736 = scmp.ne.s32.totalorder %s724, %s725
      %p737 = scmp.eq.s32.totalorder %s80, 1
      %p738 = por %p736, %p737
      %p740 = scmp.ne.s32.totalorder %s725, %s739
      %p741 = scmp.eq.s32.totalorder %s80, 0
      %p742 = por %p740, %p741
      %s744 = sadd.s32 %s743, 1
      %p747 = scmp.eq.s32.totalorder %s74, 1
      %p748 = scmp.ne.s32.totalorder %s743, %s745
      %p749 = scmp.eq.s32.totalorder %s74, 0
      %p750 = por %p748, %p749
      %p751 = scmp.ne.s32.totalorder %s743, %s745
      %p752 = scmp.eq.s32.totalorder %s79, 1
      %p753 = por %p751, %p752
      %p754 = scmp.ne.s32.totalorder %s745, %s746
      %p755 = scmp.eq.s32.totalorder %s79, 0
      %p756 = por %p754, %p755
      %p757 = scmp.ne.s32.totalorder %s745, %s746
      %p758 = scmp.eq.s32.totalorder %s80, 1
      %p759 = por %p757, %p758
      %p761 = scmp.ne.s32.totalorder %s746, %s760
      %p762 = scmp.eq.s32.totalorder %s80, 0
      %p763 = por %p761, %p762
      %s764 = ssub.s32 %s74, %s81
      %p765 = scmp.eq.s32.totalorder %s764, 0
      %s767 = sadd.s32 %s766, 1
      %s768 = scalar_select %p765, %s766, %s767
      %p771 = pneg %p765
      %p772 = scmp.eq.s32.totalorder %s74, 1
      %p773 = por %p771, %p772
      %p774 = scmp.ne.s32.totalorder %s766, %s769
      %p775 = scmp.eq.s32.totalorder %s74, 0
      %p776 = por %p774, %p775
      %p777 = scmp.ne.s32.totalorder %s766, %s769
      %p778 = scmp.eq.s32.totalorder %s79, 1
      %p779 = por %p777, %p778
      %p780 = scmp.ne.s32.totalorder %s769, %s770
      %p781 = scmp.eq.s32.totalorder %s79, 0
      %p782 = por %p780, %p781
      %p783 = scmp.ne.s32.totalorder %s769, %s770
      %p784 = scmp.eq.s32.totalorder %s80, 1
      %p785 = por %p783, %p784
      %p787 = scmp.ne.s32.totalorder %s770, %s786
      %p788 = scmp.eq.s32.totalorder %s80, 0
      %p789 = por %p787, %p788
      %p790 = scmp.le.s32.totalorder 1, %s74
      %p791 = scmp.lt.s32.totalorder %s74, 3
      %p792 = pnand %p790, %p791
      %p793 = pneg %p792
      // Predicated region
      $region9: #{mid_block_nchw.1} parent=5 // pred_check
        _
      $region10: #{mid_block_nchw.1} parent=5 // pred_check_branch
        %795 = sbr.rel (%p792) target = $region12
      $region11: #{mid_block_nchw.1} parent=5 // pred_region
        %s796 = ssub.s32 %s74, 1
        // Predicated region
        $region13: #{mid_block_nchw.1} parent=11 // pred_check
          %p797 = pneg %p147
        $region14: #{mid_block_nchw.1} parent=11 // pred_check_branch
          %799 = sbr.rel (%p797) target = $region16
        $region15: #{mid_block_nchw.1} parent=11 // pred_region
          _
        $region16: #{mid_block_nchw.1} parent=11 // pred_fallthru
          _
        // Predicated region
        $region17: #{mid_block_nchw.1} parent=11 // pred_check
          %p800 = pneg %p168
        $region18: #{mid_block_nchw.1} parent=11 // pred_check_branch
          %802 = sbr.rel (%p800) target = $region20
        $region19: #{mid_block_nchw.1} parent=11 // pred_region
          _
        $region20: #{mid_block_nchw.1} parent=11 // pred_fallthru
          _
        // Predicated region
        $region21: #{mid_block_nchw.1} parent=11 // pred_check
          %p803 = pneg %p189
        $region22: #{mid_block_nchw.1} parent=11 // pred_check_branch
          %805 = sbr.rel (%p803) target = $region24
        $region23: #{mid_block_nchw.1} parent=11 // pred_region
          _
        $region24: #{mid_block_nchw.1} parent=11 // pred_fallthru
          _
        // Predicated region
        $region25: #{mid_block_nchw.1} parent=11 // pred_check
          %p806 = pneg %p210
        $region26: #{mid_block_nchw.1} parent=11 // pred_check_branch
          %808 = sbr.rel (%p806) target = $region28
        $region27: #{mid_block_nchw.1} parent=11 // pred_region
          _
        $region28: #{mid_block_nchw.1} parent=11 // pred_fallthru
          _
        // Predicated region
        $region29: #{mid_block_nchw.1} parent=11 // pred_check
          %p809 = pneg %p231
        $region30: #{mid_block_nchw.1} parent=11 // pred_check_branch
          %811 = sbr.rel (%p809) target = $region32
        $region31: #{mid_block_nchw.1} parent=11 // pred_region
          _
        $region32: #{mid_block_nchw.1} parent=11 // pred_fallthru
          _
        // Predicated region
        $region33: #{mid_block_nchw.1} parent=11 // pred_check
          %p812 = pneg %p252
        $region34: #{mid_block_nchw.1} parent=11 // pred_check_branch
          %814 = sbr.rel (%p812) target = $region36
        $region35: #{mid_block_nchw.1} parent=11 // pred_region
          _
        $region36: #{mid_block_nchw.1} parent=11 // pred_fallthru
          _
        // Predicated region
        $region37: #{mid_block_nchw.1} parent=11 // pred_check
          %p815 = pneg %p273
        $region38: #{mid_block_nchw.1} parent=11 // pred_check_branch
          %817 = sbr.rel (%p815) target = $region40
        $region39: #{mid_block_nchw.1} parent=11 // pred_region
          _
        $region40: #{mid_block_nchw.1} parent=11 // pred_fallthru
          _
        // Predicated region
        $region41: #{mid_block_nchw.1} parent=11 // pred_check
          %p818 = pneg %p294
        $region42: #{mid_block_nchw.1} parent=11 // pred_check_branch
          %820 = sbr.rel (%p818) target = $region44
        $region43: #{mid_block_nchw.1} parent=11 // pred_region
          _
        $region44: #{mid_block_nchw.1} parent=11 // pred_fallthru
          _
        // Predicated region
        $region45: #{mid_block_nchw.1} parent=11 // pred_check
          %p821 = pneg %p315
        $region46: #{mid_block_nchw.1} parent=11 // pred_check_branch
          %823 = sbr.rel (%p821) target = $region48
        $region47: #{mid_block_nchw.1} parent=11 // pred_region
          _
        $region48: #{mid_block_nchw.1} parent=11 // pred_fallthru
          _
        // Predicated region
        $region49: #{mid_block_nchw.1} parent=11 // pred_check
          %p824 = pneg %p336
        $region50: #{mid_block_nchw.1} parent=11 // pred_check_branch
          %826 = sbr.rel (%p824) target = $region52
        $region51: #{mid_block_nchw.1} parent=11 // pred_region
          _
        $region52: #{mid_block_nchw.1} parent=11 // pred_fallthru
          _
        // Predicated region
        $region53: #{mid_block_nchw.1} parent=11 // pred_check
          %p827 = pneg %p357
        $region54: #{mid_block_nchw.1} parent=11 // pred_check_branch
          %829 = sbr.rel (%p827) target = $region56
        $region55: #{mid_block_nchw.1} parent=11 // pred_region
          _
        $region56: #{mid_block_nchw.1} parent=11 // pred_fallthru
          _
        // Predicated region
        $region57: #{mid_block_nchw.1} parent=11 // pred_check
          %p830 = pneg %p378
        $region58: #{mid_block_nchw.1} parent=11 // pred_check_branch
          %832 = sbr.rel (%p830) target = $region60
        $region59: #{mid_block_nchw.1} parent=11 // pred_region
          _
        $region60: #{mid_block_nchw.1} parent=11 // pred_fallthru
          _
        // Predicated region
        $region61: #{mid_block_nchw.1} parent=11 // pred_check
          %p833 = pneg %p399
        $region62: #{mid_block_nchw.1} parent=11 // pred_check_branch
          %835 = sbr.rel (%p833) target = $region64
        $region63: #{mid_block_nchw.1} parent=11 // pred_region
          _
        $region64: #{mid_block_nchw.1} parent=11 // pred_fallthru
          _
        // Predicated region
        $region65: #{mid_block_nchw.1} parent=11 // pred_check
          %p836 = pneg %p420
        $region66: #{mid_block_nchw.1} parent=11 // pred_check_branch
          %838 = sbr.rel (%p836) target = $region68
        $region67: #{mid_block_nchw.1} parent=11 // pred_region
          _
        $region68: #{mid_block_nchw.1} parent=11 // pred_fallthru
          _
        // Predicated region
        $region69: #{mid_block_nchw.1} parent=11 // pred_check
          %p839 = pneg %p441
        $region70: #{mid_block_nchw.1} parent=11 // pred_check_branch
          %841 = sbr.rel (%p839) target = $region72
        $region71: #{mid_block_nchw.1} parent=11 // pred_region
          _
        $region72: #{mid_block_nchw.1} parent=11 // pred_fallthru
          _
        // Predicated region
        $region73: #{mid_block_nchw.1} parent=11 // pred_check
          %p842 = pneg %p462
        $region74: #{mid_block_nchw.1} parent=11 // pred_check_branch
          %844 = sbr.rel (%p842) target = $region76
        $region75: #{mid_block_nchw.1} parent=11 // pred_region
          _
        $region76: #{mid_block_nchw.1} parent=11 // pred_fallthru
          _
        // Predicated region
        $region77: #{mid_block_nchw.1} parent=11 // pred_check
          %p845 = pneg %p483
        $region78: #{mid_block_nchw.1} parent=11 // pred_check_branch
          %847 = sbr.rel (%p845) target = $region80
        $region79: #{mid_block_nchw.1} parent=11 // pred_region
          _
        $region80: #{mid_block_nchw.1} parent=11 // pred_fallthru
          _
        // Predicated region
        $region81: #{mid_block_nchw.1} parent=11 // pred_check
          %p848 = pneg %p504
        $region82: #{mid_block_nchw.1} parent=11 // pred_check_branch
          %850 = sbr.rel (%p848) target = $region84
        $region83: #{mid_block_nchw.1} parent=11 // pred_region
          _
        $region84: #{mid_block_nchw.1} parent=11 // pred_fallthru
          _
        // Predicated region
        $region85: #{mid_block_nchw.1} parent=11 // pred_check
          %p851 = pneg %p525
        $region86: #{mid_block_nchw.1} parent=11 // pred_check_branch
          %853 = sbr.rel (%p851) target = $region88
        $region87: #{mid_block_nchw.1} parent=11 // pred_region
          _
        $region88: #{mid_block_nchw.1} parent=11 // pred_fallthru
          _
        // Predicated region
        $region89: #{mid_block_nchw.1} parent=11 // pred_check
          %p854 = pneg %p546
        $region90: #{mid_block_nchw.1} parent=11 // pred_check_branch
          %856 = sbr.rel (%p854) target = $region92
        $region91: #{mid_block_nchw.1} parent=11 // pred_region
          _
        $region92: #{mid_block_nchw.1} parent=11 // pred_fallthru
          _
        // Predicated region
        $region93: #{mid_block_nchw.1} parent=11 // pred_check
          %p857 = pneg %p567
        $region94: #{mid_block_nchw.1} parent=11 // pred_check_branch
          %859 = sbr.rel (%p857) target = $region96
        $region95: #{mid_block_nchw.1} parent=11 // pred_region
          _
        $region96: #{mid_block_nchw.1} parent=11 // pred_fallthru
          _
        // Predicated region
        $region97: #{mid_block_nchw.1} parent=11 // pred_check
          %p860 = pneg %p588
        $region98: #{mid_block_nchw.1} parent=11 // pred_check_branch
          %862 = sbr.rel (%p860) target = $region100
        $region99: #{mid_block_nchw.1} parent=11 // pred_region
          _
        $region100: #{mid_block_nchw.1} parent=11 // pred_fallthru
          _
        // Predicated region
        $region101: #{mid_block_nchw.1} parent=11 // pred_check
          %p863 = pneg %p609
        $region102: #{mid_block_nchw.1} parent=11 // pred_check_branch
          %865 = sbr.rel (%p863) target = $region104
        $region103: #{mid_block_nchw.1} parent=11 // pred_region
          _
        $region104: #{mid_block_nchw.1} parent=11 // pred_fallthru
          _
        // Predicated region
        $region105: #{mid_block_nchw.1} parent=11 // pred_check
          %p866 = pneg %p630
        $region106: #{mid_block_nchw.1} parent=11 // pred_check_branch
          %868 = sbr.rel (%p866) target = $region108
        $region107: #{mid_block_nchw.1} parent=11 // pred_region
          _
        $region108: #{mid_block_nchw.1} parent=11 // pred_fallthru
          _
        // Predicated region
        $region109: #{mid_block_nchw.1} parent=11 // pred_check
          %p869 = pneg %p651
        $region110: #{mid_block_nchw.1} parent=11 // pred_check_branch
          %871 = sbr.rel (%p869) target = $region112
        $region111: #{mid_block_nchw.1} parent=11 // pred_region
          _
        $region112: #{mid_block_nchw.1} parent=11 // pred_fallthru
          _
        // Predicated region
        $region113: #{mid_block_nchw.1} parent=11 // pred_check
          %p872 = pneg %p672
        $region114: #{mid_block_nchw.1} parent=11 // pred_check_branch
          %874 = sbr.rel (%p872) target = $region116
        $region115: #{mid_block_nchw.1} parent=11 // pred_region
          _
        $region116: #{mid_block_nchw.1} parent=11 // pred_fallthru
          _
        // Predicated region
        $region117: #{mid_block_nchw.1} parent=11 // pred_check
          %p875 = pneg %p693
        $region118: #{mid_block_nchw.1} parent=11 // pred_check_branch
          %877 = sbr.rel (%p875) target = $region120
        $region119: #{mid_block_nchw.1} parent=11 // pred_region
          _
        $region120: #{mid_block_nchw.1} parent=11 // pred_fallthru
          _
        // Predicated region
        $region121: #{mid_block_nchw.1} parent=11 // pred_check
          %p878 = pneg %p714
        $region122: #{mid_block_nchw.1} parent=11 // pred_check_branch
          %880 = sbr.rel (%p878) target = $region124
        $region123: #{mid_block_nchw.1} parent=11 // pred_region
          _
        $region124: #{mid_block_nchw.1} parent=11 // pred_fallthru
          _
        // Predicated region
        $region125: #{mid_block_nchw.1} parent=11 // pred_check
          %p881 = pneg %p735
        $region126: #{mid_block_nchw.1} parent=11 // pred_check_branch
          %883 = sbr.rel (%p881) target = $region128
        $region127: #{mid_block_nchw.1} parent=11 // pred_region
          _
        $region128: #{mid_block_nchw.1} parent=11 // pred_fallthru
          _
        // Predicated region
        $region129: #{mid_block_nchw.1} parent=11 // pred_check
          %p884 = pneg %p756
        $region130: #{mid_block_nchw.1} parent=11 // pred_check_branch
          %886 = sbr.rel (%p884) target = $region132
        $region131: #{mid_block_nchw.1} parent=11 // pred_region
          _
        $region132: #{mid_block_nchw.1} parent=11 // pred_fallthru
          _
      $region12: #{mid_block_nchw.1} parent=5 // pred_fallthru
        _
      %p887 = scmp.lt.s32.totalorder %s74, 2
      // Predicated region
      $region133: #{mid_block_nchw.1} parent=5 // pred_check
        %p888 = pneg %p887
      $region134: #{mid_block_nchw.1} parent=5 // pred_check_branch
        %890 = sbr.rel (%p888) target = $region136
      $region135: #{mid_block_nchw.1} parent=5 // pred_region
        // Predicated region
        $region137: #{mid_block_nchw.1} parent=135 // pred_check
          %p891 = pneg %p94
        $region138: #{mid_block_nchw.1} parent=135 // pred_check_branch
          %893 = sbr.rel (%p891) target = $region140
        $region139: #{mid_block_nchw.1} parent=135 // pred_region
          %p894 = scmp.lt.s32.totalorder %s74, 1
          %s895 = scalar_select %p894, %s74, 1
          %s896 = smul.addr %s895, 8
          %s897 = smul.addr %s896, 8
          %s898 = scalar_lea.vmem %s1, %s897
        $region140: #{mid_block_nchw.1} parent=135 // pred_fallthru
          _
        // Predicated region
        $region141: #{mid_block_nchw.1} parent=135 // pred_check
          %p899 = pneg %p120
        $region142: #{mid_block_nchw.1} parent=135 // pred_check_branch
          %901 = sbr.rel (%p899) target = $region144
        $region143: #{mid_block_nchw.1} parent=135 // pred_region
          %p902 = scmp.lt.s32.totalorder %s74, 1
          %s903 = scalar_select %p902, %s74, 1
          %s904 = scalar_lea.vmem %s3, %s903
        $region144: #{mid_block_nchw.1} parent=135 // pred_fallthru
          _
      $region136: #{mid_block_nchw.1} parent=5 // pred_fallthru
        _
      %p905 = scmp.le.s32.totalorder 1, %s74
      %p906 = scmp.lt.s32.totalorder %s74, 3
      %p907 = pnand %p905, %p906
      %p908 = pneg %p907
      // Predicated region
      $region145: #{mid_block_nchw.1} parent=5 // pred_check
        _
      $region146: #{mid_block_nchw.1} parent=5 // pred_check_branch
        %910 = sbr.rel (%p907) target = $region148
      $region147: #{mid_block_nchw.1} parent=5 // pred_region
        %s911 = ssub.s32 %s74, 1
        %p912 = scmp.lt.s32.totalorder %s79, 1
        %s913 = scalar_select %p912, %s79, 1
        %s914 = smul.addr %s913, 8
        %s915 = smul.addr %s914, 8
        %s916 = scalar_lea.vmem %s1, %s915
        %p917 = pneg %p100
        %p918 = pneg %p97
        %p919 = scmp.lt.s32.totalorder %s79, 1
        %s920 = scalar_select %p919, %s79, 1
        %s921 = scalar_lea.vmem %s3, %s920
        %p922 = pneg %p126
        %p923 = pneg %p123
        %p924 = pneg %p147
        %p925 = pneg %p144
        %p926 = pneg %p168
        %p927 = pneg %p165
        %p928 = pneg %p189
        %p929 = pneg %p186
        %p930 = pneg %p210
        %p931 = pneg %p207
        %p932 = pneg %p231
        %p933 = pneg %p228
        %p934 = pneg %p252
        %p935 = pneg %p249
        %p936 = pneg %p273
        %p937 = pneg %p270
        %p938 = pneg %p294
        %p939 = pneg %p291
        %p940 = pneg %p315
        %p941 = pneg %p312
        %p942 = pneg %p336
        %p943 = pneg %p333
        %p944 = pneg %p357
        %p945 = pneg %p354
        %p946 = pneg %p378
        %p947 = pneg %p375
        %p948 = pneg %p399
        %p949 = pneg %p396
        %p950 = pneg %p420
        %p951 = pneg %p417
        %p952 = pneg %p441
        %p953 = pneg %p438
        %p954 = pneg %p462
        %p955 = pneg %p459
        %p956 = pneg %p483
        %p957 = pneg %p480
        %p958 = pneg %p504
        %p959 = pneg %p501
        %p960 = pneg %p525
        %p961 = pneg %p522
        %p962 = pneg %p546
        %p963 = pneg %p543
        %p964 = pneg %p567
        %p965 = pneg %p564
        %p966 = pneg %p588
        %p967 = pneg %p585
        %p968 = pneg %p609
        %p969 = pneg %p606
        %p970 = pneg %p630
        %p971 = pneg %p627
        %p972 = pneg %p651
        %p973 = pneg %p648
        %p974 = pneg %p672
        %p975 = pneg %p669
        %p976 = pneg %p693
        %p977 = pneg %p690
        %p978 = pneg %p714
        %p979 = pneg %p711
        %p980 = pneg %p735
        %p981 = pneg %p732
        %p982 = pneg %p756
        %p983 = pneg %p753
        %p984 = pneg %p782
        %p985 = pneg %p779
        %s986 = sand.u32 %s769, 1
        %s987 = scalar_lea.sflag [#allocation4], %s986
        %s988 = sand.u32 %s769, 1
        %s989 = smul.addr %s988, 64
        %s990 = scalar_lea.vmem [#allocation3], %s989
        %p991 = scmp.lt.s32.totalorder %s79, 1
        %s992 = scalar_select %p991, %s79, 1
        %s993 = smul.addr %s992, 8
        %s994 = smul.addr %s993, 8
        %s995 = scalar_lea.vmem %s1, %s994
        %p996 = scmp.lt.s32.totalorder %s79, 1
        %s997 = scalar_select %p996, %s79, 1
        %s998 = scalar_lea.vmem %s3, %s997
        %vm1000 = vcmask 64512
        %1001 = vst.msk [vmem:[#allocation2] sm:$0xff] %vm1000, 0.0
        %vm1002 = vcmask 58368
        %1003 = vst.msk [vmem:[#allocation2 + $0x8] sm:$0x3] %vm1002, 0.0
        %s1004 = scalar_lea.vmem [#allocation2], 144
        %1005 = vst.msk [vmem:[%s1004] sm:$0xff] %vm1000, 0.0
        %1006 = vst.msk [vmem:[%s1004 + $0x8] sm:$0x3] %vm1002, 0.0
        %vm1007 = vcmask 57344
        %1008 = vst.msk [vmem:[#allocation2] sm:$0x1] %vm1007, 0.0
        %1009 = vst.msk [vmem:[#allocation2 + $0x10] sm:$0x1] %vm1007, 0.0
        %1010 = vst.msk [vmem:[#allocation2 + $0x20] sm:$0x1] %vm1007, 0.0
        %1011 = vst.msk [vmem:[#allocation2 + $0x30] sm:$0x1] %vm1007, 0.0
        %1012 = vst.msk [vmem:[#allocation2 + $0x40] sm:$0x1] %vm1007, 0.0
        %1013 = vst.msk [vmem:[#allocation2 + $0x50] sm:$0x1] %vm1007, 0.0
        %1014 = vst.msk [vmem:[#allocation2 + $0x60] sm:$0x1] %vm1007, 0.0
        %1015 = vst.msk [vmem:[#allocation2 + $0x70] sm:$0x1] %vm1007, 0.0
        %1016 = vst.msk [vmem:[#allocation2 + $0x80] sm:$0x1] %vm1007, 0.0
        %1017 = vst.msk [vmem:[#allocation2 + $0x90] sm:$0x1] %vm1007, 0.0
        %1018 = vst.msk [vmem:[#allocation2 + $0x9] sm:$0x1] %vm1007, 0.0
        %1019 = vst.msk [vmem:[#allocation2 + $0x19] sm:$0x1] %vm1007, 0.0
        %1020 = vst.msk [vmem:[#allocation2 + $0x29] sm:$0x1] %vm1007, 0.0
        %1021 = vst.msk [vmem:[#allocation2 + $0x39] sm:$0x1] %vm1007, 0.0
        %1022 = vst.msk [vmem:[#allocation2 + $0x49] sm:$0x1] %vm1007, 0.0
        %1023 = vst.msk [vmem:[#allocation2 + $0x59] sm:$0x1] %vm1007, 0.0
        %1024 = vst.msk [vmem:[#allocation2 + $0x69] sm:$0x1] %vm1007, 0.0
        %1025 = vst.msk [vmem:[#allocation2 + $0x79] sm:$0x1] %vm1007, 0.0
        %1026 = vst.msk [vmem:[#allocation2 + $0x89] sm:$0x1] %vm1007, 0.0
        %1027 = vst.msk [vmem:[#allocation2 + $0x99] sm:$0x1] %vm1007, 0.0
        %v1028 = vld [vmem:[%s995] sm:$0xff]
        %v1029 = vld [vmem:[%s995 + $0x8] sm:$0xff]
        %v1030 = vld [vmem:[%s995 + $0x10] sm:$0xff]
        %v1031 = vld [vmem:[%s995 + $0x18] sm:$0xff]
        %v1032 = vld [vmem:[%s995 + $0x20] sm:$0xff]
        %v1033 = vld [vmem:[%s995 + $0x28] sm:$0xff]
        %v1034 = vld [vmem:[%s995 + $0x30] sm:$0xff]
        %v1035 = vld [vmem:[%s995 + $0x38] sm:$0xff]
        %v1036 = vld [vmem:[%s5] sm:$0xff]
        %v1037 = vld [vmem:[%s998] sm:$0x1]
        %v1038 = vxor.u32 %v1037, 2147483648
        %v1039 = vmul.f32 %v1038, 1.442695
        %v1040 = vpow.pop %v1039
        %v1041 = vadd.f32 %v1040, 1.0
        %v1042 = vrcp.pop %v1041
        %v1043 = vmul.f32 1.0, %v1042
        %v1044 = vmul.f32 %v1037, %v1043
        %v1045 = vld [vmem:[%s15] sm:$0xff]
        %v1046 = vld [vmem:[%s15 + $0x8] sm:$0xff]
        %v1047 = vld [vmem:[%s17] sm:$0x1]
        %vm1048 = vcmask 130048
        %v1050 = vsel %vm1048, %v1044, 0
        %1052 = vmatprep.subr.mxu0 0.0
        %1053 = vmatpush1.msra.mxu0 %v1045
        %1054 = vmatprep.subr.mxu0 0.0
        %1055 = vmatpush1.msra.mxu0 %v1046
        %1056 = vmatprep.subr.mxu0 0.0
        %1057 = vmatpush1.msra.mxu0 0.0
        %1058 = vmatprep.subr.mxu0 0.0
        %1059 = vmatpush1.msra.mxu0 0.0
        %1060 = vmatprep.subr.mxu0 0.0
        %1061 = vmatpush1.msra.mxu0 0.0
        %1062 = vmatprep.subr.mxu0 0.0
        %1063 = vmatpush1.msra.mxu0 0.0
        %1064 = vmatprep.subr.mxu0 0.0
        %1065 = vmatpush1.msra.mxu0 0.0
        %1066 = vmatprep.subr.mxu0 0.0
        %1067 = vmatpush1.msra.mxu0 0.0
        %1068 = vmatprep.subr.mxu0 0.0
        %1069 = vmatpush1.msra.mxu0 0.0
        %1070 = vmatprep.subr.mxu0 0.0
        %1071 = vmatpush1.msra.mxu0 0.0
        %1072 = vmatprep.subr.mxu0 0.0
        %1073 = vmatpush1.msra.mxu0 0.0
        %1074 = vmatprep.subr.mxu0 0.0
        %1075 = vmatpush1.msra.mxu0 0.0
        %1076 = vmatprep.subr.mxu0 0.0
        %1077 = vmatpush1.msra.mxu0 0.0
        %1078 = vmatprep.subr.mxu0 0.0
        %1079 = vmatpush1.msra.mxu0 0.0
        %1080 = vmatprep.subr.mxu0 0.0
        %1081 = vmatpush1.msra.mxu0 0.0
        %1082 = vmatprep.subr.mxu0 0.0
        %1083 = vmatpush1.msra.mxu0 0.0
        %1084 = vmatprep.subr.mxu0 0.0
        %1085 = vmatpush1.msra.mxu0 0.0
        %1086 = vmatprep.subr.mxu0 0.0
        %1087 = vmatpush1.msra.mxu0 0.0
        %1088 = vmatprep.subr.mxu0 0.0
        %1089 = vmatpush1.msra.mxu0 0.0
        %1090 = vmatprep.subr.mxu0 0.0
        %1091 = vmatpush1.msra.mxu0 0.0
        %1092 = vmatprep.subr.mxu0 0.0
        %1093 = vmatpush1.msra.mxu0 0.0
        %1094 = vmatprep.subr.mxu0 0.0
        %1095 = vmatpush1.msra.mxu0 0.0
        %1096 = vmatprep.subr.mxu0 0.0
        %1097 = vmatpush1.msra.mxu0 0.0
        %1098 = vmatprep.subr.mxu0 0.0
        %1099 = vmatpush1.msra.mxu0 0.0
        %1100 = vmatprep.subr.mxu0 0.0
        %1101 = vmatpush1.msra.mxu0 0.0
        %1102 = vmatprep.subr.mxu0 0.0
        %1103 = vmatpush1.msra.mxu0 0.0
        %1104 = vmatprep.subr.mxu0 0.0
        %1105 = vmatpush1.msra.mxu0 0.0
        %1106 = vmatprep.subr.mxu0 0.0
        %1107 = vmatpush1.msra.mxu0 0.0
        %1108 = vmatprep.subr.mxu0 0.0
        %1109 = vmatpush1.msra.mxu0 0.0
        %1110 = vmatprep.subr.mxu0 0.0
        %1111 = vmatpush1.msra.mxu0 0.0
        %1112 = vmatprep.subr.mxu0 0.0
        %1113 = vmatpush1.msra.mxu0 0.0
        %1114 = vmatprep.subr.mxu0 0.0
        %1115 = vmatpush1.msra.mxu0 0.0
        %1116 = vmatprep.mubr.f32.mxu0 0.0
        %1117 = vmatmul.mubr.f32.gmra.mrb[0].mxu0 %v1050
        %v1118 = vpop.f32.mrb[0].mxu0
        %v1119 = vadd.f32 %v1047, %v1118
        %v1120 = vpop.f32.mrb[0].mxu0
        %1121 = vdwg.mxu0
        %v1122 = vld [vmem:[%s49] sm:$0xff]
        %v1123 = vld [vmem:[%s49 + $0x8] sm:$0xff]
        %v1124 = vld [vmem:[%s51] sm:$0x1]
        %1125 = vmatprep.subr.mxu0 0.0
        %1126 = vmatpush1.msra.mxu0 %v1122
        %1127 = vmatprep.subr.mxu0 0.0
        %1128 = vmatpush1.msra.mxu0 %v1123
        %1129 = vmatprep.subr.mxu0 0.0
        %1130 = vmatpush1.msra.mxu0 0.0
        %1131 = vmatprep.subr.mxu0 0.0
        %1132 = vmatpush1.msra.mxu0 0.0
        %1133 = vmatprep.subr.mxu0 0.0
        %1134 = vmatpush1.msra.mxu0 0.0
        %1135 = vmatprep.subr.mxu0 0.0
        %1136 = vmatpush1.msra.mxu0 0.0
        %1137 = vmatprep.subr.mxu0 0.0
        %1138 = vmatpush1.msra.mxu0 0.0
        %1139 = vmatprep.subr.mxu0 0.0
        %1140 = vmatpush1.msra.mxu0 0.0
        %1141 = vmatprep.subr.mxu0 0.0
        %1142 = vmatpush1.msra.mxu0 0.0
        %1143 = vmatprep.subr.mxu0 0.0
        %1144 = vmatpush1.msra.mxu0 0.0
        %1145 = vmatprep.subr.mxu0 0.0
        %1146 = vmatpush1.msra.mxu0 0.0
        %1147 = vmatprep.subr.mxu0 0.0
        %1148 = vmatpush1.msra.mxu0 0.0
        %1149 = vmatprep.subr.mxu0 0.0
        %1150 = vmatpush1.msra.mxu0 0.0
        %1151 = vmatprep.subr.mxu0 0.0
        %1152 = vmatpush1.msra.mxu0 0.0
        %1153 = vmatprep.subr.mxu0 0.0
        %1154 = vmatpush1.msra.mxu0 0.0
        %1155 = vmatprep.subr.mxu0 0.0
        %1156 = vmatpush1.msra.mxu0 0.0
        %1157 = vmatprep.subr.mxu0 0.0
        %1158 = vmatpush1.msra.mxu0 0.0
        %1159 = vmatprep.subr.mxu0 0.0
        %1160 = vmatpush1.msra.mxu0 0.0
        %1161 = vmatprep.subr.mxu0 0.0
        %1162 = vmatpush1.msra.mxu0 0.0
        %1163 = vmatprep.subr.mxu0 0.0
        %1164 = vmatpush1.msra.mxu0 0.0
        %1165 = vmatprep.subr.mxu0 0.0
        %1166 = vmatpush1.msra.mxu0 0.0
        %1167 = vmatprep.subr.mxu0 0.0
        %1168 = vmatpush1.msra.mxu0 0.0
        %1169 = vmatprep.subr.mxu0 0.0
        %1170 = vmatpush1.msra.mxu0 0.0
        %1171 = vmatprep.subr.mxu0 0.0
        %1172 = vmatpush1.msra.mxu0 0.0
        %1173 = vmatprep.subr.mxu0 0.0
        %1174 = vmatpush1.msra.mxu0 0.0
        %1175 = vmatprep.subr.mxu0 0.0
        %1176 = vmatpush1.msra.mxu0 0.0
        %1177 = vmatprep.subr.mxu0 0.0
        %1178 = vmatpush1.msra.mxu0 0.0
        %1179 = vmatprep.subr.mxu0 0.0
        %1180 = vmatpush1.msra.mxu0 0.0
        %1181 = vmatprep.subr.mxu0 0.0
        %1182 = vmatpush1.msra.mxu0 0.0
        %1183 = vmatprep.subr.mxu0 0.0
        %1184 = vmatpush1.msra.mxu0 0.0
        %1185 = vmatprep.subr.mxu0 0.0
        %1186 = vmatpush1.msra.mxu0 0.0
        %1187 = vmatprep.subr.mxu0 0.0
        %1188 = vmatpush1.msra.mxu0 0.0
        %1189 = vmatprep.mubr.f32.mxu0 0.0
        %1190 = vmatmul.mubr.f32.gmra.mrb[0].mxu0 %v1050
        %v1191 = vpop.f32.mrb[0].mxu0
        %v1192 = vadd.f32 %v1124, %v1191
        %v1193 = vpop.f32.mrb[0].mxu0
        %1194 = vdwg.mxu0
        %v1195 = vld [vmem:[%s9] sm:$0x1]
        %v1196 = vld [vmem:[%s11] sm:$0x1]
        %v1197 = vld [vmem:[%s13] sm:$0x1]
        %v1198 = vld [vmem:[%s21] sm:$0x1]
        %v1199 = vld [vmem:[%s23] sm:$0x1]
        %v1200 = vld [vmem:[%s25] sm:$0x1]
        %s1201 = scalar_lea.vmem [#allocation2], 16
        %1202 = vst.msk [vmem:[%s1201 + $0x1] sm:$0xff] %vm1000, %v1028
        %1203 = vst.msk [vmem:[%s1201 + $0x11] sm:$0xff] %vm1000, %v1029
        %1204 = vst.msk [vmem:[%s1201 + $0x21] sm:$0xff] %vm1000, %v1030
        %1205 = vst.msk [vmem:[%s1201 + $0x31] sm:$0xff] %vm1000, %v1031
        %1206 = vst.msk [vmem:[%s1201 + $0x41] sm:$0xff] %vm1000, %v1032
        %1207 = vst.msk [vmem:[%s1201 + $0x51] sm:$0xff] %vm1000, %v1033
        %1208 = vst.msk [vmem:[%s1201 + $0x61] sm:$0xff] %vm1000, %v1034
        %1209 = vst.msk [vmem:[%s1201 + $0x71] sm:$0xff] %vm1000, %v1035
        %v1210 = vld [vmem:[#allocation2] sm:$0xff]
        %v1211 = vld [vmem:[#allocation2 + $0x10] sm:$0xff]
        %v1212 = vld [vmem:[#allocation2 + $0x20] sm:$0xff]
        %v1213 = vld [vmem:[#allocation2 + $0x30] sm:$0xff]
        %v1214 = vld [vmem:[#allocation2 + $0x40] sm:$0xff]
        %v1215 = vld [vmem:[#allocation2 + $0x50] sm:$0xff]
        %v1216 = vld [vmem:[#allocation2 + $0x60] sm:$0xff]
        %v1217 = vld [vmem:[#allocation2 + $0x70] sm:$0xff]
        %v1218 = vld [vmem:[#allocation2 + $0x1] sm:$0xff]
        %v1219 = vld [vmem:[#allocation2 + $0x11] sm:$0xff]
        %v1220 = vld [vmem:[#allocation2 + $0x21] sm:$0xff]
        %v1221 = vld [vmem:[#allocation2 + $0x31] sm:$0xff]
        %v1222 = vld [vmem:[#allocation2 + $0x41] sm:$0xff]
        %v1223 = vld [vmem:[#allocation2 + $0x51] sm:$0xff]
        %v1224 = vld [vmem:[#allocation2 + $0x61] sm:$0xff]
        %v1225 = vld [vmem:[#allocation2 + $0x71] sm:$0xff]
        %v1226 = vld [vmem:[#allocation2 + $0x2] sm:$0xff]
        %v1227 = vld [vmem:[#allocation2 + $0x12] sm:$0xff]
        %v1228 = vld [vmem:[#allocation2 + $0x22] sm:$0xff]
        %v1229 = vld [vmem:[#allocation2 + $0x32] sm:$0xff]
        %v1230 = vld [vmem:[#allocation2 + $0x42] sm:$0xff]
        %v1231 = vld [vmem:[#allocation2 + $0x52] sm:$0xff]
        %v1232 = vld [vmem:[#allocation2 + $0x62] sm:$0xff]
        %v1233 = vld [vmem:[#allocation2 + $0x72] sm:$0xff]
        %1242 = vrot.lane.b32.xlu0 %v1218, 8
        %v1243 = vpop.permute.xlu0 %1242
        %1244 = vrot.lane.b32.xlu0 %v1219, 8
        %v1245 = vpop.permute.xlu0 %1244
        %1246 = vrot.lane.b32.xlu0 %v1220, 8
        %v1247 = vpop.permute.xlu0 %1246
        %1248 = vrot.lane.b32.xlu0 %v1221, 8
        %v1249 = vpop.permute.xlu0 %1248
        %1250 = vrot.lane.b32.xlu0 %v1222, 8
        %v1251 = vpop.permute.xlu0 %1250
        %1252 = vrot.lane.b32.xlu0 %v1223, 8
        %v1253 = vpop.permute.xlu0 %1252
        %1254 = vrot.lane.b32.xlu0 %v1224, 8
        %v1255 = vpop.permute.xlu0 %1254
        %1256 = vrot.lane.b32.xlu0 %v1225, 8
        %v1257 = vpop.permute.xlu0 %1256
        %1274 = vrot.lane.b32.xlu0 %v1226, 16
        %v1275 = vpop.permute.xlu0 %1274
        %1276 = vrot.lane.b32.xlu0 %v1227, 16
        %v1277 = vpop.permute.xlu0 %1276
        %1278 = vrot.lane.b32.xlu0 %v1228, 16
        %v1279 = vpop.permute.xlu0 %1278
        %1280 = vrot.lane.b32.xlu0 %v1229, 16
        %v1281 = vpop.permute.xlu0 %1280
        %1282 = vrot.lane.b32.xlu0 %v1230, 16
        %v1283 = vpop.permute.xlu0 %1282
        %1284 = vrot.lane.b32.xlu0 %v1231, 16
        %v1285 = vpop.permute.xlu0 %1284
        %1286 = vrot.lane.b32.xlu0 %v1232, 16
        %v1287 = vpop.permute.xlu0 %1286
        %1288 = vrot.lane.b32.xlu0 %v1233, 16
        %v1289 = vpop.permute.xlu0 %1288
        %v1298 = vsel %vm1000, %v1210, %v1243
        %v1299 = vsel %vm1000, %v1211, %v1245
        %v1300 = vsel %vm1000, %v1212, %v1247
        %v1301 = vsel %vm1000, %v1213, %v1249
        %v1302 = vsel %vm1000, %v1214, %v1251
        %v1303 = vsel %vm1000, %v1215, %v1253
        %v1304 = vsel %vm1000, %v1216, %v1255
        %v1305 = vsel %vm1000, %v1217, %v1257
        %v1306 = vsel %vm1048, %v1298, %v1275
        %v1307 = vsel %vm1048, %v1299, %v1277
        %v1308 = vsel %vm1048, %v1300, %v1279
        %v1309 = vsel %vm1048, %v1301, %v1281
        %v1310 = vsel %vm1048, %v1302, %v1283
        %v1311 = vsel %vm1048, %v1303, %v1285
        %v1312 = vsel %vm1048, %v1304, %v1287
        %v1313 = vsel %vm1048, %v1305, %v1289
        %v1314 = vpack.c.bf16 %v1307, %v1306
        %v1315 = vpack.c.bf16 %v1309, %v1308
        %v1316 = vpack.c.bf16 %v1311, %v1310
        %v1317 = vpack.c.bf16 %v1313, %v1312
        %v1318 = vld [vmem:[%s7] sm:$0xf]
        %v1319 = vld [vmem:[%s7 + $0x4] sm:$0xf]
        %v1320 = vld [vmem:[%s7 + $0x8] sm:$0xf]
        %v1321 = vld [vmem:[%s1201] sm:$0xff]
        %v1322 = vld [vmem:[%s1201 + $0x10] sm:$0xff]
        %v1323 = vld [vmem:[%s1201 + $0x20] sm:$0xff]
        %v1324 = vld [vmem:[%s1201 + $0x30] sm:$0xff]
        %v1325 = vld [vmem:[%s1201 + $0x40] sm:$0xff]
        %v1326 = vld [vmem:[%s1201 + $0x50] sm:$0xff]
        %v1327 = vld [vmem:[%s1201 + $0x60] sm:$0xff]
        %v1328 = vld [vmem:[%s1201 + $0x70] sm:$0xff]
        %v1329 = vld [vmem:[%s1201 + $0x1] sm:$0xff]
        %v1330 = vld [vmem:[%s1201 + $0x11] sm:$0xff]
        %v1331 = vld [vmem:[%s1201 + $0x21] sm:$0xff]
        %v1332 = vld [vmem:[%s1201 + $0x31] sm:$0xff]
        %v1333 = vld [vmem:[%s1201 + $0x41] sm:$0xff]
        %v1334 = vld [vmem:[%s1201 + $0x51] sm:$0xff]
        %v1335 = vld [vmem:[%s1201 + $0x61] sm:$0xff]
        %v1336 = vld [vmem:[%s1201 + $0x71] sm:$0xff]
        %v1337 = vld [vmem:[%s1201 + $0x2] sm:$0xff]
        %v1338 = vld [vmem:[%s1201 + $0x12] sm:$0xff]
        %v1339 = vld [vmem:[%s1201 + $0x22] sm:$0xff]
        %v1340 = vld [vmem:[%s1201 + $0x32] sm:$0xff]
        %v1341 = vld [vmem:[%s1201 + $0x42] sm:$0xff]
        %v1342 = vld [vmem:[%s1201 + $0x52] sm:$0xff]
        %v1343 = vld [vmem:[%s1201 + $0x62] sm:$0xff]
        %v1344 = vld [vmem:[%s1201 + $0x72] sm:$0xff]
        %1353 = vrot.lane.b32.xlu0 %v1329, 8
        %v1354 = vpop.permute.xlu0 %1353
        %1355 = vrot.lane.b32.xlu0 %v1330, 8
        %v1356 = vpop.permute.xlu0 %1355
        %1357 = vrot.lane.b32.xlu0 %v1331, 8
        %v1358 = vpop.permute.xlu0 %1357
        %1359 = vrot.lane.b32.xlu0 %v1332, 8
        %v1360 = vpop.permute.xlu0 %1359
        %1361 = vrot.lane.b32.xlu0 %v1333, 8
        %v1362 = vpop.permute.xlu0 %1361
        %1363 = vrot.lane.b32.xlu0 %v1334, 8
        %v1364 = vpop.permute.xlu0 %1363
        %1365 = vrot.lane.b32.xlu0 %v1335, 8
        %v1366 = vpop.permute.xlu0 %1365
        %1367 = vrot.lane.b32.xlu0 %v1336, 8
        %v1368 = vpop.permute.xlu0 %1367
        %1385 = vrot.lane.b32.xlu0 %v1337, 16
        %v1386 = vpop.permute.xlu0 %1385
        %1387 = vrot.lane.b32.xlu0 %v1338, 16
        %v1388 = vpop.permute.xlu0 %1387
        %1389 = vrot.lane.b32.xlu0 %v1339, 16
        %v1390 = vpop.permute.xlu0 %1389
        %1391 = vrot.lane.b32.xlu0 %v1340, 16
        %v1392 = vpop.permute.xlu0 %1391
        %1393 = vrot.lane.b32.xlu0 %v1341, 16
        %v1394 = vpop.permute.xlu0 %1393
        %1395 = vrot.lane.b32.xlu0 %v1342, 16
        %v1396 = vpop.permute.xlu0 %1395
        %1397 = vrot.lane.b32.xlu0 %v1343, 16
        %v1398 = vpop.permute.xlu0 %1397
        %1399 = vrot.lane.b32.xlu0 %v1344, 16
        %v1400 = vpop.permute.xlu0 %1399
        %v1409 = vsel %vm1000, %v1321, %v1354
        %v1410 = vsel %vm1000, %v1322, %v1356
        %v1411 = vsel %vm1000, %v1323, %v1358
        %v1412 = vsel %vm1000, %v1324, %v1360
        %v1413 = vsel %vm1000, %v1325, %v1362
        %v1414 = vsel %vm1000, %v1326, %v1364
        %v1415 = vsel %vm1000, %v1327, %v1366
        %v1416 = vsel %vm1000, %v1328, %v1368
        %v1417 = vsel %vm1048, %v1409, %v1386
        %v1418 = vsel %vm1048, %v1410, %v1388
        %v1419 = vsel %vm1048, %v1411, %v1390
        %v1420 = vsel %vm1048, %v1412, %v1392
        %v1421 = vsel %vm1048, %v1413, %v1394
        %v1422 = vsel %vm1048, %v1414, %v1396
        %v1423 = vsel %vm1048, %v1415, %v1398
        %v1424 = vsel %vm1048, %v1416, %v1400
        %v1425 = vpack.c.bf16 %v1418, %v1417
        %v1426 = vpack.c.bf16 %v1420, %v1419
        %v1427 = vpack.c.bf16 %v1422, %v1421
        %v1428 = vpack.c.bf16 %v1424, %v1423
        %s1429 = scalar_lea.vmem %s7, 12
        %v1430 = vld [vmem:[%s1429] sm:$0xf]
        %v1431 = vld [vmem:[%s1429 + $0x4] sm:$0xf]
        %v1432 = vld [vmem:[%s1429 + $0x8] sm:$0xf]
        %v1436 = vunpack.c.l.b16 %v1430
        %v1437 = vunpack.c.l.b16 %v1431
        %v1438 = vunpack.c.l.b16 %v1432
        %v1439 = vpack.c.b16 %v1437, %v1436
        %v1440 = vpack.c.b16 %v1438, %v1438
        %vm1442 = vcmask 195584
        %v1444 = vsel %vm1442, %v1425, 0
        %v1447 = vsel %vm1442, %v1426, 0
        %v1450 = vsel %vm1442, %v1427, 0
        %v1453 = vsel %vm1442, %v1428, 0
        %vm1455 = vcmask 1043456
        %v1457 = vsel %vm1455, %v1440, 0
        %1459 = vmatprep.subr.bf16.mxu0 0
        %1460 = vmatpush1.bf16.msra.mxu0 %v1439
        %1461 = vmatprep.subr.bf16.mxu0 0
        %1462 = vmatpush1.bf16.msra.mxu0 %v1457
        %1463 = vmatprep.subr.bf16.mxu0 0
        %1464 = vmatpush1.bf16.msra.mxu0 0
        %1465 = vmatprep.subr.bf16.mxu0 0
        %1466 = vmatpush1.bf16.msra.mxu0 0
        %1467 = vmatprep.subr.bf16.mxu0 0
        %1468 = vmatpush1.bf16.msra.mxu0 0
        %1469 = vmatprep.subr.bf16.mxu0 0
        %1470 = vmatpush1.bf16.msra.mxu0 0
        %1471 = vmatprep.subr.bf16.mxu0 0
        %1472 = vmatpush1.bf16.msra.mxu0 0
        %1473 = vmatprep.subr.bf16.mxu0 0
        %1474 = vmatpush1.bf16.msra.mxu0 0
        %1475 = vmatprep.subr.bf16.mxu0 0
        %1476 = vmatpush1.bf16.msra.mxu0 0
        %1477 = vmatprep.subr.bf16.mxu0 0
        %1478 = vmatpush1.bf16.msra.mxu0 0
        %1479 = vmatprep.subr.bf16.mxu0 0
        %1480 = vmatpush1.bf16.msra.mxu0 0
        %1481 = vmatprep.subr.bf16.mxu0 0
        %1482 = vmatpush1.bf16.msra.mxu0 0
        %1483 = vmatprep.subr.bf16.mxu0 0
        %1484 = vmatpush1.bf16.msra.mxu0 0
        %1485 = vmatprep.subr.bf16.mxu0 0
        %1486 = vmatpush1.bf16.msra.mxu0 0
        %1487 = vmatprep.subr.bf16.mxu0 0
        %1488 = vmatpush1.bf16.msra.mxu0 0
        %1489 = vmatprep.subr.bf16.mxu0 0
        %1490 = vmatpush1.bf16.msra.mxu0 0
        %1491 = vmatprep.mubr.bf16.mxu0 0
        %1492 = vmatmul.mubr.bf16.gmra.mrb[0].mxu0 %v1444
        %v1493 = vpop.f32.mrb[0].mxu0
        %v1494 = vadd.f32 0.0, %v1493
        %v1495 = vpop.f32.mrb[0].mxu0
        %v1496 = vpop.f32.mrb[0].mxu0
        %v1497 = vadd.f32 0.0, %v1496
        %v1498 = vpop.f32.mrb[0].mxu0
        %1499 = vmatprep.mubr.bf16.mxu0 0
        %1500 = vmatmul.mubr.bf16.gmra.mrb[0].mxu0 %v1447
        %v1501 = vpop.f32.mrb[0].mxu0
        %v1502 = vadd.f32 0.0, %v1501
        %v1503 = vpop.f32.mrb[0].mxu0
        %v1504 = vpop.f32.mrb[0].mxu0
        %v1505 = vadd.f32 0.0, %v1504
        %v1506 = vpop.f32.mrb[0].mxu0
        %1507 = vmatprep.mubr.bf16.mxu0 0
        %1508 = vmatmul.mubr.bf16.gmra.mrb[0].mxu0 %v1450
        %v1509 = vpop.f32.mrb[0].mxu0
        %v1510 = vadd.f32 0.0, %v1509
        %v1511 = vpop.f32.mrb[0].mxu0
        %v1512 = vpop.f32.mrb[0].mxu0
        %v1513 = vadd.f32 0.0, %v1512
        %v1514 = vpop.f32.mrb[0].mxu0
        %1515 = vmatprep.mubr.bf16.mxu0 0
        %1516 = vmatmul.mubr.bf16.gmra.mrb[0].mxu0 %v1453
        %v1517 = vpop.f32.mrb[0].mxu0
        %v1518 = vadd.f32 0.0, %v1517
        %v1519 = vpop.f32.mrb[0].mxu0
        %v1520 = vpop.f32.mrb[0].mxu0
        %v1521 = vadd.f32 0.0, %v1520
        %v1522 = vpop.f32.mrb[0].mxu0
        %1523 = vdwg.mxu0
        %v1527 = vunpack.c.l.b16 %v1318
        %v1528 = vunpack.c.l.b16 %v1319
        %v1529 = vunpack.c.l.b16 %v1320
        %v1530 = vpack.c.b16 %v1528, %v1527
        %v1531 = vpack.c.b16 %v1529, %v1529
        %v1534 = vsel %vm1442, %v1314, 0
        %v1537 = vsel %vm1442, %v1315, 0
        %v1540 = vsel %vm1442, %v1316, 0
        %v1543 = vsel %vm1442, %v1317, 0
        %v1546 = vsel %vm1455, %v1531, 0
        %1548 = vmatprep.subr.bf16.mxu0 0
        %1549 = vmatpush1.bf16.msra.mxu0 %v1530
        %1550 = vmatprep.subr.bf16.mxu0 0
        %1551 = vmatpush1.bf16.msra.mxu0 %v1546
        %1552 = vmatprep.subr.bf16.mxu0 0
        %1553 = vmatpush1.bf16.msra.mxu0 0
        %1554 = vmatprep.subr.bf16.mxu0 0
        %1555 = vmatpush1.bf16.msra.mxu0 0
        %1556 = vmatprep.subr.bf16.mxu0 0
        %1557 = vmatpush1.bf16.msra.mxu0 0
        %1558 = vmatprep.subr.bf16.mxu0 0
        %1559 = vmatpush1.bf16.msra.mxu0 0
        %1560 = vmatprep.subr.bf16.mxu0 0
        %1561 = vmatpush1.bf16.msra.mxu0 0
        %1562 = vmatprep.subr.bf16.mxu0 0
        %1563 = vmatpush1.bf16.msra.mxu0 0
        %1564 = vmatprep.subr.bf16.mxu0 0
        %1565 = vmatpush1.bf16.msra.mxu0 0
        %1566 = vmatprep.subr.bf16.mxu0 0
        %1567 = vmatpush1.bf16.msra.mxu0 0
        %1568 = vmatprep.subr.bf16.mxu0 0
        %1569 = vmatpush1.bf16.msra.mxu0 0
        %1570 = vmatprep.subr.bf16.mxu0 0
        %1571 = vmatpush1.bf16.msra.mxu0 0
        %1572 = vmatprep.subr.bf16.mxu0 0
        %1573 = vmatpush1.bf16.msra.mxu0 0
        %1574 = vmatprep.subr.bf16.mxu0 0
        %1575 = vmatpush1.bf16.msra.mxu0 0
        %1576 = vmatprep.subr.bf16.mxu0 0
        %1577 = vmatpush1.bf16.msra.mxu0 0
        %1578 = vmatprep.subr.bf16.mxu0 0
        %1579 = vmatpush1.bf16.msra.mxu0 0
        %1580 = vmatprep.mubr.bf16.mxu0 0
        %1581 = vmatmul.mubr.bf16.gmra.mrb[0].mxu0 %v1534
        %v1582 = vpop.f32.mrb[0].mxu0
        %v1583 = vadd.f32 %v1494, %v1582
        %v1584 = vpop.f32.mrb[0].mxu0
        %v1585 = vpop.f32.mrb[0].mxu0
        %v1586 = vadd.f32 %v1497, %v1585
        %v1587 = vpop.f32.mrb[0].mxu0
        %1588 = vmatprep.mubr.bf16.mxu0 0
        %1589 = vmatmul.mubr.bf16.gmra.mrb[0].mxu0 %v1537
        %v1590 = vpop.f32.mrb[0].mxu0
        %v1591 = vadd.f32 %v1502, %v1590
        %v1592 = vpop.f32.mrb[0].mxu0
        %v1593 = vpop.f32.mrb[0].mxu0
        %v1594 = vadd.f32 %v1505, %v1593
        %v1595 = vpop.f32.mrb[0].mxu0
        %1596 = vmatprep.mubr.bf16.mxu0 0
        %1597 = vmatmul.mubr.bf16.gmra.mrb[0].mxu0 %v1540
        %v1598 = vpop.f32.mrb[0].mxu0
        %v1599 = vadd.f32 %v1510, %v1598
        %v1600 = vpop.f32.mrb[0].mxu0
        %v1601 = vpop.f32.mrb[0].mxu0
        %v1602 = vadd.f32 %v1513, %v1601
        %v1603 = vpop.f32.mrb[0].mxu0
        %1604 = vmatprep.mubr.bf16.mxu0 0
        %1605 = vmatmul.mubr.bf16.gmra.mrb[0].mxu0 %v1543
        %v1606 = vpop.f32.mrb[0].mxu0
        %v1607 = vadd.f32 %v1518, %v1606
        %v1608 = vpop.f32.mrb[0].mxu0
        %v1609 = vpop.f32.mrb[0].mxu0
        %v1610 = vadd.f32 %v1521, %v1609
        %v1611 = vpop.f32.mrb[0].mxu0
        %1612 = vdwg.mxu0
        %s1613 = scalar_lea.vmem [#allocation2], 32
        %v1614 = vld [vmem:[%s1613] sm:$0xff]
        %v1615 = vld [vmem:[%s1613 + $0x10] sm:$0xff]
        %v1616 = vld [vmem:[%s1613 + $0x20] sm:$0xff]
        %v1617 = vld [vmem:[%s1613 + $0x30] sm:$0xff]
        %v1618 = vld [vmem:[%s1613 + $0x40] sm:$0xff]
        %v1619 = vld [vmem:[%s1613 + $0x50] sm:$0xff]
        %v1620 = vld [vmem:[%s1613 + $0x60] sm:$0xff]
        %v1621 = vld [vmem:[%s1613 + $0x70] sm:$0xff]
        %v1622 = vld [vmem:[%s1613 + $0x1] sm:$0xff]
        %v1623 = vld [vmem:[%s1613 + $0x11] sm:$0xff]
        %v1624 = vld [vmem:[%s1613 + $0x21] sm:$0xff]
        %v1625 = vld [vmem:[%s1613 + $0x31] sm:$0xff]
        %v1626 = vld [vmem:[%s1613 + $0x41] sm:$0xff]
        %v1627 = vld [vmem:[%s1613 + $0x51] sm:$0xff]
        %v1628 = vld [vmem:[%s1613 + $0x61] sm:$0xff]
        %v1629 = vld [vmem:[%s1613 + $0x71] sm:$0xff]
        %v1630 = vld [vmem:[%s1613 + $0x2] sm:$0xff]
        %v1631 = vld [vmem:[%s1613 + $0x12] sm:$0xff]
        %v1632 = vld [vmem:[%s1613 + $0x22] sm:$0xff]
        %v1633 = vld [vmem:[%s1613 + $0x32] sm:$0xff]
        %v1634 = vld [vmem:[%s1613 + $0x42] sm:$0xff]
        %v1635 = vld [vmem:[%s1613 + $0x52] sm:$0xff]
        %v1636 = vld [vmem:[%s1613 + $0x62] sm:$0xff]
        %v1637 = vld [vmem:[%s1613 + $0x72] sm:$0xff]
        %1646 = vrot.lane.b32.xlu0 %v1622, 8
        %v1647 = vpop.permute.xlu0 %1646
        %1648 = vrot.lane.b32.xlu0 %v1623, 8
        %v1649 = vpop.permute.xlu0 %1648
        %1650 = vrot.lane.b32.xlu0 %v1624, 8
        %v1651 = vpop.permute.xlu0 %1650
        %1652 = vrot.lane.b32.xlu0 %v1625, 8
        %v1653 = vpop.permute.xlu0 %1652
        %1654 = vrot.lane.b32.xlu0 %v1626, 8
        %v1655 = vpop.permute.xlu0 %1654
        %1656 = vrot.lane.b32.xlu0 %v1627, 8
        %v1657 = vpop.permute.xlu0 %1656
        %1658 = vrot.lane.b32.xlu0 %v1628, 8
        %v1659 = vpop.permute.xlu0 %1658
        %1660 = vrot.lane.b32.xlu0 %v1629, 8
        %v1661 = vpop.permute.xlu0 %1660
        %1678 = vrot.lane.b32.xlu0 %v1630, 16
        %v1679 = vpop.permute.xlu0 %1678
        %1680 = vrot.lane.b32.xlu0 %v1631, 16
        %v1681 = vpop.permute.xlu0 %1680
        %1682 = vrot.lane.b32.xlu0 %v1632, 16
        %v1683 = vpop.permute.xlu0 %1682
        %1684 = vrot.lane.b32.xlu0 %v1633, 16
        %v1685 = vpop.permute.xlu0 %1684
        %1686 = vrot.lane.b32.xlu0 %v1634, 16
        %v1687 = vpop.permute.xlu0 %1686
        %1688 = vrot.lane.b32.xlu0 %v1635, 16
        %v1689 = vpop.permute.xlu0 %1688
        %1690 = vrot.lane.b32.xlu0 %v1636, 16
        %v1691 = vpop.permute.xlu0 %1690
        %1692 = vrot.lane.b32.xlu0 %v1637, 16
        %v1693 = vpop.permute.xlu0 %1692
        %v1702 = vsel %vm1000, %v1614, %v1647
        %v1703 = vsel %vm1000, %v1615, %v1649
        %v1704 = vsel %vm1000, %v1616, %v1651
        %v1705 = vsel %vm1000, %v1617, %v1653
        %v1706 = vsel %vm1000, %v1618, %v1655
        %v1707 = vsel %vm1000, %v1619, %v1657
        %v1708 = vsel %vm1000, %v1620, %v1659
        %v1709 = vsel %vm1000, %v1621, %v1661
        %v1710 = vsel %vm1048, %v1702, %v1679
        %v1711 = vsel %vm1048, %v1703, %v1681
        %v1712 = vsel %vm1048, %v1704, %v1683
        %v1713 = vsel %vm1048, %v1705, %v1685
        %v1714 = vsel %vm1048, %v1706, %v1687
        %v1715 = vsel %vm1048, %v1707, %v1689
        %v1716 = vsel %vm1048, %v1708, %v1691
        %v1717 = vsel %vm1048, %v1709, %v1693
        %v1718 = vpack.c.bf16 %v1711, %v1710
        %v1719 = vpack.c.bf16 %v1713, %v1712
        %v1720 = vpack.c.bf16 %v1715, %v1714
        %v1721 = vpack.c.bf16 %v1717, %v1716
        %s1722 = scalar_lea.vmem %s7, 24
        %v1723 = vld [vmem:[%s1722] sm:$0xf]
        %v1724 = vld [vmem:[%s1722 + $0x4] sm:$0xf]
        %v1725 = vld [vmem:[%s1722 + $0x8] sm:$0xf]
        %v1729 = vunpack.c.l.b16 %v1723
        %v1730 = vunpack.c.l.b16 %v1724
        %v1731 = vunpack.c.l.b16 %v1725
        %v1732 = vpack.c.b16 %v1730, %v1729
        %v1733 = vpack.c.b16 %v1731, %v1731
        %v1736 = vsel %vm1442, %v1718, 0
        %v1739 = vsel %vm1442, %v1719, 0
        %v1742 = vsel %vm1442, %v1720, 0
        %v1745 = vsel %vm1442, %v1721, 0
        %v1748 = vsel %vm1455, %v1733, 0
        %1750 = vmatprep.subr.bf16.mxu0 0
        %1751 = vmatpush1.bf16.msra.mxu0 %v1732
        %1752 = vmatprep.subr.bf16.mxu0 0
        %1753 = vmatpush1.bf16.msra.mxu0 %v1748
        %1754 = vmatprep.subr.bf16.mxu0 0
        %1755 = vmatpush1.bf16.msra.mxu0 0
        %1756 = vmatprep.subr.bf16.mxu0 0
        %1757 = vmatpush1.bf16.msra.mxu0 0
        %1758 = vmatprep.subr.bf16.mxu0 0
        %1759 = vmatpush1.bf16.msra.mxu0 0
        %1760 = vmatprep.subr.bf16.mxu0 0
        %1761 = vmatpush1.bf16.msra.mxu0 0
        %1762 = vmatprep.subr.bf16.mxu0 0
        %1763 = vmatpush1.bf16.msra.mxu0 0
        %1764 = vmatprep.subr.bf16.mxu0 0
        %1765 = vmatpush1.bf16.msra.mxu0 0
        %1766 = vmatprep.subr.bf16.mxu0 0
        %1767 = vmatpush1.bf16.msra.mxu0 0
        %1768 = vmatprep.subr.bf16.mxu0 0
        %1769 = vmatpush1.bf16.msra.mxu0 0
        %1770 = vmatprep.subr.bf16.mxu0 0
        %1771 = vmatpush1.bf16.msra.mxu0 0
        %1772 = vmatprep.subr.bf16.mxu0 0
        %1773 = vmatpush1.bf16.msra.mxu0 0
        %1774 = vmatprep.subr.bf16.mxu0 0
        %1775 = vmatpush1.bf16.msra.mxu0 0
        %1776 = vmatprep.subr.bf16.mxu0 0
        %1777 = vmatpush1.bf16.msra.mxu0 0
        %1778 = vmatprep.subr.bf16.mxu0 0
        %1779 = vmatpush1.bf16.msra.mxu0 0
        %1780 = vmatprep.subr.bf16.mxu0 0
        %1781 = vmatpush1.bf16.msra.mxu0 0
        %1782 = vmatprep.mubr.bf16.mxu0 0
        %1783 = vmatmul.mubr.bf16.gmra.mrb[0].mxu0 %v1736
        %v1784 = vpop.f32.mrb[0].mxu0
        %v1785 = vadd.f32 0.0, %v1784
        %v1786 = vpop.f32.mrb[0].mxu0
        %v1787 = vpop.f32.mrb[0].mxu0
        %v1788 = vadd.f32 0.0, %v1787
        %v1789 = vpop.f32.mrb[0].mxu0
        %1790 = vmatprep.mubr.bf16.mxu0 0
        %1791 = vmatmul.mubr.bf16.gmra.mrb[0].mxu0 %v1739
        %v1792 = vpop.f32.mrb[0].mxu0
        %v1793 = vadd.f32 0.0, %v1792
        %v1794 = vpop.f32.mrb[0].mxu0
        %v1795 = vpop.f32.mrb[0].mxu0
        %v1796 = vadd.f32 0.0, %v1795
        %v1797 = vpop.f32.mrb[0].mxu0
        %1798 = vmatprep.mubr.bf16.mxu0 0
        %1799 = vmatmul.mubr.bf16.gmra.mrb[0].mxu0 %v1742
        %v1800 = vpop.f32.mrb[0].mxu0
        %v1801 = vadd.f32 0.0, %v1800
        %v1802 = vpop.f32.mrb[0].mxu0
        %v1803 = vpop.f32.mrb[0].mxu0
        %v1804 = vadd.f32 0.0, %v1803
        %v1805 = vpop.f32.mrb[0].mxu0
        %1806 = vmatprep.mubr.bf16.mxu0 0
        %1807 = vmatmul.mubr.bf16.gmra.mrb[0].mxu0 %v1745
        %v1808 = vpop.f32.mrb[0].mxu0
        %v1809 = vadd.f32 0.0, %v1808
        %v1810 = vpop.f32.mrb[0].mxu0
        %v1811 = vpop.f32.mrb[0].mxu0
        %v1812 = vadd.f32 0.0, %v1811
        %v1813 = vpop.f32.mrb[0].mxu0
        %1814 = vdwg.mxu0
        %v1815 = vadd.f32 %v1583, %v1785
        %v1816 = vadd.f32 %v1586, %v1788
        %v1817 = vadd.f32 %v1591, %v1793
        %v1818 = vadd.f32 %v1594, %v1796
        %v1819 = vadd.f32 %v1599, %v1801
        %v1820 = vadd.f32 %v1602, %v1804
        %v1821 = vadd.f32 %v1607, %v1809
        %v1822 = vadd.f32 %v1610, %v1812
        %v1824 = vlaneseq
        %v1825 = vshrl.u32 %v1824, 7
        %v1826 = vsub.s32 0, %v1825
        %v1827 = vrot.slane %v1195, %v1826
        %v1829 = vadd.f32 %v1815, %v1827
        %v1830 = vadd.f32 %v1816, %v1827
        %v1831 = vadd.f32 %v1817, %v1827
        %v1832 = vadd.f32 %v1818, %v1827
        %v1833 = vadd.f32 %v1819, %v1827
        %v1834 = vadd.f32 %v1820, %v1827
        %v1835 = vadd.f32 %v1821, %v1827
        %v1836 = vadd.f32 %v1822, %v1827
        %v1837 = vsel %vm1000, %v1829, 0.0
        %v1838 = vsel %vm1000, %v1830, 0.0
        %v1839 = vadd.f32 %v1837, %v1838
        %v1840 = vsel %vm1000, %v1831, 0.0
        %v1841 = vadd.f32 %v1839, %v1840
        %v1842 = vsel %vm1000, %v1832, 0.0
        %v1843 = vadd.f32 %v1841, %v1842
        %v1844 = vsel %vm1000, %v1833, 0.0
        %v1845 = vadd.f32 %v1843, %v1844
        %v1846 = vsel %vm1000, %v1834, 0.0
        %v1847 = vadd.f32 %v1845, %v1846
        %v1848 = vsel %vm1000, %v1835, 0.0
        %v1849 = vadd.f32 %v1847, %v1848
        %v1850 = vsel %vm1000, %v1836, 0.0
        %v1851 = vadd.f32 %v1849, %v1850
        %v1852 = vrot.slane %v1851, 4
        %v1853 = vadd.f32 %v1851, %v1852
        %v1854 = vrot.slane %v1853, 2
        %v1855 = vadd.f32 %v1853, %v1854
        %v1856 = vrot.slane %v1855, 1
        %v1857 = vadd.f32 %v1855, %v1856
        %v1858 = vrcp.pop 64.0
        %v1859 = vmul.f32 %v1857, %v1858
        %v1860 = vmul.f32 %v1829, %v1829
        %v1861 = vmul.f32 %v1830, %v1830
        %v1862 = vmul.f32 %v1831, %v1831
        %v1863 = vmul.f32 %v1832, %v1832
        %v1864 = vmul.f32 %v1833, %v1833
        %v1865 = vmul.f32 %v1834, %v1834
        %v1866 = vmul.f32 %v1835, %v1835
        %v1867 = vmul.f32 %v1836, %v1836
        %v1868 = vsel %vm1000, %v1860, 0.0
        %v1869 = vsel %vm1000, %v1861, 0.0
        %v1870 = vadd.f32 %v1868, %v1869
        %v1871 = vsel %vm1000, %v1862, 0.0
        %v1872 = vadd.f32 %v1870, %v1871
        %v1873 = vsel %vm1000, %v1863, 0.0
        %v1874 = vadd.f32 %v1872, %v1873
        %v1875 = vsel %vm1000, %v1864, 0.0
        %v1876 = vadd.f32 %v1874, %v1875
        %v1877 = vsel %vm1000, %v1865, 0.0
        %v1878 = vadd.f32 %v1876, %v1877
        %v1879 = vsel %vm1000, %v1866, 0.0
        %v1880 = vadd.f32 %v1878, %v1879
        %v1881 = vsel %vm1000, %v1867, 0.0
        %v1882 = vadd.f32 %v1880, %v1881
        %v1883 = vrot.slane %v1882, 4
        %v1884 = vadd.f32 %v1882, %v1883
        %v1885 = vrot.slane %v1884, 2
        %v1886 = vadd.f32 %v1884, %v1885
        %v1887 = vrot.slane %v1886, 1
        %v1888 = vadd.f32 %v1886, %v1887
        %v1889 = vmul.f32 %v1888, %v1858
        %v1891 = vsel %vm1000, %v1859, 0
        %1893 = vmatprep.subr.mxu0 0.0
        %1894 = vmatpush1.msra.mxu0 %v1036
        %1895 = vmatprep.subr.mxu0 0.0
        %1896 = vmatpush1.msra.mxu0 0.0
        %1897 = vmatprep.subr.mxu0 0.0
        %1898 = vmatpush1.msra.mxu0 0.0
        %1899 = vmatprep.subr.mxu0 0.0
        %1900 = vmatpush1.msra.mxu0 0.0
        %1901 = vmatprep.subr.mxu0 0.0
        %1902 = vmatpush1.msra.mxu0 0.0
        %1903 = vmatprep.subr.mxu0 0.0
        %1904 = vmatpush1.msra.mxu0 0.0
        %1905 = vmatprep.subr.mxu0 0.0
        %1906 = vmatpush1.msra.mxu0 0.0
        %1907 = vmatprep.subr.mxu0 0.0
        %1908 = vmatpush1.msra.mxu0 0.0
        %1909 = vmatprep.subr.mxu0 0.0
        %1910 = vmatpush1.msra.mxu0 0.0
        %1911 = vmatprep.subr.mxu0 0.0
        %1912 = vmatpush1.msra.mxu0 0.0
        %1913 = vmatprep.subr.mxu0 0.0
        %1914 = vmatpush1.msra.mxu0 0.0
        %1915 = vmatprep.subr.mxu0 0.0
        %1916 = vmatpush1.msra.mxu0 0.0
        %1917 = vmatprep.subr.mxu0 0.0
        %1918 = vmatpush1.msra.mxu0 0.0
        %1919 = vmatprep.subr.mxu0 0.0
        %1920 = vmatpush1.msra.mxu0 0.0
        %1921 = vmatprep.subr.mxu0 0.0
        %1922 = vmatpush1.msra.mxu0 0.0
        %1923 = vmatprep.subr.mxu0 0.0
        %1924 = vmatpush1.msra.mxu0 0.0
        %1925 = vmatprep.subr.mxu0 0.0
        %1926 = vmatpush1.msra.mxu0 0.0
        %1927 = vmatprep.subr.mxu0 0.0
        %1928 = vmatpush1.msra.mxu0 0.0
        %1929 = vmatprep.subr.mxu0 0.0
        %1930 = vmatpush1.msra.mxu0 0.0
        %1931 = vmatprep.subr.mxu0 0.0
        %1932 = vmatpush1.msra.mxu0 0.0
        %1933 = vmatprep.subr.mxu0 0.0
        %1934 = vmatpush1.msra.mxu0 0.0
        %1935 = vmatprep.subr.mxu0 0.0
        %1936 = vmatpush1.msra.mxu0 0.0
        %1937 = vmatprep.subr.mxu0 0.0
        %1938 = vmatpush1.msra.mxu0 0.0
        %1939 = vmatprep.subr.mxu0 0.0
        %1940 = vmatpush1.msra.mxu0 0.0
        %1941 = vmatprep.subr.mxu0 0.0
        %1942 = vmatpush1.msra.mxu0 0.0
        %1943 = vmatprep.subr.mxu0 0.0
        %1944 = vmatpush1.msra.mxu0 0.0
        %1945 = vmatprep.subr.mxu0 0.0
        %1946 = vmatpush1.msra.mxu0 0.0
        %1947 = vmatprep.subr.mxu0 0.0
        %1948 = vmatpush1.msra.mxu0 0.0
        %1949 = vmatprep.subr.mxu0 0.0
        %1950 = vmatpush1.msra.mxu0 0.0
        %1951 = vmatprep.subr.mxu0 0.0
        %1952 = vmatpush1.msra.mxu0 0.0
        %1953 = vmatprep.subr.mxu0 0.0
        %1954 = vmatpush1.msra.mxu0 0.0
        %1955 = vmatprep.subr.mxu0 0.0
        %1956 = vmatpush1.msra.mxu0 0.0
        %1957 = vmatprep.mubr.f32.mxu0 0.0
        %1958 = vmatmul.mubr.f32.gmra.mrb[0].mxu0 %v1891
        %v1959 = vpop.f32.mrb[0].mxu0
        %v1960 = vadd.f32 0.0, %v1959
        %v1961 = vpop.f32.mrb[0].mxu0
        %1962 = vdwg.mxu0
        %v1964 = vsel %vm1000, %v1889, 0
        %1966 = vmatprep.subr.mxu0 0.0
        %1967 = vmatpush1.msra.mxu0 %v1036
        %1968 = vmatprep.subr.mxu0 0.0
        %1969 = vmatpush1.msra.mxu0 0.0
        %1970 = vmatprep.subr.mxu0 0.0
        %1971 = vmatpush1.msra.mxu0 0.0
        %1972 = vmatprep.subr.mxu0 0.0
        %1973 = vmatpush1.msra.mxu0 0.0
        %1974 = vmatprep.subr.mxu0 0.0
        %1975 = vmatpush1.msra.mxu0 0.0
        %1976 = vmatprep.subr.mxu0 0.0
        %1977 = vmatpush1.msra.mxu0 0.0
        %1978 = vmatprep.subr.mxu0 0.0
        %1979 = vmatpush1.msra.mxu0 0.0
        %1980 = vmatprep.subr.mxu0 0.0
        %1981 = vmatpush1.msra.mxu0 0.0
        %1982 = vmatprep.subr.mxu0 0.0
        %1983 = vmatpush1.msra.mxu0 0.0
        %1984 = vmatprep.subr.mxu0 0.0
        %1985 = vmatpush1.msra.mxu0 0.0
        %1986 = vmatprep.subr.mxu0 0.0
        %1987 = vmatpush1.msra.mxu0 0.0
        %1988 = vmatprep.subr.mxu0 0.0
        %1989 = vmatpush1.msra.mxu0 0.0
        %1990 = vmatprep.subr.mxu0 0.0
        %1991 = vmatpush1.msra.mxu0 0.0
        %1992 = vmatprep.subr.mxu0 0.0
        %1993 = vmatpush1.msra.mxu0 0.0
        %1994 = vmatprep.subr.mxu0 0.0
        %1995 = vmatpush1.msra.mxu0 0.0
        %1996 = vmatprep.subr.mxu0 0.0
        %1997 = vmatpush1.msra.mxu0 0.0
        %1998 = vmatprep.subr.mxu0 0.0
        %1999 = vmatpush1.msra.mxu0 0.0
        %2000 = vmatprep.subr.mxu0 0.0
        %2001 = vmatpush1.msra.mxu0 0.0
        %2002 = vmatprep.subr.mxu0 0.0
        %2003 = vmatpush1.msra.mxu0 0.0
        %2004 = vmatprep.subr.mxu0 0.0
        %2005 = vmatpush1.msra.mxu0 0.0
        %2006 = vmatprep.subr.mxu0 0.0
        %2007 = vmatpush1.msra.mxu0 0.0
        %2008 = vmatprep.subr.mxu0 0.0
        %2009 = vmatpush1.msra.mxu0 0.0
        %2010 = vmatprep.subr.mxu0 0.0
        %2011 = vmatpush1.msra.mxu0 0.0
        %2012 = vmatprep.subr.mxu0 0.0
        %2013 = vmatpush1.msra.mxu0 0.0
        %2014 = vmatprep.subr.mxu0 0.0
        %2015 = vmatpush1.msra.mxu0 0.0
        %2016 = vmatprep.subr.mxu0 0.0
        %2017 = vmatpush1.msra.mxu0 0.0
        %2018 = vmatprep.subr.mxu0 0.0
        %2019 = vmatpush1.msra.mxu0 0.0
        %2020 = vmatprep.subr.mxu0 0.0
        %2021 = vmatpush1.msra.mxu0 0.0
        %2022 = vmatprep.subr.mxu0 0.0
        %2023 = vmatpush1.msra.mxu0 0.0
        %2024 = vmatprep.subr.mxu0 0.0
        %2025 = vmatpush1.msra.mxu0 0.0
        %2026 = vmatprep.subr.mxu0 0.0
        %2027 = vmatpush1.msra.mxu0 0.0
        %2028 = vmatprep.subr.mxu0 0.0
        %2029 = vmatpush1.msra.mxu0 0.0
        %2030 = vmatprep.mubr.f32.mxu0 0.0
        %2031 = vmatmul.mubr.f32.gmra.mrb[0].mxu0 %v1964
        %v2032 = vpop.f32.mrb[0].mxu0
        %v2033 = vadd.f32 0.0, %v2032
        %v2034 = vpop.f32.mrb[0].mxu0
        %2035 = vdwg.mxu0
        %v2036 = vmul.f32 %v1960, %v1960
        %v2037 = vsub.f32 %v2033, %v2036
        %v2038 = vmax.f32 %v2037, 0.0
        %v2039 = vadd.f32 %v2038, 1e-05
        %v2040 = vrsqrt.pop %v2039
        %v2041 = vlaneseq
        %v2042 = vshrl.u32 %v2041, 7
        %v2043 = vsub.s32 0, %v2042
        %v2044 = vrot.slane %v1960, %v2043
        %v2045 = vsub.f32 %v1829, %v2044
        %v2046 = vsub.f32 %v1830, %v2044
        %v2047 = vsub.f32 %v1831, %v2044
        %v2048 = vsub.f32 %v1832, %v2044
        %v2049 = vsub.f32 %v1833, %v2044
        %v2050 = vsub.f32 %v1834, %v2044
        %v2051 = vsub.f32 %v1835, %v2044
        %v2052 = vsub.f32 %v1836, %v2044
        %v2053 = vmul.f32 %v2040, %v1196
        %v2054 = vlaneseq
        %v2055 = vshrl.u32 %v2054, 7
        %v2056 = vsub.s32 0, %v2055
        %v2057 = vrot.slane %v2053, %v2056
        %v2058 = vmul.f32 %v2045, %v2057
        %v2059 = vmul.f32 %v2046, %v2057
        %v2060 = vmul.f32 %v2047, %v2057
        %v2061 = vmul.f32 %v2048, %v2057
        %v2062 = vmul.f32 %v2049, %v2057
        %v2063 = vmul.f32 %v2050, %v2057
        %v2064 = vmul.f32 %v2051, %v2057
        %v2065 = vmul.f32 %v2052, %v2057
        %v2067 = vlaneseq
        %v2068 = vshrl.u32 %v2067, 7
        %v2069 = vsub.s32 0, %v2068
        %v2070 = vrot.slane %v1197, %v2069
        %v2072 = vadd.f32 %v2058, %v2070
        %v2073 = vadd.f32 %v2059, %v2070
        %v2074 = vadd.f32 %v2060, %v2070
        %v2075 = vadd.f32 %v2061, %v2070
        %v2076 = vadd.f32 %v2062, %v2070
        %v2077 = vadd.f32 %v2063, %v2070
        %v2078 = vadd.f32 %v2064, %v2070
        %v2079 = vadd.f32 %v2065, %v2070
        %v2080 = vxor.u32 %v2072, 2147483648
        %v2081 = vxor.u32 %v2073, 2147483648
        %v2082 = vxor.u32 %v2074, 2147483648
        %v2083 = vxor.u32 %v2075, 2147483648
        %v2084 = vxor.u32 %v2076, 2147483648
        %v2085 = vxor.u32 %v2077, 2147483648
        %v2086 = vxor.u32 %v2078, 2147483648
        %v2087 = vxor.u32 %v2079, 2147483648
        %v2088 = vmul.f32 %v2080, 1.442695
        %v2089 = vpow.pop %v2088
        %v2090 = vmul.f32 %v2081, 1.442695
        %v2091 = vpow.pop %v2090
        %v2092 = vmul.f32 %v2082, 1.442695
        %v2093 = vpow.pop %v2092
        %v2094 = vmul.f32 %v2083, 1.442695
        %v2095 = vpow.pop %v2094
        %v2096 = vmul.f32 %v2084, 1.442695
        %v2097 = vpow.pop %v2096
        %v2098 = vmul.f32 %v2085, 1.442695
        %v2099 = vpow.pop %v2098
        %v2100 = vmul.f32 %v2086, 1.442695
        %v2101 = vpow.pop %v2100
        %v2102 = vmul.f32 %v2087, 1.442695
        %v2103 = vpow.pop %v2102
        %v2104 = vadd.f32 %v2089, 1.0
        %v2105 = vadd.f32 %v2091, 1.0
        %v2106 = vadd.f32 %v2093, 1.0
        %v2107 = vadd.f32 %v2095, 1.0
        %v2108 = vadd.f32 %v2097, 1.0
        %v2109 = vadd.f32 %v2099, 1.0
        %v2110 = vadd.f32 %v2101, 1.0
        %v2111 = vadd.f32 %v2103, 1.0
        %v2112 = vrcp.pop %v2104
        %v2113 = vmul.f32 1.0, %v2112
        %v2114 = vrcp.pop %v2105
        %v2115 = vmul.f32 1.0, %v2114
        %v2116 = vrcp.pop %v2106
        %v2117 = vmul.f32 1.0, %v2116
        %v2118 = vrcp.pop %v2107
        %v2119 = vmul.f32 1.0, %v2118
        %v2120 = vrcp.pop %v2108
        %v2121 = vmul.f32 1.0, %v2120
        %v2122 = vrcp.pop %v2109
        %v2123 = vmul.f32 1.0, %v2122
        %v2124 = vrcp.pop %v2110
        %v2125 = vmul.f32 1.0, %v2124
        %v2126 = vrcp.pop %v2111
        %v2127 = vmul.f32 1.0, %v2126
        %v2128 = vmul.f32 %v2072, %v2113
        %v2129 = vmul.f32 %v2073, %v2115
        %v2130 = vmul.f32 %v2074, %v2117
        %v2131 = vmul.f32 %v2075, %v2119
        %v2132 = vmul.f32 %v2076, %v2121
        %v2133 = vmul.f32 %v2077, %v2123
        %v2134 = vmul.f32 %v2078, %v2125
        %v2135 = vmul.f32 %v2079, %v2127
        %v2136 = vlaneseq
        %v2137 = vshrl.u32 %v2136, 7
        %v2138 = vsub.s32 0, %v2137
        %v2139 = vrot.slane %v1119, %v2138
        %v2140 = vadd.f32 %v2128, %v2139
        %v2141 = vadd.f32 %v2129, %v2139
        %v2142 = vadd.f32 %v2130, %v2139
        %v2143 = vadd.f32 %v2131, %v2139
        %v2144 = vadd.f32 %v2132, %v2139
        %v2145 = vadd.f32 %v2133, %v2139
        %v2146 = vadd.f32 %v2134, %v2139
        %v2147 = vadd.f32 %v2135, %v2139
        %2148 = vst.msk [vmem:[%s1201 + $0x1] sm:$0xff] %vm1000, %v2140
        %2149 = vst.msk [vmem:[%s1201 + $0x11] sm:$0xff] %vm1000, %v2141
        %2150 = vst.msk [vmem:[%s1201 + $0x21] sm:$0xff] %vm1000, %v2142
        %2151 = vst.msk [vmem:[%s1201 + $0x31] sm:$0xff] %vm1000, %v2143
        %2152 = vst.msk [vmem:[%s1201 + $0x41] sm:$0xff] %vm1000, %v2144
        %2153 = vst.msk [vmem:[%s1201 + $0x51] sm:$0xff] %vm1000, %v2145
        %2154 = vst.msk [vmem:[%s1201 + $0x61] sm:$0xff] %vm1000, %v2146
        %2155 = vst.msk [vmem:[%s1201 + $0x71] sm:$0xff] %vm1000, %v2147
        %v2156 = vld [vmem:[#allocation2] sm:$0xff]
        %v2157 = vld [vmem:[#allocation2 + $0x10] sm:$0xff]
        %v2158 = vld [vmem:[#allocation2 + $0x20] sm:$0xff]
        %v2159 = vld [vmem:[#allocation2 + $0x30] sm:$0xff]
        %v2160 = vld [vmem:[#allocation2 + $0x40] sm:$0xff]
        %v2161 = vld [vmem:[#allocation2 + $0x50] sm:$0xff]
        %v2162 = vld [vmem:[#allocation2 + $0x60] sm:$0xff]
        %v2163 = vld [vmem:[#allocation2 + $0x70] sm:$0xff]
        %v2164 = vld [vmem:[#allocation2 + $0x1] sm:$0xff]
        %v2165 = vld [vmem:[#allocation2 + $0x11] sm:$0xff]
        %v2166 = vld [vmem:[#allocation2 + $0x21] sm:$0xff]
        %v2167 = vld [vmem:[#allocation2 + $0x31] sm:$0xff]
        %v2168 = vld [vmem:[#allocation2 + $0x41] sm:$0xff]
        %v2169 = vld [vmem:[#allocation2 + $0x51] sm:$0xff]
        %v2170 = vld [vmem:[#allocation2 + $0x61] sm:$0xff]
        %v2171 = vld [vmem:[#allocation2 + $0x71] sm:$0xff]
        %v2172 = vld [vmem:[#allocation2 + $0x2] sm:$0xff]
        %v2173 = vld [vmem:[#allocation2 + $0x12] sm:$0xff]
        %v2174 = vld [vmem:[#allocation2 + $0x22] sm:$0xff]
        %v2175 = vld [vmem:[#allocation2 + $0x32] sm:$0xff]
        %v2176 = vld [vmem:[#allocation2 + $0x42] sm:$0xff]
        %v2177 = vld [vmem:[#allocation2 + $0x52] sm:$0xff]
        %v2178 = vld [vmem:[#allocation2 + $0x62] sm:$0xff]
        %v2179 = vld [vmem:[#allocation2 + $0x72] sm:$0xff]
        %2188 = vrot.lane.b32.xlu0 %v2164, 8
        %v2189 = vpop.permute.xlu0 %2188
        %2190 = vrot.lane.b32.xlu0 %v2165, 8
        %v2191 = vpop.permute.xlu0 %2190
        %2192 = vrot.lane.b32.xlu0 %v2166, 8
        %v2193 = vpop.permute.xlu0 %2192
        %2194 = vrot.lane.b32.xlu0 %v2167, 8
        %v2195 = vpop.permute.xlu0 %2194
        %2196 = vrot.lane.b32.xlu0 %v2168, 8
        %v2197 = vpop.permute.xlu0 %2196
        %2198 = vrot.lane.b32.xlu0 %v2169, 8
        %v2199 = vpop.permute.xlu0 %2198
        %2200 = vrot.lane.b32.xlu0 %v2170, 8
        %v2201 = vpop.permute.xlu0 %2200
        %2202 = vrot.lane.b32.xlu0 %v2171, 8
        %v2203 = vpop.permute.xlu0 %2202
        %2220 = vrot.lane.b32.xlu0 %v2172, 16
        %v2221 = vpop.permute.xlu0 %2220
        %2222 = vrot.lane.b32.xlu0 %v2173, 16
        %v2223 = vpop.permute.xlu0 %2222
        %2224 = vrot.lane.b32.xlu0 %v2174, 16
        %v2225 = vpop.permute.xlu0 %2224
        %2226 = vrot.lane.b32.xlu0 %v2175, 16
        %v2227 = vpop.permute.xlu0 %2226
        %2228 = vrot.lane.b32.xlu0 %v2176, 16
        %v2229 = vpop.permute.xlu0 %2228
        %2230 = vrot.lane.b32.xlu0 %v2177, 16
        %v2231 = vpop.permute.xlu0 %2230
        %2232 = vrot.lane.b32.xlu0 %v2178, 16
        %v2233 = vpop.permute.xlu0 %2232
        %2234 = vrot.lane.b32.xlu0 %v2179, 16
        %v2235 = vpop.permute.xlu0 %2234
        %v2244 = vsel %vm1000, %v2156, %v2189
        %v2245 = vsel %vm1000, %v2157, %v2191
        %v2246 = vsel %vm1000, %v2158, %v2193
        %v2247 = vsel %vm1000, %v2159, %v2195
        %v2248 = vsel %vm1000, %v2160, %v2197
        %v2249 = vsel %vm1000, %v2161, %v2199
        %v2250 = vsel %vm1000, %v2162, %v2201
        %v2251 = vsel %vm1000, %v2163, %v2203
        %v2252 = vsel %vm1048, %v2244, %v2221
        %v2253 = vsel %vm1048, %v2245, %v2223
        %v2254 = vsel %vm1048, %v2246, %v2225
        %v2255 = vsel %vm1048, %v2247, %v2227
        %v2256 = vsel %vm1048, %v2248, %v2229
        %v2257 = vsel %vm1048, %v2249, %v2231
        %v2258 = vsel %vm1048, %v2250, %v2233
        %v2259 = vsel %vm1048, %v2251, %v2235
        %v2260 = vpack.c.bf16 %v2253, %v2252
        %v2261 = vpack.c.bf16 %v2255, %v2254
        %v2262 = vpack.c.bf16 %v2257, %v2256
        %v2263 = vpack.c.bf16 %v2259, %v2258
        %v2264 = vld [vmem:[%s19] sm:$0xf]
        %v2265 = vld [vmem:[%s19 + $0x4] sm:$0xf]
        %v2266 = vld [vmem:[%s19 + $0x8] sm:$0xf]
        %v2267 = vld [vmem:[%s1201] sm:$0xff]
        %v2268 = vld [vmem:[%s1201 + $0x10] sm:$0xff]
        %v2269 = vld [vmem:[%s1201 + $0x20] sm:$0xff]
        %v2270 = vld [vmem:[%s1201 + $0x30] sm:$0xff]
        %v2271 = vld [vmem:[%s1201 + $0x40] sm:$0xff]
        %v2272 = vld [vmem:[%s1201 + $0x50] sm:$0xff]
        %v2273 = vld [vmem:[%s1201 + $0x60] sm:$0xff]
        %v2274 = vld [vmem:[%s1201 + $0x70] sm:$0xff]
        %v2275 = vld [vmem:[%s1201 + $0x1] sm:$0xff]
        %v2276 = vld [vmem:[%s1201 + $0x11] sm:$0xff]
        %v2277 = vld [vmem:[%s1201 + $0x21] sm:$0xff]
        %v2278 = vld [vmem:[%s1201 + $0x31] sm:$0xff]
        %v2279 = vld [vmem:[%s1201 + $0x41] sm:$0xff]
        %v2280 = vld [vmem:[%s1201 + $0x51] sm:$0xff]
        %v2281 = vld [vmem:[%s1201 + $0x61] sm:$0xff]
        %v2282 = vld [vmem:[%s1201 + $0x71] sm:$0xff]
        %v2283 = vld [vmem:[%s1201 + $0x2] sm:$0xff]
        %v2284 = vld [vmem:[%s1201 + $0x12] sm:$0xff]
        %v2285 = vld [vmem:[%s1201 + $0x22] sm:$0xff]
        %v2286 = vld [vmem:[%s1201 + $0x32] sm:$0xff]
        %v2287 = vld [vmem:[%s1201 + $0x42] sm:$0xff]
        %v2288 = vld [vmem:[%s1201 + $0x52] sm:$0xff]
        %v2289 = vld [vmem:[%s1201 + $0x62] sm:$0xff]
        %v2290 = vld [vmem:[%s1201 + $0x72] sm:$0xff]
        %2299 = vrot.lane.b32.xlu0 %v2275, 8
        %v2300 = vpop.permute.xlu0 %2299
        %2301 = vrot.lane.b32.xlu0 %v2276, 8
        %v2302 = vpop.permute.xlu0 %2301
        %2303 = vrot.lane.b32.xlu0 %v2277, 8
        %v2304 = vpop.permute.xlu0 %2303
        %2305 = vrot.lane.b32.xlu0 %v2278, 8
        %v2306 = vpop.permute.xlu0 %2305
        %2307 = vrot.lane.b32.xlu0 %v2279, 8
        %v2308 = vpop.permute.xlu0 %2307
        %2309 = vrot.lane.b32.xlu0 %v2280, 8
        %v2310 = vpop.permute.xlu0 %2309
        %2311 = vrot.lane.b32.xlu0 %v2281, 8
        %v2312 = vpop.permute.xlu0 %2311
        %2313 = vrot.lane.b32.xlu0 %v2282, 8
        %v2314 = vpop.permute.xlu0 %2313
        %2331 = vrot.lane.b32.xlu0 %v2283, 16
        %v2332 = vpop.permute.xlu0 %2331
        %2333 = vrot.lane.b32.xlu0 %v2284, 16
        %v2334 = vpop.permute.xlu0 %2333
        %2335 = vrot.lane.b32.xlu0 %v2285, 16
        %v2336 = vpop.permute.xlu0 %2335
        %2337 = vrot.lane.b32.xlu0 %v2286, 16
        %v2338 = vpop.permute.xlu0 %2337
        %2339 = vrot.lane.b32.xlu0 %v2287, 16
        %v2340 = vpop.permute.xlu0 %2339
        %2341 = vrot.lane.b32.xlu0 %v2288, 16
        %v2342 = vpop.permute.xlu0 %2341
        %2343 = vrot.lane.b32.xlu0 %v2289, 16
        %v2344 = vpop.permute.xlu0 %2343
        %2345 = vrot.lane.b32.xlu0 %v2290, 16
        %v2346 = vpop.permute.xlu0 %2345
        %v2355 = vsel %vm1000, %v2267, %v2300
        %v2356 = vsel %vm1000, %v2268, %v2302
        %v2357 = vsel %vm1000, %v2269, %v2304
        %v2358 = vsel %vm1000, %v2270, %v2306
        %v2359 = vsel %vm1000, %v2271, %v2308
        %v2360 = vsel %vm1000, %v2272, %v2310
        %v2361 = vsel %vm1000, %v2273, %v2312
        %v2362 = vsel %vm1000, %v2274, %v2314
        %v2363 = vsel %vm1048, %v2355, %v2332
        %v2364 = vsel %vm1048, %v2356, %v2334
        %v2365 = vsel %vm1048, %v2357, %v2336
        %v2366 = vsel %vm1048, %v2358, %v2338
        %v2367 = vsel %vm1048, %v2359, %v2340
        %v2368 = vsel %vm1048, %v2360, %v2342
        %v2369 = vsel %vm1048, %v2361, %v2344
        %v2370 = vsel %vm1048, %v2362, %v2346
        %v2371 = vpack.c.bf16 %v2364, %v2363
        %v2372 = vpack.c.bf16 %v2366, %v2365
        %v2373 = vpack.c.bf16 %v2368, %v2367
        %v2374 = vpack.c.bf16 %v2370, %v2369
        %s2375 = scalar_lea.vmem %s19, 12
        %v2376 = vld [vmem:[%s2375] sm:$0xf]
        %v2377 = vld [vmem:[%s2375 + $0x4] sm:$0xf]
        %v2378 = vld [vmem:[%s2375 + $0x8] sm:$0xf]
        %v2382 = vunpack.c.l.b16 %v2376
        %v2383 = vunpack.c.l.b16 %v2377
        %v2384 = vunpack.c.l.b16 %v2378
        %v2385 = vpack.c.b16 %v2383, %v2382
        %v2386 = vpack.c.b16 %v2384, %v2384
        %v2389 = vsel %vm1442, %v2371, 0
        %v2392 = vsel %vm1442, %v2372, 0
        %v2395 = vsel %vm1442, %v2373, 0
        %v2398 = vsel %vm1442, %v2374, 0
        %v2401 = vsel %vm1455, %v2386, 0
        %2403 = vmatprep.subr.bf16.mxu0 0
        %2404 = vmatpush1.bf16.msra.mxu0 %v2385
        %2405 = vmatprep.subr.bf16.mxu0 0
        %2406 = vmatpush1.bf16.msra.mxu0 %v2401
        %2407 = vmatprep.subr.bf16.mxu0 0
        %2408 = vmatpush1.bf16.msra.mxu0 0
        %2409 = vmatprep.subr.bf16.mxu0 0
        %2410 = vmatpush1.bf16.msra.mxu0 0
        %2411 = vmatprep.subr.bf16.mxu0 0
        %2412 = vmatpush1.bf16.msra.mxu0 0
        %2413 = vmatprep.subr.bf16.mxu0 0
        %2414 = vmatpush1.bf16.msra.mxu0 0
        %2415 = vmatprep.subr.bf16.mxu0 0
        %2416 = vmatpush1.bf16.msra.mxu0 0
        %2417 = vmatprep.subr.bf16.mxu0 0
        %2418 = vmatpush1.bf16.msra.mxu0 0
        %2419 = vmatprep.subr.bf16.mxu0 0
        %2420 = vmatpush1.bf16.msra.mxu0 0
        %2421 = vmatprep.subr.bf16.mxu0 0
        %2422 = vmatpush1.bf16.msra.mxu0 0
        %2423 = vmatprep.subr.bf16.mxu0 0
        %2424 = vmatpush1.bf16.msra.mxu0 0
        %2425 = vmatprep.subr.bf16.mxu0 0
        %2426 = vmatpush1.bf16.msra.mxu0 0
        %2427 = vmatprep.subr.bf16.mxu0 0
        %2428 = vmatpush1.bf16.msra.mxu0 0
        %2429 = vmatprep.subr.bf16.mxu0 0
        %2430 = vmatpush1.bf16.msra.mxu0 0
        %2431 = vmatprep.subr.bf16.mxu0 0
        %2432 = vmatpush1.bf16.msra.mxu0 0
        %2433 = vmatprep.subr.bf16.mxu0 0
        %2434 = vmatpush1.bf16.msra.mxu0 0
        %2435 = vmatprep.mubr.bf16.mxu0 0
        %2436 = vmatmul.mubr.bf16.gmra.mrb[0].mxu0 %v2389
        %v2437 = vpop.f32.mrb[0].mxu0
        %v2438 = vadd.f32 0.0, %v2437
        %v2439 = vpop.f32.mrb[0].mxu0
        %v2440 = vpop.f32.mrb[0].mxu0
        %v2441 = vadd.f32 0.0, %v2440
        %v2442 = vpop.f32.mrb[0].mxu0
        %2443 = vmatprep.mubr.bf16.mxu0 0
        %2444 = vmatmul.mubr.bf16.gmra.mrb[0].mxu0 %v2392
        %v2445 = vpop.f32.mrb[0].mxu0
        %v2446 = vadd.f32 0.0, %v2445
        %v2447 = vpop.f32.mrb[0].mxu0
        %v2448 = vpop.f32.mrb[0].mxu0
        %v2449 = vadd.f32 0.0, %v2448
        %v2450 = vpop.f32.mrb[0].mxu0
        %2451 = vmatprep.mubr.bf16.mxu0 0
        %2452 = vmatmul.mubr.bf16.gmra.mrb[0].mxu0 %v2395
        %v2453 = vpop.f32.mrb[0].mxu0
        %v2454 = vadd.f32 0.0, %v2453
        %v2455 = vpop.f32.mrb[0].mxu0
        %v2456 = vpop.f32.mrb[0].mxu0
        %v2457 = vadd.f32 0.0, %v2456
        %v2458 = vpop.f32.mrb[0].mxu0
        %2459 = vmatprep.mubr.bf16.mxu0 0
        %2460 = vmatmul.mubr.bf16.gmra.mrb[0].mxu0 %v2398
        %v2461 = vpop.f32.mrb[0].mxu0
        %v2462 = vadd.f32 0.0, %v2461
        %v2463 = vpop.f32.mrb[0].mxu0
        %v2464 = vpop.f32.mrb[0].mxu0
        %v2465 = vadd.f32 0.0, %v2464
        %v2466 = vpop.f32.mrb[0].mxu0
        %2467 = vdwg.mxu0
        %v2471 = vunpack.c.l.b16 %v2264
        %v2472 = vunpack.c.l.b16 %v2265
        %v2473 = vunpack.c.l.b16 %v2266
        %v2474 = vpack.c.b16 %v2472, %v2471
        %v2475 = vpack.c.b16 %v2473, %v2473
        %v2478 = vsel %vm1442, %v2260, 0
        %v2481 = vsel %vm1442, %v2261, 0
        %v2484 = vsel %vm1442, %v2262, 0
        %v2487 = vsel %vm1442, %v2263, 0
        %v2490 = vsel %vm1455, %v2475, 0
        %2492 = vmatprep.subr.bf16.mxu0 0
        %2493 = vmatpush1.bf16.msra.mxu0 %v2474
        %2494 = vmatprep.subr.bf16.mxu0 0
        %2495 = vmatpush1.bf16.msra.mxu0 %v2490
        %2496 = vmatprep.subr.bf16.mxu0 0
        %2497 = vmatpush1.bf16.msra.mxu0 0
        %2498 = vmatprep.subr.bf16.mxu0 0
        %2499 = vmatpush1.bf16.msra.mxu0 0
        %2500 = vmatprep.subr.bf16.mxu0 0
        %2501 = vmatpush1.bf16.msra.mxu0 0
        %2502 = vmatprep.subr.bf16.mxu0 0
        %2503 = vmatpush1.bf16.msra.mxu0 0
        %2504 = vmatprep.subr.bf16.mxu0 0
        %2505 = vmatpush1.bf16.msra.mxu0 0
        %2506 = vmatprep.subr.bf16.mxu0 0
        %2507 = vmatpush1.bf16.msra.mxu0 0
        %2508 = vmatprep.subr.bf16.mxu0 0
        %2509 = vmatpush1.bf16.msra.mxu0 0
        %2510 = vmatprep.subr.bf16.mxu0 0
        %2511 = vmatpush1.bf16.msra.mxu0 0
        %2512 = vmatprep.subr.bf16.mxu0 0
        %2513 = vmatpush1.bf16.msra.mxu0 0
        %2514 = vmatprep.subr.bf16.mxu0 0
        %2515 = vmatpush1.bf16.msra.mxu0 0
        %2516 = vmatprep.subr.bf16.mxu0 0
        %2517 = vmatpush1.bf16.msra.mxu0 0
        %2518 = vmatprep.subr.bf16.mxu0 0
        %2519 = vmatpush1.bf16.msra.mxu0 0
        %2520 = vmatprep.subr.bf16.mxu0 0
        %2521 = vmatpush1.bf16.msra.mxu0 0
        %2522 = vmatprep.subr.bf16.mxu0 0
        %2523 = vmatpush1.bf16.msra.mxu0 0
        %2524 = vmatprep.mubr.bf16.mxu0 0
        %2525 = vmatmul.mubr.bf16.gmra.mrb[0].mxu0 %v2478
        %v2526 = vpop.f32.mrb[0].mxu0
        %v2527 = vadd.f32 %v2438, %v2526
        %v2528 = vpop.f32.mrb[0].mxu0
        %v2529 = vpop.f32.mrb[0].mxu0
        %v2530 = vadd.f32 %v2441, %v2529
        %v2531 = vpop.f32.mrb[0].mxu0
        %2532 = vmatprep.mubr.bf16.mxu0 0
        %2533 = vmatmul.mubr.bf16.gmra.mrb[0].mxu0 %v2481
        %v2534 = vpop.f32.mrb[0].mxu0
        %v2535 = vadd.f32 %v2446, %v2534
        %v2536 = vpop.f32.mrb[0].mxu0
        %v2537 = vpop.f32.mrb[0].mxu0
        %v2538 = vadd.f32 %v2449, %v2537
        %v2539 = vpop.f32.mrb[0].mxu0
        %2540 = vmatprep.mubr.bf16.mxu0 0
        %2541 = vmatmul.mubr.bf16.gmra.mrb[0].mxu0 %v2484
        %v2542 = vpop.f32.mrb[0].mxu0
        %v2543 = vadd.f32 %v2454, %v2542
        %v2544 = vpop.f32.mrb[0].mxu0
        %v2545 = vpop.f32.mrb[0].mxu0
        %v2546 = vadd.f32 %v2457, %v2545
        %v2547 = vpop.f32.mrb[0].mxu0
        %2548 = vmatprep.mubr.bf16.mxu0 0
        %2549 = vmatmul.mubr.bf16.gmra.mrb[0].mxu0 %v2487
        %v2550 = vpop.f32.mrb[0].mxu0
        %v2551 = vadd.f32 %v2462, %v2550
        %v2552 = vpop.f32.mrb[0].mxu0
        %v2553 = vpop.f32.mrb[0].mxu0
        %v2554 = vadd.f32 %v2465, %v2553
        %v2555 = vpop.f32.mrb[0].mxu0
        %2556 = vdwg.mxu0
        %v2557 = vld [vmem:[%s1613] sm:$0xff]
        %v2558 = vld [vmem:[%s1613 + $0x10] sm:$0xff]
        %v2559 = vld [vmem:[%s1613 + $0x20] sm:$0xff]
        %v2560 = vld [vmem:[%s1613 + $0x30] sm:$0xff]
        %v2561 = vld [vmem:[%s1613 + $0x40] sm:$0xff]
        %v2562 = vld [vmem:[%s1613 + $0x50] sm:$0xff]
        %v2563 = vld [vmem:[%s1613 + $0x60] sm:$0xff]
        %v2564 = vld [vmem:[%s1613 + $0x70] sm:$0xff]
        %v2565 = vld [vmem:[%s1613 + $0x1] sm:$0xff]
        %v2566 = vld [vmem:[%s1613 + $0x11] sm:$0xff]
        %v2567 = vld [vmem:[%s1613 + $0x21] sm:$0xff]
        %v2568 = vld [vmem:[%s1613 + $0x31] sm:$0xff]
        %v2569 = vld [vmem:[%s1613 + $0x41] sm:$0xff]
        %v2570 = vld [vmem:[%s1613 + $0x51] sm:$0xff]
        %v2571 = vld [vmem:[%s1613 + $0x61] sm:$0xff]
        %v2572 = vld [vmem:[%s1613 + $0x71] sm:$0xff]
        %v2573 = vld [vmem:[%s1613 + $0x2] sm:$0xff]
        %v2574 = vld [vmem:[%s1613 + $0x12] sm:$0xff]
        %v2575 = vld [vmem:[%s1613 + $0x22] sm:$0xff]
        %v2576 = vld [vmem:[%s1613 + $0x32] sm:$0xff]
        %v2577 = vld [vmem:[%s1613 + $0x42] sm:$0xff]
        %v2578 = vld [vmem:[%s1613 + $0x52] sm:$0xff]
        %v2579 = vld [vmem:[%s1613 + $0x62] sm:$0xff]
        %v2580 = vld [vmem:[%s1613 + $0x72] sm:$0xff]
        %2589 = vrot.lane.b32.xlu0 %v2565, 8
        %v2590 = vpop.permute.xlu0 %2589
        %2591 = vrot.lane.b32.xlu0 %v2566, 8
        %v2592 = vpop.permute.xlu0 %2591
        %2593 = vrot.lane.b32.xlu0 %v2567, 8
        %v2594 = vpop.permute.xlu0 %2593
        %2595 = vrot.lane.b32.xlu0 %v2568, 8
        %v2596 = vpop.permute.xlu0 %2595
        %2597 = vrot.lane.b32.xlu0 %v2569, 8
        %v2598 = vpop.permute.xlu0 %2597
        %2599 = vrot.lane.b32.xlu0 %v2570, 8
        %v2600 = vpop.permute.xlu0 %2599
        %2601 = vrot.lane.b32.xlu0 %v2571, 8
        %v2602 = vpop.permute.xlu0 %2601
        %2603 = vrot.lane.b32.xlu0 %v2572, 8
        %v2604 = vpop.permute.xlu0 %2603
        %2621 = vrot.lane.b32.xlu0 %v2573, 16
        %v2622 = vpop.permute.xlu0 %2621
        %2623 = vrot.lane.b32.xlu0 %v2574, 16
        %v2624 = vpop.permute.xlu0 %2623
        %2625 = vrot.lane.b32.xlu0 %v2575, 16
        %v2626 = vpop.permute.xlu0 %2625
        %2627 = vrot.lane.b32.xlu0 %v2576, 16
        %v2628 = vpop.permute.xlu0 %2627
        %2629 = vrot.lane.b32.xlu0 %v2577, 16
        %v2630 = vpop.permute.xlu0 %2629
        %2631 = vrot.lane.b32.xlu0 %v2578, 16
        %v2632 = vpop.permute.xlu0 %2631
        %2633 = vrot.lane.b32.xlu0 %v2579, 16
        %v2634 = vpop.permute.xlu0 %2633
        %2635 = vrot.lane.b32.xlu0 %v2580, 16
        %v2636 = vpop.permute.xlu0 %2635
        %v2645 = vsel %vm1000, %v2557, %v2590
        %v2646 = vsel %vm1000, %v2558, %v2592
        %v2647 = vsel %vm1000, %v2559, %v2594
        %v2648 = vsel %vm1000, %v2560, %v2596
        %v2649 = vsel %vm1000, %v2561, %v2598
        %v2650 = vsel %vm1000, %v2562, %v2600
        %v2651 = vsel %vm1000, %v2563, %v2602
        %v2652 = vsel %vm1000, %v2564, %v2604
        %v2653 = vsel %vm1048, %v2645, %v2622
        %v2654 = vsel %vm1048, %v2646, %v2624
        %v2655 = vsel %vm1048, %v2647, %v2626
        %v2656 = vsel %vm1048, %v2648, %v2628
        %v2657 = vsel %vm1048, %v2649, %v2630
        %v2658 = vsel %vm1048, %v2650, %v2632
        %v2659 = vsel %vm1048, %v2651, %v2634
        %v2660 = vsel %vm1048, %v2652, %v2636
        %v2661 = vpack.c.bf16 %v2654, %v2653
        %v2662 = vpack.c.bf16 %v2656, %v2655
        %v2663 = vpack.c.bf16 %v2658, %v2657
        %v2664 = vpack.c.bf16 %v2660, %v2659
        %s2665 = scalar_lea.vmem %s19, 24
        %v2666 = vld [vmem:[%s2665] sm:$0xf]
        %v2667 = vld [vmem:[%s2665 + $0x4] sm:$0xf]
        %v2668 = vld [vmem:[%s2665 + $0x8] sm:$0xf]
        %v2672 = vunpack.c.l.b16 %v2666
        %v2673 = vunpack.c.l.b16 %v2667
        %v2674 = vunpack.c.l.b16 %v2668
        %v2675 = vpack.c.b16 %v2673, %v2672
        %v2676 = vpack.c.b16 %v2674, %v2674
        %v2679 = vsel %vm1442, %v2661, 0
        %v2682 = vsel %vm1442, %v2662, 0
        %v2685 = vsel %vm1442, %v2663, 0
        %v2688 = vsel %vm1442, %v2664, 0
        %v2691 = vsel %vm1455, %v2676, 0
        %2693 = vmatprep.subr.bf16.mxu0 0
        %2694 = vmatpush1.bf16.msra.mxu0 %v2675
        %2695 = vmatprep.subr.bf16.mxu0 0
        %2696 = vmatpush1.bf16.msra.mxu0 %v2691
        %2697 = vmatprep.subr.bf16.mxu0 0
        %2698 = vmatpush1.bf16.msra.mxu0 0
        %2699 = vmatprep.subr.bf16.mxu0 0
        %2700 = vmatpush1.bf16.msra.mxu0 0
        %2701 = vmatprep.subr.bf16.mxu0 0
        %2702 = vmatpush1.bf16.msra.mxu0 0
        %2703 = vmatprep.subr.bf16.mxu0 0
        %2704 = vmatpush1.bf16.msra.mxu0 0
        %2705 = vmatprep.subr.bf16.mxu0 0
        %2706 = vmatpush1.bf16.msra.mxu0 0
        %2707 = vmatprep.subr.bf16.mxu0 0
        %2708 = vmatpush1.bf16.msra.mxu0 0
        %2709 = vmatprep.subr.bf16.mxu0 0
        %2710 = vmatpush1.bf16.msra.mxu0 0
        %2711 = vmatprep.subr.bf16.mxu0 0
        %2712 = vmatpush1.bf16.msra.mxu0 0
        %2713 = vmatprep.subr.bf16.mxu0 0
        %2714 = vmatpush1.bf16.msra.mxu0 0
        %2715 = vmatprep.subr.bf16.mxu0 0
        %2716 = vmatpush1.bf16.msra.mxu0 0
        %2717 = vmatprep.subr.bf16.mxu0 0
        %2718 = vmatpush1.bf16.msra.mxu0 0
        %2719 = vmatprep.subr.bf16.mxu0 0
        %2720 = vmatpush1.bf16.msra.mxu0 0
        %2721 = vmatprep.subr.bf16.mxu0 0
        %2722 = vmatpush1.bf16.msra.mxu0 0
        %2723 = vmatprep.subr.bf16.mxu0 0
        %2724 = vmatpush1.bf16.msra.mxu0 0
        %2725 = vmatprep.mubr.bf16.mxu0 0
        %2726 = vmatmul.mubr.bf16.gmra.mrb[0].mxu0 %v2679
        %v2727 = vpop.f32.mrb[0].mxu0
        %v2728 = vadd.f32 0.0, %v2727
        %v2729 = vpop.f32.mrb[0].mxu0
        %v2730 = vpop.f32.mrb[0].mxu0
        %v2731 = vadd.f32 0.0, %v2730
        %v2732 = vpop.f32.mrb[0].mxu0
        %2733 = vmatprep.mubr.bf16.mxu0 0
        %2734 = vmatmul.mubr.bf16.gmra.mrb[0].mxu0 %v2682
        %v2735 = vpop.f32.mrb[0].mxu0
        %v2736 = vadd.f32 0.0, %v2735
        %v2737 = vpop.f32.mrb[0].mxu0
        %v2738 = vpop.f32.mrb[0].mxu0
        %v2739 = vadd.f32 0.0, %v2738
        %v2740 = vpop.f32.mrb[0].mxu0
        %2741 = vmatprep.mubr.bf16.mxu0 0
        %2742 = vmatmul.mubr.bf16.gmra.mrb[0].mxu0 %v2685
        %v2743 = vpop.f32.mrb[0].mxu0
        %v2744 = vadd.f32 0.0, %v2743
        %v2745 = vpop.f32.mrb[0].mxu0
        %v2746 = vpop.f32.mrb[0].mxu0
        %v2747 = vadd.f32 0.0, %v2746
        %v2748 = vpop.f32.mrb[0].mxu0
        %2749 = vmatprep.mubr.bf16.mxu0 0
        %2750 = vmatmul.mubr.bf16.gmra.mrb[0].mxu0 %v2688
        %v2751 = vpop.f32.mrb[0].mxu0
        %v2752 = vadd.f32 0.0, %v2751
        %v2753 = vpop.f32.mrb[0].mxu0
        %v2754 = vpop.f32.mrb[0].mxu0
        %v2755 = vadd.f32 0.0, %v2754
        %v2756 = vpop.f32.mrb[0].mxu0
        %2757 = vdwg.mxu0
        %v2758 = vadd.f32 %v2527, %v2728
        %v2759 = vadd.f32 %v2530, %v2731
        %v2760 = vadd.f32 %v2535, %v2736
        %v2761 = vadd.f32 %v2538, %v2739
        %v2762 = vadd.f32 %v2543, %v2744
        %v2763 = vadd.f32 %v2546, %v2747
        %v2764 = vadd.f32 %v2551, %v2752
        %v2765 = vadd.f32 %v2554, %v2755
        %v2767 = vlaneseq
        %v2768 = vshrl.u32 %v2767, 7
        %v2769 = vsub.s32 0, %v2768
        %v2770 = vrot.slane %v1198, %v2769
        %v2772 = vadd.f32 %v2758, %v2770
        %v2773 = vadd.f32 %v2759, %v2770
        %v2774 = vadd.f32 %v2760, %v2770
        %v2775 = vadd.f32 %v2761, %v2770
        %v2776 = vadd.f32 %v2762, %v2770
        %v2777 = vadd.f32 %v2763, %v2770
        %v2778 = vadd.f32 %v2764, %v2770
        %v2779 = vadd.f32 %v2765, %v2770
        %v2780 = vsel %vm1000, %v2772, 0.0
        %v2781 = vsel %vm1000, %v2773, 0.0
        %v2782 = vadd.f32 %v2780, %v2781
        %v2783 = vsel %vm1000, %v2774, 0.0
        %v2784 = vadd.f32 %v2782, %v2783
        %v2785 = vsel %vm1000, %v2775, 0.0
        %v2786 = vadd.f32 %v2784, %v2785
        %v2787 = vsel %vm1000, %v2776, 0.0
        %v2788 = vadd.f32 %v2786, %v2787
        %v2789 = vsel %vm1000, %v2777, 0.0
        %v2790 = vadd.f32 %v2788, %v2789
        %v2791 = vsel %vm1000, %v2778, 0.0
        %v2792 = vadd.f32 %v2790, %v2791
        %v2793 = vsel %vm1000, %v2779, 0.0
        %v2794 = vadd.f32 %v2792, %v2793
        %v2795 = vrot.slane %v2794, 4
        %v2796 = vadd.f32 %v2794, %v2795
        %v2797 = vrot.slane %v2796, 2
        %v2798 = vadd.f32 %v2796, %v2797
        %v2799 = vrot.slane %v2798, 1
        %v2800 = vadd.f32 %v2798, %v2799
        %v2801 = vmul.f32 %v2800, %v1858
        %v2802 = vmul.f32 %v2772, %v2772
        %v2803 = vmul.f32 %v2773, %v2773
        %v2804 = vmul.f32 %v2774, %v2774
        %v2805 = vmul.f32 %v2775, %v2775
        %v2806 = vmul.f32 %v2776, %v2776
        %v2807 = vmul.f32 %v2777, %v2777
        %v2808 = vmul.f32 %v2778, %v2778
        %v2809 = vmul.f32 %v2779, %v2779
        %v2810 = vsel %vm1000, %v2802, 0.0
        %v2811 = vsel %vm1000, %v2803, 0.0
        %v2812 = vadd.f32 %v2810, %v2811
        %v2813 = vsel %vm1000, %v2804, 0.0
        %v2814 = vadd.f32 %v2812, %v2813
        %v2815 = vsel %vm1000, %v2805, 0.0
        %v2816 = vadd.f32 %v2814, %v2815
        %v2817 = vsel %vm1000, %v2806, 0.0
        %v2818 = vadd.f32 %v2816, %v2817
        %v2819 = vsel %vm1000, %v2807, 0.0
        %v2820 = vadd.f32 %v2818, %v2819
        %v2821 = vsel %vm1000, %v2808, 0.0
        %v2822 = vadd.f32 %v2820, %v2821
        %v2823 = vsel %vm1000, %v2809, 0.0
        %v2824 = vadd.f32 %v2822, %v2823
        %v2825 = vrot.slane %v2824, 4
        %v2826 = vadd.f32 %v2824, %v2825
        %v2827 = vrot.slane %v2826, 2
        %v2828 = vadd.f32 %v2826, %v2827
        %v2829 = vrot.slane %v2828, 1
        %v2830 = vadd.f32 %v2828, %v2829
        %v2831 = vmul.f32 %v2830, %v1858
        %v2833 = vsel %vm1000, %v2801, 0
        %2835 = vmatprep.subr.mxu0 0.0
        %2836 = vmatpush1.msra.mxu0 %v1036
        %2837 = vmatprep.subr.mxu0 0.0
        %2838 = vmatpush1.msra.mxu0 0.0
        %2839 = vmatprep.subr.mxu0 0.0
        %2840 = vmatpush1.msra.mxu0 0.0
        %2841 = vmatprep.subr.mxu0 0.0
        %2842 = vmatpush1.msra.mxu0 0.0
        %2843 = vmatprep.subr.mxu0 0.0
        %2844 = vmatpush1.msra.mxu0 0.0
        %2845 = vmatprep.subr.mxu0 0.0
        %2846 = vmatpush1.msra.mxu0 0.0
        %2847 = vmatprep.subr.mxu0 0.0
        %2848 = vmatpush1.msra.mxu0 0.0
        %2849 = vmatprep.subr.mxu0 0.0
        %2850 = vmatpush1.msra.mxu0 0.0
        %2851 = vmatprep.subr.mxu0 0.0
        %2852 = vmatpush1.msra.mxu0 0.0
        %2853 = vmatprep.subr.mxu0 0.0
        %2854 = vmatpush1.msra.mxu0 0.0
        %2855 = vmatprep.subr.mxu0 0.0
        %2856 = vmatpush1.msra.mxu0 0.0
        %2857 = vmatprep.subr.mxu0 0.0
        %2858 = vmatpush1.msra.mxu0 0.0
        %2859 = vmatprep.subr.mxu0 0.0
        %2860 = vmatpush1.msra.mxu0 0.0
        %2861 = vmatprep.subr.mxu0 0.0
        %2862 = vmatpush1.msra.mxu0 0.0
        %2863 = vmatprep.subr.mxu0 0.0
        %2864 = vmatpush1.msra.mxu0 0.0
        %2865 = vmatprep.subr.mxu0 0.0
        %2866 = vmatpush1.msra.mxu0 0.0
        %2867 = vmatprep.subr.mxu0 0.0
        %2868 = vmatpush1.msra.mxu0 0.0
        %2869 = vmatprep.subr.mxu0 0.0
        %2870 = vmatpush1.msra.mxu0 0.0
        %2871 = vmatprep.subr.mxu0 0.0
        %2872 = vmatpush1.msra.mxu0 0.0
        %2873 = vmatprep.subr.mxu0 0.0
        %2874 = vmatpush1.msra.mxu0 0.0
        %2875 = vmatprep.subr.mxu0 0.0
        %2876 = vmatpush1.msra.mxu0 0.0
        %2877 = vmatprep.subr.mxu0 0.0
        %2878 = vmatpush1.msra.mxu0 0.0
        %2879 = vmatprep.subr.mxu0 0.0
        %2880 = vmatpush1.msra.mxu0 0.0
        %2881 = vmatprep.subr.mxu0 0.0
        %2882 = vmatpush1.msra.mxu0 0.0
        %2883 = vmatprep.subr.mxu0 0.0
        %2884 = vmatpush1.msra.mxu0 0.0
        %2885 = vmatprep.subr.mxu0 0.0
        %2886 = vmatpush1.msra.mxu0 0.0
        %2887 = vmatprep.subr.mxu0 0.0
        %2888 = vmatpush1.msra.mxu0 0.0
        %2889 = vmatprep.subr.mxu0 0.0
        %2890 = vmatpush1.msra.mxu0 0.0
        %2891 = vmatprep.subr.mxu0 0.0
        %2892 = vmatpush1.msra.mxu0 0.0
        %2893 = vmatprep.subr.mxu0 0.0
        %2894 = vmatpush1.msra.mxu0 0.0
        %2895 = vmatprep.subr.mxu0 0.0
        %2896 = vmatpush1.msra.mxu0 0.0
        %2897 = vmatprep.subr.mxu0 0.0
        %2898 = vmatpush1.msra.mxu0 0.0
        %2899 = vmatprep.mubr.f32.mxu0 0.0
        %2900 = vmatmul.mubr.f32.gmra.mrb[0].mxu0 %v2833
        %v2901 = vpop.f32.mrb[0].mxu0
        %v2902 = vadd.f32 0.0, %v2901
        %v2903 = vpop.f32.mrb[0].mxu0
        %2904 = vdwg.mxu0
        %v2906 = vsel %vm1000, %v2831, 0
        %2908 = vmatprep.subr.mxu0 0.0
        %2909 = vmatpush1.msra.mxu0 %v1036
        %2910 = vmatprep.subr.mxu0 0.0
        %2911 = vmatpush1.msra.mxu0 0.0
        %2912 = vmatprep.subr.mxu0 0.0
        %2913 = vmatpush1.msra.mxu0 0.0
        %2914 = vmatprep.subr.mxu0 0.0
        %2915 = vmatpush1.msra.mxu0 0.0
        %2916 = vmatprep.subr.mxu0 0.0
        %2917 = vmatpush1.msra.mxu0 0.0
        %2918 = vmatprep.subr.mxu0 0.0
        %2919 = vmatpush1.msra.mxu0 0.0
        %2920 = vmatprep.subr.mxu0 0.0
        %2921 = vmatpush1.msra.mxu0 0.0
        %2922 = vmatprep.subr.mxu0 0.0
        %2923 = vmatpush1.msra.mxu0 0.0
        %2924 = vmatprep.subr.mxu0 0.0
        %2925 = vmatpush1.msra.mxu0 0.0
        %2926 = vmatprep.subr.mxu0 0.0
        %2927 = vmatpush1.msra.mxu0 0.0
        %2928 = vmatprep.subr.mxu0 0.0
        %2929 = vmatpush1.msra.mxu0 0.0
        %2930 = vmatprep.subr.mxu0 0.0
        %2931 = vmatpush1.msra.mxu0 0.0
        %2932 = vmatprep.subr.mxu0 0.0
        %2933 = vmatpush1.msra.mxu0 0.0
        %2934 = vmatprep.subr.mxu0 0.0
        %2935 = vmatpush1.msra.mxu0 0.0
        %2936 = vmatprep.subr.mxu0 0.0
        %2937 = vmatpush1.msra.mxu0 0.0
        %2938 = vmatprep.subr.mxu0 0.0
        %2939 = vmatpush1.msra.mxu0 0.0
        %2940 = vmatprep.subr.mxu0 0.0
        %2941 = vmatpush1.msra.mxu0 0.0
        %2942 = vmatprep.subr.mxu0 0.0
        %2943 = vmatpush1.msra.mxu0 0.0
        %2944 = vmatprep.subr.mxu0 0.0
        %2945 = vmatpush1.msra.mxu0 0.0
        %2946 = vmatprep.subr.mxu0 0.0
        %2947 = vmatpush1.msra.mxu0 0.0
        %2948 = vmatprep.subr.mxu0 0.0
        %2949 = vmatpush1.msra.mxu0 0.0
        %2950 = vmatprep.subr.mxu0 0.0
        %2951 = vmatpush1.msra.mxu0 0.0
        %2952 = vmatprep.subr.mxu0 0.0
        %2953 = vmatpush1.msra.mxu0 0.0
        %2954 = vmatprep.subr.mxu0 0.0
        %2955 = vmatpush1.msra.mxu0 0.0
        %2956 = vmatprep.subr.mxu0 0.0
        %2957 = vmatpush1.msra.mxu0 0.0
        %2958 = vmatprep.subr.mxu0 0.0
        %2959 = vmatpush1.msra.mxu0 0.0
        %2960 = vmatprep.subr.mxu0 0.0
        %2961 = vmatpush1.msra.mxu0 0.0
        %2962 = vmatprep.subr.mxu0 0.0
        %2963 = vmatpush1.msra.mxu0 0.0
        %2964 = vmatprep.subr.mxu0 0.0
        %2965 = vmatpush1.msra.mxu0 0.0
        %2966 = vmatprep.subr.mxu0 0.0
        %2967 = vmatpush1.msra.mxu0 0.0
        %2968 = vmatprep.subr.mxu0 0.0
        %2969 = vmatpush1.msra.mxu0 0.0
        %2970 = vmatprep.subr.mxu0 0.0
        %2971 = vmatpush1.msra.mxu0 0.0
        %2972 = vmatprep.mubr.f32.mxu0 0.0
        %2973 = vmatmul.mubr.f32.gmra.mrb[0].mxu0 %v2906
        %v2974 = vpop.f32.mrb[0].mxu0
        %v2975 = vadd.f32 0.0, %v2974
        %v2976 = vpop.f32.mrb[0].mxu0
        %2977 = vdwg.mxu0
        %v2978 = vmul.f32 %v2902, %v2902
        %v2979 = vsub.f32 %v2975, %v2978
        %v2980 = vmax.f32 %v2979, 0.0
        %v2981 = vadd.f32 %v2980, 1e-05
        %v2982 = vrsqrt.pop %v2981
        %v2983 = vlaneseq
        %v2984 = vshrl.u32 %v2983, 7
        %v2985 = vsub.s32 0, %v2984
        %v2986 = vrot.slane %v2902, %v2985
        %v2987 = vsub.f32 %v2772, %v2986
        %v2988 = vsub.f32 %v2773, %v2986
        %v2989 = vsub.f32 %v2774, %v2986
        %v2990 = vsub.f32 %v2775, %v2986
        %v2991 = vsub.f32 %v2776, %v2986
        %v2992 = vsub.f32 %v2777, %v2986
        %v2993 = vsub.f32 %v2778, %v2986
        %v2994 = vsub.f32 %v2779, %v2986
        %v2995 = vmul.f32 %v2982, %v1199
        %v2996 = vlaneseq
        %v2997 = vshrl.u32 %v2996, 7
        %v2998 = vsub.s32 0, %v2997
        %v2999 = vrot.slane %v2995, %v2998
        %v3000 = vmul.f32 %v2987, %v2999
        %v3001 = vmul.f32 %v2988, %v2999
        %v3002 = vmul.f32 %v2989, %v2999
        %v3003 = vmul.f32 %v2990, %v2999
        %v3004 = vmul.f32 %v2991, %v2999
        %v3005 = vmul.f32 %v2992, %v2999
        %v3006 = vmul.f32 %v2993, %v2999
        %v3007 = vmul.f32 %v2994, %v2999
        %v3009 = vlaneseq
        %v3010 = vshrl.u32 %v3009, 7
        %v3011 = vsub.s32 0, %v3010
        %v3012 = vrot.slane %v1200, %v3011
        %v3014 = vadd.f32 %v3000, %v3012
        %v3015 = vadd.f32 %v3001, %v3012
        %v3016 = vadd.f32 %v3002, %v3012
        %v3017 = vadd.f32 %v3003, %v3012
        %v3018 = vadd.f32 %v3004, %v3012
        %v3019 = vadd.f32 %v3005, %v3012
        %v3020 = vadd.f32 %v3006, %v3012
        %v3021 = vadd.f32 %v3007, %v3012
        %v3022 = vadd.f32 %v3014, %v1028
        %v3023 = vadd.f32 %v3015, %v1029
        %v3024 = vadd.f32 %v3016, %v1030
        %v3025 = vadd.f32 %v3017, %v1031
        %v3026 = vadd.f32 %v3018, %v1032
        %v3027 = vadd.f32 %v3019, %v1033
        %v3028 = vadd.f32 %v3020, %v1034
        %v3029 = vadd.f32 %v3021, %v1035
        %v3030 = vxor.u32 %v3022, 2147483648
        %v3031 = vxor.u32 %v3023, 2147483648
        %v3032 = vxor.u32 %v3024, 2147483648
        %v3033 = vxor.u32 %v3025, 2147483648
        %v3034 = vxor.u32 %v3026, 2147483648
        %v3035 = vxor.u32 %v3027, 2147483648
        %v3036 = vxor.u32 %v3028, 2147483648
        %v3037 = vxor.u32 %v3029, 2147483648
        %v3038 = vmul.f32 %v3030, 1.442695
        %v3039 = vpow.pop %v3038
        %v3040 = vmul.f32 %v3031, 1.442695
        %v3041 = vpow.pop %v3040
        %v3042 = vmul.f32 %v3032, 1.442695
        %v3043 = vpow.pop %v3042
        %v3044 = vmul.f32 %v3033, 1.442695
        %v3045 = vpow.pop %v3044
        %v3046 = vmul.f32 %v3034, 1.442695
        %v3047 = vpow.pop %v3046
        %v3048 = vmul.f32 %v3035, 1.442695
        %v3049 = vpow.pop %v3048
        %v3050 = vmul.f32 %v3036, 1.442695
        %v3051 = vpow.pop %v3050
        %v3052 = vmul.f32 %v3037, 1.442695
        %v3053 = vpow.pop %v3052
        %v3054 = vadd.f32 %v3039, 1.0
        %v3055 = vadd.f32 %v3041, 1.0
        %v3056 = vadd.f32 %v3043, 1.0
        %v3057 = vadd.f32 %v3045, 1.0
        %v3058 = vadd.f32 %v3047, 1.0
        %v3059 = vadd.f32 %v3049, 1.0
        %v3060 = vadd.f32 %v3051, 1.0
        %v3061 = vadd.f32 %v3053, 1.0
        %v3062 = vrcp.pop %v3054
        %v3063 = vmul.f32 1.0, %v3062
        %v3064 = vrcp.pop %v3055
        %v3065 = vmul.f32 1.0, %v3064
        %v3066 = vrcp.pop %v3056
        %v3067 = vmul.f32 1.0, %v3066
        %v3068 = vrcp.pop %v3057
        %v3069 = vmul.f32 1.0, %v3068
        %v3070 = vrcp.pop %v3058
        %v3071 = vmul.f32 1.0, %v3070
        %v3072 = vrcp.pop %v3059
        %v3073 = vmul.f32 1.0, %v3072
        %v3074 = vrcp.pop %v3060
        %v3075 = vmul.f32 1.0, %v3074
        %v3076 = vrcp.pop %v3061
        %v3077 = vmul.f32 1.0, %v3076
        %v3078 = vmul.f32 %v3022, %v3063
        %v3079 = vmul.f32 %v3023, %v3065
        %v3080 = vmul.f32 %v3024, %v3067
        %v3081 = vmul.f32 %v3025, %v3069
        %v3082 = vmul.f32 %v3026, %v3071
        %v3083 = vmul.f32 %v3027, %v3073
        %v3084 = vmul.f32 %v3028, %v3075
        %v3085 = vmul.f32 %v3029, %v3077
        %v3086 = vld [vmem:[%s27] sm:$0x1]
        %v3087 = vld [vmem:[%s29] sm:$0x1]
        %v3088 = vld [vmem:[%s39] sm:$0x1]
        %v3089 = vsel %vm1000, %v3078, 0.0
        %v3090 = vsel %vm1000, %v3079, 0.0
        %v3091 = vadd.f32 %v3089, %v3090
        %v3092 = vsel %vm1000, %v3080, 0.0
        %v3093 = vadd.f32 %v3091, %v3092
        %v3094 = vsel %vm1000, %v3081, 0.0
        %v3095 = vadd.f32 %v3093, %v3094
        %v3096 = vsel %vm1000, %v3082, 0.0
        %v3097 = vadd.f32 %v3095, %v3096
        %v3098 = vsel %vm1000, %v3083, 0.0
        %v3099 = vadd.f32 %v3097, %v3098
        %v3100 = vsel %vm1000, %v3084, 0.0
        %v3101 = vadd.f32 %v3099, %v3100
        %v3102 = vsel %vm1000, %v3085, 0.0
        %v3103 = vadd.f32 %v3101, %v3102
        %v3104 = vrot.slane %v3103, 4
        %v3105 = vadd.f32 %v3103, %v3104
        %v3106 = vrot.slane %v3105, 2
        %v3107 = vadd.f32 %v3105, %v3106
        %v3108 = vrot.slane %v3107, 1
        %v3109 = vadd.f32 %v3107, %v3108
        %v3110 = vmul.f32 %v3109, %v1858
        %v3111 = vmul.f32 %v3078, %v3078
        %v3112 = vmul.f32 %v3079, %v3079
        %v3113 = vmul.f32 %v3080, %v3080
        %v3114 = vmul.f32 %v3081, %v3081
        %v3115 = vmul.f32 %v3082, %v3082
        %v3116 = vmul.f32 %v3083, %v3083
        %v3117 = vmul.f32 %v3084, %v3084
        %v3118 = vmul.f32 %v3085, %v3085
        %v3119 = vsel %vm1000, %v3111, 0.0
        %v3120 = vsel %vm1000, %v3112, 0.0
        %v3121 = vadd.f32 %v3119, %v3120
        %v3122 = vsel %vm1000, %v3113, 0.0
        %v3123 = vadd.f32 %v3121, %v3122
        %v3124 = vsel %vm1000, %v3114, 0.0
        %v3125 = vadd.f32 %v3123, %v3124
        %v3126 = vsel %vm1000, %v3115, 0.0
        %v3127 = vadd.f32 %v3125, %v3126
        %v3128 = vsel %vm1000, %v3116, 0.0
        %v3129 = vadd.f32 %v3127, %v3128
        %v3130 = vsel %vm1000, %v3117, 0.0
        %v3131 = vadd.f32 %v3129, %v3130
        %v3132 = vsel %vm1000, %v3118, 0.0
        %v3133 = vadd.f32 %v3131, %v3132
        %v3134 = vrot.slane %v3133, 4
        %v3135 = vadd.f32 %v3133, %v3134
        %v3136 = vrot.slane %v3135, 2
        %v3137 = vadd.f32 %v3135, %v3136
        %v3138 = vrot.slane %v3137, 1
        %v3139 = vadd.f32 %v3137, %v3138
        %v3140 = vmul.f32 %v3139, %v1858
        %v3142 = vsel %vm1000, %v3110, 0
        %3144 = vmatprep.subr.mxu0 0.0
        %3145 = vmatpush1.msra.mxu0 %v1036
        %3146 = vmatprep.subr.mxu0 0.0
        %3147 = vmatpush1.msra.mxu0 0.0
        %3148 = vmatprep.subr.mxu0 0.0
        %3149 = vmatpush1.msra.mxu0 0.0
        %3150 = vmatprep.subr.mxu0 0.0
        %3151 = vmatpush1.msra.mxu0 0.0
        %3152 = vmatprep.subr.mxu0 0.0
        %3153 = vmatpush1.msra.mxu0 0.0
        %3154 = vmatprep.subr.mxu0 0.0
        %3155 = vmatpush1.msra.mxu0 0.0
        %3156 = vmatprep.subr.mxu0 0.0
        %3157 = vmatpush1.msra.mxu0 0.0
        %3158 = vmatprep.subr.mxu0 0.0
        %3159 = vmatpush1.msra.mxu0 0.0
        %3160 = vmatprep.subr.mxu0 0.0
        %3161 = vmatpush1.msra.mxu0 0.0
        %3162 = vmatprep.subr.mxu0 0.0
        %3163 = vmatpush1.msra.mxu0 0.0
        %3164 = vmatprep.subr.mxu0 0.0
        %3165 = vmatpush1.msra.mxu0 0.0
        %3166 = vmatprep.subr.mxu0 0.0
        %3167 = vmatpush1.msra.mxu0 0.0
        %3168 = vmatprep.subr.mxu0 0.0
        %3169 = vmatpush1.msra.mxu0 0.0
        %3170 = vmatprep.subr.mxu0 0.0
        %3171 = vmatpush1.msra.mxu0 0.0
        %3172 = vmatprep.subr.mxu0 0.0
        %3173 = vmatpush1.msra.mxu0 0.0
        %3174 = vmatprep.subr.mxu0 0.0
        %3175 = vmatpush1.msra.mxu0 0.0
        %3176 = vmatprep.subr.mxu0 0.0
        %3177 = vmatpush1.msra.mxu0 0.0
        %3178 = vmatprep.subr.mxu0 0.0
        %3179 = vmatpush1.msra.mxu0 0.0
        %3180 = vmatprep.subr.mxu0 0.0
        %3181 = vmatpush1.msra.mxu0 0.0
        %3182 = vmatprep.subr.mxu0 0.0
        %3183 = vmatpush1.msra.mxu0 0.0
        %3184 = vmatprep.subr.mxu0 0.0
        %3185 = vmatpush1.msra.mxu0 0.0
        %3186 = vmatprep.subr.mxu0 0.0
        %3187 = vmatpush1.msra.mxu0 0.0
        %3188 = vmatprep.subr.mxu0 0.0
        %3189 = vmatpush1.msra.mxu0 0.0
        %3190 = vmatprep.subr.mxu0 0.0
        %3191 = vmatpush1.msra.mxu0 0.0
        %3192 = vmatprep.subr.mxu0 0.0
        %3193 = vmatpush1.msra.mxu0 0.0
        %3194 = vmatprep.subr.mxu0 0.0
        %3195 = vmatpush1.msra.mxu0 0.0
        %3196 = vmatprep.subr.mxu0 0.0
        %3197 = vmatpush1.msra.mxu0 0.0
        %3198 = vmatprep.subr.mxu0 0.0
        %3199 = vmatpush1.msra.mxu0 0.0
        %3200 = vmatprep.subr.mxu0 0.0
        %3201 = vmatpush1.msra.mxu0 0.0
        %3202 = vmatprep.subr.mxu0 0.0
        %3203 = vmatpush1.msra.mxu0 0.0
        %3204 = vmatprep.subr.mxu0 0.0
        %3205 = vmatpush1.msra.mxu0 0.0
        %3206 = vmatprep.subr.mxu0 0.0
        %3207 = vmatpush1.msra.mxu0 0.0
        %3208 = vmatprep.mubr.f32.mxu0 0.0
        %3209 = vmatmul.mubr.f32.gmra.mrb[0].mxu0 %v3142
        %v3210 = vpop.f32.mrb[0].mxu0
        %v3211 = vadd.f32 0.0, %v3210
        %v3212 = vpop.f32.mrb[0].mxu0
        %3213 = vdwg.mxu0
        %v3215 = vsel %vm1000, %v3140, 0
        %3217 = vmatprep.subr.mxu0 0.0
        %3218 = vmatpush1.msra.mxu0 %v1036
        %3219 = vmatprep.subr.mxu0 0.0
        %3220 = vmatpush1.msra.mxu0 0.0
        %3221 = vmatprep.subr.mxu0 0.0
        %3222 = vmatpush1.msra.mxu0 0.0
        %3223 = vmatprep.subr.mxu0 0.0
        %3224 = vmatpush1.msra.mxu0 0.0
        %3225 = vmatprep.subr.mxu0 0.0
        %3226 = vmatpush1.msra.mxu0 0.0
        %3227 = vmatprep.subr.mxu0 0.0
        %3228 = vmatpush1.msra.mxu0 0.0
        %3229 = vmatprep.subr.mxu0 0.0
        %3230 = vmatpush1.msra.mxu0 0.0
        %3231 = vmatprep.subr.mxu0 0.0
        %3232 = vmatpush1.msra.mxu0 0.0
        %3233 = vmatprep.subr.mxu0 0.0
        %3234 = vmatpush1.msra.mxu0 0.0
        %3235 = vmatprep.subr.mxu0 0.0
        %3236 = vmatpush1.msra.mxu0 0.0
        %3237 = vmatprep.subr.mxu0 0.0
        %3238 = vmatpush1.msra.mxu0 0.0
        %3239 = vmatprep.subr.mxu0 0.0
        %3240 = vmatpush1.msra.mxu0 0.0
        %3241 = vmatprep.subr.mxu0 0.0
        %3242 = vmatpush1.msra.mxu0 0.0
        %3243 = vmatprep.subr.mxu0 0.0
        %3244 = vmatpush1.msra.mxu0 0.0
        %3245 = vmatprep.subr.mxu0 0.0
        %3246 = vmatpush1.msra.mxu0 0.0
        %3247 = vmatprep.subr.mxu0 0.0
        %3248 = vmatpush1.msra.mxu0 0.0
        %3249 = vmatprep.subr.mxu0 0.0
        %3250 = vmatpush1.msra.mxu0 0.0
        %3251 = vmatprep.subr.mxu0 0.0
        %3252 = vmatpush1.msra.mxu0 0.0
        %3253 = vmatprep.subr.mxu0 0.0
        %3254 = vmatpush1.msra.mxu0 0.0
        %3255 = vmatprep.subr.mxu0 0.0
        %3256 = vmatpush1.msra.mxu0 0.0
        %3257 = vmatprep.subr.mxu0 0.0
        %3258 = vmatpush1.msra.mxu0 0.0
        %3259 = vmatprep.subr.mxu0 0.0
        %3260 = vmatpush1.msra.mxu0 0.0
        %3261 = vmatprep.subr.mxu0 0.0
        %3262 = vmatpush1.msra.mxu0 0.0
        %3263 = vmatprep.subr.mxu0 0.0
        %3264 = vmatpush1.msra.mxu0 0.0
        %3265 = vmatprep.subr.mxu0 0.0
        %3266 = vmatpush1.msra.mxu0 0.0
        %3267 = vmatprep.subr.mxu0 0.0
        %3268 = vmatpush1.msra.mxu0 0.0
        %3269 = vmatprep.subr.mxu0 0.0
        %3270 = vmatpush1.msra.mxu0 0.0
        %3271 = vmatprep.subr.mxu0 0.0
        %3272 = vmatpush1.msra.mxu0 0.0
        %3273 = vmatprep.subr.mxu0 0.0
        %3274 = vmatpush1.msra.mxu0 0.0
        %3275 = vmatprep.subr.mxu0 0.0
        %3276 = vmatpush1.msra.mxu0 0.0
        %3277 = vmatprep.subr.mxu0 0.0
        %3278 = vmatpush1.msra.mxu0 0.0
        %3279 = vmatprep.subr.mxu0 0.0
        %3280 = vmatpush1.msra.mxu0 0.0
        %3281 = vmatprep.mubr.f32.mxu0 0.0
        %3282 = vmatmul.mubr.f32.gmra.mrb[0].mxu0 %v3215
        %v3283 = vpop.f32.mrb[0].mxu0
        %v3284 = vadd.f32 0.0, %v3283
        %v3285 = vpop.f32.mrb[0].mxu0
        %3286 = vdwg.mxu0
        %v3287 = vmul.f32 %v3211, %v3211
        %v3288 = vsub.f32 %v3284, %v3287
        %v3289 = vmax.f32 %v3288, 0.0
        %v3290 = vadd.f32 %v3289, 1e-05
        %v3291 = vrsqrt.pop %v3290
        %v3292 = vlaneseq
        %v3293 = vshrl.u32 %v3292, 7
        %v3294 = vsub.s32 0, %v3293
        %v3295 = vrot.slane %v3211, %v3294
        %v3296 = vsub.f32 %v3078, %v3295
        %v3297 = vsub.f32 %v3079, %v3295
        %v3298 = vsub.f32 %v3080, %v3295
        %v3299 = vsub.f32 %v3081, %v3295
        %v3300 = vsub.f32 %v3082, %v3295
        %v3301 = vsub.f32 %v3083, %v3295
        %v3302 = vsub.f32 %v3084, %v3295
        %v3303 = vsub.f32 %v3085, %v3295
        %v3304 = vmul.f32 %v3291, %v3086
        %v3305 = vlaneseq
        %v3306 = vshrl.u32 %v3305, 7
        %v3307 = vsub.s32 0, %v3306
        %v3308 = vrot.slane %v3304, %v3307
        %v3309 = vmul.f32 %v3296, %v3308
        %v3310 = vmul.f32 %v3297, %v3308
        %v3311 = vmul.f32 %v3298, %v3308
        %v3312 = vmul.f32 %v3299, %v3308
        %v3313 = vmul.f32 %v3300, %v3308
        %v3314 = vmul.f32 %v3301, %v3308
        %v3315 = vmul.f32 %v3302, %v3308
        %v3316 = vmul.f32 %v3303, %v3308
        %v3318 = vlaneseq
        %v3319 = vshrl.u32 %v3318, 7
        %v3320 = vsub.s32 0, %v3319
        %v3321 = vrot.slane %v3087, %v3320
        %v3323 = vadd.f32 %v3309, %v3321
        %v3324 = vadd.f32 %v3310, %v3321
        %v3325 = vadd.f32 %v3311, %v3321
        %v3326 = vadd.f32 %v3312, %v3321
        %v3327 = vadd.f32 %v3313, %v3321
        %v3328 = vadd.f32 %v3314, %v3321
        %v3329 = vadd.f32 %v3315, %v3321
        %v3330 = vadd.f32 %v3316, %v3321
        %v3331 = vpack.c.bf16 %v3324, %v3323
        %v3332 = vpack.c.bf16 %v3326, %v3325
        %v3333 = vpack.c.bf16 %v3328, %v3327
        %v3334 = vpack.c.bf16 %v3330, %v3329
        %v3335 = vld [vmem:[%s31] sm:$0xf]
        %v3337 = vsel %vm1000, %v3331, 0
        %v3340 = vsel %vm1000, %v3332, 0
        %v3343 = vsel %vm1000, %v3333, 0
        %v3346 = vsel %vm1000, %v3334, 0
        %v3349 = vsel %vm1455, %v3335, 0
        %3351 = vmatprep.subr.bf16.mxu0 0
        %3352 = vmatpush1.bf16.msra.mxu0 %v3349
        %3353 = vmatprep.subr.bf16.mxu0 0
        %3354 = vmatpush1.bf16.msra.mxu0 0
        %3355 = vmatprep.subr.bf16.mxu0 0
        %3356 = vmatpush1.bf16.msra.mxu0 0
        %3357 = vmatprep.subr.bf16.mxu0 0
        %3358 = vmatpush1.bf16.msra.mxu0 0
        %3359 = vmatprep.subr.bf16.mxu0 0
        %3360 = vmatpush1.bf16.msra.mxu0 0
        %3361 = vmatprep.subr.bf16.mxu0 0
        %3362 = vmatpush1.bf16.msra.mxu0 0
        %3363 = vmatprep.subr.bf16.mxu0 0
        %3364 = vmatpush1.bf16.msra.mxu0 0
        %3365 = vmatprep.subr.bf16.mxu0 0
        %3366 = vmatpush1.bf16.msra.mxu0 0
        %3367 = vmatprep.subr.bf16.mxu0 0
        %3368 = vmatpush1.bf16.msra.mxu0 0
        %3369 = vmatprep.subr.bf16.mxu0 0
        %3370 = vmatpush1.bf16.msra.mxu0 0
        %3371 = vmatprep.subr.bf16.mxu0 0
        %3372 = vmatpush1.bf16.msra.mxu0 0
        %3373 = vmatprep.subr.bf16.mxu0 0
        %3374 = vmatpush1.bf16.msra.mxu0 0
        %3375 = vmatprep.subr.bf16.mxu0 0
        %3376 = vmatpush1.bf16.msra.mxu0 0
        %3377 = vmatprep.subr.bf16.mxu0 0
        %3378 = vmatpush1.bf16.msra.mxu0 0
        %3379 = vmatprep.subr.bf16.mxu0 0
        %3380 = vmatpush1.bf16.msra.mxu0 0
        %3381 = vmatprep.subr.bf16.mxu0 0
        %3382 = vmatpush1.bf16.msra.mxu0 0
        %3383 = vmatprep.mubr.bf16.mxu0 0
        %3384 = vmatmul.mubr.bf16.gmra.mrb[0].mxu0 %v3337
        %v3385 = vpop.f32.mrb[0].mxu0
        %v3386 = vadd.f32 0.0, %v3385
        %v3387 = vpop.f32.mrb[0].mxu0
        %v3388 = vpop.f32.mrb[0].mxu0
        %v3389 = vadd.f32 0.0, %v3388
        %v3390 = vpop.f32.mrb[0].mxu0
        %3391 = vmatprep.mubr.bf16.mxu0 0
        %3392 = vmatmul.mubr.bf16.gmra.mrb[0].mxu0 %v3340
        %v3393 = vpop.f32.mrb[0].mxu0
        %v3394 = vadd.f32 0.0, %v3393
        %v3395 = vpop.f32.mrb[0].mxu0
        %v3396 = vpop.f32.mrb[0].mxu0
        %v3397 = vadd.f32 0.0, %v3396
        %v3398 = vpop.f32.mrb[0].mxu0
        %3399 = vmatprep.mubr.bf16.mxu0 0
        %3400 = vmatmul.mubr.bf16.gmra.mrb[0].mxu0 %v3343
        %v3401 = vpop.f32.mrb[0].mxu0
        %v3402 = vadd.f32 0.0, %v3401
        %v3403 = vpop.f32.mrb[0].mxu0
        %v3404 = vpop.f32.mrb[0].mxu0
        %v3405 = vadd.f32 0.0, %v3404
        %v3406 = vpop.f32.mrb[0].mxu0
        %3407 = vmatprep.mubr.bf16.mxu0 0
        %3408 = vmatmul.mubr.bf16.gmra.mrb[0].mxu0 %v3346
        %v3409 = vpop.f32.mrb[0].mxu0
        %v3410 = vadd.f32 0.0, %v3409
        %v3411 = vpop.f32.mrb[0].mxu0
        %v3412 = vpop.f32.mrb[0].mxu0
        %v3413 = vadd.f32 0.0, %v3412
        %v3414 = vpop.f32.mrb[0].mxu0
        %3415 = vdwg.mxu0
        %v3416 = vld [vmem:[%s33] sm:$0xf]
        %v3418 = vsel %vm1455, %v3416, 0
        %3420 = vmatprep.subr.bf16.mxu0 0
        %3421 = vmatpush1.bf16.msra.mxu0 %v3418
        %3422 = vmatprep.subr.bf16.mxu0 0
        %3423 = vmatpush1.bf16.msra.mxu0 0
        %3424 = vmatprep.subr.bf16.mxu0 0
        %3425 = vmatpush1.bf16.msra.mxu0 0
        %3426 = vmatprep.subr.bf16.mxu0 0
        %3427 = vmatpush1.bf16.msra.mxu0 0
        %3428 = vmatprep.subr.bf16.mxu0 0
        %3429 = vmatpush1.bf16.msra.mxu0 0
        %3430 = vmatprep.subr.bf16.mxu0 0
        %3431 = vmatpush1.bf16.msra.mxu0 0
        %3432 = vmatprep.subr.bf16.mxu0 0
        %3433 = vmatpush1.bf16.msra.mxu0 0
        %3434 = vmatprep.subr.bf16.mxu0 0
        %3435 = vmatpush1.bf16.msra.mxu0 0
        %3436 = vmatprep.subr.bf16.mxu0 0
        %3437 = vmatpush1.bf16.msra.mxu0 0
        %3438 = vmatprep.subr.bf16.mxu0 0
        %3439 = vmatpush1.bf16.msra.mxu0 0
        %3440 = vmatprep.subr.bf16.mxu0 0
        %3441 = vmatpush1.bf16.msra.mxu0 0
        %3442 = vmatprep.subr.bf16.mxu0 0
        %3443 = vmatpush1.bf16.msra.mxu0 0
        %3444 = vmatprep.subr.bf16.mxu0 0
        %3445 = vmatpush1.bf16.msra.mxu0 0
        %3446 = vmatprep.subr.bf16.mxu0 0
        %3447 = vmatpush1.bf16.msra.mxu0 0
        %3448 = vmatprep.subr.bf16.mxu0 0
        %3449 = vmatpush1.bf16.msra.mxu0 0
        %3450 = vmatprep.subr.bf16.mxu0 0
        %3451 = vmatpush1.bf16.msra.mxu0 0
        %3452 = vmatprep.mubr.bf16.mxu0 0
        %3453 = vmatmul.mubr.bf16.gmra.mrb[0].mxu0 %v3337
        %v3454 = vpop.f32.mrb[0].mxu0
        %v3455 = vadd.f32 0.0, %v3454
        %v3456 = vpop.f32.mrb[0].mxu0
        %v3457 = vpop.f32.mrb[0].mxu0
        %v3458 = vadd.f32 0.0, %v3457
        %v3459 = vpop.f32.mrb[0].mxu0
        %3460 = vmatprep.mubr.bf16.mxu0 0
        %3461 = vmatmul.mubr.bf16.gmra.mrb[0].mxu0 %v3340
        %v3462 = vpop.f32.mrb[0].mxu0
        %v3463 = vadd.f32 0.0, %v3462
        %v3464 = vpop.f32.mrb[0].mxu0
        %v3465 = vpop.f32.mrb[0].mxu0
        %v3466 = vadd.f32 0.0, %v3465
        %v3467 = vpop.f32.mrb[0].mxu0
        %3468 = vmatprep.mubr.bf16.mxu0 0
        %3469 = vmatmul.mubr.bf16.gmra.mrb[0].mxu0 %v3343
        %v3470 = vpop.f32.mrb[0].mxu0
        %v3471 = vadd.f32 0.0, %v3470
        %v3472 = vpop.f32.mrb[0].mxu0
        %v3473 = vpop.f32.mrb[0].mxu0
        %v3474 = vadd.f32 0.0, %v3473
        %v3475 = vpop.f32.mrb[0].mxu0
        %3476 = vmatprep.mubr.bf16.mxu0 0
        %3477 = vmatmul.mubr.bf16.gmra.mrb[0].mxu0 %v3346
        %v3478 = vpop.f32.mrb[0].mxu0
        %v3479 = vadd.f32 0.0, %v3478
        %v3480 = vpop.f32.mrb[0].mxu0
        %v3481 = vpop.f32.mrb[0].mxu0
        %v3482 = vadd.f32 0.0, %v3481
        %v3483 = vpop.f32.mrb[0].mxu0
        %3484 = vdwg.mxu0
        %v3485 = vld [vmem:[%s35] sm:$0xf]
        %v3487 = vsel %vm1455, %v3485, 0
        %3489 = vmatprep.subr.bf16.mxu0 0
        %3490 = vmatpush1.bf16.msra.mxu0 %v3487
        %3491 = vmatprep.subr.bf16.mxu0 0
        %3492 = vmatpush1.bf16.msra.mxu0 0
        %3493 = vmatprep.subr.bf16.mxu0 0
        %3494 = vmatpush1.bf16.msra.mxu0 0
        %3495 = vmatprep.subr.bf16.mxu0 0
        %3496 = vmatpush1.bf16.msra.mxu0 0
        %3497 = vmatprep.subr.bf16.mxu0 0
        %3498 = vmatpush1.bf16.msra.mxu0 0
        %3499 = vmatprep.subr.bf16.mxu0 0
        %3500 = vmatpush1.bf16.msra.mxu0 0
        %3501 = vmatprep.subr.bf16.mxu0 0
        %3502 = vmatpush1.bf16.msra.mxu0 0
        %3503 = vmatprep.subr.bf16.mxu0 0
        %3504 = vmatpush1.bf16.msra.mxu0 0
        %3505 = vmatprep.subr.bf16.mxu0 0
        %3506 = vmatpush1.bf16.msra.mxu0 0
        %3507 = vmatprep.subr.bf16.mxu0 0
        %3508 = vmatpush1.bf16.msra.mxu0 0
        %3509 = vmatprep.subr.bf16.mxu0 0
        %3510 = vmatpush1.bf16.msra.mxu0 0
        %3511 = vmatprep.subr.bf16.mxu0 0
        %3512 = vmatpush1.bf16.msra.mxu0 0
        %3513 = vmatprep.subr.bf16.mxu0 0
        %3514 = vmatpush1.bf16.msra.mxu0 0
        %3515 = vmatprep.subr.bf16.mxu0 0
        %3516 = vmatpush1.bf16.msra.mxu0 0
        %3517 = vmatprep.subr.bf16.mxu0 0
        %3518 = vmatpush1.bf16.msra.mxu0 0
        %3519 = vmatprep.subr.bf16.mxu0 0
        %3520 = vmatpush1.bf16.msra.mxu0 0
        %3521 = vmatprep.mubr.bf16.mxu0 0
        %3522 = vmatmul.mubr.bf16.gmra.mrb[0].mxu0 %v3337
        %v3523 = vpop.f32.mrb[0].mxu0
        %v3524 = vadd.f32 0.0, %v3523
        %v3525 = vpop.f32.mrb[0].mxu0
        %v3526 = vpop.f32.mrb[0].mxu0
        %v3527 = vadd.f32 0.0, %v3526
        %v3528 = vpop.f32.mrb[0].mxu0
        %3529 = vmatprep.mubr.bf16.mxu0 0
        %3530 = vmatmul.mubr.bf16.gmra.mrb[0].mxu0 %v3340
        %v3531 = vpop.f32.mrb[0].mxu0
        %v3532 = vadd.f32 0.0, %v3531
        %v3533 = vpop.f32.mrb[0].mxu0
        %v3534 = vpop.f32.mrb[0].mxu0
        %v3535 = vadd.f32 0.0, %v3534
        %v3536 = vpop.f32.mrb[0].mxu0
        %3537 = vmatprep.mubr.bf16.mxu0 0
        %3538 = vmatmul.mubr.bf16.gmra.mrb[0].mxu0 %v3343
        %v3539 = vpop.f32.mrb[0].mxu0
        %v3540 = vadd.f32 0.0, %v3539
        %v3541 = vpop.f32.mrb[0].mxu0
        %v3542 = vpop.f32.mrb[0].mxu0
        %v3543 = vadd.f32 0.0, %v3542
        %v3544 = vpop.f32.mrb[0].mxu0
        %3545 = vmatprep.mubr.bf16.mxu0 0
        %3546 = vmatmul.mubr.bf16.gmra.mrb[0].mxu0 %v3346
        %v3547 = vpop.f32.mrb[0].mxu0
        %v3548 = vadd.f32 0.0, %v3547
        %v3549 = vpop.f32.mrb[0].mxu0
        %v3550 = vpop.f32.mrb[0].mxu0
        %v3551 = vadd.f32 0.0, %v3550
        %v3552 = vpop.f32.mrb[0].mxu0
        %3553 = vdwg.mxu0
        %v3554 = vmul.f32 %v3386, 0.17677669
        %v3555 = vmul.f32 %v3389, 0.17677669
        %v3556 = vmul.f32 %v3394, 0.17677669
        %v3557 = vmul.f32 %v3397, 0.17677669
        %v3558 = vmul.f32 %v3402, 0.17677669
        %v3559 = vmul.f32 %v3405, 0.17677669
        %v3560 = vmul.f32 %v3410, 0.17677669
        %v3561 = vmul.f32 %v3413, 0.17677669
        %v3562 = vpack.c.bf16 %v3555, %v3554
        %v3563 = vpack.c.bf16 %v3557, %v3556
        %v3564 = vpack.c.bf16 %v3559, %v3558
        %v3565 = vpack.c.bf16 %v3561, %v3560
        %v3566 = vpack.c.bf16 %v3458, %v3455
        %v3567 = vpack.c.bf16 %v3466, %v3463
        %v3568 = vpack.c.bf16 %v3474, %v3471
        %v3569 = vpack.c.bf16 %v3482, %v3479
        %v3570 = vpack.c.bf16 %v3527, %v3524
        %v3571 = vpack.c.bf16 %v3535, %v3532
        %v3572 = vpack.c.bf16 %v3543, %v3540
        %v3573 = vpack.c.bf16 %v3551, %v3548
        %vm3574 = vcmask 261120
        %v3576 = vsel %vm3574, %v3562, 0
        %v3579 = vsel %vm3574, %v3563, 0
        %v3582 = vsel %vm3574, %v3564, 0
        %v3585 = vsel %vm3574, %v3565, 0
        %v3588 = vsel %vm3574, %v3566, 0
        %v3591 = vsel %vm3574, %v3567, 0
        %v3594 = vsel %vm3574, %v3568, 0
        %v3597 = vsel %vm3574, %v3569, 0
        %3599 = vmatprep.subr.bf16.mxu0 0
        %3600 = vmatpush1.bf16.xpose.msra.mxu0 %v3588
        %3601 = vmatprep.subr.bf16.mxu0 0
        %3602 = vmatpush1.bf16.xpose.msra.mxu0 %v3591
        %3603 = vmatprep.subr.bf16.mxu0 0
        %3604 = vmatpush1.bf16.xpose.msra.mxu0 %v3594
        %3605 = vmatprep.subr.bf16.mxu0 0
        %3606 = vmatpush1.bf16.xpose.msra.mxu0 %v3597
        %3607 = vmatprep.subr.bf16.mxu0 0
        %3608 = vmatpush1.bf16.xpose.msra.mxu0 0
        %3609 = vmatprep.subr.bf16.mxu0 0
        %3610 = vmatpush1.bf16.xpose.msra.mxu0 0
        %3611 = vmatprep.subr.bf16.mxu0 0
        %3612 = vmatpush1.bf16.xpose.msra.mxu0 0
        %3613 = vmatprep.subr.bf16.mxu0 0
        %3614 = vmatpush1.bf16.xpose.msra.mxu0 0
        %3615 = vmatprep.subr.bf16.mxu0 0
        %3616 = vmatpush1.bf16.xpose.msra.mxu0 0
        %3617 = vmatprep.subr.bf16.mxu0 0
        %3618 = vmatpush1.bf16.xpose.msra.mxu0 0
        %3619 = vmatprep.subr.bf16.mxu0 0
        %3620 = vmatpush1.bf16.xpose.msra.mxu0 0
        %3621 = vmatprep.subr.bf16.mxu0 0
        %3622 = vmatpush1.bf16.xpose.msra.mxu0 0
        %3623 = vmatprep.subr.bf16.mxu0 0
        %3624 = vmatpush1.bf16.xpose.msra.mxu0 0
        %3625 = vmatprep.subr.bf16.mxu0 0
        %3626 = vmatpush1.bf16.xpose.msra.mxu0 0
        %3627 = vmatprep.subr.bf16.mxu0 0
        %3628 = vmatpush1.bf16.xpose.msra.mxu0 0
        %3629 = vmatprep.subr.bf16.mxu0 0
        %3630 = vmatpush1.bf16.xpose.msra.mxu0 0
        %3631 = vmatprep.mubr.bf16.mxu0 0
        %3632 = vmatmul.mubr.bf16.gmra.mrb[0].mxu0 %v3576
        %v3633 = vpop.f32.mrb[0].mxu0
        %v3634 = vadd.f32 0.0, %v3633
        %v3635 = vpop.f32.mrb[0].mxu0
        %v3636 = vpop.f32.mrb[0].mxu0
        %v3637 = vadd.f32 0.0, %v3636
        %v3638 = vpop.f32.mrb[0].mxu0
        %3639 = vmatprep.mubr.bf16.mxu0 0
        %3640 = vmatmul.mubr.bf16.gmra.mrb[0].mxu0 %v3579
        %v3641 = vpop.f32.mrb[0].mxu0
        %v3642 = vadd.f32 0.0, %v3641
        %v3643 = vpop.f32.mrb[0].mxu0
        %v3644 = vpop.f32.mrb[0].mxu0
        %v3645 = vadd.f32 0.0, %v3644
        %v3646 = vpop.f32.mrb[0].mxu0
        %3647 = vmatprep.mubr.bf16.mxu0 0
        %3648 = vmatmul.mubr.bf16.gmra.mrb[0].mxu0 %v3582
        %v3649 = vpop.f32.mrb[0].mxu0
        %v3650 = vadd.f32 0.0, %v3649
        %v3651 = vpop.f32.mrb[0].mxu0
        %v3652 = vpop.f32.mrb[0].mxu0
        %v3653 = vadd.f32 0.0, %v3652
        %v3654 = vpop.f32.mrb[0].mxu0
        %3655 = vmatprep.mubr.bf16.mxu0 0
        %3656 = vmatmul.mubr.bf16.gmra.mrb[0].mxu0 %v3585
        %v3657 = vpop.f32.mrb[0].mxu0
        %v3658 = vadd.f32 0.0, %v3657
        %v3659 = vpop.f32.mrb[0].mxu0
        %v3660 = vpop.f32.mrb[0].mxu0
        %v3661 = vadd.f32 0.0, %v3660
        %v3662 = vpop.f32.mrb[0].mxu0
        %3663 = vdwg.mxu0
        %vm3664 = vcmask 523264
        %v3665 = vsel %vm3664, %v3634, -inf
        %3666 = vmax.xlane.f32.xlu0 %v3665
        %v3667 = vpop.xlane.xlu0 %3666
        %v3668 = vsel %vm3664, %v3637, -inf
        %3669 = vmax.xlane.f32.xlu0 %v3668
        %v3670 = vpop.xlane.xlu0 %3669
        %v3671 = vsel %vm3664, %v3642, -inf
        %3672 = vmax.xlane.f32.xlu0 %v3671
        %v3673 = vpop.xlane.xlu0 %3672
        %v3674 = vsel %vm3664, %v3645, -inf
        %3675 = vmax.xlane.f32.xlu0 %v3674
        %v3676 = vpop.xlane.xlu0 %3675
        %v3677 = vsel %vm3664, %v3650, -inf
        %3678 = vmax.xlane.f32.xlu0 %v3677
        %v3679 = vpop.xlane.xlu0 %3678
        %v3680 = vsel %vm3664, %v3653, -inf
        %3681 = vmax.xlane.f32.xlu0 %v3680
        %v3682 = vpop.xlane.xlu0 %3681
        %v3683 = vsel %vm3664, %v3658, -inf
        %3684 = vmax.xlane.f32.xlu0 %v3683
        %v3685 = vpop.xlane.xlu0 %3684
        %v3686 = vsel %vm3664, %v3661, -inf
        %3687 = vmax.xlane.f32.xlu0 %v3686
        %v3688 = vpop.xlane.xlu0 %3687
        %v3689 = vsub.f32 %v3634, %v3667
        %v3690 = vsub.f32 %v3637, %v3670
        %v3691 = vsub.f32 %v3642, %v3673
        %v3692 = vsub.f32 %v3645, %v3676
        %v3693 = vsub.f32 %v3650, %v3679
        %v3694 = vsub.f32 %v3653, %v3682
        %v3695 = vsub.f32 %v3658, %v3685
        %v3696 = vsub.f32 %v3661, %v3688
        %v3697 = vmul.f32 %v3689, 1.442695
        %v3698 = vpow.pop %v3697
        %v3699 = vmul.f32 %v3690, 1.442695
        %v3700 = vpow.pop %v3699
        %v3701 = vmul.f32 %v3691, 1.442695
        %v3702 = vpow.pop %v3701
        %v3703 = vmul.f32 %v3692, 1.442695
        %v3704 = vpow.pop %v3703
        %v3705 = vmul.f32 %v3693, 1.442695
        %v3706 = vpow.pop %v3705
        %v3707 = vmul.f32 %v3694, 1.442695
        %v3708 = vpow.pop %v3707
        %v3709 = vmul.f32 %v3695, 1.442695
        %v3710 = vpow.pop %v3709
        %v3711 = vmul.f32 %v3696, 1.442695
        %v3712 = vpow.pop %v3711
        %v3713 = vsel %vm3664, %v3698, 0.0
        %3714 = vadd.xlane.f32.xlu0 %v3713
        %v3715 = vpop.xlane.xlu0 %3714
        %v3716 = vsel %vm3664, %v3700, 0.0
        %3717 = vadd.xlane.f32.xlu0 %v3716
        %v3718 = vpop.xlane.xlu0 %3717
        %v3719 = vsel %vm3664, %v3702, 0.0
        %3720 = vadd.xlane.f32.xlu0 %v3719
        %v3721 = vpop.xlane.xlu0 %3720
        %v3722 = vsel %vm3664, %v3704, 0.0
        %3723 = vadd.xlane.f32.xlu0 %v3722
        %v3724 = vpop.xlane.xlu0 %3723
        %v3725 = vsel %vm3664, %v3706, 0.0
        %3726 = vadd.xlane.f32.xlu0 %v3725
        %v3727 = vpop.xlane.xlu0 %3726
        %v3728 = vsel %vm3664, %v3708, 0.0
        %3729 = vadd.xlane.f32.xlu0 %v3728
        %v3730 = vpop.xlane.xlu0 %3729
        %v3731 = vsel %vm3664, %v3710, 0.0
        %3732 = vadd.xlane.f32.xlu0 %v3731
        %v3733 = vpop.xlane.xlu0 %3732
        %v3734 = vsel %vm3664, %v3712, 0.0
        %3735 = vadd.xlane.f32.xlu0 %v3734
        %v3736 = vpop.xlane.xlu0 %3735
        %v3737 = vrcp.pop %v3715
        %v3738 = vrcp.pop %v3718
        %v3739 = vrcp.pop %v3721
        %v3740 = vrcp.pop %v3724
        %v3741 = vrcp.pop %v3727
        %v3742 = vrcp.pop %v3730
        %v3743 = vrcp.pop %v3733
        %v3744 = vrcp.pop %v3736
        %v3745 = vmul.f32 %v3698, %v3737
        %v3746 = vmul.f32 %v3700, %v3738
        %v3747 = vmul.f32 %v3702, %v3739
        %v3748 = vmul.f32 %v3704, %v3740
        %v3749 = vmul.f32 %v3706, %v3741
        %v3750 = vmul.f32 %v3708, %v3742
        %v3751 = vmul.f32 %v3710, %v3743
        %v3752 = vmul.f32 %v3712, %v3744
        %v3753 = vpack.c.bf16 %v3746, %v3745
        %v3754 = vpack.c.bf16 %v3748, %v3747
        %v3755 = vpack.c.bf16 %v3750, %v3749
        %v3756 = vpack.c.bf16 %v3752, %v3751
        %v3758 = vsel %vm3664, %v3753, 0
        %v3761 = vsel %vm3664, %v3754, 0
        %v3764 = vsel %vm3664, %v3755, 0
        %v3767 = vsel %vm3664, %v3756, 0
        %3769 = vmatprep.subr.bf16.mxu0 0
        %3770 = vmatpush1.bf16.msra.mxu0 %v3570
        %3771 = vmatprep.subr.bf16.mxu0 0
        %3772 = vmatpush1.bf16.msra.mxu0 %v3571
        %3773 = vmatprep.subr.bf16.mxu0 0
        %3774 = vmatpush1.bf16.msra.mxu0 %v3572
        %3775 = vmatprep.subr.bf16.mxu0 0
        %3776 = vmatpush1.bf16.msra.mxu0 %v3573
        %3777 = vmatprep.subr.bf16.mxu0 0
        %3778 = vmatpush1.bf16.msra.mxu0 0
        %3779 = vmatprep.subr.bf16.mxu0 0
        %3780 = vmatpush1.bf16.msra.mxu0 0
        %3781 = vmatprep.subr.bf16.mxu0 0
        %3782 = vmatpush1.bf16.msra.mxu0 0
        %3783 = vmatprep.subr.bf16.mxu0 0
        %3784 = vmatpush1.bf16.msra.mxu0 0
        %3785 = vmatprep.subr.bf16.mxu0 0
        %3786 = vmatpush1.bf16.msra.mxu0 0
        %3787 = vmatprep.subr.bf16.mxu0 0
        %3788 = vmatpush1.bf16.msra.mxu0 0
        %3789 = vmatprep.subr.bf16.mxu0 0
        %3790 = vmatpush1.bf16.msra.mxu0 0
        %3791 = vmatprep.subr.bf16.mxu0 0
        %3792 = vmatpush1.bf16.msra.mxu0 0
        %3793 = vmatprep.subr.bf16.mxu0 0
        %3794 = vmatpush1.bf16.msra.mxu0 0
        %3795 = vmatprep.subr.bf16.mxu0 0
        %3796 = vmatpush1.bf16.msra.mxu0 0
        %3797 = vmatprep.subr.bf16.mxu0 0
        %3798 = vmatpush1.bf16.msra.mxu0 0
        %3799 = vmatprep.subr.bf16.mxu0 0
        %3800 = vmatpush1.bf16.msra.mxu0 0
        %3801 = vmatprep.mubr.bf16.mxu0 0
        %3802 = vmatmul.mubr.bf16.gmra.mrb[0].mxu0 %v3758
        %v3803 = vpop.f32.mrb[0].mxu0
        %v3804 = vadd.f32 0.0, %v3803
        %v3805 = vpop.f32.mrb[0].mxu0
        %v3806 = vpop.f32.mrb[0].mxu0
        %v3807 = vadd.f32 0.0, %v3806
        %v3808 = vpop.f32.mrb[0].mxu0
        %3809 = vmatprep.mubr.bf16.mxu0 0
        %3810 = vmatmul.mubr.bf16.gmra.mrb[0].mxu0 %v3761
        %v3811 = vpop.f32.mrb[0].mxu0
        %v3812 = vadd.f32 0.0, %v3811
        %v3813 = vpop.f32.mrb[0].mxu0
        %v3814 = vpop.f32.mrb[0].mxu0
        %v3815 = vadd.f32 0.0, %v3814
        %v3816 = vpop.f32.mrb[0].mxu0
        %3817 = vmatprep.mubr.bf16.mxu0 0
        %3818 = vmatmul.mubr.bf16.gmra.mrb[0].mxu0 %v3764
        %v3819 = vpop.f32.mrb[0].mxu0
        %v3820 = vadd.f32 0.0, %v3819
        %v3821 = vpop.f32.mrb[0].mxu0
        %v3822 = vpop.f32.mrb[0].mxu0
        %v3823 = vadd.f32 0.0, %v3822
        %v3824 = vpop.f32.mrb[0].mxu0
        %3825 = vmatprep.mubr.bf16.mxu0 0
        %3826 = vmatmul.mubr.bf16.gmra.mrb[0].mxu0 %v3767
        %v3827 = vpop.f32.mrb[0].mxu0
        %v3828 = vadd.f32 0.0, %v3827
        %v3829 = vpop.f32.mrb[0].mxu0
        %v3830 = vpop.f32.mrb[0].mxu0
        %v3831 = vadd.f32 0.0, %v3830
        %v3832 = vpop.f32.mrb[0].mxu0
        %3833 = vdwg.mxu0
        %3838 = vrot.lane.b32.xlu0 %v3562, 96
        %v3839 = vpop.permute.xlu0 %3838
        %3840 = vrot.lane.b32.xlu0 %v3563, 96
        %v3841 = vpop.permute.xlu0 %3840
        %3842 = vrot.lane.b32.xlu0 %v3564, 96
        %v3843 = vpop.permute.xlu0 %3842
        %3844 = vrot.lane.b32.xlu0 %v3565, 96
        %v3845 = vpop.permute.xlu0 %3844
        %3850 = vrot.lane.b32.xlu0 %v3566, 96
        %v3851 = vpop.permute.xlu0 %3850
        %3852 = vrot.lane.b32.xlu0 %v3567, 96
        %v3853 = vpop.permute.xlu0 %3852
        %3854 = vrot.lane.b32.xlu0 %v3568, 96
        %v3855 = vpop.permute.xlu0 %3854
        %3856 = vrot.lane.b32.xlu0 %v3569, 96
        %v3857 = vpop.permute.xlu0 %3856
        %v3859 = vsel %vm3574, %v3839, 0
        %v3862 = vsel %vm3574, %v3841, 0
        %v3865 = vsel %vm3574, %v3843, 0
        %v3868 = vsel %vm3574, %v3845, 0
        %v3871 = vsel %vm3574, %v3851, 0
        %v3874 = vsel %vm3574, %v3853, 0
        %v3877 = vsel %vm3574, %v3855, 0
        %v3880 = vsel %vm3574, %v3857, 0
        %3882 = vmatprep.subr.bf16.mxu0 0
        %3883 = vmatpush1.bf16.xpose.msra.mxu0 %v3871
        %3884 = vmatprep.subr.bf16.mxu0 0
        %3885 = vmatpush1.bf16.xpose.msra.mxu0 %v3874
        %3886 = vmatprep.subr.bf16.mxu0 0
        %3887 = vmatpush1.bf16.xpose.msra.mxu0 %v3877
        %3888 = vmatprep.subr.bf16.mxu0 0
        %3889 = vmatpush1.bf16.xpose.msra.mxu0 %v3880
        %3890 = vmatprep.subr.bf16.mxu0 0
        %3891 = vmatpush1.bf16.xpose.msra.mxu0 0
        %3892 = vmatprep.subr.bf16.mxu0 0
        %3893 = vmatpush1.bf16.xpose.msra.mxu0 0
        %3894 = vmatprep.subr.bf16.mxu0 0
        %3895 = vmatpush1.bf16.xpose.msra.mxu0 0
        %3896 = vmatprep.subr.bf16.mxu0 0
        %3897 = vmatpush1.bf16.xpose.msra.mxu0 0
        %3898 = vmatprep.subr.bf16.mxu0 0
        %3899 = vmatpush1.bf16.xpose.msra.mxu0 0
        %3900 = vmatprep.subr.bf16.mxu0 0
        %3901 = vmatpush1.bf16.xpose.msra.mxu0 0
        %3902 = vmatprep.subr.bf16.mxu0 0
        %3903 = vmatpush1.bf16.xpose.msra.mxu0 0
        %3904 = vmatprep.subr.bf16.mxu0 0
        %3905 = vmatpush1.bf16.xpose.msra.mxu0 0
        %3906 = vmatprep.subr.bf16.mxu0 0
        %3907 = vmatpush1.bf16.xpose.msra.mxu0 0
        %3908 = vmatprep.subr.bf16.mxu0 0
        %3909 = vmatpush1.bf16.xpose.msra.mxu0 0
        %3910 = vmatprep.subr.bf16.mxu0 0
        %3911 = vmatpush1.bf16.xpose.msra.mxu0 0
        %3912 = vmatprep.subr.bf16.mxu0 0
        %3913 = vmatpush1.bf16.xpose.msra.mxu0 0
        %3914 = vmatprep.mubr.bf16.mxu0 0
        %3915 = vmatmul.mubr.bf16.gmra.mrb[0].mxu0 %v3859
        %v3916 = vpop.f32.mrb[0].mxu0
        %v3917 = vadd.f32 0.0, %v3916
        %v3918 = vpop.f32.mrb[0].mxu0
        %v3919 = vpop.f32.mrb[0].mxu0
        %v3920 = vadd.f32 0.0, %v3919
        %v3921 = vpop.f32.mrb[0].mxu0
        %3922 = vmatprep.mubr.bf16.mxu0 0
        %3923 = vmatmul.mubr.bf16.gmra.mrb[0].mxu0 %v3862
        %v3924 = vpop.f32.mrb[0].mxu0
        %v3925 = vadd.f32 0.0, %v3924
        %v3926 = vpop.f32.mrb[0].mxu0
        %v3927 = vpop.f32.mrb[0].mxu0
        %v3928 = vadd.f32 0.0, %v3927
        %v3929 = vpop.f32.mrb[0].mxu0
        %3930 = vmatprep.mubr.bf16.mxu0 0
        %3931 = vmatmul.mubr.bf16.gmra.mrb[0].mxu0 %v3865
        %v3932 = vpop.f32.mrb[0].mxu0
        %v3933 = vadd.f32 0.0, %v3932
        %v3934 = vpop.f32.mrb[0].mxu0
        %v3935 = vpop.f32.mrb[0].mxu0
        %v3936 = vadd.f32 0.0, %v3935
        %v3937 = vpop.f32.mrb[0].mxu0
        %3938 = vmatprep.mubr.bf16.mxu0 0
        %3939 = vmatmul.mubr.bf16.gmra.mrb[0].mxu0 %v3868
        %v3940 = vpop.f32.mrb[0].mxu0
        %v3941 = vadd.f32 0.0, %v3940
        %v3942 = vpop.f32.mrb[0].mxu0
        %v3943 = vpop.f32.mrb[0].mxu0
        %v3944 = vadd.f32 0.0, %v3943
        %v3945 = vpop.f32.mrb[0].mxu0
        %3946 = vdwg.mxu0
        %v3947 = vsel %vm3664, %v3917, -inf
        %3948 = vmax.xlane.f32.xlu0 %v3947
        %v3949 = vpop.xlane.xlu0 %3948
        %v3950 = vsel %vm3664, %v3920, -inf
        %3951 = vmax.xlane.f32.xlu0 %v3950
        %v3952 = vpop.xlane.xlu0 %3951
        %v3953 = vsel %vm3664, %v3925, -inf
        %3954 = vmax.xlane.f32.xlu0 %v3953
        %v3955 = vpop.xlane.xlu0 %3954
        %v3956 = vsel %vm3664, %v3928, -inf
        %3957 = vmax.xlane.f32.xlu0 %v3956
        %v3958 = vpop.xlane.xlu0 %3957
        %v3959 = vsel %vm3664, %v3933, -inf
        %3960 = vmax.xlane.f32.xlu0 %v3959
        %v3961 = vpop.xlane.xlu0 %3960
        %v3962 = vsel %vm3664, %v3936, -inf
        %3963 = vmax.xlane.f32.xlu0 %v3962
        %v3964 = vpop.xlane.xlu0 %3963
        %v3965 = vsel %vm3664, %v3941, -inf
        %3966 = vmax.xlane.f32.xlu0 %v3965
        %v3967 = vpop.xlane.xlu0 %3966
        %v3968 = vsel %vm3664, %v3944, -inf
        %3969 = vmax.xlane.f32.xlu0 %v3968
        %v3970 = vpop.xlane.xlu0 %3969
        %v3971 = vsub.f32 %v3917, %v3949
        %v3972 = vsub.f32 %v3920, %v3952
        %v3973 = vsub.f32 %v3925, %v3955
        %v3974 = vsub.f32 %v3928, %v3958
        %v3975 = vsub.f32 %v3933, %v3961
        %v3976 = vsub.f32 %v3936, %v3964
        %v3977 = vsub.f32 %v3941, %v3967
        %v3978 = vsub.f32 %v3944, %v3970
        %v3979 = vmul.f32 %v3971, 1.442695
        %v3980 = vpow.pop %v3979
        %v3981 = vmul.f32 %v3972, 1.442695
        %v3982 = vpow.pop %v3981
        %v3983 = vmul.f32 %v3973, 1.442695
        %v3984 = vpow.pop %v3983
        %v3985 = vmul.f32 %v3974, 1.442695
        %v3986 = vpow.pop %v3985
        %v3987 = vmul.f32 %v3975, 1.442695
        %v3988 = vpow.pop %v3987
        %v3989 = vmul.f32 %v3976, 1.442695
        %v3990 = vpow.pop %v3989
        %v3991 = vmul.f32 %v3977, 1.442695
        %v3992 = vpow.pop %v3991
        %v3993 = vmul.f32 %v3978, 1.442695
        %v3994 = vpow.pop %v3993
        %v3995 = vsel %vm3664, %v3980, 0.0
        %3996 = vadd.xlane.f32.xlu0 %v3995
        %v3997 = vpop.xlane.xlu0 %3996
        %v3998 = vsel %vm3664, %v3982, 0.0
        %3999 = vadd.xlane.f32.xlu0 %v3998
        %v4000 = vpop.xlane.xlu0 %3999
        %v4001 = vsel %vm3664, %v3984, 0.0
        %4002 = vadd.xlane.f32.xlu0 %v4001
        %v4003 = vpop.xlane.xlu0 %4002
        %v4004 = vsel %vm3664, %v3986, 0.0
        %4005 = vadd.xlane.f32.xlu0 %v4004
        %v4006 = vpop.xlane.xlu0 %4005
        %v4007 = vsel %vm3664, %v3988, 0.0
        %4008 = vadd.xlane.f32.xlu0 %v4007
        %v4009 = vpop.xlane.xlu0 %4008
        %v4010 = vsel %vm3664, %v3990, 0.0
        %4011 = vadd.xlane.f32.xlu0 %v4010
        %v4012 = vpop.xlane.xlu0 %4011
        %v4013 = vsel %vm3664, %v3992, 0.0
        %4014 = vadd.xlane.f32.xlu0 %v4013
        %v4015 = vpop.xlane.xlu0 %4014
        %v4016 = vsel %vm3664, %v3994, 0.0
        %4017 = vadd.xlane.f32.xlu0 %v4016
        %v4018 = vpop.xlane.xlu0 %4017
        %v4019 = vrcp.pop %v3997
        %v4020 = vrcp.pop %v4000
        %v4021 = vrcp.pop %v4003
        %v4022 = vrcp.pop %v4006
        %v4023 = vrcp.pop %v4009
        %v4024 = vrcp.pop %v4012
        %v4025 = vrcp.pop %v4015
        %v4026 = vrcp.pop %v4018
        %v4027 = vmul.f32 %v3980, %v4019
        %v4028 = vmul.f32 %v3982, %v4020
        %v4029 = vmul.f32 %v3984, %v4021
        %v4030 = vmul.f32 %v3986, %v4022
        %v4031 = vmul.f32 %v3988, %v4023
        %v4032 = vmul.f32 %v3990, %v4024
        %v4033 = vmul.f32 %v3992, %v4025
        %v4034 = vmul.f32 %v3994, %v4026
        %v4035 = vpack.c.bf16 %v4028, %v4027
        %v4036 = vpack.c.bf16 %v4030, %v4029
        %v4037 = vpack.c.bf16 %v4032, %v4031
        %v4038 = vpack.c.bf16 %v4034, %v4033
        %4043 = vrot.lane.b32.xlu0 %v3570, 96
        %v4044 = vpop.permute.xlu0 %4043
        %4045 = vrot.lane.b32.xlu0 %v3571, 96
        %v4046 = vpop.permute.xlu0 %4045
        %4047 = vrot.lane.b32.xlu0 %v3572, 96
        %v4048 = vpop.permute.xlu0 %4047
        %4049 = vrot.lane.b32.xlu0 %v3573, 96
        %v4050 = vpop.permute.xlu0 %4049
        %v4056 = vsel %vm3664, %v4035, 0
        %v4059 = vsel %vm3664, %v4036, 0
        %v4062 = vsel %vm3664, %v4037, 0
        %v4065 = vsel %vm3664, %v4038, 0
        %4067 = vmatprep.subr.bf16.mxu0 0
        %4068 = vmatpush1.bf16.msra.mxu0 %v4044
        %4069 = vmatprep.subr.bf16.mxu0 0
        %4070 = vmatpush1.bf16.msra.mxu0 %v4046
        %4071 = vmatprep.subr.bf16.mxu0 0
        %4072 = vmatpush1.bf16.msra.mxu0 %v4048
        %4073 = vmatprep.subr.bf16.mxu0 0
        %4074 = vmatpush1.bf16.msra.mxu0 %v4050
        %4075 = vmatprep.subr.bf16.mxu0 0
        %4076 = vmatpush1.bf16.msra.mxu0 0
        %4077 = vmatprep.subr.bf16.mxu0 0
        %4078 = vmatpush1.bf16.msra.mxu0 0
        %4079 = vmatprep.subr.bf16.mxu0 0
        %4080 = vmatpush1.bf16.msra.mxu0 0
        %4081 = vmatprep.subr.bf16.mxu0 0
        %4082 = vmatpush1.bf16.msra.mxu0 0
        %4083 = vmatprep.subr.bf16.mxu0 0
        %4084 = vmatpush1.bf16.msra.mxu0 0
        %4085 = vmatprep.subr.bf16.mxu0 0
        %4086 = vmatpush1.bf16.msra.mxu0 0
        %4087 = vmatprep.subr.bf16.mxu0 0
        %4088 = vmatpush1.bf16.msra.mxu0 0
        %4089 = vmatprep.subr.bf16.mxu0 0
        %4090 = vmatpush1.bf16.msra.mxu0 0
        %4091 = vmatprep.subr.bf16.mxu0 0
        %4092 = vmatpush1.bf16.msra.mxu0 0
        %4093 = vmatprep.subr.bf16.mxu0 0
        %4094 = vmatpush1.bf16.msra.mxu0 0
        %4095 = vmatprep.subr.bf16.mxu0 0
        %4096 = vmatpush1.bf16.msra.mxu0 0
        %4097 = vmatprep.subr.bf16.mxu0 0
        %4098 = vmatpush1.bf16.msra.mxu0 0
        %4099 = vmatprep.mubr.bf16.mxu0 0
        %4100 = vmatmul.mubr.bf16.gmra.mrb[0].mxu0 %v4056
        %v4101 = vpop.f32.mrb[0].mxu0
        %v4102 = vadd.f32 0.0, %v4101
        %v4103 = vpop.f32.mrb[0].mxu0
        %v4104 = vpop.f32.mrb[0].mxu0
        %v4105 = vadd.f32 0.0, %v4104
        %v4106 = vpop.f32.mrb[0].mxu0
        %4107 = vmatprep.mubr.bf16.mxu0 0
        %4108 = vmatmul.mubr.bf16.gmra.mrb[0].mxu0 %v4059
        %v4109 = vpop.f32.mrb[0].mxu0
        %v4110 = vadd.f32 0.0, %v4109
        %v4111 = vpop.f32.mrb[0].mxu0
        %v4112 = vpop.f32.mrb[0].mxu0
        %v4113 = vadd.f32 0.0, %v4112
        %v4114 = vpop.f32.mrb[0].mxu0
        %4115 = vmatprep.mubr.bf16.mxu0 0
        %4116 = vmatmul.mubr.bf16.gmra.mrb[0].mxu0 %v4062
        %v4117 = vpop.f32.mrb[0].mxu0
        %v4118 = vadd.f32 0.0, %v4117
        %v4119 = vpop.f32.mrb[0].mxu0
        %v4120 = vpop.f32.mrb[0].mxu0
        %v4121 = vadd.f32 0.0, %v4120
        %v4122 = vpop.f32.mrb[0].mxu0
        %4123 = vmatprep.mubr.bf16.mxu0 0
        %4124 = vmatmul.mubr.bf16.gmra.mrb[0].mxu0 %v4065
        %v4125 = vpop.f32.mrb[0].mxu0
        %v4126 = vadd.f32 0.0, %v4125
        %v4127 = vpop.f32.mrb[0].mxu0
        %v4128 = vpop.f32.mrb[0].mxu0
        %v4129 = vadd.f32 0.0, %v4128
        %v4130 = vpop.f32.mrb[0].mxu0
        %4131 = vdwg.mxu0
        %4132 = vrot.lane.b32.xlu0 %v3562, 64
        %v4133 = vpop.permute.xlu0 %4132
        %4134 = vrot.lane.b32.xlu0 %v3563, 64
        %v4135 = vpop.permute.xlu0 %4134
        %4136 = vrot.lane.b32.xlu0 %v3564, 64
        %v4137 = vpop.permute.xlu0 %4136
        %4138 = vrot.lane.b32.xlu0 %v3565, 64
        %v4139 = vpop.permute.xlu0 %4138
        %4140 = vrot.lane.b32.xlu0 %v3566, 64
        %v4141 = vpop.permute.xlu0 %4140
        %4142 = vrot.lane.b32.xlu0 %v3567, 64
        %v4143 = vpop.permute.xlu0 %4142
        %4144 = vrot.lane.b32.xlu0 %v3568, 64
        %v4145 = vpop.permute.xlu0 %4144
        %4146 = vrot.lane.b32.xlu0 %v3569, 64
        %v4147 = vpop.permute.xlu0 %4146
        %v4149 = vsel %vm3574, %v4133, 0
        %v4152 = vsel %vm3574, %v4135, 0
        %v4155 = vsel %vm3574, %v4137, 0
        %v4158 = vsel %vm3574, %v4139, 0
        %v4161 = vsel %vm3574, %v4141, 0
        %v4164 = vsel %vm3574, %v4143, 0
        %v4167 = vsel %vm3574, %v4145, 0
        %v4170 = vsel %vm3574, %v4147, 0
        %4172 = vmatprep.subr.bf16.mxu0 0
        %4173 = vmatpush1.bf16.xpose.msra.mxu0 %v4161
        %4174 = vmatprep.subr.bf16.mxu0 0
        %4175 = vmatpush1.bf16.xpose.msra.mxu0 %v4164
        %4176 = vmatprep.subr.bf16.mxu0 0
        %4177 = vmatpush1.bf16.xpose.msra.mxu0 %v4167
        %4178 = vmatprep.subr.bf16.mxu0 0
        %4179 = vmatpush1.bf16.xpose.msra.mxu0 %v4170
        %4180 = vmatprep.subr.bf16.mxu0 0
        %4181 = vmatpush1.bf16.xpose.msra.mxu0 0
        %4182 = vmatprep.subr.bf16.mxu0 0
        %4183 = vmatpush1.bf16.xpose.msra.mxu0 0
        %4184 = vmatprep.subr.bf16.mxu0 0
        %4185 = vmatpush1.bf16.xpose.msra.mxu0 0
        %4186 = vmatprep.subr.bf16.mxu0 0
        %4187 = vmatpush1.bf16.xpose.msra.mxu0 0
        %4188 = vmatprep.subr.bf16.mxu0 0
        %4189 = vmatpush1.bf16.xpose.msra.mxu0 0
        %4190 = vmatprep.subr.bf16.mxu0 0
        %4191 = vmatpush1.bf16.xpose.msra.mxu0 0
        %4192 = vmatprep.subr.bf16.mxu0 0
        %4193 = vmatpush1.bf16.xpose.msra.mxu0 0
        %4194 = vmatprep.subr.bf16.mxu0 0
        %4195 = vmatpush1.bf16.xpose.msra.mxu0 0
        %4196 = vmatprep.subr.bf16.mxu0 0
        %4197 = vmatpush1.bf16.xpose.msra.mxu0 0
        %4198 = vmatprep.subr.bf16.mxu0 0
        %4199 = vmatpush1.bf16.xpose.msra.mxu0 0
        %4200 = vmatprep.subr.bf16.mxu0 0
        %4201 = vmatpush1.bf16.xpose.msra.mxu0 0
        %4202 = vmatprep.subr.bf16.mxu0 0
        %4203 = vmatpush1.bf16.xpose.msra.mxu0 0
        %4204 = vmatprep.mubr.bf16.mxu0 0
        %4205 = vmatmul.mubr.bf16.gmra.mrb[0].mxu0 %v4149
        %v4206 = vpop.f32.mrb[0].mxu0
        %v4207 = vadd.f32 0.0, %v4206
        %v4208 = vpop.f32.mrb[0].mxu0
        %v4209 = vpop.f32.mrb[0].mxu0
        %v4210 = vadd.f32 0.0, %v4209
        %v4211 = vpop.f32.mrb[0].mxu0
        %4212 = vmatprep.mubr.bf16.mxu0 0
        %4213 = vmatmul.mubr.bf16.gmra.mrb[0].mxu0 %v4152
        %v4214 = vpop.f32.mrb[0].mxu0
        %v4215 = vadd.f32 0.0, %v4214
        %v4216 = vpop.f32.mrb[0].mxu0
        %v4217 = vpop.f32.mrb[0].mxu0
        %v4218 = vadd.f32 0.0, %v4217
        %v4219 = vpop.f32.mrb[0].mxu0
        %4220 = vmatprep.mubr.bf16.mxu0 0
        %4221 = vmatmul.mubr.bf16.gmra.mrb[0].mxu0 %v4155
        %v4222 = vpop.f32.mrb[0].mxu0
        %v4223 = vadd.f32 0.0, %v4222
        %v4224 = vpop.f32.mrb[0].mxu0
        %v4225 = vpop.f32.mrb[0].mxu0
        %v4226 = vadd.f32 0.0, %v4225
        %v4227 = vpop.f32.mrb[0].mxu0
        %4228 = vmatprep.mubr.bf16.mxu0 0
        %4229 = vmatmul.mubr.bf16.gmra.mrb[0].mxu0 %v4158
        %v4230 = vpop.f32.mrb[0].mxu0
        %v4231 = vadd.f32 0.0, %v4230
        %v4232 = vpop.f32.mrb[0].mxu0
        %v4233 = vpop.f32.mrb[0].mxu0
        %v4234 = vadd.f32 0.0, %v4233
        %v4235 = vpop.f32.mrb[0].mxu0
        %4236 = vdwg.mxu0
        %v4237 = vsel %vm3664, %v4207, -inf
        %4238 = vmax.xlane.f32.xlu0 %v4237
        %v4239 = vpop.xlane.xlu0 %4238
        %v4240 = vsel %vm3664, %v4210, -inf
        %4241 = vmax.xlane.f32.xlu0 %v4240
        %v4242 = vpop.xlane.xlu0 %4241
        %v4243 = vsel %vm3664, %v4215, -inf
        %4244 = vmax.xlane.f32.xlu0 %v4243
        %v4245 = vpop.xlane.xlu0 %4244
        %v4246 = vsel %vm3664, %v4218, -inf
        %4247 = vmax.xlane.f32.xlu0 %v4246
        %v4248 = vpop.xlane.xlu0 %4247
        %v4249 = vsel %vm3664, %v4223, -inf
        %4250 = vmax.xlane.f32.xlu0 %v4249
        %v4251 = vpop.xlane.xlu0 %4250
        %v4252 = vsel %vm3664, %v4226, -inf
        %4253 = vmax.xlane.f32.xlu0 %v4252
        %v4254 = vpop.xlane.xlu0 %4253
        %v4255 = vsel %vm3664, %v4231, -inf
        %4256 = vmax.xlane.f32.xlu0 %v4255
        %v4257 = vpop.xlane.xlu0 %4256
        %v4258 = vsel %vm3664, %v4234, -inf
        %4259 = vmax.xlane.f32.xlu0 %v4258
        %v4260 = vpop.xlane.xlu0 %4259
        %v4261 = vsub.f32 %v4207, %v4239
        %v4262 = vsub.f32 %v4210, %v4242
        %v4263 = vsub.f32 %v4215, %v4245
        %v4264 = vsub.f32 %v4218, %v4248
        %v4265 = vsub.f32 %v4223, %v4251
        %v4266 = vsub.f32 %v4226, %v4254
        %v4267 = vsub.f32 %v4231, %v4257
        %v4268 = vsub.f32 %v4234, %v4260
        %v4269 = vmul.f32 %v4261, 1.442695
        %v4270 = vpow.pop %v4269
        %v4271 = vmul.f32 %v4262, 1.442695
        %v4272 = vpow.pop %v4271
        %v4273 = vmul.f32 %v4263, 1.442695
        %v4274 = vpow.pop %v4273
        %v4275 = vmul.f32 %v4264, 1.442695
        %v4276 = vpow.pop %v4275
        %v4277 = vmul.f32 %v4265, 1.442695
        %v4278 = vpow.pop %v4277
        %v4279 = vmul.f32 %v4266, 1.442695
        %v4280 = vpow.pop %v4279
        %v4281 = vmul.f32 %v4267, 1.442695
        %v4282 = vpow.pop %v4281
        %v4283 = vmul.f32 %v4268, 1.442695
        %v4284 = vpow.pop %v4283
        %v4285 = vsel %vm3664, %v4270, 0.0
        %4286 = vadd.xlane.f32.xlu0 %v4285
        %v4287 = vpop.xlane.xlu0 %4286
        %v4288 = vsel %vm3664, %v4272, 0.0
        %4289 = vadd.xlane.f32.xlu0 %v4288
        %v4290 = vpop.xlane.xlu0 %4289
        %v4291 = vsel %vm3664, %v4274, 0.0
        %4292 = vadd.xlane.f32.xlu0 %v4291
        %v4293 = vpop.xlane.xlu0 %4292
        %v4294 = vsel %vm3664, %v4276, 0.0
        %4295 = vadd.xlane.f32.xlu0 %v4294
        %v4296 = vpop.xlane.xlu0 %4295
        %v4297 = vsel %vm3664, %v4278, 0.0
        %4298 = vadd.xlane.f32.xlu0 %v4297
        %v4299 = vpop.xlane.xlu0 %4298
        %v4300 = vsel %vm3664, %v4280, 0.0
        %4301 = vadd.xlane.f32.xlu0 %v4300
        %v4302 = vpop.xlane.xlu0 %4301
        %v4303 = vsel %vm3664, %v4282, 0.0
        %4304 = vadd.xlane.f32.xlu0 %v4303
        %v4305 = vpop.xlane.xlu0 %4304
        %v4306 = vsel %vm3664, %v4284, 0.0
        %4307 = vadd.xlane.f32.xlu0 %v4306
        %v4308 = vpop.xlane.xlu0 %4307
        %v4309 = vrcp.pop %v4287
        %v4310 = vrcp.pop %v4290
        %v4311 = vrcp.pop %v4293
        %v4312 = vrcp.pop %v4296
        %v4313 = vrcp.pop %v4299
        %v4314 = vrcp.pop %v4302
        %v4315 = vrcp.pop %v4305
        %v4316 = vrcp.pop %v4308
        %v4317 = vmul.f32 %v4270, %v4309
        %v4318 = vmul.f32 %v4272, %v4310
        %v4319 = vmul.f32 %v4274, %v4311
        %v4320 = vmul.f32 %v4276, %v4312
        %v4321 = vmul.f32 %v4278, %v4313
        %v4322 = vmul.f32 %v4280, %v4314
        %v4323 = vmul.f32 %v4282, %v4315
        %v4324 = vmul.f32 %v4284, %v4316
        %v4325 = vpack.c.bf16 %v4318, %v4317
        %v4326 = vpack.c.bf16 %v4320, %v4319
        %v4327 = vpack.c.bf16 %v4322, %v4321
        %v4328 = vpack.c.bf16 %v4324, %v4323
        %4329 = vrot.lane.b32.xlu0 %v3570, 64
        %v4330 = vpop.permute.xlu0 %4329
        %4331 = vrot.lane.b32.xlu0 %v3571, 64
        %v4332 = vpop.permute.xlu0 %4331
        %4333 = vrot.lane.b32.xlu0 %v3572, 64
        %v4334 = vpop.permute.xlu0 %4333
        %4335 = vrot.lane.b32.xlu0 %v3573, 64
        %v4336 = vpop.permute.xlu0 %4335
        %v4342 = vsel %vm3664, %v4325, 0
        %v4345 = vsel %vm3664, %v4326, 0
        %v4348 = vsel %vm3664, %v4327, 0
        %v4351 = vsel %vm3664, %v4328, 0
        %4353 = vmatprep.subr.bf16.mxu0 0
        %4354 = vmatpush1.bf16.msra.mxu0 %v4330
        %4355 = vmatprep.subr.bf16.mxu0 0
        %4356 = vmatpush1.bf16.msra.mxu0 %v4332
        %4357 = vmatprep.subr.bf16.mxu0 0
        %4358 = vmatpush1.bf16.msra.mxu0 %v4334
        %4359 = vmatprep.subr.bf16.mxu0 0
        %4360 = vmatpush1.bf16.msra.mxu0 %v4336
        %4361 = vmatprep.subr.bf16.mxu0 0
        %4362 = vmatpush1.bf16.msra.mxu0 0
        %4363 = vmatprep.subr.bf16.mxu0 0
        %4364 = vmatpush1.bf16.msra.mxu0 0
        %4365 = vmatprep.subr.bf16.mxu0 0
        %4366 = vmatpush1.bf16.msra.mxu0 0
        %4367 = vmatprep.subr.bf16.mxu0 0
        %4368 = vmatpush1.bf16.msra.mxu0 0
        %4369 = vmatprep.subr.bf16.mxu0 0
        %4370 = vmatpush1.bf16.msra.mxu0 0
        %4371 = vmatprep.subr.bf16.mxu0 0
        %4372 = vmatpush1.bf16.msra.mxu0 0
        %4373 = vmatprep.subr.bf16.mxu0 0
        %4374 = vmatpush1.bf16.msra.mxu0 0
        %4375 = vmatprep.subr.bf16.mxu0 0
        %4376 = vmatpush1.bf16.msra.mxu0 0
        %4377 = vmatprep.subr.bf16.mxu0 0
        %4378 = vmatpush1.bf16.msra.mxu0 0
        %4379 = vmatprep.subr.bf16.mxu0 0
        %4380 = vmatpush1.bf16.msra.mxu0 0
        %4381 = vmatprep.subr.bf16.mxu0 0
        %4382 = vmatpush1.bf16.msra.mxu0 0
        %4383 = vmatprep.subr.bf16.mxu0 0
        %4384 = vmatpush1.bf16.msra.mxu0 0
        %4385 = vmatprep.mubr.bf16.mxu0 0
        %4386 = vmatmul.mubr.bf16.gmra.mrb[0].mxu0 %v4342
        %v4387 = vpop.f32.mrb[0].mxu0
        %v4388 = vadd.f32 0.0, %v4387
        %v4389 = vpop.f32.mrb[0].mxu0
        %v4390 = vpop.f32.mrb[0].mxu0
        %v4391 = vadd.f32 0.0, %v4390
        %v4392 = vpop.f32.mrb[0].mxu0
        %4393 = vmatprep.mubr.bf16.mxu0 0
        %4394 = vmatmul.mubr.bf16.gmra.mrb[0].mxu0 %v4345
        %v4395 = vpop.f32.mrb[0].mxu0
        %v4396 = vadd.f32 0.0, %v4395
        %v4397 = vpop.f32.mrb[0].mxu0
        %v4398 = vpop.f32.mrb[0].mxu0
        %v4399 = vadd.f32 0.0, %v4398
        %v4400 = vpop.f32.mrb[0].mxu0
        %4401 = vmatprep.mubr.bf16.mxu0 0
        %4402 = vmatmul.mubr.bf16.gmra.mrb[0].mxu0 %v4348
        %v4403 = vpop.f32.mrb[0].mxu0
        %v4404 = vadd.f32 0.0, %v4403
        %v4405 = vpop.f32.mrb[0].mxu0
        %v4406 = vpop.f32.mrb[0].mxu0
        %v4407 = vadd.f32 0.0, %v4406
        %v4408 = vpop.f32.mrb[0].mxu0
        %4409 = vmatprep.mubr.bf16.mxu0 0
        %4410 = vmatmul.mubr.bf16.gmra.mrb[0].mxu0 %v4351
        %v4411 = vpop.f32.mrb[0].mxu0
        %v4412 = vadd.f32 0.0, %v4411
        %v4413 = vpop.f32.mrb[0].mxu0
        %v4414 = vpop.f32.mrb[0].mxu0
        %v4415 = vadd.f32 0.0, %v4414
        %v4416 = vpop.f32.mrb[0].mxu0
        %4417 = vdwg.mxu0
        %4418 = vrot.lane.b32.xlu0 %v3562, 32
        %v4419 = vpop.permute.xlu0 %4418
        %4420 = vrot.lane.b32.xlu0 %v3563, 32
        %v4421 = vpop.permute.xlu0 %4420
        %4422 = vrot.lane.b32.xlu0 %v3564, 32
        %v4423 = vpop.permute.xlu0 %4422
        %4424 = vrot.lane.b32.xlu0 %v3565, 32
        %v4425 = vpop.permute.xlu0 %4424
        %4426 = vrot.lane.b32.xlu0 %v3566, 32
        %v4427 = vpop.permute.xlu0 %4426
        %4428 = vrot.lane.b32.xlu0 %v3567, 32
        %v4429 = vpop.permute.xlu0 %4428
        %4430 = vrot.lane.b32.xlu0 %v3568, 32
        %v4431 = vpop.permute.xlu0 %4430
        %4432 = vrot.lane.b32.xlu0 %v3569, 32
        %v4433 = vpop.permute.xlu0 %4432
        %v4435 = vsel %vm3574, %v4419, 0
        %v4438 = vsel %vm3574, %v4421, 0
        %v4441 = vsel %vm3574, %v4423, 0
        %v4444 = vsel %vm3574, %v4425, 0
        %v4447 = vsel %vm3574, %v4427, 0
        %v4450 = vsel %vm3574, %v4429, 0
        %v4453 = vsel %vm3574, %v4431, 0
        %v4456 = vsel %vm3574, %v4433, 0
        %4458 = vmatprep.subr.bf16.mxu0 0
        %4459 = vmatpush1.bf16.xpose.msra.mxu0 %v4447
        %4460 = vmatprep.subr.bf16.mxu0 0
        %4461 = vmatpush1.bf16.xpose.msra.mxu0 %v4450
        %4462 = vmatprep.subr.bf16.mxu0 0
        %4463 = vmatpush1.bf16.xpose.msra.mxu0 %v4453
        %4464 = vmatprep.subr.bf16.mxu0 0
        %4465 = vmatpush1.bf16.xpose.msra.mxu0 %v4456
        %4466 = vmatprep.subr.bf16.mxu0 0
        %4467 = vmatpush1.bf16.xpose.msra.mxu0 0
        %4468 = vmatprep.subr.bf16.mxu0 0
        %4469 = vmatpush1.bf16.xpose.msra.mxu0 0
        %4470 = vmatprep.subr.bf16.mxu0 0
        %4471 = vmatpush1.bf16.xpose.msra.mxu0 0
        %4472 = vmatprep.subr.bf16.mxu0 0
        %4473 = vmatpush1.bf16.xpose.msra.mxu0 0
        %4474 = vmatprep.subr.bf16.mxu0 0
        %4475 = vmatpush1.bf16.xpose.msra.mxu0 0
        %4476 = vmatprep.subr.bf16.mxu0 0
        %4477 = vmatpush1.bf16.xpose.msra.mxu0 0
        %4478 = vmatprep.subr.bf16.mxu0 0
        %4479 = vmatpush1.bf16.xpose.msra.mxu0 0
        %4480 = vmatprep.subr.bf16.mxu0 0
        %4481 = vmatpush1.bf16.xpose.msra.mxu0 0
        %4482 = vmatprep.subr.bf16.mxu0 0
        %4483 = vmatpush1.bf16.xpose.msra.mxu0 0
        %4484 = vmatprep.subr.bf16.mxu0 0
        %4485 = vmatpush1.bf16.xpose.msra.mxu0 0
        %4486 = vmatprep.subr.bf16.mxu0 0
        %4487 = vmatpush1.bf16.xpose.msra.mxu0 0
        %4488 = vmatprep.subr.bf16.mxu0 0
        %4489 = vmatpush1.bf16.xpose.msra.mxu0 0
        %4490 = vmatprep.mubr.bf16.mxu0 0
        %4491 = vmatmul.mubr.bf16.gmra.mrb[0].mxu0 %v4435
        %v4492 = vpop.f32.mrb[0].mxu0
        %v4493 = vadd.f32 0.0, %v4492
        %v4494 = vpop.f32.mrb[0].mxu0
        %v4495 = vpop.f32.mrb[0].mxu0
        %v4496 = vadd.f32 0.0, %v4495
        %v4497 = vpop.f32.mrb[0].mxu0
        %4498 = vmatprep.mubr.bf16.mxu0 0
        %4499 = vmatmul.mubr.bf16.gmra.mrb[0].mxu0 %v4438
        %v4500 = vpop.f32.mrb[0].mxu0
        %v4501 = vadd.f32 0.0, %v4500
        %v4502 = vpop.f32.mrb[0].mxu0
        %v4503 = vpop.f32.mrb[0].mxu0
        %v4504 = vadd.f32 0.0, %v4503
        %v4505 = vpop.f32.mrb[0].mxu0
        %4506 = vmatprep.mubr.bf16.mxu0 0
        %4507 = vmatmul.mubr.bf16.gmra.mrb[0].mxu0 %v4441
        %v4508 = vpop.f32.mrb[0].mxu0
        %v4509 = vadd.f32 0.0, %v4508
        %v4510 = vpop.f32.mrb[0].mxu0
        %v4511 = vpop.f32.mrb[0].mxu0
        %v4512 = vadd.f32 0.0, %v4511
        %v4513 = vpop.f32.mrb[0].mxu0
        %4514 = vmatprep.mubr.bf16.mxu0 0
        %4515 = vmatmul.mubr.bf16.gmra.mrb[0].mxu0 %v4444
        %v4516 = vpop.f32.mrb[0].mxu0
        %v4517 = vadd.f32 0.0, %v4516
        %v4518 = vpop.f32.mrb[0].mxu0
        %v4519 = vpop.f32.mrb[0].mxu0
        %v4520 = vadd.f32 0.0, %v4519
        %v4521 = vpop.f32.mrb[0].mxu0
        %4522 = vdwg.mxu0
        %v4523 = vsel %vm3664, %v4493, -inf
        %4524 = vmax.xlane.f32.xlu0 %v4523
        %v4525 = vpop.xlane.xlu0 %4524
        %v4526 = vsel %vm3664, %v4496, -inf
        %4527 = vmax.xlane.f32.xlu0 %v4526
        %v4528 = vpop.xlane.xlu0 %4527
        %v4529 = vsel %vm3664, %v4501, -inf
        %4530 = vmax.xlane.f32.xlu0 %v4529
        %v4531 = vpop.xlane.xlu0 %4530
        %v4532 = vsel %vm3664, %v4504, -inf
        %4533 = vmax.xlane.f32.xlu0 %v4532
        %v4534 = vpop.xlane.xlu0 %4533
        %v4535 = vsel %vm3664, %v4509, -inf
        %4536 = vmax.xlane.f32.xlu0 %v4535
        %v4537 = vpop.xlane.xlu0 %4536
        %v4538 = vsel %vm3664, %v4512, -inf
        %4539 = vmax.xlane.f32.xlu0 %v4538
        %v4540 = vpop.xlane.xlu0 %4539
        %v4541 = vsel %vm3664, %v4517, -inf
        %4542 = vmax.xlane.f32.xlu0 %v4541
        %v4543 = vpop.xlane.xlu0 %4542
        %v4544 = vsel %vm3664, %v4520, -inf
        %4545 = vmax.xlane.f32.xlu0 %v4544
        %v4546 = vpop.xlane.xlu0 %4545
        %v4547 = vsub.f32 %v4493, %v4525
        %v4548 = vsub.f32 %v4496, %v4528
        %v4549 = vsub.f32 %v4501, %v4531
        %v4550 = vsub.f32 %v4504, %v4534
        %v4551 = vsub.f32 %v4509, %v4537
        %v4552 = vsub.f32 %v4512, %v4540
        %v4553 = vsub.f32 %v4517, %v4543
        %v4554 = vsub.f32 %v4520, %v4546
        %v4555 = vmul.f32 %v4547, 1.442695
        %v4556 = vpow.pop %v4555
        %v4557 = vmul.f32 %v4548, 1.442695
        %v4558 = vpow.pop %v4557
        %v4559 = vmul.f32 %v4549, 1.442695
        %v4560 = vpow.pop %v4559
        %v4561 = vmul.f32 %v4550, 1.442695
        %v4562 = vpow.pop %v4561
        %v4563 = vmul.f32 %v4551, 1.442695
        %v4564 = vpow.pop %v4563
        %v4565 = vmul.f32 %v4552, 1.442695
        %v4566 = vpow.pop %v4565
        %v4567 = vmul.f32 %v4553, 1.442695
        %v4568 = vpow.pop %v4567
        %v4569 = vmul.f32 %v4554, 1.442695
        %v4570 = vpow.pop %v4569
        %v4571 = vsel %vm3664, %v4556, 0.0
        %4572 = vadd.xlane.f32.xlu0 %v4571
        %v4573 = vpop.xlane.xlu0 %4572
        %v4574 = vsel %vm3664, %v4558, 0.0
        %4575 = vadd.xlane.f32.xlu0 %v4574
        %v4576 = vpop.xlane.xlu0 %4575
        %v4577 = vsel %vm3664, %v4560, 0.0
        %4578 = vadd.xlane.f32.xlu0 %v4577
        %v4579 = vpop.xlane.xlu0 %4578
        %v4580 = vsel %vm3664, %v4562, 0.0
        %4581 = vadd.xlane.f32.xlu0 %v4580
        %v4582 = vpop.xlane.xlu0 %4581
        %v4583 = vsel %vm3664, %v4564, 0.0
        %4584 = vadd.xlane.f32.xlu0 %v4583
        %v4585 = vpop.xlane.xlu0 %4584
        %v4586 = vsel %vm3664, %v4566, 0.0
        %4587 = vadd.xlane.f32.xlu0 %v4586
        %v4588 = vpop.xlane.xlu0 %4587
        %v4589 = vsel %vm3664, %v4568, 0.0
        %4590 = vadd.xlane.f32.xlu0 %v4589
        %v4591 = vpop.xlane.xlu0 %4590
        %v4592 = vsel %vm3664, %v4570, 0.0
        %4593 = vadd.xlane.f32.xlu0 %v4592
        %v4594 = vpop.xlane.xlu0 %4593
        %v4595 = vrcp.pop %v4573
        %v4596 = vrcp.pop %v4576
        %v4597 = vrcp.pop %v4579
        %v4598 = vrcp.pop %v4582
        %v4599 = vrcp.pop %v4585
        %v4600 = vrcp.pop %v4588
        %v4601 = vrcp.pop %v4591
        %v4602 = vrcp.pop %v4594
        %v4603 = vmul.f32 %v4556, %v4595
        %v4604 = vmul.f32 %v4558, %v4596
        %v4605 = vmul.f32 %v4560, %v4597
        %v4606 = vmul.f32 %v4562, %v4598
        %v4607 = vmul.f32 %v4564, %v4599
        %v4608 = vmul.f32 %v4566, %v4600
        %v4609 = vmul.f32 %v4568, %v4601
        %v4610 = vmul.f32 %v4570, %v4602
        %v4611 = vpack.c.bf16 %v4604, %v4603
        %v4612 = vpack.c.bf16 %v4606, %v4605
        %v4613 = vpack.c.bf16 %v4608, %v4607
        %v4614 = vpack.c.bf16 %v4610, %v4609
        %4615 = vrot.lane.b32.xlu0 %v3570, 32
        %v4616 = vpop.permute.xlu0 %4615
        %4617 = vrot.lane.b32.xlu0 %v3571, 32
        %v4618 = vpop.permute.xlu0 %4617
        %4619 = vrot.lane.b32.xlu0 %v3572, 32
        %v4620 = vpop.permute.xlu0 %4619
        %4621 = vrot.lane.b32.xlu0 %v3573, 32
        %v4622 = vpop.permute.xlu0 %4621
        %v4628 = vsel %vm3664, %v4611, 0
        %v4631 = vsel %vm3664, %v4612, 0
        %v4634 = vsel %vm3664, %v4613, 0
        %v4637 = vsel %vm3664, %v4614, 0
        %4639 = vmatprep.subr.bf16.mxu0 0
        %4640 = vmatpush1.bf16.msra.mxu0 %v4616
        %4641 = vmatprep.subr.bf16.mxu0 0
        %4642 = vmatpush1.bf16.msra.mxu0 %v4618
        %4643 = vmatprep.subr.bf16.mxu0 0
        %4644 = vmatpush1.bf16.msra.mxu0 %v4620
        %4645 = vmatprep.subr.bf16.mxu0 0
        %4646 = vmatpush1.bf16.msra.mxu0 %v4622
        %4647 = vmatprep.subr.bf16.mxu0 0
        %4648 = vmatpush1.bf16.msra.mxu0 0
        %4649 = vmatprep.subr.bf16.mxu0 0
        %4650 = vmatpush1.bf16.msra.mxu0 0
        %4651 = vmatprep.subr.bf16.mxu0 0
        %4652 = vmatpush1.bf16.msra.mxu0 0
        %4653 = vmatprep.subr.bf16.mxu0 0
        %4654 = vmatpush1.bf16.msra.mxu0 0
        %4655 = vmatprep.subr.bf16.mxu0 0
        %4656 = vmatpush1.bf16.msra.mxu0 0
        %4657 = vmatprep.subr.bf16.mxu0 0
        %4658 = vmatpush1.bf16.msra.mxu0 0
        %4659 = vmatprep.subr.bf16.mxu0 0
        %4660 = vmatpush1.bf16.msra.mxu0 0
        %4661 = vmatprep.subr.bf16.mxu0 0
        %4662 = vmatpush1.bf16.msra.mxu0 0
        %4663 = vmatprep.subr.bf16.mxu0 0
        %4664 = vmatpush1.bf16.msra.mxu0 0
        %4665 = vmatprep.subr.bf16.mxu0 0
        %4666 = vmatpush1.bf16.msra.mxu0 0
        %4667 = vmatprep.subr.bf16.mxu0 0
        %4668 = vmatpush1.bf16.msra.mxu0 0
        %4669 = vmatprep.subr.bf16.mxu0 0
        %4670 = vmatpush1.bf16.msra.mxu0 0
        %4671 = vmatprep.mubr.bf16.mxu0 0
        %4672 = vmatmul.mubr.bf16.gmra.mrb[0].mxu0 %v4628
        %v4673 = vpop.f32.mrb[0].mxu0
        %v4674 = vadd.f32 0.0, %v4673
        %v4675 = vpop.f32.mrb[0].mxu0
        %v4676 = vpop.f32.mrb[0].mxu0
        %v4677 = vadd.f32 0.0, %v4676
        %v4678 = vpop.f32.mrb[0].mxu0
        %4679 = vmatprep.mubr.bf16.mxu0 0
        %4680 = vmatmul.mubr.bf16.gmra.mrb[0].mxu0 %v4631
        %v4681 = vpop.f32.mrb[0].mxu0
        %v4682 = vadd.f32 0.0, %v4681
        %v4683 = vpop.f32.mrb[0].mxu0
        %v4684 = vpop.f32.mrb[0].mxu0
        %v4685 = vadd.f32 0.0, %v4684
        %v4686 = vpop.f32.mrb[0].mxu0
        %4687 = vmatprep.mubr.bf16.mxu0 0
        %4688 = vmatmul.mubr.bf16.gmra.mrb[0].mxu0 %v4634
        %v4689 = vpop.f32.mrb[0].mxu0
        %v4690 = vadd.f32 0.0, %v4689
        %v4691 = vpop.f32.mrb[0].mxu0
        %v4692 = vpop.f32.mrb[0].mxu0
        %v4693 = vadd.f32 0.0, %v4692
        %v4694 = vpop.f32.mrb[0].mxu0
        %4695 = vmatprep.mubr.bf16.mxu0 0
        %4696 = vmatmul.mubr.bf16.gmra.mrb[0].mxu0 %v4637
        %v4697 = vpop.f32.mrb[0].mxu0
        %v4698 = vadd.f32 0.0, %v4697
        %v4699 = vpop.f32.mrb[0].mxu0
        %v4700 = vpop.f32.mrb[0].mxu0
        %v4701 = vadd.f32 0.0, %v4700
        %v4702 = vpop.f32.mrb[0].mxu0
        %4703 = vdwg.mxu0
        %4712 = vrot.lane.b32.xlu0 %v4102, 32
        %v4713 = vpop.permute.xlu0 %4712
        %4714 = vrot.lane.b32.xlu0 %v4105, 32
        %v4715 = vpop.permute.xlu0 %4714
        %4716 = vrot.lane.b32.xlu0 %v4110, 32
        %v4717 = vpop.permute.xlu0 %4716
        %4718 = vrot.lane.b32.xlu0 %v4113, 32
        %v4719 = vpop.permute.xlu0 %4718
        %4720 = vrot.lane.b32.xlu0 %v4118, 32
        %v4721 = vpop.permute.xlu0 %4720
        %4722 = vrot.lane.b32.xlu0 %v4121, 32
        %v4723 = vpop.permute.xlu0 %4722
        %4724 = vrot.lane.b32.xlu0 %v4126, 32
        %v4725 = vpop.permute.xlu0 %4724
        %4726 = vrot.lane.b32.xlu0 %v4129, 32
        %v4727 = vpop.permute.xlu0 %4726
        %4744 = vrot.lane.b32.xlu0 %v4388, 64
        %v4745 = vpop.permute.xlu0 %4744
        %4746 = vrot.lane.b32.xlu0 %v4391, 64
        %v4747 = vpop.permute.xlu0 %4746
        %4748 = vrot.lane.b32.xlu0 %v4396, 64
        %v4749 = vpop.permute.xlu0 %4748
        %4750 = vrot.lane.b32.xlu0 %v4399, 64
        %v4751 = vpop.permute.xlu0 %4750
        %4752 = vrot.lane.b32.xlu0 %v4404, 64
        %v4753 = vpop.permute.xlu0 %4752
        %4754 = vrot.lane.b32.xlu0 %v4407, 64
        %v4755 = vpop.permute.xlu0 %4754
        %4756 = vrot.lane.b32.xlu0 %v4412, 64
        %v4757 = vpop.permute.xlu0 %4756
        %4758 = vrot.lane.b32.xlu0 %v4415, 64
        %v4759 = vpop.permute.xlu0 %4758
        %4776 = vrot.lane.b32.xlu0 %v4674, 96
        %v4777 = vpop.permute.xlu0 %4776
        %4778 = vrot.lane.b32.xlu0 %v4677, 96
        %v4779 = vpop.permute.xlu0 %4778
        %4780 = vrot.lane.b32.xlu0 %v4682, 96
        %v4781 = vpop.permute.xlu0 %4780
        %4782 = vrot.lane.b32.xlu0 %v4685, 96
        %v4783 = vpop.permute.xlu0 %4782
        %4784 = vrot.lane.b32.xlu0 %v4690, 96
        %v4785 = vpop.permute.xlu0 %4784
        %4786 = vrot.lane.b32.xlu0 %v4693, 96
        %v4787 = vpop.permute.xlu0 %4786
        %4788 = vrot.lane.b32.xlu0 %v4698, 96
        %v4789 = vpop.permute.xlu0 %4788
        %4790 = vrot.lane.b32.xlu0 %v4701, 96
        %v4791 = vpop.permute.xlu0 %4790
        %v4800 = vsel %vm3574, %v3804, %v4713
        %v4801 = vsel %vm3574, %v3807, %v4715
        %v4802 = vsel %vm3574, %v3812, %v4717
        %v4803 = vsel %vm3574, %v3815, %v4719
        %v4804 = vsel %vm3574, %v3820, %v4721
        %v4805 = vsel %vm3574, %v3823, %v4723
        %v4806 = vsel %vm3574, %v3828, %v4725
        %v4807 = vsel %vm3574, %v3831, %v4727
        %v4808 = vsel %vm3664, %v4800, %v4745
        %v4809 = vsel %vm3664, %v4801, %v4747
        %v4810 = vsel %vm3664, %v4802, %v4749
        %v4811 = vsel %vm3664, %v4803, %v4751
        %v4812 = vsel %vm3664, %v4804, %v4753
        %v4813 = vsel %vm3664, %v4805, %v4755
        %v4814 = vsel %vm3664, %v4806, %v4757
        %v4815 = vsel %vm3664, %v4807, %v4759
        %vm4816 = vcmask 785408
        %v4817 = vsel %vm4816, %v4808, %v4777
        %v4818 = vsel %vm4816, %v4809, %v4779
        %v4819 = vsel %vm4816, %v4810, %v4781
        %v4820 = vsel %vm4816, %v4811, %v4783
        %v4821 = vsel %vm4816, %v4812, %v4785
        %v4822 = vsel %vm4816, %v4813, %v4787
        %v4823 = vsel %vm4816, %v4814, %v4789
        %v4824 = vsel %vm4816, %v4815, %v4791
        %v4825 = vpack.c.bf16 %v4818, %v4817
        %v4826 = vpack.c.bf16 %v4820, %v4819
        %v4827 = vpack.c.bf16 %v4822, %v4821
        %v4828 = vpack.c.bf16 %v4824, %v4823
        %v4829 = vld [vmem:[%s37] sm:$0xf]
        %v4830 = vld [vmem:[%s37 + $0x4] sm:$0xf]
        %v4831 = vld [vmem:[%s37 + $0x8] sm:$0xf]
        %v4832 = vld [vmem:[%s37 + $0xc] sm:$0xf]
        %v4833 = vld [vmem:[%s37 + $0x10] sm:$0xf]
        %v4834 = vld [vmem:[%s37 + $0x14] sm:$0xf]
        %v4835 = vld [vmem:[%s37 + $0x18] sm:$0xf]
        %v4836 = vld [vmem:[%s37 + $0x1c] sm:$0xf]
        %v4837 = vld [vmem:[%s37 + $0x20] sm:$0xf]
        %v4838 = vld [vmem:[%s37 + $0x24] sm:$0xf]
        %v4839 = vld [vmem:[%s37 + $0x28] sm:$0xf]
        %v4840 = vld [vmem:[%s37 + $0x2c] sm:$0xf]
        %v4841 = vld [vmem:[%s37 + $0x30] sm:$0xf]
        %v4842 = vld [vmem:[%s37 + $0x34] sm:$0xf]
        %v4843 = vld [vmem:[%s37 + $0x38] sm:$0xf]
        %v4844 = vld [vmem:[%s37 + $0x3c] sm:$0xf]
        %v4846 = vlaneseq
        %v4847 = vshrl.u32 %v4846, 7
        %v4848 = vsub.s32 0, %v4847
        %v4849 = vrot.slane %v3088, %v4848
        %v4867 = vunpack.c.l.b16 %v4829
        %v4868 = vunpack.c.l.b16 %v4830
        %v4869 = vunpack.c.l.b16 %v4831
        %v4870 = vunpack.c.l.b16 %v4832
        %v4871 = vunpack.c.l.b16 %v4833
        %v4872 = vunpack.c.l.b16 %v4834
        %v4873 = vunpack.c.l.b16 %v4835
        %v4874 = vunpack.c.l.b16 %v4836
        %v4875 = vunpack.c.l.b16 %v4837
        %v4876 = vunpack.c.l.b16 %v4838
        %v4877 = vunpack.c.l.b16 %v4839
        %v4878 = vunpack.c.l.b16 %v4840
        %v4879 = vunpack.c.l.b16 %v4841
        %v4880 = vunpack.c.l.b16 %v4842
        %v4881 = vunpack.c.l.b16 %v4843
        %v4882 = vunpack.c.l.b16 %v4844
        %v4883 = vpack.c.b16 %v4868, %v4867
        %v4884 = vpack.c.b16 %v4870, %v4869
        %v4885 = vpack.c.b16 %v4872, %v4871
        %v4886 = vpack.c.b16 %v4874, %v4873
        %v4887 = vpack.c.b16 %v4876, %v4875
        %v4888 = vpack.c.b16 %v4878, %v4877
        %v4889 = vpack.c.b16 %v4880, %v4879
        %v4890 = vpack.c.b16 %v4882, %v4881
        %4899 = vmatprep.subr.bf16.mxu0 0
        %4900 = vmatpush1.bf16.msra.mxu0 %v4883
        %4901 = vmatprep.subr.bf16.mxu0 0
        %4902 = vmatpush1.bf16.msra.mxu0 %v4884
        %4903 = vmatprep.subr.bf16.mxu0 0
        %4904 = vmatpush1.bf16.msra.mxu0 %v4885
        %4905 = vmatprep.subr.bf16.mxu0 0
        %4906 = vmatpush1.bf16.msra.mxu0 %v4886
        %4907 = vmatprep.subr.bf16.mxu0 0
        %4908 = vmatpush1.bf16.msra.mxu0 %v4887
        %4909 = vmatprep.subr.bf16.mxu0 0
        %4910 = vmatpush1.bf16.msra.mxu0 %v4888
        %4911 = vmatprep.subr.bf16.mxu0 0
        %4912 = vmatpush1.bf16.msra.mxu0 %v4889
        %4913 = vmatprep.subr.bf16.mxu0 0
        %4914 = vmatpush1.bf16.msra.mxu0 %v4890
        %4915 = vmatprep.subr.bf16.mxu0 0
        %4916 = vmatpush1.bf16.msra.mxu0 0
        %4917 = vmatprep.subr.bf16.mxu0 0
        %4918 = vmatpush1.bf16.msra.mxu0 0
        %4919 = vmatprep.subr.bf16.mxu0 0
        %4920 = vmatpush1.bf16.msra.mxu0 0
        %4921 = vmatprep.subr.bf16.mxu0 0
        %4922 = vmatpush1.bf16.msra.mxu0 0
        %4923 = vmatprep.subr.bf16.mxu0 0
        %4924 = vmatpush1.bf16.msra.mxu0 0
        %4925 = vmatprep.subr.bf16.mxu0 0
        %4926 = vmatpush1.bf16.msra.mxu0 0
        %4927 = vmatprep.subr.bf16.mxu0 0
        %4928 = vmatpush1.bf16.msra.mxu0 0
        %4929 = vmatprep.subr.bf16.mxu0 0
        %4930 = vmatpush1.bf16.msra.mxu0 0
        %4931 = vmatprep.mubr.bf16.mxu0 0
        %4932 = vmatmul.mubr.bf16.gmra.mrb[0].mxu0 %v4825
        %v4933 = vpop.f32.mrb[0].mxu0
        %v4934 = vadd.f32 %v4849, %v4933
        %v4935 = vpop.f32.mrb[0].mxu0
        %v4936 = vpop.f32.mrb[0].mxu0
        %v4937 = vadd.f32 %v4849, %v4936
        %v4938 = vpop.f32.mrb[0].mxu0
        %4939 = vmatprep.mubr.bf16.mxu0 0
        %4940 = vmatmul.mubr.bf16.gmra.mrb[0].mxu0 %v4826
        %v4941 = vpop.f32.mrb[0].mxu0
        %v4942 = vadd.f32 %v4849, %v4941
        %v4943 = vpop.f32.mrb[0].mxu0
        %v4944 = vpop.f32.mrb[0].mxu0
        %v4945 = vadd.f32 %v4849, %v4944
        %v4946 = vpop.f32.mrb[0].mxu0
        %4947 = vmatprep.mubr.bf16.mxu0 0
        %4948 = vmatmul.mubr.bf16.gmra.mrb[0].mxu0 %v4827
        %v4949 = vpop.f32.mrb[0].mxu0
        %v4950 = vadd.f32 %v4849, %v4949
        %v4951 = vpop.f32.mrb[0].mxu0
        %v4952 = vpop.f32.mrb[0].mxu0
        %v4953 = vadd.f32 %v4849, %v4952
        %v4954 = vpop.f32.mrb[0].mxu0
        %4955 = vmatprep.mubr.bf16.mxu0 0
        %4956 = vmatmul.mubr.bf16.gmra.mrb[0].mxu0 %v4828
        %v4957 = vpop.f32.mrb[0].mxu0
        %v4958 = vadd.f32 %v4849, %v4957
        %v4959 = vpop.f32.mrb[0].mxu0
        %v4960 = vpop.f32.mrb[0].mxu0
        %v4961 = vadd.f32 %v4849, %v4960
        %v4962 = vpop.f32.mrb[0].mxu0
        %4963 = vdwg.mxu0
        %v4964 = vadd.f32 %v3078, %v4934
        %v4965 = vadd.f32 %v3079, %v4937
        %v4966 = vadd.f32 %v3080, %v4942
        %v4967 = vadd.f32 %v3081, %v4945
        %v4968 = vadd.f32 %v3082, %v4950
        %v4969 = vadd.f32 %v3083, %v4953
        %v4970 = vadd.f32 %v3084, %v4958
        %v4971 = vadd.f32 %v3085, %v4961
        %v4972 = vld [vmem:[%s43] sm:$0x1]
        %v4973 = vld [vmem:[%s45] sm:$0x1]
        %v4974 = vld [vmem:[%s47] sm:$0x1]
        %v4975 = vld [vmem:[%s55] sm:$0x1]
        %v4976 = vld [vmem:[%s57] sm:$0x1]
        %v4977 = vld [vmem:[%s59] sm:$0x1]
        %4978 = vst.msk [vmem:[%s1201 + $0x1] sm:$0xff] %vm1000, %v4964
        %4979 = vst.msk [vmem:[%s1201 + $0x11] sm:$0xff] %vm1000, %v4965
        %4980 = vst.msk [vmem:[%s1201 + $0x21] sm:$0xff] %vm1000, %v4966
        %4981 = vst.msk [vmem:[%s1201 + $0x31] sm:$0xff] %vm1000, %v4967
        %4982 = vst.msk [vmem:[%s1201 + $0x41] sm:$0xff] %vm1000, %v4968
        %4983 = vst.msk [vmem:[%s1201 + $0x51] sm:$0xff] %vm1000, %v4969
        %4984 = vst.msk [vmem:[%s1201 + $0x61] sm:$0xff] %vm1000, %v4970
        %4985 = vst.msk [vmem:[%s1201 + $0x71] sm:$0xff] %vm1000, %v4971
        %v4986 = vld [vmem:[#allocation2] sm:$0xff]
        %v4987 = vld [vmem:[#allocation2 + $0x10] sm:$0xff]
        %v4988 = vld [vmem:[#allocation2 + $0x20] sm:$0xff]
        %v4989 = vld [vmem:[#allocation2 + $0x30] sm:$0xff]
        %v4990 = vld [vmem:[#allocation2 + $0x40] sm:$0xff]
        %v4991 = vld [vmem:[#allocation2 + $0x50] sm:$0xff]
        %v4992 = vld [vmem:[#allocation2 + $0x60] sm:$0xff]
        %v4993 = vld [vmem:[#allocation2 + $0x70] sm:$0xff]
        %v4994 = vld [vmem:[#allocation2 + $0x1] sm:$0xff]
        %v4995 = vld [vmem:[#allocation2 + $0x11] sm:$0xff]
        %v4996 = vld [vmem:[#allocation2 + $0x21] sm:$0xff]
        %v4997 = vld [vmem:[#allocation2 + $0x31] sm:$0xff]
        %v4998 = vld [vmem:[#allocation2 + $0x41] sm:$0xff]
        %v4999 = vld [vmem:[#allocation2 + $0x51] sm:$0xff]
        %v5000 = vld [vmem:[#allocation2 + $0x61] sm:$0xff]
        %v5001 = vld [vmem:[#allocation2 + $0x71] sm:$0xff]
        %v5002 = vld [vmem:[#allocation2 + $0x2] sm:$0xff]
        %v5003 = vld [vmem:[#allocation2 + $0x12] sm:$0xff]
        %v5004 = vld [vmem:[#allocation2 + $0x22] sm:$0xff]
        %v5005 = vld [vmem:[#allocation2 + $0x32] sm:$0xff]
        %v5006 = vld [vmem:[#allocation2 + $0x42] sm:$0xff]
        %v5007 = vld [vmem:[#allocation2 + $0x52] sm:$0xff]
        %v5008 = vld [vmem:[#allocation2 + $0x62] sm:$0xff]
        %v5009 = vld [vmem:[#allocation2 + $0x72] sm:$0xff]
        %5018 = vrot.lane.b32.xlu0 %v4994, 8
        %v5019 = vpop.permute.xlu0 %5018
        %5020 = vrot.lane.b32.xlu0 %v4995, 8
        %v5021 = vpop.permute.xlu0 %5020
        %5022 = vrot.lane.b32.xlu0 %v4996, 8
        %v5023 = vpop.permute.xlu0 %5022
        %5024 = vrot.lane.b32.xlu0 %v4997, 8
        %v5025 = vpop.permute.xlu0 %5024
        %5026 = vrot.lane.b32.xlu0 %v4998, 8
        %v5027 = vpop.permute.xlu0 %5026
        %5028 = vrot.lane.b32.xlu0 %v4999, 8
        %v5029 = vpop.permute.xlu0 %5028
        %5030 = vrot.lane.b32.xlu0 %v5000, 8
        %v5031 = vpop.permute.xlu0 %5030
        %5032 = vrot.lane.b32.xlu0 %v5001, 8
        %v5033 = vpop.permute.xlu0 %5032
        %5050 = vrot.lane.b32.xlu0 %v5002, 16
        %v5051 = vpop.permute.xlu0 %5050
        %5052 = vrot.lane.b32.xlu0 %v5003, 16
        %v5053 = vpop.permute.xlu0 %5052
        %5054 = vrot.lane.b32.xlu0 %v5004, 16
        %v5055 = vpop.permute.xlu0 %5054
        %5056 = vrot.lane.b32.xlu0 %v5005, 16
        %v5057 = vpop.permute.xlu0 %5056
        %5058 = vrot.lane.b32.xlu0 %v5006, 16
        %v5059 = vpop.permute.xlu0 %5058
        %5060 = vrot.lane.b32.xlu0 %v5007, 16
        %v5061 = vpop.permute.xlu0 %5060
        %5062 = vrot.lane.b32.xlu0 %v5008, 16
        %v5063 = vpop.permute.xlu0 %5062
        %5064 = vrot.lane.b32.xlu0 %v5009, 16
        %v5065 = vpop.permute.xlu0 %5064
        %v5074 = vsel %vm1000, %v4986, %v5019
        %v5075 = vsel %vm1000, %v4987, %v5021
        %v5076 = vsel %vm1000, %v4988, %v5023
        %v5077 = vsel %vm1000, %v4989, %v5025
        %v5078 = vsel %vm1000, %v4990, %v5027
        %v5079 = vsel %vm1000, %v4991, %v5029
        %v5080 = vsel %vm1000, %v4992, %v5031
        %v5081 = vsel %vm1000, %v4993, %v5033
        %v5082 = vsel %vm1048, %v5074, %v5051
        %v5083 = vsel %vm1048, %v5075, %v5053
        %v5084 = vsel %vm1048, %v5076, %v5055
        %v5085 = vsel %vm1048, %v5077, %v5057
        %v5086 = vsel %vm1048, %v5078, %v5059
        %v5087 = vsel %vm1048, %v5079, %v5061
        %v5088 = vsel %vm1048, %v5080, %v5063
        %v5089 = vsel %vm1048, %v5081, %v5065
        %v5090 = vpack.c.bf16 %v5083, %v5082
        %v5091 = vpack.c.bf16 %v5085, %v5084
        %v5092 = vpack.c.bf16 %v5087, %v5086
        %v5093 = vpack.c.bf16 %v5089, %v5088
        %v5094 = vld [vmem:[%s41] sm:$0xf]
        %v5095 = vld [vmem:[%s41 + $0x4] sm:$0xf]
        %v5096 = vld [vmem:[%s41 + $0x8] sm:$0xf]
        %v5097 = vld [vmem:[%s1201] sm:$0xff]
        %v5098 = vld [vmem:[%s1201 + $0x10] sm:$0xff]
        %v5099 = vld [vmem:[%s1201 + $0x20] sm:$0xff]
        %v5100 = vld [vmem:[%s1201 + $0x30] sm:$0xff]
        %v5101 = vld [vmem:[%s1201 + $0x40] sm:$0xff]
        %v5102 = vld [vmem:[%s1201 + $0x50] sm:$0xff]
        %v5103 = vld [vmem:[%s1201 + $0x60] sm:$0xff]
        %v5104 = vld [vmem:[%s1201 + $0x70] sm:$0xff]
        %v5105 = vld [vmem:[%s1201 + $0x1] sm:$0xff]
        %v5106 = vld [vmem:[%s1201 + $0x11] sm:$0xff]
        %v5107 = vld [vmem:[%s1201 + $0x21] sm:$0xff]
        %v5108 = vld [vmem:[%s1201 + $0x31] sm:$0xff]
        %v5109 = vld [vmem:[%s1201 + $0x41] sm:$0xff]
        %v5110 = vld [vmem:[%s1201 + $0x51] sm:$0xff]
        %v5111 = vld [vmem:[%s1201 + $0x61] sm:$0xff]
        %v5112 = vld [vmem:[%s1201 + $0x71] sm:$0xff]
        %v5113 = vld [vmem:[%s1201 + $0x2] sm:$0xff]
        %v5114 = vld [vmem:[%s1201 + $0x12] sm:$0xff]
        %v5115 = vld [vmem:[%s1201 + $0x22] sm:$0xff]
        %v5116 = vld [vmem:[%s1201 + $0x32] sm:$0xff]
        %v5117 = vld [vmem:[%s1201 + $0x42] sm:$0xff]
        %v5118 = vld [vmem:[%s1201 + $0x52] sm:$0xff]
        %v5119 = vld [vmem:[%s1201 + $0x62] sm:$0xff]
        %v5120 = vld [vmem:[%s1201 + $0x72] sm:$0xff]
        %5129 = vrot.lane.b32.xlu0 %v5105, 8
        %v5130 = vpop.permute.xlu0 %5129
        %5131 = vrot.lane.b32.xlu0 %v5106, 8
        %v5132 = vpop.permute.xlu0 %5131
        %5133 = vrot.lane.b32.xlu0 %v5107, 8
        %v5134 = vpop.permute.xlu0 %5133
        %5135 = vrot.lane.b32.xlu0 %v5108, 8
        %v5136 = vpop.permute.xlu0 %5135
        %5137 = vrot.lane.b32.xlu0 %v5109, 8
        %v5138 = vpop.permute.xlu0 %5137
        %5139 = vrot.lane.b32.xlu0 %v5110, 8
        %v5140 = vpop.permute.xlu0 %5139
        %5141 = vrot.lane.b32.xlu0 %v5111, 8
        %v5142 = vpop.permute.xlu0 %5141
        %5143 = vrot.lane.b32.xlu0 %v5112, 8
        %v5144 = vpop.permute.xlu0 %5143
        %5161 = vrot.lane.b32.xlu0 %v5113, 16
        %v5162 = vpop.permute.xlu0 %5161
        %5163 = vrot.lane.b32.xlu0 %v5114, 16
        %v5164 = vpop.permute.xlu0 %5163
        %5165 = vrot.lane.b32.xlu0 %v5115, 16
        %v5166 = vpop.permute.xlu0 %5165
        %5167 = vrot.lane.b32.xlu0 %v5116, 16
        %v5168 = vpop.permute.xlu0 %5167
        %5169 = vrot.lane.b32.xlu0 %v5117, 16
        %v5170 = vpop.permute.xlu0 %5169
        %5171 = vrot.lane.b32.xlu0 %v5118, 16
        %v5172 = vpop.permute.xlu0 %5171
        %5173 = vrot.lane.b32.xlu0 %v5119, 16
        %v5174 = vpop.permute.xlu0 %5173
        %5175 = vrot.lane.b32.xlu0 %v5120, 16
        %v5176 = vpop.permute.xlu0 %5175
        %v5185 = vsel %vm1000, %v5097, %v5130
        %v5186 = vsel %vm1000, %v5098, %v5132
        %v5187 = vsel %vm1000, %v5099, %v5134
        %v5188 = vsel %vm1000, %v5100, %v5136
        %v5189 = vsel %vm1000, %v5101, %v5138
        %v5190 = vsel %vm1000, %v5102, %v5140
        %v5191 = vsel %vm1000, %v5103, %v5142
        %v5192 = vsel %vm1000, %v5104, %v5144
        %v5193 = vsel %vm1048, %v5185, %v5162
        %v5194 = vsel %vm1048, %v5186, %v5164
        %v5195 = vsel %vm1048, %v5187, %v5166
        %v5196 = vsel %vm1048, %v5188, %v5168
        %v5197 = vsel %vm1048, %v5189, %v5170
        %v5198 = vsel %vm1048, %v5190, %v5172
        %v5199 = vsel %vm1048, %v5191, %v5174
        %v5200 = vsel %vm1048, %v5192, %v5176
        %v5201 = vpack.c.bf16 %v5194, %v5193
        %v5202 = vpack.c.bf16 %v5196, %v5195
        %v5203 = vpack.c.bf16 %v5198, %v5197
        %v5204 = vpack.c.bf16 %v5200, %v5199
        %s5205 = scalar_lea.vmem %s41, 12
        %v5206 = vld [vmem:[%s5205] sm:$0xf]
        %v5207 = vld [vmem:[%s5205 + $0x4] sm:$0xf]
        %v5208 = vld [vmem:[%s5205 + $0x8] sm:$0xf]
        %v5212 = vunpack.c.l.b16 %v5206
        %v5213 = vunpack.c.l.b16 %v5207
        %v5214 = vunpack.c.l.b16 %v5208
        %v5215 = vpack.c.b16 %v5213, %v5212
        %v5216 = vpack.c.b16 %v5214, %v5214
        %v5219 = vsel %vm1442, %v5201, 0
        %v5222 = vsel %vm1442, %v5202, 0
        %v5225 = vsel %vm1442, %v5203, 0
        %v5228 = vsel %vm1442, %v5204, 0
        %v5231 = vsel %vm1455, %v5216, 0
        %5233 = vmatprep.subr.bf16.mxu0 0
        %5234 = vmatpush1.bf16.msra.mxu0 %v5215
        %5235 = vmatprep.subr.bf16.mxu0 0
        %5236 = vmatpush1.bf16.msra.mxu0 %v5231
        %5237 = vmatprep.subr.bf16.mxu0 0
        %5238 = vmatpush1.bf16.msra.mxu0 0
        %5239 = vmatprep.subr.bf16.mxu0 0
        %5240 = vmatpush1.bf16.msra.mxu0 0
        %5241 = vmatprep.subr.bf16.mxu0 0
        %5242 = vmatpush1.bf16.msra.mxu0 0
        %5243 = vmatprep.subr.bf16.mxu0 0
        %5244 = vmatpush1.bf16.msra.mxu0 0
        %5245 = vmatprep.subr.bf16.mxu0 0
        %5246 = vmatpush1.bf16.msra.mxu0 0
        %5247 = vmatprep.subr.bf16.mxu0 0
        %5248 = vmatpush1.bf16.msra.mxu0 0
        %5249 = vmatprep.subr.bf16.mxu0 0
        %5250 = vmatpush1.bf16.msra.mxu0 0
        %5251 = vmatprep.subr.bf16.mxu0 0
        %5252 = vmatpush1.bf16.msra.mxu0 0
        %5253 = vmatprep.subr.bf16.mxu0 0
        %5254 = vmatpush1.bf16.msra.mxu0 0
        %5255 = vmatprep.subr.bf16.mxu0 0
        %5256 = vmatpush1.bf16.msra.mxu0 0
        %5257 = vmatprep.subr.bf16.mxu0 0
        %5258 = vmatpush1.bf16.msra.mxu0 0
        %5259 = vmatprep.subr.bf16.mxu0 0
        %5260 = vmatpush1.bf16.msra.mxu0 0
        %5261 = vmatprep.subr.bf16.mxu0 0
        %5262 = vmatpush1.bf16.msra.mxu0 0
        %5263 = vmatprep.subr.bf16.mxu0 0
        %5264 = vmatpush1.bf16.msra.mxu0 0
        %5265 = vmatprep.mubr.bf16.mxu0 0
        %5266 = vmatmul.mubr.bf16.gmra.mrb[0].mxu0 %v5219
        %v5267 = vpop.f32.mrb[0].mxu0
        %v5268 = vadd.f32 0.0, %v5267
        %v5269 = vpop.f32.mrb[0].mxu0
        %v5270 = vpop.f32.mrb[0].mxu0
        %v5271 = vadd.f32 0.0, %v5270
        %v5272 = vpop.f32.mrb[0].mxu0
        %5273 = vmatprep.mubr.bf16.mxu0 0
        %5274 = vmatmul.mubr.bf16.gmra.mrb[0].mxu0 %v5222
        %v5275 = vpop.f32.mrb[0].mxu0
        %v5276 = vadd.f32 0.0, %v5275
        %v5277 = vpop.f32.mrb[0].mxu0
        %v5278 = vpop.f32.mrb[0].mxu0
        %v5279 = vadd.f32 0.0, %v5278
        %v5280 = vpop.f32.mrb[0].mxu0
        %5281 = vmatprep.mubr.bf16.mxu0 0
        %5282 = vmatmul.mubr.bf16.gmra.mrb[0].mxu0 %v5225
        %v5283 = vpop.f32.mrb[0].mxu0
        %v5284 = vadd.f32 0.0, %v5283
        %v5285 = vpop.f32.mrb[0].mxu0
        %v5286 = vpop.f32.mrb[0].mxu0
        %v5287 = vadd.f32 0.0, %v5286
        %v5288 = vpop.f32.mrb[0].mxu0
        %5289 = vmatprep.mubr.bf16.mxu0 0
        %5290 = vmatmul.mubr.bf16.gmra.mrb[0].mxu0 %v5228
        %v5291 = vpop.f32.mrb[0].mxu0
        %v5292 = vadd.f32 0.0, %v5291
        %v5293 = vpop.f32.mrb[0].mxu0
        %v5294 = vpop.f32.mrb[0].mxu0
        %v5295 = vadd.f32 0.0, %v5294
        %v5296 = vpop.f32.mrb[0].mxu0
        %5297 = vdwg.mxu0
        %v5301 = vunpack.c.l.b16 %v5094
        %v5302 = vunpack.c.l.b16 %v5095
        %v5303 = vunpack.c.l.b16 %v5096
        %v5304 = vpack.c.b16 %v5302, %v5301
        %v5305 = vpack.c.b16 %v5303, %v5303
        %v5308 = vsel %vm1442, %v5090, 0
        %v5311 = vsel %vm1442, %v5091, 0
        %v5314 = vsel %vm1442, %v5092, 0
        %v5317 = vsel %vm1442, %v5093, 0
        %v5320 = vsel %vm1455, %v5305, 0
        %5322 = vmatprep.subr.bf16.mxu0 0
        %5323 = vmatpush1.bf16.msra.mxu0 %v5304
        %5324 = vmatprep.subr.bf16.mxu0 0
        %5325 = vmatpush1.bf16.msra.mxu0 %v5320
        %5326 = vmatprep.subr.bf16.mxu0 0
        %5327 = vmatpush1.bf16.msra.mxu0 0
        %5328 = vmatprep.subr.bf16.mxu0 0
        %5329 = vmatpush1.bf16.msra.mxu0 0
        %5330 = vmatprep.subr.bf16.mxu0 0
        %5331 = vmatpush1.bf16.msra.mxu0 0
        %5332 = vmatprep.subr.bf16.mxu0 0
        %5333 = vmatpush1.bf16.msra.mxu0 0
        %5334 = vmatprep.subr.bf16.mxu0 0
        %5335 = vmatpush1.bf16.msra.mxu0 0
        %5336 = vmatprep.subr.bf16.mxu0 0
        %5337 = vmatpush1.bf16.msra.mxu0 0
        %5338 = vmatprep.subr.bf16.mxu0 0
        %5339 = vmatpush1.bf16.msra.mxu0 0
        %5340 = vmatprep.subr.bf16.mxu0 0
        %5341 = vmatpush1.bf16.msra.mxu0 0
        %5342 = vmatprep.subr.bf16.mxu0 0
        %5343 = vmatpush1.bf16.msra.mxu0 0
        %5344 = vmatprep.subr.bf16.mxu0 0
        %5345 = vmatpush1.bf16.msra.mxu0 0
        %5346 = vmatprep.subr.bf16.mxu0 0
        %5347 = vmatpush1.bf16.msra.mxu0 0
        %5348 = vmatprep.subr.bf16.mxu0 0
        %5349 = vmatpush1.bf16.msra.mxu0 0
        %5350 = vmatprep.subr.bf16.mxu0 0
        %5351 = vmatpush1.bf16.msra.mxu0 0
        %5352 = vmatprep.subr.bf16.mxu0 0
        %5353 = vmatpush1.bf16.msra.mxu0 0
        %5354 = vmatprep.mubr.bf16.mxu0 0
        %5355 = vmatmul.mubr.bf16.gmra.mrb[0].mxu0 %v5308
        %v5356 = vpop.f32.mrb[0].mxu0
        %v5357 = vadd.f32 %v5268, %v5356
        %v5358 = vpop.f32.mrb[0].mxu0
        %v5359 = vpop.f32.mrb[0].mxu0
        %v5360 = vadd.f32 %v5271, %v5359
        %v5361 = vpop.f32.mrb[0].mxu0
        %5362 = vmatprep.mubr.bf16.mxu0 0
        %5363 = vmatmul.mubr.bf16.gmra.mrb[0].mxu0 %v5311
        %v5364 = vpop.f32.mrb[0].mxu0
        %v5365 = vadd.f32 %v5276, %v5364
        %v5366 = vpop.f32.mrb[0].mxu0
        %v5367 = vpop.f32.mrb[0].mxu0
        %v5368 = vadd.f32 %v5279, %v5367
        %v5369 = vpop.f32.mrb[0].mxu0
        %5370 = vmatprep.mubr.bf16.mxu0 0
        %5371 = vmatmul.mubr.bf16.gmra.mrb[0].mxu0 %v5314
        %v5372 = vpop.f32.mrb[0].mxu0
        %v5373 = vadd.f32 %v5284, %v5372
        %v5374 = vpop.f32.mrb[0].mxu0
        %v5375 = vpop.f32.mrb[0].mxu0
        %v5376 = vadd.f32 %v5287, %v5375
        %v5377 = vpop.f32.mrb[0].mxu0
        %5378 = vmatprep.mubr.bf16.mxu0 0
        %5379 = vmatmul.mubr.bf16.gmra.mrb[0].mxu0 %v5317
        %v5380 = vpop.f32.mrb[0].mxu0
        %v5381 = vadd.f32 %v5292, %v5380
        %v5382 = vpop.f32.mrb[0].mxu0
        %v5383 = vpop.f32.mrb[0].mxu0
        %v5384 = vadd.f32 %v5295, %v5383
        %v5385 = vpop.f32.mrb[0].mxu0
        %5386 = vdwg.mxu0
        %v5387 = vld [vmem:[%s1613] sm:$0xff]
        %v5388 = vld [vmem:[%s1613 + $0x10] sm:$0xff]
        %v5389 = vld [vmem:[%s1613 + $0x20] sm:$0xff]
        %v5390 = vld [vmem:[%s1613 + $0x30] sm:$0xff]
        %v5391 = vld [vmem:[%s1613 + $0x40] sm:$0xff]
        %v5392 = vld [vmem:[%s1613 + $0x50] sm:$0xff]
        %v5393 = vld [vmem:[%s1613 + $0x60] sm:$0xff]
        %v5394 = vld [vmem:[%s1613 + $0x70] sm:$0xff]
        %v5395 = vld [vmem:[%s1613 + $0x1] sm:$0xff]
        %v5396 = vld [vmem:[%s1613 + $0x11] sm:$0xff]
        %v5397 = vld [vmem:[%s1613 + $0x21] sm:$0xff]
        %v5398 = vld [vmem:[%s1613 + $0x31] sm:$0xff]
        %v5399 = vld [vmem:[%s1613 + $0x41] sm:$0xff]
        %v5400 = vld [vmem:[%s1613 + $0x51] sm:$0xff]
        %v5401 = vld [vmem:[%s1613 + $0x61] sm:$0xff]
        %v5402 = vld [vmem:[%s1613 + $0x71] sm:$0xff]
        %v5403 = vld [vmem:[%s1613 + $0x2] sm:$0xff]
        %v5404 = vld [vmem:[%s1613 + $0x12] sm:$0xff]
        %v5405 = vld [vmem:[%s1613 + $0x22] sm:$0xff]
        %v5406 = vld [vmem:[%s1613 + $0x32] sm:$0xff]
        %v5407 = vld [vmem:[%s1613 + $0x42] sm:$0xff]
        %v5408 = vld [vmem:[%s1613 + $0x52] sm:$0xff]
        %v5409 = vld [vmem:[%s1613 + $0x62] sm:$0xff]
        %v5410 = vld [vmem:[%s1613 + $0x72] sm:$0xff]
        %5419 = vrot.lane.b32.xlu0 %v5395, 8
        %v5420 = vpop.permute.xlu0 %5419
        %5421 = vrot.lane.b32.xlu0 %v5396, 8
        %v5422 = vpop.permute.xlu0 %5421
        %5423 = vrot.lane.b32.xlu0 %v5397, 8
        %v5424 = vpop.permute.xlu0 %5423
        %5425 = vrot.lane.b32.xlu0 %v5398, 8
        %v5426 = vpop.permute.xlu0 %5425
        %5427 = vrot.lane.b32.xlu0 %v5399, 8
        %v5428 = vpop.permute.xlu0 %5427
        %5429 = vrot.lane.b32.xlu0 %v5400, 8
        %v5430 = vpop.permute.xlu0 %5429
        %5431 = vrot.lane.b32.xlu0 %v5401, 8
        %v5432 = vpop.permute.xlu0 %5431
        %5433 = vrot.lane.b32.xlu0 %v5402, 8
        %v5434 = vpop.permute.xlu0 %5433
        %5451 = vrot.lane.b32.xlu0 %v5403, 16
        %v5452 = vpop.permute.xlu0 %5451
        %5453 = vrot.lane.b32.xlu0 %v5404, 16
        %v5454 = vpop.permute.xlu0 %5453
        %5455 = vrot.lane.b32.xlu0 %v5405, 16
        %v5456 = vpop.permute.xlu0 %5455
        %5457 = vrot.lane.b32.xlu0 %v5406, 16
        %v5458 = vpop.permute.xlu0 %5457
        %5459 = vrot.lane.b32.xlu0 %v5407, 16
        %v5460 = vpop.permute.xlu0 %5459
        %5461 = vrot.lane.b32.xlu0 %v5408, 16
        %v5462 = vpop.permute.xlu0 %5461
        %5463 = vrot.lane.b32.xlu0 %v5409, 16
        %v5464 = vpop.permute.xlu0 %5463
        %5465 = vrot.lane.b32.xlu0 %v5410, 16
        %v5466 = vpop.permute.xlu0 %5465
        %v5475 = vsel %vm1000, %v5387, %v5420
        %v5476 = vsel %vm1000, %v5388, %v5422
        %v5477 = vsel %vm1000, %v5389, %v5424
        %v5478 = vsel %vm1000, %v5390, %v5426
        %v5479 = vsel %vm1000, %v5391, %v5428
        %v5480 = vsel %vm1000, %v5392, %v5430
        %v5481 = vsel %vm1000, %v5393, %v5432
        %v5482 = vsel %vm1000, %v5394, %v5434
        %v5483 = vsel %vm1048, %v5475, %v5452
        %v5484 = vsel %vm1048, %v5476, %v5454
        %v5485 = vsel %vm1048, %v5477, %v5456
        %v5486 = vsel %vm1048, %v5478, %v5458
        %v5487 = vsel %vm1048, %v5479, %v5460
        %v5488 = vsel %vm1048, %v5480, %v5462
        %v5489 = vsel %vm1048, %v5481, %v5464
        %v5490 = vsel %vm1048, %v5482, %v5466
        %v5491 = vpack.c.bf16 %v5484, %v5483
        %v5492 = vpack.c.bf16 %v5486, %v5485
        %v5493 = vpack.c.bf16 %v5488, %v5487
        %v5494 = vpack.c.bf16 %v5490, %v5489
        %s5495 = scalar_lea.vmem %s41, 24
        %v5496 = vld [vmem:[%s5495] sm:$0xf]
        %v5497 = vld [vmem:[%s5495 + $0x4] sm:$0xf]
        %v5498 = vld [vmem:[%s5495 + $0x8] sm:$0xf]
        %v5502 = vunpack.c.l.b16 %v5496
        %v5503 = vunpack.c.l.b16 %v5497
        %v5504 = vunpack.c.l.b16 %v5498
        %v5505 = vpack.c.b16 %v5503, %v5502
        %v5506 = vpack.c.b16 %v5504, %v5504
        %v5509 = vsel %vm1442, %v5491, 0
        %v5512 = vsel %vm1442, %v5492, 0
        %v5515 = vsel %vm1442, %v5493, 0
        %v5518 = vsel %vm1442, %v5494, 0
        %v5521 = vsel %vm1455, %v5506, 0
        %5523 = vmatprep.subr.bf16.mxu0 0
        %5524 = vmatpush1.bf16.msra.mxu0 %v5505
        %5525 = vmatprep.subr.bf16.mxu0 0
        %5526 = vmatpush1.bf16.msra.mxu0 %v5521
        %5527 = vmatprep.subr.bf16.mxu0 0
        %5528 = vmatpush1.bf16.msra.mxu0 0
        %5529 = vmatprep.subr.bf16.mxu0 0
        %5530 = vmatpush1.bf16.msra.mxu0 0
        %5531 = vmatprep.subr.bf16.mxu0 0
        %5532 = vmatpush1.bf16.msra.mxu0 0
        %5533 = vmatprep.subr.bf16.mxu0 0
        %5534 = vmatpush1.bf16.msra.mxu0 0
        %5535 = vmatprep.subr.bf16.mxu0 0
        %5536 = vmatpush1.bf16.msra.mxu0 0
        %5537 = vmatprep.subr.bf16.mxu0 0
        %5538 = vmatpush1.bf16.msra.mxu0 0
        %5539 = vmatprep.subr.bf16.mxu0 0
        %5540 = vmatpush1.bf16.msra.mxu0 0
        %5541 = vmatprep.subr.bf16.mxu0 0
        %5542 = vmatpush1.bf16.msra.mxu0 0
        %5543 = vmatprep.subr.bf16.mxu0 0
        %5544 = vmatpush1.bf16.msra.mxu0 0
        %5545 = vmatprep.subr.bf16.mxu0 0
        %5546 = vmatpush1.bf16.msra.mxu0 0
        %5547 = vmatprep.subr.bf16.mxu0 0
        %5548 = vmatpush1.bf16.msra.mxu0 0
        %5549 = vmatprep.subr.bf16.mxu0 0
        %5550 = vmatpush1.bf16.msra.mxu0 0
        %5551 = vmatprep.subr.bf16.mxu0 0
        %5552 = vmatpush1.bf16.msra.mxu0 0
        %5553 = vmatprep.subr.bf16.mxu0 0
        %5554 = vmatpush1.bf16.msra.mxu0 0
        %5555 = vmatprep.mubr.bf16.mxu0 0
        %5556 = vmatmul.mubr.bf16.gmra.mrb[0].mxu0 %v5509
        %v5557 = vpop.f32.mrb[0].mxu0
        %v5558 = vadd.f32 0.0, %v5557
        %v5559 = vpop.f32.mrb[0].mxu0
        %v5560 = vpop.f32.mrb[0].mxu0
        %v5561 = vadd.f32 0.0, %v5560
        %v5562 = vpop.f32.mrb[0].mxu0
        %5563 = vmatprep.mubr.bf16.mxu0 0
        %5564 = vmatmul.mubr.bf16.gmra.mrb[0].mxu0 %v5512
        %v5565 = vpop.f32.mrb[0].mxu0
        %v5566 = vadd.f32 0.0, %v5565
        %v5567 = vpop.f32.mrb[0].mxu0
        %v5568 = vpop.f32.mrb[0].mxu0
        %v5569 = vadd.f32 0.0, %v5568
        %v5570 = vpop.f32.mrb[0].mxu0
        %5571 = vmatprep.mubr.bf16.mxu0 0
        %5572 = vmatmul.mubr.bf16.gmra.mrb[0].mxu0 %v5515
        %v5573 = vpop.f32.mrb[0].mxu0
        %v5574 = vadd.f32 0.0, %v5573
        %v5575 = vpop.f32.mrb[0].mxu0
        %v5576 = vpop.f32.mrb[0].mxu0
        %v5577 = vadd.f32 0.0, %v5576
        %v5578 = vpop.f32.mrb[0].mxu0
        %5579 = vmatprep.mubr.bf16.mxu0 0
        %5580 = vmatmul.mubr.bf16.gmra.mrb[0].mxu0 %v5518
        %v5581 = vpop.f32.mrb[0].mxu0
        %v5582 = vadd.f32 0.0, %v5581
        %v5583 = vpop.f32.mrb[0].mxu0
        %v5584 = vpop.f32.mrb[0].mxu0
        %v5585 = vadd.f32 0.0, %v5584
        %v5586 = vpop.f32.mrb[0].mxu0
        %5587 = vdwg.mxu0
        %v5588 = vadd.f32 %v5357, %v5558
        %v5589 = vadd.f32 %v5360, %v5561
        %v5590 = vadd.f32 %v5365, %v5566
        %v5591 = vadd.f32 %v5368, %v5569
        %v5592 = vadd.f32 %v5373, %v5574
        %v5593 = vadd.f32 %v5376, %v5577
        %v5594 = vadd.f32 %v5381, %v5582
        %v5595 = vadd.f32 %v5384, %v5585
        %v5597 = vlaneseq
        %v5598 = vshrl.u32 %v5597, 7
        %v5599 = vsub.s32 0, %v5598
        %v5600 = vrot.slane %v4972, %v5599
        %v5602 = vadd.f32 %v5588, %v5600
        %v5603 = vadd.f32 %v5589, %v5600
        %v5604 = vadd.f32 %v5590, %v5600
        %v5605 = vadd.f32 %v5591, %v5600
        %v5606 = vadd.f32 %v5592, %v5600
        %v5607 = vadd.f32 %v5593, %v5600
        %v5608 = vadd.f32 %v5594, %v5600
        %v5609 = vadd.f32 %v5595, %v5600
        %v5610 = vsel %vm1000, %v5602, 0.0
        %v5611 = vsel %vm1000, %v5603, 0.0
        %v5612 = vadd.f32 %v5610, %v5611
        %v5613 = vsel %vm1000, %v5604, 0.0
        %v5614 = vadd.f32 %v5612, %v5613
        %v5615 = vsel %vm1000, %v5605, 0.0
        %v5616 = vadd.f32 %v5614, %v5615
        %v5617 = vsel %vm1000, %v5606, 0.0
        %v5618 = vadd.f32 %v5616, %v5617
        %v5619 = vsel %vm1000, %v5607, 0.0
        %v5620 = vadd.f32 %v5618, %v5619
        %v5621 = vsel %vm1000, %v5608, 0.0
        %v5622 = vadd.f32 %v5620, %v5621
        %v5623 = vsel %vm1000, %v5609, 0.0
        %v5624 = vadd.f32 %v5622, %v5623
        %v5625 = vrot.slane %v5624, 4
        %v5626 = vadd.f32 %v5624, %v5625
        %v5627 = vrot.slane %v5626, 2
        %v5628 = vadd.f32 %v5626, %v5627
        %v5629 = vrot.slane %v5628, 1
        %v5630 = vadd.f32 %v5628, %v5629
        %v5631 = vmul.f32 %v5630, %v1858
        %v5632 = vmul.f32 %v5602, %v5602
        %v5633 = vmul.f32 %v5603, %v5603
        %v5634 = vmul.f32 %v5604, %v5604
        %v5635 = vmul.f32 %v5605, %v5605
        %v5636 = vmul.f32 %v5606, %v5606
        %v5637 = vmul.f32 %v5607, %v5607
        %v5638 = vmul.f32 %v5608, %v5608
        %v5639 = vmul.f32 %v5609, %v5609
        %v5640 = vsel %vm1000, %v5632, 0.0
        %v5641 = vsel %vm1000, %v5633, 0.0
        %v5642 = vadd.f32 %v5640, %v5641
        %v5643 = vsel %vm1000, %v5634, 0.0
        %v5644 = vadd.f32 %v5642, %v5643
        %v5645 = vsel %vm1000, %v5635, 0.0
        %v5646 = vadd.f32 %v5644, %v5645
        %v5647 = vsel %vm1000, %v5636, 0.0
        %v5648 = vadd.f32 %v5646, %v5647
        %v5649 = vsel %vm1000, %v5637, 0.0
        %v5650 = vadd.f32 %v5648, %v5649
        %v5651 = vsel %vm1000, %v5638, 0.0
        %v5652 = vadd.f32 %v5650, %v5651
        %v5653 = vsel %vm1000, %v5639, 0.0
        %v5654 = vadd.f32 %v5652, %v5653
        %v5655 = vrot.slane %v5654, 4
        %v5656 = vadd.f32 %v5654, %v5655
        %v5657 = vrot.slane %v5656, 2
        %v5658 = vadd.f32 %v5656, %v5657
        %v5659 = vrot.slane %v5658, 1
        %v5660 = vadd.f32 %v5658, %v5659
        %v5661 = vmul.f32 %v5660, %v1858
        %v5663 = vsel %vm1000, %v5631, 0
        %5665 = vmatprep.subr.mxu0 0.0
        %5666 = vmatpush1.msra.mxu0 %v1036
        %5667 = vmatprep.subr.mxu0 0.0
        %5668 = vmatpush1.msra.mxu0 0.0
        %5669 = vmatprep.subr.mxu0 0.0
        %5670 = vmatpush1.msra.mxu0 0.0
        %5671 = vmatprep.subr.mxu0 0.0
        %5672 = vmatpush1.msra.mxu0 0.0
        %5673 = vmatprep.subr.mxu0 0.0
        %5674 = vmatpush1.msra.mxu0 0.0
        %5675 = vmatprep.subr.mxu0 0.0
        %5676 = vmatpush1.msra.mxu0 0.0
        %5677 = vmatprep.subr.mxu0 0.0
        %5678 = vmatpush1.msra.mxu0 0.0
        %5679 = vmatprep.subr.mxu0 0.0
        %5680 = vmatpush1.msra.mxu0 0.0
        %5681 = vmatprep.subr.mxu0 0.0
        %5682 = vmatpush1.msra.mxu0 0.0
        %5683 = vmatprep.subr.mxu0 0.0
        %5684 = vmatpush1.msra.mxu0 0.0
        %5685 = vmatprep.subr.mxu0 0.0
        %5686 = vmatpush1.msra.mxu0 0.0
        %5687 = vmatprep.subr.mxu0 0.0
        %5688 = vmatpush1.msra.mxu0 0.0
        %5689 = vmatprep.subr.mxu0 0.0
        %5690 = vmatpush1.msra.mxu0 0.0
        %5691 = vmatprep.subr.mxu0 0.0
        %5692 = vmatpush1.msra.mxu0 0.0
        %5693 = vmatprep.subr.mxu0 0.0
        %5694 = vmatpush1.msra.mxu0 0.0
        %5695 = vmatprep.subr.mxu0 0.0
        %5696 = vmatpush1.msra.mxu0 0.0
        %5697 = vmatprep.subr.mxu0 0.0
        %5698 = vmatpush1.msra.mxu0 0.0
        %5699 = vmatprep.subr.mxu0 0.0
        %5700 = vmatpush1.msra.mxu0 0.0
        %5701 = vmatprep.subr.mxu0 0.0
        %5702 = vmatpush1.msra.mxu0 0.0
        %5703 = vmatprep.subr.mxu0 0.0
        %5704 = vmatpush1.msra.mxu0 0.0
        %5705 = vmatprep.subr.mxu0 0.0
        %5706 = vmatpush1.msra.mxu0 0.0
        %5707 = vmatprep.subr.mxu0 0.0
        %5708 = vmatpush1.msra.mxu0 0.0
        %5709 = vmatprep.subr.mxu0 0.0
        %5710 = vmatpush1.msra.mxu0 0.0
        %5711 = vmatprep.subr.mxu0 0.0
        %5712 = vmatpush1.msra.mxu0 0.0
        %5713 = vmatprep.subr.mxu0 0.0
        %5714 = vmatpush1.msra.mxu0 0.0
        %5715 = vmatprep.subr.mxu0 0.0
        %5716 = vmatpush1.msra.mxu0 0.0
        %5717 = vmatprep.subr.mxu0 0.0
        %5718 = vmatpush1.msra.mxu0 0.0
        %5719 = vmatprep.subr.mxu0 0.0
        %5720 = vmatpush1.msra.mxu0 0.0
        %5721 = vmatprep.subr.mxu0 0.0
        %5722 = vmatpush1.msra.mxu0 0.0
        %5723 = vmatprep.subr.mxu0 0.0
        %5724 = vmatpush1.msra.mxu0 0.0
        %5725 = vmatprep.subr.mxu0 0.0
        %5726 = vmatpush1.msra.mxu0 0.0
        %5727 = vmatprep.subr.mxu0 0.0
        %5728 = vmatpush1.msra.mxu0 0.0
        %5729 = vmatprep.mubr.f32.mxu0 0.0
        %5730 = vmatmul.mubr.f32.gmra.mrb[0].mxu0 %v5663
        %v5731 = vpop.f32.mrb[0].mxu0
        %v5732 = vadd.f32 0.0, %v5731
        %v5733 = vpop.f32.mrb[0].mxu0
        %5734 = vdwg.mxu0
        %v5736 = vsel %vm1000, %v5661, 0
        %5738 = vmatprep.subr.mxu0 0.0
        %5739 = vmatpush1.msra.mxu0 %v1036
        %5740 = vmatprep.subr.mxu0 0.0
        %5741 = vmatpush1.msra.mxu0 0.0
        %5742 = vmatprep.subr.mxu0 0.0
        %5743 = vmatpush1.msra.mxu0 0.0
        %5744 = vmatprep.subr.mxu0 0.0
        %5745 = vmatpush1.msra.mxu0 0.0
        %5746 = vmatprep.subr.mxu0 0.0
        %5747 = vmatpush1.msra.mxu0 0.0
        %5748 = vmatprep.subr.mxu0 0.0
        %5749 = vmatpush1.msra.mxu0 0.0
        %5750 = vmatprep.subr.mxu0 0.0
        %5751 = vmatpush1.msra.mxu0 0.0
        %5752 = vmatprep.subr.mxu0 0.0
        %5753 = vmatpush1.msra.mxu0 0.0
        %5754 = vmatprep.subr.mxu0 0.0
        %5755 = vmatpush1.msra.mxu0 0.0
        %5756 = vmatprep.subr.mxu0 0.0
        %5757 = vmatpush1.msra.mxu0 0.0
        %5758 = vmatprep.subr.mxu0 0.0
        %5759 = vmatpush1.msra.mxu0 0.0
        %5760 = vmatprep.subr.mxu0 0.0
        %5761 = vmatpush1.msra.mxu0 0.0
        %5762 = vmatprep.subr.mxu0 0.0
        %5763 = vmatpush1.msra.mxu0 0.0
        %5764 = vmatprep.subr.mxu0 0.0
        %5765 = vmatpush1.msra.mxu0 0.0
        %5766 = vmatprep.subr.mxu0 0.0
        %5767 = vmatpush1.msra.mxu0 0.0
        %5768 = vmatprep.subr.mxu0 0.0
        %5769 = vmatpush1.msra.mxu0 0.0
        %5770 = vmatprep.subr.mxu0 0.0
        %5771 = vmatpush1.msra.mxu0 0.0
        %5772 = vmatprep.subr.mxu0 0.0
        %5773 = vmatpush1.msra.mxu0 0.0
        %5774 = vmatprep.subr.mxu0 0.0
        %5775 = vmatpush1.msra.mxu0 0.0
        %5776 = vmatprep.subr.mxu0 0.0
        %5777 = vmatpush1.msra.mxu0 0.0
        %5778 = vmatprep.subr.mxu0 0.0
        %5779 = vmatpush1.msra.mxu0 0.0
        %5780 = vmatprep.subr.mxu0 0.0
        %5781 = vmatpush1.msra.mxu0 0.0
        %5782 = vmatprep.subr.mxu0 0.0
        %5783 = vmatpush1.msra.mxu0 0.0
        %5784 = vmatprep.subr.mxu0 0.0
        %5785 = vmatpush1.msra.mxu0 0.0
        %5786 = vmatprep.subr.mxu0 0.0
        %5787 = vmatpush1.msra.mxu0 0.0
        %5788 = vmatprep.subr.mxu0 0.0
        %5789 = vmatpush1.msra.mxu0 0.0
        %5790 = vmatprep.subr.mxu0 0.0
        %5791 = vmatpush1.msra.mxu0 0.0
        %5792 = vmatprep.subr.mxu0 0.0
        %5793 = vmatpush1.msra.mxu0 0.0
        %5794 = vmatprep.subr.mxu0 0.0
        %5795 = vmatpush1.msra.mxu0 0.0
        %5796 = vmatprep.subr.mxu0 0.0
        %5797 = vmatpush1.msra.mxu0 0.0
        %5798 = vmatprep.subr.mxu0 0.0
        %5799 = vmatpush1.msra.mxu0 0.0
        %5800 = vmatprep.subr.mxu0 0.0
        %5801 = vmatpush1.msra.mxu0 0.0
        %5802 = vmatprep.mubr.f32.mxu0 0.0
        %5803 = vmatmul.mubr.f32.gmra.mrb[0].mxu0 %v5736
        %v5804 = vpop.f32.mrb[0].mxu0
        %v5805 = vadd.f32 0.0, %v5804
        %v5806 = vpop.f32.mrb[0].mxu0
        %5807 = vdwg.mxu0
        %v5808 = vmul.f32 %v5732, %v5732
        %v5809 = vsub.f32 %v5805, %v5808
        %v5810 = vmax.f32 %v5809, 0.0
        %v5811 = vadd.f32 %v5810, 1e-05
        %v5812 = vrsqrt.pop %v5811
        %v5813 = vlaneseq
        %v5814 = vshrl.u32 %v5813, 7
        %v5815 = vsub.s32 0, %v5814
        %v5816 = vrot.slane %v5732, %v5815
        %v5817 = vsub.f32 %v5602, %v5816
        %v5818 = vsub.f32 %v5603, %v5816
        %v5819 = vsub.f32 %v5604, %v5816
        %v5820 = vsub.f32 %v5605, %v5816
        %v5821 = vsub.f32 %v5606, %v5816
        %v5822 = vsub.f32 %v5607, %v5816
        %v5823 = vsub.f32 %v5608, %v5816
        %v5824 = vsub.f32 %v5609, %v5816
        %v5825 = vmul.f32 %v5812, %v4973
        %v5826 = vlaneseq
        %v5827 = vshrl.u32 %v5826, 7
        %v5828 = vsub.s32 0, %v5827
        %v5829 = vrot.slane %v5825, %v5828
        %v5830 = vmul.f32 %v5817, %v5829
        %v5831 = vmul.f32 %v5818, %v5829
        %v5832 = vmul.f32 %v5819, %v5829
        %v5833 = vmul.f32 %v5820, %v5829
        %v5834 = vmul.f32 %v5821, %v5829
        %v5835 = vmul.f32 %v5822, %v5829
        %v5836 = vmul.f32 %v5823, %v5829
        %v5837 = vmul.f32 %v5824, %v5829
        %v5839 = vlaneseq
        %v5840 = vshrl.u32 %v5839, 7
        %v5841 = vsub.s32 0, %v5840
        %v5842 = vrot.slane %v4974, %v5841
        %v5844 = vadd.f32 %v5830, %v5842
        %v5845 = vadd.f32 %v5831, %v5842
        %v5846 = vadd.f32 %v5832, %v5842
        %v5847 = vadd.f32 %v5833, %v5842
        %v5848 = vadd.f32 %v5834, %v5842
        %v5849 = vadd.f32 %v5835, %v5842
        %v5850 = vadd.f32 %v5836, %v5842
        %v5851 = vadd.f32 %v5837, %v5842
        %v5852 = vxor.u32 %v5844, 2147483648
        %v5853 = vxor.u32 %v5845, 2147483648
        %v5854 = vxor.u32 %v5846, 2147483648
        %v5855 = vxor.u32 %v5847, 2147483648
        %v5856 = vxor.u32 %v5848, 2147483648
        %v5857 = vxor.u32 %v5849, 2147483648
        %v5858 = vxor.u32 %v5850, 2147483648
        %v5859 = vxor.u32 %v5851, 2147483648
        %v5860 = vmul.f32 %v5852, 1.442695
        %v5861 = vpow.pop %v5860
        %v5862 = vmul.f32 %v5853, 1.442695
        %v5863 = vpow.pop %v5862
        %v5864 = vmul.f32 %v5854, 1.442695
        %v5865 = vpow.pop %v5864
        %v5866 = vmul.f32 %v5855, 1.442695
        %v5867 = vpow.pop %v5866
        %v5868 = vmul.f32 %v5856, 1.442695
        %v5869 = vpow.pop %v5868
        %v5870 = vmul.f32 %v5857, 1.442695
        %v5871 = vpow.pop %v5870
        %v5872 = vmul.f32 %v5858, 1.442695
        %v5873 = vpow.pop %v5872
        %v5874 = vmul.f32 %v5859, 1.442695
        %v5875 = vpow.pop %v5874
        %v5876 = vadd.f32 %v5861, 1.0
        %v5877 = vadd.f32 %v5863, 1.0
        %v5878 = vadd.f32 %v5865, 1.0
        %v5879 = vadd.f32 %v5867, 1.0
        %v5880 = vadd.f32 %v5869, 1.0
        %v5881 = vadd.f32 %v5871, 1.0
        %v5882 = vadd.f32 %v5873, 1.0
        %v5883 = vadd.f32 %v5875, 1.0
        %v5884 = vrcp.pop %v5876
        %v5885 = vmul.f32 1.0, %v5884
        %v5886 = vrcp.pop %v5877
        %v5887 = vmul.f32 1.0, %v5886
        %v5888 = vrcp.pop %v5878
        %v5889 = vmul.f32 1.0, %v5888
        %v5890 = vrcp.pop %v5879
        %v5891 = vmul.f32 1.0, %v5890
        %v5892 = vrcp.pop %v5880
        %v5893 = vmul.f32 1.0, %v5892
        %v5894 = vrcp.pop %v5881
        %v5895 = vmul.f32 1.0, %v5894
        %v5896 = vrcp.pop %v5882
        %v5897 = vmul.f32 1.0, %v5896
        %v5898 = vrcp.pop %v5883
        %v5899 = vmul.f32 1.0, %v5898
        %v5900 = vmul.f32 %v5844, %v5885
        %v5901 = vmul.f32 %v5845, %v5887
        %v5902 = vmul.f32 %v5846, %v5889
        %v5903 = vmul.f32 %v5847, %v5891
        %v5904 = vmul.f32 %v5848, %v5893
        %v5905 = vmul.f32 %v5849, %v5895
        %v5906 = vmul.f32 %v5850, %v5897
        %v5907 = vmul.f32 %v5851, %v5899
        %v5908 = vlaneseq
        %v5909 = vshrl.u32 %v5908, 7
        %v5910 = vsub.s32 0, %v5909
        %v5911 = vrot.slane %v1192, %v5910
        %v5912 = vadd.f32 %v5900, %v5911
        %v5913 = vadd.f32 %v5901, %v5911
        %v5914 = vadd.f32 %v5902, %v5911
        %v5915 = vadd.f32 %v5903, %v5911
        %v5916 = vadd.f32 %v5904, %v5911
        %v5917 = vadd.f32 %v5905, %v5911
        %v5918 = vadd.f32 %v5906, %v5911
        %v5919 = vadd.f32 %v5907, %v5911
        %5920 = vst.msk [vmem:[%s1201 + $0x1] sm:$0xff] %vm1000, %v5912
        %5921 = vst.msk [vmem:[%s1201 + $0x11] sm:$0xff] %vm1000, %v5913
        %5922 = vst.msk [vmem:[%s1201 + $0x21] sm:$0xff] %vm1000, %v5914
        %5923 = vst.msk [vmem:[%s1201 + $0x31] sm:$0xff] %vm1000, %v5915
        %5924 = vst.msk [vmem:[%s1201 + $0x41] sm:$0xff] %vm1000, %v5916
        %5925 = vst.msk [vmem:[%s1201 + $0x51] sm:$0xff] %vm1000, %v5917
        %5926 = vst.msk [vmem:[%s1201 + $0x61] sm:$0xff] %vm1000, %v5918
        %5927 = vst.msk [vmem:[%s1201 + $0x71] sm:$0xff] %vm1000, %v5919
        %v5928 = vld [vmem:[#allocation2] sm:$0xff]
        %v5929 = vld [vmem:[#allocation2 + $0x10] sm:$0xff]
        %v5930 = vld [vmem:[#allocation2 + $0x20] sm:$0xff]
        %v5931 = vld [vmem:[#allocation2 + $0x30] sm:$0xff]
        %v5932 = vld [vmem:[#allocation2 + $0x40] sm:$0xff]
        %v5933 = vld [vmem:[#allocation2 + $0x50] sm:$0xff]
        %v5934 = vld [vmem:[#allocation2 + $0x60] sm:$0xff]
        %v5935 = vld [vmem:[#allocation2 + $0x70] sm:$0xff]
        %v5936 = vld [vmem:[#allocation2 + $0x1] sm:$0xff]
        %v5937 = vld [vmem:[#allocation2 + $0x11] sm:$0xff]
        %v5938 = vld [vmem:[#allocation2 + $0x21] sm:$0xff]
        %v5939 = vld [vmem:[#allocation2 + $0x31] sm:$0xff]
        %v5940 = vld [vmem:[#allocation2 + $0x41] sm:$0xff]
        %v5941 = vld [vmem:[#allocation2 + $0x51] sm:$0xff]
        %v5942 = vld [vmem:[#allocation2 + $0x61] sm:$0xff]
        %v5943 = vld [vmem:[#allocation2 + $0x71] sm:$0xff]
        %v5944 = vld [vmem:[#allocation2 + $0x2] sm:$0xff]
        %v5945 = vld [vmem:[#allocation2 + $0x12] sm:$0xff]
        %v5946 = vld [vmem:[#allocation2 + $0x22] sm:$0xff]
        %v5947 = vld [vmem:[#allocation2 + $0x32] sm:$0xff]
        %v5948 = vld [vmem:[#allocation2 + $0x42] sm:$0xff]
        %v5949 = vld [vmem:[#allocation2 + $0x52] sm:$0xff]
        %v5950 = vld [vmem:[#allocation2 + $0x62] sm:$0xff]
        %v5951 = vld [vmem:[#allocation2 + $0x72] sm:$0xff]
        %5960 = vrot.lane.b32.xlu0 %v5936, 8
        %v5961 = vpop.permute.xlu0 %5960
        %5962 = vrot.lane.b32.xlu0 %v5937, 8
        %v5963 = vpop.permute.xlu0 %5962
        %5964 = vrot.lane.b32.xlu0 %v5938, 8
        %v5965 = vpop.permute.xlu0 %5964
        %5966 = vrot.lane.b32.xlu0 %v5939, 8
        %v5967 = vpop.permute.xlu0 %5966
        %5968 = vrot.lane.b32.xlu0 %v5940, 8
        %v5969 = vpop.permute.xlu0 %5968
        %5970 = vrot.lane.b32.xlu0 %v5941, 8
        %v5971 = vpop.permute.xlu0 %5970
        %5972 = vrot.lane.b32.xlu0 %v5942, 8
        %v5973 = vpop.permute.xlu0 %5972
        %5974 = vrot.lane.b32.xlu0 %v5943, 8
        %v5975 = vpop.permute.xlu0 %5974
        %5992 = vrot.lane.b32.xlu0 %v5944, 16
        %v5993 = vpop.permute.xlu0 %5992
        %5994 = vrot.lane.b32.xlu0 %v5945, 16
        %v5995 = vpop.permute.xlu0 %5994
        %5996 = vrot.lane.b32.xlu0 %v5946, 16
        %v5997 = vpop.permute.xlu0 %5996
        %5998 = vrot.lane.b32.xlu0 %v5947, 16
        %v5999 = vpop.permute.xlu0 %5998
        %6000 = vrot.lane.b32.xlu0 %v5948, 16
        %v6001 = vpop.permute.xlu0 %6000
        %6002 = vrot.lane.b32.xlu0 %v5949, 16
        %v6003 = vpop.permute.xlu0 %6002
        %6004 = vrot.lane.b32.xlu0 %v5950, 16
        %v6005 = vpop.permute.xlu0 %6004
        %6006 = vrot.lane.b32.xlu0 %v5951, 16
        %v6007 = vpop.permute.xlu0 %6006
        %v6016 = vsel %vm1000, %v5928, %v5961
        %v6017 = vsel %vm1000, %v5929, %v5963
        %v6018 = vsel %vm1000, %v5930, %v5965
        %v6019 = vsel %vm1000, %v5931, %v5967
        %v6020 = vsel %vm1000, %v5932, %v5969
        %v6021 = vsel %vm1000, %v5933, %v5971
        %v6022 = vsel %vm1000, %v5934, %v5973
        %v6023 = vsel %vm1000, %v5935, %v5975
        %v6024 = vsel %vm1048, %v6016, %v5993
        %v6025 = vsel %vm1048, %v6017, %v5995
        %v6026 = vsel %vm1048, %v6018, %v5997
        %v6027 = vsel %vm1048, %v6019, %v5999
        %v6028 = vsel %vm1048, %v6020, %v6001
        %v6029 = vsel %vm1048, %v6021, %v6003
        %v6030 = vsel %vm1048, %v6022, %v6005
        %v6031 = vsel %vm1048, %v6023, %v6007
        %v6032 = vpack.c.bf16 %v6025, %v6024
        %v6033 = vpack.c.bf16 %v6027, %v6026
        %v6034 = vpack.c.bf16 %v6029, %v6028
        %v6035 = vpack.c.bf16 %v6031, %v6030
        %v6036 = vld [vmem:[%s53] sm:$0xf]
        %v6037 = vld [vmem:[%s53 + $0x4] sm:$0xf]
        %v6038 = vld [vmem:[%s53 + $0x8] sm:$0xf]
        %v6039 = vld [vmem:[%s1201] sm:$0xff]
        %v6040 = vld [vmem:[%s1201 + $0x10] sm:$0xff]
        %v6041 = vld [vmem:[%s1201 + $0x20] sm:$0xff]
        %v6042 = vld [vmem:[%s1201 + $0x30] sm:$0xff]
        %v6043 = vld [vmem:[%s1201 + $0x40] sm:$0xff]
        %v6044 = vld [vmem:[%s1201 + $0x50] sm:$0xff]
        %v6045 = vld [vmem:[%s1201 + $0x60] sm:$0xff]
        %v6046 = vld [vmem:[%s1201 + $0x70] sm:$0xff]
        %v6047 = vld [vmem:[%s1201 + $0x1] sm:$0xff]
        %v6048 = vld [vmem:[%s1201 + $0x11] sm:$0xff]
        %v6049 = vld [vmem:[%s1201 + $0x21] sm:$0xff]
        %v6050 = vld [vmem:[%s1201 + $0x31] sm:$0xff]
        %v6051 = vld [vmem:[%s1201 + $0x41] sm:$0xff]
        %v6052 = vld [vmem:[%s1201 + $0x51] sm:$0xff]
        %v6053 = vld [vmem:[%s1201 + $0x61] sm:$0xff]
        %v6054 = vld [vmem:[%s1201 + $0x71] sm:$0xff]
        %v6055 = vld [vmem:[%s1201 + $0x2] sm:$0xff]
        %v6056 = vld [vmem:[%s1201 + $0x12] sm:$0xff]
        %v6057 = vld [vmem:[%s1201 + $0x22] sm:$0xff]
        %v6058 = vld [vmem:[%s1201 + $0x32] sm:$0xff]
        %v6059 = vld [vmem:[%s1201 + $0x42] sm:$0xff]
        %v6060 = vld [vmem:[%s1201 + $0x52] sm:$0xff]
        %v6061 = vld [vmem:[%s1201 + $0x62] sm:$0xff]
        %v6062 = vld [vmem:[%s1201 + $0x72] sm:$0xff]
        %6071 = vrot.lane.b32.xlu0 %v6047, 8
        %v6072 = vpop.permute.xlu0 %6071
        %6073 = vrot.lane.b32.xlu0 %v6048, 8
        %v6074 = vpop.permute.xlu0 %6073
        %6075 = vrot.lane.b32.xlu0 %v6049, 8
        %v6076 = vpop.permute.xlu0 %6075
        %6077 = vrot.lane.b32.xlu0 %v6050, 8
        %v6078 = vpop.permute.xlu0 %6077
        %6079 = vrot.lane.b32.xlu0 %v6051, 8
        %v6080 = vpop.permute.xlu0 %6079
        %6081 = vrot.lane.b32.xlu0 %v6052, 8
        %v6082 = vpop.permute.xlu0 %6081
        %6083 = vrot.lane.b32.xlu0 %v6053, 8
        %v6084 = vpop.permute.xlu0 %6083
        %6085 = vrot.lane.b32.xlu0 %v6054, 8
        %v6086 = vpop.permute.xlu0 %6085
        %6103 = vrot.lane.b32.xlu0 %v6055, 16
        %v6104 = vpop.permute.xlu0 %6103
        %6105 = vrot.lane.b32.xlu0 %v6056, 16
        %v6106 = vpop.permute.xlu0 %6105
        %6107 = vrot.lane.b32.xlu0 %v6057, 16
        %v6108 = vpop.permute.xlu0 %6107
        %6109 = vrot.lane.b32.xlu0 %v6058, 16
        %v6110 = vpop.permute.xlu0 %6109
        %6111 = vrot.lane.b32.xlu0 %v6059, 16
        %v6112 = vpop.permute.xlu0 %6111
        %6113 = vrot.lane.b32.xlu0 %v6060, 16
        %v6114 = vpop.permute.xlu0 %6113
        %6115 = vrot.lane.b32.xlu0 %v6061, 16
        %v6116 = vpop.permute.xlu0 %6115
        %6117 = vrot.lane.b32.xlu0 %v6062, 16
        %v6118 = vpop.permute.xlu0 %6117
        %v6127 = vsel %vm1000, %v6039, %v6072
        %v6128 = vsel %vm1000, %v6040, %v6074
        %v6129 = vsel %vm1000, %v6041, %v6076
        %v6130 = vsel %vm1000, %v6042, %v6078
        %v6131 = vsel %vm1000, %v6043, %v6080
        %v6132 = vsel %vm1000, %v6044, %v6082
        %v6133 = vsel %vm1000, %v6045, %v6084
        %v6134 = vsel %vm1000, %v6046, %v6086
        %v6135 = vsel %vm1048, %v6127, %v6104
        %v6136 = vsel %vm1048, %v6128, %v6106
        %v6137 = vsel %vm1048, %v6129, %v6108
        %v6138 = vsel %vm1048, %v6130, %v6110
        %v6139 = vsel %vm1048, %v6131, %v6112
        %v6140 = vsel %vm1048, %v6132, %v6114
        %v6141 = vsel %vm1048, %v6133, %v6116
        %v6142 = vsel %vm1048, %v6134, %v6118
        %v6143 = vpack.c.bf16 %v6136, %v6135
        %v6144 = vpack.c.bf16 %v6138, %v6137
        %v6145 = vpack.c.bf16 %v6140, %v6139
        %v6146 = vpack.c.bf16 %v6142, %v6141
        %s6147 = scalar_lea.vmem %s53, 12
        %v6148 = vld [vmem:[%s6147] sm:$0xf]
        %v6149 = vld [vmem:[%s6147 + $0x4] sm:$0xf]
        %v6150 = vld [vmem:[%s6147 + $0x8] sm:$0xf]
        %v6154 = vunpack.c.l.b16 %v6148
        %v6155 = vunpack.c.l.b16 %v6149
        %v6156 = vunpack.c.l.b16 %v6150
        %v6157 = vpack.c.b16 %v6155, %v6154
        %v6158 = vpack.c.b16 %v6156, %v6156
        %v6161 = vsel %vm1442, %v6143, 0
        %v6164 = vsel %vm1442, %v6144, 0
        %v6167 = vsel %vm1442, %v6145, 0
        %v6170 = vsel %vm1442, %v6146, 0
        %v6173 = vsel %vm1455, %v6158, 0
        %6175 = vmatprep.subr.bf16.mxu0 0
        %6176 = vmatpush1.bf16.msra.mxu0 %v6157
        %6177 = vmatprep.subr.bf16.mxu0 0
        %6178 = vmatpush1.bf16.msra.mxu0 %v6173
        %6179 = vmatprep.subr.bf16.mxu0 0
        %6180 = vmatpush1.bf16.msra.mxu0 0
        %6181 = vmatprep.subr.bf16.mxu0 0
        %6182 = vmatpush1.bf16.msra.mxu0 0
        %6183 = vmatprep.subr.bf16.mxu0 0
        %6184 = vmatpush1.bf16.msra.mxu0 0
        %6185 = vmatprep.subr.bf16.mxu0 0
        %6186 = vmatpush1.bf16.msra.mxu0 0
        %6187 = vmatprep.subr.bf16.mxu0 0
        %6188 = vmatpush1.bf16.msra.mxu0 0
        %6189 = vmatprep.subr.bf16.mxu0 0
        %6190 = vmatpush1.bf16.msra.mxu0 0
        %6191 = vmatprep.subr.bf16.mxu0 0
        %6192 = vmatpush1.bf16.msra.mxu0 0
        %6193 = vmatprep.subr.bf16.mxu0 0
        %6194 = vmatpush1.bf16.msra.mxu0 0
        %6195 = vmatprep.subr.bf16.mxu0 0
        %6196 = vmatpush1.bf16.msra.mxu0 0
        %6197 = vmatprep.subr.bf16.mxu0 0
        %6198 = vmatpush1.bf16.msra.mxu0 0
        %6199 = vmatprep.subr.bf16.mxu0 0
        %6200 = vmatpush1.bf16.msra.mxu0 0
        %6201 = vmatprep.subr.bf16.mxu0 0
        %6202 = vmatpush1.bf16.msra.mxu0 0
        %6203 = vmatprep.subr.bf16.mxu0 0
        %6204 = vmatpush1.bf16.msra.mxu0 0
        %6205 = vmatprep.subr.bf16.mxu0 0
        %6206 = vmatpush1.bf16.msra.mxu0 0
        %6207 = vmatprep.mubr.bf16.mxu0 0
        %6208 = vmatmul.mubr.bf16.gmra.mrb[0].mxu0 %v6161
        %v6209 = vpop.f32.mrb[0].mxu0
        %v6210 = vadd.f32 0.0, %v6209
        %v6211 = vpop.f32.mrb[0].mxu0
        %v6212 = vpop.f32.mrb[0].mxu0
        %v6213 = vadd.f32 0.0, %v6212
        %v6214 = vpop.f32.mrb[0].mxu0
        %6215 = vmatprep.mubr.bf16.mxu0 0
        %6216 = vmatmul.mubr.bf16.gmra.mrb[0].mxu0 %v6164
        %v6217 = vpop.f32.mrb[0].mxu0
        %v6218 = vadd.f32 0.0, %v6217
        %v6219 = vpop.f32.mrb[0].mxu0
        %v6220 = vpop.f32.mrb[0].mxu0
        %v6221 = vadd.f32 0.0, %v6220
        %v6222 = vpop.f32.mrb[0].mxu0
        %6223 = vmatprep.mubr.bf16.mxu0 0
        %6224 = vmatmul.mubr.bf16.gmra.mrb[0].mxu0 %v6167
        %v6225 = vpop.f32.mrb[0].mxu0
        %v6226 = vadd.f32 0.0, %v6225
        %v6227 = vpop.f32.mrb[0].mxu0
        %v6228 = vpop.f32.mrb[0].mxu0
        %v6229 = vadd.f32 0.0, %v6228
        %v6230 = vpop.f32.mrb[0].mxu0
        %6231 = vmatprep.mubr.bf16.mxu0 0
        %6232 = vmatmul.mubr.bf16.gmra.mrb[0].mxu0 %v6170
        %v6233 = vpop.f32.mrb[0].mxu0
        %v6234 = vadd.f32 0.0, %v6233
        %v6235 = vpop.f32.mrb[0].mxu0
        %v6236 = vpop.f32.mrb[0].mxu0
        %v6237 = vadd.f32 0.0, %v6236
        %v6238 = vpop.f32.mrb[0].mxu0
        %6239 = vdwg.mxu0
        %v6243 = vunpack.c.l.b16 %v6036
        %v6244 = vunpack.c.l.b16 %v6037
        %v6245 = vunpack.c.l.b16 %v6038
        %v6246 = vpack.c.b16 %v6244, %v6243
        %v6247 = vpack.c.b16 %v6245, %v6245
        %v6250 = vsel %vm1442, %v6032, 0
        %v6253 = vsel %vm1442, %v6033, 0
        %v6256 = vsel %vm1442, %v6034, 0
        %v6259 = vsel %vm1442, %v6035, 0
        %v6262 = vsel %vm1455, %v6247, 0
        %6264 = vmatprep.subr.bf16.mxu0 0
        %6265 = vmatpush1.bf16.msra.mxu0 %v6246
        %6266 = vmatprep.subr.bf16.mxu0 0
        %6267 = vmatpush1.bf16.msra.mxu0 %v6262
        %6268 = vmatprep.subr.bf16.mxu0 0
        %6269 = vmatpush1.bf16.msra.mxu0 0
        %6270 = vmatprep.subr.bf16.mxu0 0
        %6271 = vmatpush1.bf16.msra.mxu0 0
        %6272 = vmatprep.subr.bf16.mxu0 0
        %6273 = vmatpush1.bf16.msra.mxu0 0
        %6274 = vmatprep.subr.bf16.mxu0 0
        %6275 = vmatpush1.bf16.msra.mxu0 0
        %6276 = vmatprep.subr.bf16.mxu0 0
        %6277 = vmatpush1.bf16.msra.mxu0 0
        %6278 = vmatprep.subr.bf16.mxu0 0
        %6279 = vmatpush1.bf16.msra.mxu0 0
        %6280 = vmatprep.subr.bf16.mxu0 0
        %6281 = vmatpush1.bf16.msra.mxu0 0
        %6282 = vmatprep.subr.bf16.mxu0 0
        %6283 = vmatpush1.bf16.msra.mxu0 0
        %6284 = vmatprep.subr.bf16.mxu0 0
        %6285 = vmatpush1.bf16.msra.mxu0 0
        %6286 = vmatprep.subr.bf16.mxu0 0
        %6287 = vmatpush1.bf16.msra.mxu0 0
        %6288 = vmatprep.subr.bf16.mxu0 0
        %6289 = vmatpush1.bf16.msra.mxu0 0
        %6290 = vmatprep.subr.bf16.mxu0 0
        %6291 = vmatpush1.bf16.msra.mxu0 0
        %6292 = vmatprep.subr.bf16.mxu0 0
        %6293 = vmatpush1.bf16.msra.mxu0 0
        %6294 = vmatprep.subr.bf16.mxu0 0
        %6295 = vmatpush1.bf16.msra.mxu0 0
        %6296 = vmatprep.mubr.bf16.mxu0 0
        %6297 = vmatmul.mubr.bf16.gmra.mrb[0].mxu0 %v6250
        %v6298 = vpop.f32.mrb[0].mxu0
        %v6299 = vadd.f32 %v6210, %v6298
        %v6300 = vpop.f32.mrb[0].mxu0
        %v6301 = vpop.f32.mrb[0].mxu0
        %v6302 = vadd.f32 %v6213, %v6301
        %v6303 = vpop.f32.mrb[0].mxu0
        %6304 = vmatprep.mubr.bf16.mxu0 0
        %6305 = vmatmul.mubr.bf16.gmra.mrb[0].mxu0 %v6253
        %v6306 = vpop.f32.mrb[0].mxu0
        %v6307 = vadd.f32 %v6218, %v6306
        %v6308 = vpop.f32.mrb[0].mxu0
        %v6309 = vpop.f32.mrb[0].mxu0
        %v6310 = vadd.f32 %v6221, %v6309
        %v6311 = vpop.f32.mrb[0].mxu0
        %6312 = vmatprep.mubr.bf16.mxu0 0
        %6313 = vmatmul.mubr.bf16.gmra.mrb[0].mxu0 %v6256
        %v6314 = vpop.f32.mrb[0].mxu0
        %v6315 = vadd.f32 %v6226, %v6314
        %v6316 = vpop.f32.mrb[0].mxu0
        %v6317 = vpop.f32.mrb[0].mxu0
        %v6318 = vadd.f32 %v6229, %v6317
        %v6319 = vpop.f32.mrb[0].mxu0
        %6320 = vmatprep.mubr.bf16.mxu0 0
        %6321 = vmatmul.mubr.bf16.gmra.mrb[0].mxu0 %v6259
        %v6322 = vpop.f32.mrb[0].mxu0
        %v6323 = vadd.f32 %v6234, %v6322
        %v6324 = vpop.f32.mrb[0].mxu0
        %v6325 = vpop.f32.mrb[0].mxu0
        %v6326 = vadd.f32 %v6237, %v6325
        %v6327 = vpop.f32.mrb[0].mxu0
        %6328 = vdwg.mxu0
        %v6329 = vld [vmem:[%s1613] sm:$0xff]
        %v6330 = vld [vmem:[%s1613 + $0x10] sm:$0xff]
        %v6331 = vld [vmem:[%s1613 + $0x20] sm:$0xff]
        %v6332 = vld [vmem:[%s1613 + $0x30] sm:$0xff]
        %v6333 = vld [vmem:[%s1613 + $0x40] sm:$0xff]
        %v6334 = vld [vmem:[%s1613 + $0x50] sm:$0xff]
        %v6335 = vld [vmem:[%s1613 + $0x60] sm:$0xff]
        %v6336 = vld [vmem:[%s1613 + $0x70] sm:$0xff]
        %v6337 = vld [vmem:[%s1613 + $0x1] sm:$0xff]
        %v6338 = vld [vmem:[%s1613 + $0x11] sm:$0xff]
        %v6339 = vld [vmem:[%s1613 + $0x21] sm:$0xff]
        %v6340 = vld [vmem:[%s1613 + $0x31] sm:$0xff]
        %v6341 = vld [vmem:[%s1613 + $0x41] sm:$0xff]
        %v6342 = vld [vmem:[%s1613 + $0x51] sm:$0xff]
        %v6343 = vld [vmem:[%s1613 + $0x61] sm:$0xff]
        %v6344 = vld [vmem:[%s1613 + $0x71] sm:$0xff]
        %v6345 = vld [vmem:[%s1613 + $0x2] sm:$0xff]
        %v6346 = vld [vmem:[%s1613 + $0x12] sm:$0xff]
        %v6347 = vld [vmem:[%s1613 + $0x22] sm:$0xff]
        %v6348 = vld [vmem:[%s1613 + $0x32] sm:$0xff]
        %v6349 = vld [vmem:[%s1613 + $0x42] sm:$0xff]
        %v6350 = vld [vmem:[%s1613 + $0x52] sm:$0xff]
        %v6351 = vld [vmem:[%s1613 + $0x62] sm:$0xff]
        %v6352 = vld [vmem:[%s1613 + $0x72] sm:$0xff]
        %6361 = vrot.lane.b32.xlu0 %v6337, 8
        %v6362 = vpop.permute.xlu0 %6361
        %6363 = vrot.lane.b32.xlu0 %v6338, 8
        %v6364 = vpop.permute.xlu0 %6363
        %6365 = vrot.lane.b32.xlu0 %v6339, 8
        %v6366 = vpop.permute.xlu0 %6365
        %6367 = vrot.lane.b32.xlu0 %v6340, 8
        %v6368 = vpop.permute.xlu0 %6367
        %6369 = vrot.lane.b32.xlu0 %v6341, 8
        %v6370 = vpop.permute.xlu0 %6369
        %6371 = vrot.lane.b32.xlu0 %v6342, 8
        %v6372 = vpop.permute.xlu0 %6371
        %6373 = vrot.lane.b32.xlu0 %v6343, 8
        %v6374 = vpop.permute.xlu0 %6373
        %6375 = vrot.lane.b32.xlu0 %v6344, 8
        %v6376 = vpop.permute.xlu0 %6375
        %6393 = vrot.lane.b32.xlu0 %v6345, 16
        %v6394 = vpop.permute.xlu0 %6393
        %6395 = vrot.lane.b32.xlu0 %v6346, 16
        %v6396 = vpop.permute.xlu0 %6395
        %6397 = vrot.lane.b32.xlu0 %v6347, 16
        %v6398 = vpop.permute.xlu0 %6397
        %6399 = vrot.lane.b32.xlu0 %v6348, 16
        %v6400 = vpop.permute.xlu0 %6399
        %6401 = vrot.lane.b32.xlu0 %v6349, 16
        %v6402 = vpop.permute.xlu0 %6401
        %6403 = vrot.lane.b32.xlu0 %v6350, 16
        %v6404 = vpop.permute.xlu0 %6403
        %6405 = vrot.lane.b32.xlu0 %v6351, 16
        %v6406 = vpop.permute.xlu0 %6405
        %6407 = vrot.lane.b32.xlu0 %v6352, 16
        %v6408 = vpop.permute.xlu0 %6407
        %v6417 = vsel %vm1000, %v6329, %v6362
        %v6418 = vsel %vm1000, %v6330, %v6364
        %v6419 = vsel %vm1000, %v6331, %v6366
        %v6420 = vsel %vm1000, %v6332, %v6368
        %v6421 = vsel %vm1000, %v6333, %v6370
        %v6422 = vsel %vm1000, %v6334, %v6372
        %v6423 = vsel %vm1000, %v6335, %v6374
        %v6424 = vsel %vm1000, %v6336, %v6376
        %v6425 = vsel %vm1048, %v6417, %v6394
        %v6426 = vsel %vm1048, %v6418, %v6396
        %v6427 = vsel %vm1048, %v6419, %v6398
        %v6428 = vsel %vm1048, %v6420, %v6400
        %v6429 = vsel %vm1048, %v6421, %v6402
        %v6430 = vsel %vm1048, %v6422, %v6404
        %v6431 = vsel %vm1048, %v6423, %v6406
        %v6432 = vsel %vm1048, %v6424, %v6408
        %v6433 = vpack.c.bf16 %v6426, %v6425
        %v6434 = vpack.c.bf16 %v6428, %v6427
        %v6435 = vpack.c.bf16 %v6430, %v6429
        %v6436 = vpack.c.bf16 %v6432, %v6431
        %s6437 = scalar_lea.vmem %s53, 24
        %v6438 = vld [vmem:[%s6437] sm:$0xf]
        %v6439 = vld [vmem:[%s6437 + $0x4] sm:$0xf]
        %v6440 = vld [vmem:[%s6437 + $0x8] sm:$0xf]
        %v6444 = vunpack.c.l.b16 %v6438
        %v6445 = vunpack.c.l.b16 %v6439
        %v6446 = vunpack.c.l.b16 %v6440
        %v6447 = vpack.c.b16 %v6445, %v6444
        %v6448 = vpack.c.b16 %v6446, %v6446
        %v6451 = vsel %vm1442, %v6433, 0
        %v6454 = vsel %vm1442, %v6434, 0
        %v6457 = vsel %vm1442, %v6435, 0
        %v6460 = vsel %vm1442, %v6436, 0
        %v6463 = vsel %vm1455, %v6448, 0
        %6465 = vmatprep.subr.bf16.mxu0 0
        %6466 = vmatpush1.bf16.msra.mxu0 %v6447
        %6467 = vmatprep.subr.bf16.mxu0 0
        %6468 = vmatpush1.bf16.msra.mxu0 %v6463
        %6469 = vmatprep.subr.bf16.mxu0 0
        %6470 = vmatpush1.bf16.msra.mxu0 0
        %6471 = vmatprep.subr.bf16.mxu0 0
        %6472 = vmatpush1.bf16.msra.mxu0 0
        %6473 = vmatprep.subr.bf16.mxu0 0
        %6474 = vmatpush1.bf16.msra.mxu0 0
        %6475 = vmatprep.subr.bf16.mxu0 0
        %6476 = vmatpush1.bf16.msra.mxu0 0
        %6477 = vmatprep.subr.bf16.mxu0 0
        %6478 = vmatpush1.bf16.msra.mxu0 0
        %6479 = vmatprep.subr.bf16.mxu0 0
        %6480 = vmatpush1.bf16.msra.mxu0 0
        %6481 = vmatprep.subr.bf16.mxu0 0
        %6482 = vmatpush1.bf16.msra.mxu0 0
        %6483 = vmatprep.subr.bf16.mxu0 0
        %6484 = vmatpush1.bf16.msra.mxu0 0
        %6485 = vmatprep.subr.bf16.mxu0 0
        %6486 = vmatpush1.bf16.msra.mxu0 0
        %6487 = vmatprep.subr.bf16.mxu0 0
        %6488 = vmatpush1.bf16.msra.mxu0 0
        %6489 = vmatprep.subr.bf16.mxu0 0
        %6490 = vmatpush1.bf16.msra.mxu0 0
        %6491 = vmatprep.subr.bf16.mxu0 0
        %6492 = vmatpush1.bf16.msra.mxu0 0
        %6493 = vmatprep.subr.bf16.mxu0 0
        %6494 = vmatpush1.bf16.msra.mxu0 0
        %6495 = vmatprep.subr.bf16.mxu0 0
        %6496 = vmatpush1.bf16.msra.mxu0 0
        %6497 = vmatprep.mubr.bf16.mxu0 0
        %6498 = vmatmul.mubr.bf16.gmra.mrb[0].mxu0 %v6451
        %v6499 = vpop.f32.mrb[0].mxu0
        %v6500 = vadd.f32 0.0, %v6499
        %v6501 = vpop.f32.mrb[0].mxu0
        %v6502 = vpop.f32.mrb[0].mxu0
        %v6503 = vadd.f32 0.0, %v6502
        %v6504 = vpop.f32.mrb[0].mxu0
        %6505 = vmatprep.mubr.bf16.mxu0 0
        %6506 = vmatmul.mubr.bf16.gmra.mrb[0].mxu0 %v6454
        %v6507 = vpop.f32.mrb[0].mxu0
        %v6508 = vadd.f32 0.0, %v6507
        %v6509 = vpop.f32.mrb[0].mxu0
        %v6510 = vpop.f32.mrb[0].mxu0
        %v6511 = vadd.f32 0.0, %v6510
        %v6512 = vpop.f32.mrb[0].mxu0
        %6513 = vmatprep.mubr.bf16.mxu0 0
        %6514 = vmatmul.mubr.bf16.gmra.mrb[0].mxu0 %v6457
        %v6515 = vpop.f32.mrb[0].mxu0
        %v6516 = vadd.f32 0.0, %v6515
        %v6517 = vpop.f32.mrb[0].mxu0
        %v6518 = vpop.f32.mrb[0].mxu0
        %v6519 = vadd.f32 0.0, %v6518
        %v6520 = vpop.f32.mrb[0].mxu0
        %6521 = vmatprep.mubr.bf16.mxu0 0
        %6522 = vmatmul.mubr.bf16.gmra.mrb[0].mxu0 %v6460
        %v6523 = vpop.f32.mrb[0].mxu0
        %v6524 = vadd.f32 0.0, %v6523
        %v6525 = vpop.f32.mrb[0].mxu0
        %v6526 = vpop.f32.mrb[0].mxu0
        %v6527 = vadd.f32 0.0, %v6526
        %v6528 = vpop.f32.mrb[0].mxu0
        %6529 = vdwg.mxu0
        %v6530 = vadd.f32 %v6299, %v6500
        %v6531 = vadd.f32 %v6302, %v6503
        %v6532 = vadd.f32 %v6307, %v6508
        %v6533 = vadd.f32 %v6310, %v6511
        %v6534 = vadd.f32 %v6315, %v6516
        %v6535 = vadd.f32 %v6318, %v6519
        %v6536 = vadd.f32 %v6323, %v6524
        %v6537 = vadd.f32 %v6326, %v6527
        %v6539 = vlaneseq
        %v6540 = vshrl.u32 %v6539, 7
        %v6541 = vsub.s32 0, %v6540
        %v6542 = vrot.slane %v4975, %v6541
        %v6544 = vadd.f32 %v6530, %v6542
        %v6545 = vadd.f32 %v6531, %v6542
        %v6546 = vadd.f32 %v6532, %v6542
        %v6547 = vadd.f32 %v6533, %v6542
        %v6548 = vadd.f32 %v6534, %v6542
        %v6549 = vadd.f32 %v6535, %v6542
        %v6550 = vadd.f32 %v6536, %v6542
        %v6551 = vadd.f32 %v6537, %v6542
        %v6552 = vsel %vm1000, %v6544, 0.0
        %v6553 = vsel %vm1000, %v6545, 0.0
        %v6554 = vadd.f32 %v6552, %v6553
        %v6555 = vsel %vm1000, %v6546, 0.0
        %v6556 = vadd.f32 %v6554, %v6555
        %v6557 = vsel %vm1000, %v6547, 0.0
        %v6558 = vadd.f32 %v6556, %v6557
        %v6559 = vsel %vm1000, %v6548, 0.0
        %v6560 = vadd.f32 %v6558, %v6559
        %v6561 = vsel %vm1000, %v6549, 0.0
        %v6562 = vadd.f32 %v6560, %v6561
        %v6563 = vsel %vm1000, %v6550, 0.0
        %v6564 = vadd.f32 %v6562, %v6563
        %v6565 = vsel %vm1000, %v6551, 0.0
        %v6566 = vadd.f32 %v6564, %v6565
        %v6567 = vrot.slane %v6566, 4
        %v6568 = vadd.f32 %v6566, %v6567
        %v6569 = vrot.slane %v6568, 2
        %v6570 = vadd.f32 %v6568, %v6569
        %v6571 = vrot.slane %v6570, 1
        %v6572 = vadd.f32 %v6570, %v6571
        %v6573 = vmul.f32 %v6572, %v1858
        %v6574 = vmul.f32 %v6544, %v6544
        %v6575 = vmul.f32 %v6545, %v6545
        %v6576 = vmul.f32 %v6546, %v6546
        %v6577 = vmul.f32 %v6547, %v6547
        %v6578 = vmul.f32 %v6548, %v6548
        %v6579 = vmul.f32 %v6549, %v6549
        %v6580 = vmul.f32 %v6550, %v6550
        %v6581 = vmul.f32 %v6551, %v6551
        %v6582 = vsel %vm1000, %v6574, 0.0
        %v6583 = vsel %vm1000, %v6575, 0.0
        %v6584 = vadd.f32 %v6582, %v6583
        %v6585 = vsel %vm1000, %v6576, 0.0
        %v6586 = vadd.f32 %v6584, %v6585
        %v6587 = vsel %vm1000, %v6577, 0.0
        %v6588 = vadd.f32 %v6586, %v6587
        %v6589 = vsel %vm1000, %v6578, 0.0
        %v6590 = vadd.f32 %v6588, %v6589
        %v6591 = vsel %vm1000, %v6579, 0.0
        %v6592 = vadd.f32 %v6590, %v6591
        %v6593 = vsel %vm1000, %v6580, 0.0
        %v6594 = vadd.f32 %v6592, %v6593
        %v6595 = vsel %vm1000, %v6581, 0.0
        %v6596 = vadd.f32 %v6594, %v6595
        %v6597 = vrot.slane %v6596, 4
        %v6598 = vadd.f32 %v6596, %v6597
        %v6599 = vrot.slane %v6598, 2
        %v6600 = vadd.f32 %v6598, %v6599
        %v6601 = vrot.slane %v6600, 1
        %v6602 = vadd.f32 %v6600, %v6601
        %v6603 = vmul.f32 %v6602, %v1858
        %v6605 = vsel %vm1000, %v6573, 0
        %6607 = vmatprep.subr.mxu0 0.0
        %6608 = vmatpush1.msra.mxu0 %v1036
        %6609 = vmatprep.subr.mxu0 0.0
        %6610 = vmatpush1.msra.mxu0 0.0
        %6611 = vmatprep.subr.mxu0 0.0
        %6612 = vmatpush1.msra.mxu0 0.0
        %6613 = vmatprep.subr.mxu0 0.0
        %6614 = vmatpush1.msra.mxu0 0.0
        %6615 = vmatprep.subr.mxu0 0.0
        %6616 = vmatpush1.msra.mxu0 0.0
        %6617 = vmatprep.subr.mxu0 0.0
        %6618 = vmatpush1.msra.mxu0 0.0
        %6619 = vmatprep.subr.mxu0 0.0
        %6620 = vmatpush1.msra.mxu0 0.0
        %6621 = vmatprep.subr.mxu0 0.0
        %6622 = vmatpush1.msra.mxu0 0.0
        %6623 = vmatprep.subr.mxu0 0.0
        %6624 = vmatpush1.msra.mxu0 0.0
        %6625 = vmatprep.subr.mxu0 0.0
        %6626 = vmatpush1.msra.mxu0 0.0
        %6627 = vmatprep.subr.mxu0 0.0
        %6628 = vmatpush1.msra.mxu0 0.0
        %6629 = vmatprep.subr.mxu0 0.0
        %6630 = vmatpush1.msra.mxu0 0.0
        %6631 = vmatprep.subr.mxu0 0.0
        %6632 = vmatpush1.msra.mxu0 0.0
        %6633 = vmatprep.subr.mxu0 0.0
        %6634 = vmatpush1.msra.mxu0 0.0
        %6635 = vmatprep.subr.mxu0 0.0
        %6636 = vmatpush1.msra.mxu0 0.0
        %6637 = vmatprep.subr.mxu0 0.0
        %6638 = vmatpush1.msra.mxu0 0.0
        %6639 = vmatprep.subr.mxu0 0.0
        %6640 = vmatpush1.msra.mxu0 0.0
        %6641 = vmatprep.subr.mxu0 0.0
        %6642 = vmatpush1.msra.mxu0 0.0
        %6643 = vmatprep.subr.mxu0 0.0
        %6644 = vmatpush1.msra.mxu0 0.0
        %6645 = vmatprep.subr.mxu0 0.0
        %6646 = vmatpush1.msra.mxu0 0.0
        %6647 = vmatprep.subr.mxu0 0.0
        %6648 = vmatpush1.msra.mxu0 0.0
        %6649 = vmatprep.subr.mxu0 0.0
        %6650 = vmatpush1.msra.mxu0 0.0
        %6651 = vmatprep.subr.mxu0 0.0
        %6652 = vmatpush1.msra.mxu0 0.0
        %6653 = vmatprep.subr.mxu0 0.0
        %6654 = vmatpush1.msra.mxu0 0.0
        %6655 = vmatprep.subr.mxu0 0.0
        %6656 = vmatpush1.msra.mxu0 0.0
        %6657 = vmatprep.subr.mxu0 0.0
        %6658 = vmatpush1.msra.mxu0 0.0
        %6659 = vmatprep.subr.mxu0 0.0
        %6660 = vmatpush1.msra.mxu0 0.0
        %6661 = vmatprep.subr.mxu0 0.0
        %6662 = vmatpush1.msra.mxu0 0.0
        %6663 = vmatprep.subr.mxu0 0.0
        %6664 = vmatpush1.msra.mxu0 0.0
        %6665 = vmatprep.subr.mxu0 0.0
        %6666 = vmatpush1.msra.mxu0 0.0
        %6667 = vmatprep.subr.mxu0 0.0
        %6668 = vmatpush1.msra.mxu0 0.0
        %6669 = vmatprep.subr.mxu0 0.0
        %6670 = vmatpush1.msra.mxu0 0.0
        %6671 = vmatprep.mubr.f32.mxu0 0.0
        %6672 = vmatmul.mubr.f32.gmra.mrb[0].mxu0 %v6605
        %v6673 = vpop.f32.mrb[0].mxu0
        %v6674 = vadd.f32 0.0, %v6673
        %v6675 = vpop.f32.mrb[0].mxu0
        %6676 = vdwg.mxu0
        %v6678 = vsel %vm1000, %v6603, 0
        %6680 = vmatprep.subr.mxu0 0.0
        %6681 = vmatpush1.msra.mxu0 %v1036
        %6682 = vmatprep.subr.mxu0 0.0
        %6683 = vmatpush1.msra.mxu0 0.0
        %6684 = vmatprep.subr.mxu0 0.0
        %6685 = vmatpush1.msra.mxu0 0.0
        %6686 = vmatprep.subr.mxu0 0.0
        %6687 = vmatpush1.msra.mxu0 0.0
        %6688 = vmatprep.subr.mxu0 0.0
        %6689 = vmatpush1.msra.mxu0 0.0
        %6690 = vmatprep.subr.mxu0 0.0
        %6691 = vmatpush1.msra.mxu0 0.0
        %6692 = vmatprep.subr.mxu0 0.0
        %6693 = vmatpush1.msra.mxu0 0.0
        %6694 = vmatprep.subr.mxu0 0.0
        %6695 = vmatpush1.msra.mxu0 0.0
        %6696 = vmatprep.subr.mxu0 0.0
        %6697 = vmatpush1.msra.mxu0 0.0
        %6698 = vmatprep.subr.mxu0 0.0
        %6699 = vmatpush1.msra.mxu0 0.0
        %6700 = vmatprep.subr.mxu0 0.0
        %6701 = vmatpush1.msra.mxu0 0.0
        %6702 = vmatprep.subr.mxu0 0.0
        %6703 = vmatpush1.msra.mxu0 0.0
        %6704 = vmatprep.subr.mxu0 0.0
        %6705 = vmatpush1.msra.mxu0 0.0
        %6706 = vmatprep.subr.mxu0 0.0
        %6707 = vmatpush1.msra.mxu0 0.0
        %6708 = vmatprep.subr.mxu0 0.0
        %6709 = vmatpush1.msra.mxu0 0.0
        %6710 = vmatprep.subr.mxu0 0.0
        %6711 = vmatpush1.msra.mxu0 0.0
        %6712 = vmatprep.subr.mxu0 0.0
        %6713 = vmatpush1.msra.mxu0 0.0
        %6714 = vmatprep.subr.mxu0 0.0
        %6715 = vmatpush1.msra.mxu0 0.0
        %6716 = vmatprep.subr.mxu0 0.0
        %6717 = vmatpush1.msra.mxu0 0.0
        %6718 = vmatprep.subr.mxu0 0.0
        %6719 = vmatpush1.msra.mxu0 0.0
        %6720 = vmatprep.subr.mxu0 0.0
        %6721 = vmatpush1.msra.mxu0 0.0
        %6722 = vmatprep.subr.mxu0 0.0
        %6723 = vmatpush1.msra.mxu0 0.0
        %6724 = vmatprep.subr.mxu0 0.0
        %6725 = vmatpush1.msra.mxu0 0.0
        %6726 = vmatprep.subr.mxu0 0.0
        %6727 = vmatpush1.msra.mxu0 0.0
        %6728 = vmatprep.subr.mxu0 0.0
        %6729 = vmatpush1.msra.mxu0 0.0
        %6730 = vmatprep.subr.mxu0 0.0
        %6731 = vmatpush1.msra.mxu0 0.0
        %6732 = vmatprep.subr.mxu0 0.0
        %6733 = vmatpush1.msra.mxu0 0.0
        %6734 = vmatprep.subr.mxu0 0.0
        %6735 = vmatpush1.msra.mxu0 0.0
        %6736 = vmatprep.subr.mxu0 0.0
        %6737 = vmatpush1.msra.mxu0 0.0
        %6738 = vmatprep.subr.mxu0 0.0
        %6739 = vmatpush1.msra.mxu0 0.0
        %6740 = vmatprep.subr.mxu0 0.0
        %6741 = vmatpush1.msra.mxu0 0.0
        %6742 = vmatprep.subr.mxu0 0.0
        %6743 = vmatpush1.msra.mxu0 0.0
        %6744 = vmatprep.mubr.f32.mxu0 0.0
        %6745 = vmatmul.mubr.f32.gmra.mrb[0].mxu0 %v6678
        %v6746 = vpop.f32.mrb[0].mxu0
        %v6747 = vadd.f32 0.0, %v6746
        %v6748 = vpop.f32.mrb[0].mxu0
        %6749 = vdwg.mxu0
        %v6750 = vmul.f32 %v6674, %v6674
        %v6751 = vsub.f32 %v6747, %v6750
        %v6752 = vmax.f32 %v6751, 0.0
        %v6753 = vadd.f32 %v6752, 1e-05
        %v6754 = vrsqrt.pop %v6753
        %v6755 = vlaneseq
        %v6756 = vshrl.u32 %v6755, 7
        %v6757 = vsub.s32 0, %v6756
        %v6758 = vrot.slane %v6674, %v6757
        %v6759 = vsub.f32 %v6544, %v6758
        %v6760 = vsub.f32 %v6545, %v6758
        %v6761 = vsub.f32 %v6546, %v6758
        %v6762 = vsub.f32 %v6547, %v6758
        %v6763 = vsub.f32 %v6548, %v6758
        %v6764 = vsub.f32 %v6549, %v6758
        %v6765 = vsub.f32 %v6550, %v6758
        %v6766 = vsub.f32 %v6551, %v6758
        %v6767 = vmul.f32 %v6754, %v4976
        %v6768 = vlaneseq
        %v6769 = vshrl.u32 %v6768, 7
        %v6770 = vsub.s32 0, %v6769
        %v6771 = vrot.slane %v6767, %v6770
        %v6772 = vmul.f32 %v6759, %v6771
        %v6773 = vmul.f32 %v6760, %v6771
        %v6774 = vmul.f32 %v6761, %v6771
        %v6775 = vmul.f32 %v6762, %v6771
        %v6776 = vmul.f32 %v6763, %v6771
        %v6777 = vmul.f32 %v6764, %v6771
        %v6778 = vmul.f32 %v6765, %v6771
        %v6779 = vmul.f32 %v6766, %v6771
        %v6781 = vlaneseq
        %v6782 = vshrl.u32 %v6781, 7
        %v6783 = vsub.s32 0, %v6782
        %v6784 = vrot.slane %v4977, %v6783
        %v6786 = vadd.f32 %v6772, %v6784
        %v6787 = vadd.f32 %v6773, %v6784
        %v6788 = vadd.f32 %v6774, %v6784
        %v6789 = vadd.f32 %v6775, %v6784
        %v6790 = vadd.f32 %v6776, %v6784
        %v6791 = vadd.f32 %v6777, %v6784
        %v6792 = vadd.f32 %v6778, %v6784
        %v6793 = vadd.f32 %v6779, %v6784
        %v6794 = vadd.f32 %v6786, %v4964
        %v6795 = vadd.f32 %v6787, %v4965
        %v6796 = vadd.f32 %v6788, %v4966
        %v6797 = vadd.f32 %v6789, %v4967
        %v6798 = vadd.f32 %v6790, %v4968
        %v6799 = vadd.f32 %v6791, %v4969
        %v6800 = vadd.f32 %v6792, %v4970
        %v6801 = vadd.f32 %v6793, %v4971
        %v6802 = vxor.u32 %v6794, 2147483648
        %v6803 = vxor.u32 %v6795, 2147483648
        %v6804 = vxor.u32 %v6796, 2147483648
        %v6805 = vxor.u32 %v6797, 2147483648
        %v6806 = vxor.u32 %v6798, 2147483648
        %v6807 = vxor.u32 %v6799, 2147483648
        %v6808 = vxor.u32 %v6800, 2147483648
        %v6809 = vxor.u32 %v6801, 2147483648
        %v6810 = vmul.f32 %v6802, 1.442695
        %v6811 = vpow.pop %v6810
        %v6812 = vmul.f32 %v6803, 1.442695
        %v6813 = vpow.pop %v6812
        %v6814 = vmul.f32 %v6804, 1.442695
        %v6815 = vpow.pop %v6814
        %v6816 = vmul.f32 %v6805, 1.442695
        %v6817 = vpow.pop %v6816
        %v6818 = vmul.f32 %v6806, 1.442695
        %v6819 = vpow.pop %v6818
        %v6820 = vmul.f32 %v6807, 1.442695
        %v6821 = vpow.pop %v6820
        %v6822 = vmul.f32 %v6808, 1.442695
        %v6823 = vpow.pop %v6822
        %v6824 = vmul.f32 %v6809, 1.442695
        %v6825 = vpow.pop %v6824
        %v6826 = vadd.f32 %v6811, 1.0
        %v6827 = vadd.f32 %v6813, 1.0
        %v6828 = vadd.f32 %v6815, 1.0
        %v6829 = vadd.f32 %v6817, 1.0
        %v6830 = vadd.f32 %v6819, 1.0
        %v6831 = vadd.f32 %v6821, 1.0
        %v6832 = vadd.f32 %v6823, 1.0
        %v6833 = vadd.f32 %v6825, 1.0
        %v6834 = vrcp.pop %v6826
        %v6835 = vmul.f32 1.0, %v6834
        %v6836 = vrcp.pop %v6827
        %v6837 = vmul.f32 1.0, %v6836
        %v6838 = vrcp.pop %v6828
        %v6839 = vmul.f32 1.0, %v6838
        %v6840 = vrcp.pop %v6829
        %v6841 = vmul.f32 1.0, %v6840
        %v6842 = vrcp.pop %v6830
        %v6843 = vmul.f32 1.0, %v6842
        %v6844 = vrcp.pop %v6831
        %v6845 = vmul.f32 1.0, %v6844
        %v6846 = vrcp.pop %v6832
        %v6847 = vmul.f32 1.0, %v6846
        %v6848 = vrcp.pop %v6833
        %v6849 = vmul.f32 1.0, %v6848
        %v6850 = vmul.f32 %v6794, %v6835
        %v6851 = vmul.f32 %v6795, %v6837
        %v6852 = vmul.f32 %v6796, %v6839
        %v6853 = vmul.f32 %v6797, %v6841
        %v6854 = vmul.f32 %v6798, %v6843
        %v6855 = vmul.f32 %v6799, %v6845
        %v6856 = vmul.f32 %v6800, %v6847
        %v6857 = vmul.f32 %v6801, %v6849
        %v6858 = vld [vmem:[%s63] sm:$0x1]
        %6859 = vst.msk [vmem:[%s1201 + $0x1] sm:$0xff] %vm1000, %v6850
        %6860 = vst.msk [vmem:[%s1201 + $0x11] sm:$0xff] %vm1000, %v6851
        %6861 = vst.msk [vmem:[%s1201 + $0x21] sm:$0xff] %vm1000, %v6852
        %6862 = vst.msk [vmem:[%s1201 + $0x31] sm:$0xff] %vm1000, %v6853
        %6863 = vst.msk [vmem:[%s1201 + $0x41] sm:$0xff] %vm1000, %v6854
        %6864 = vst.msk [vmem:[%s1201 + $0x51] sm:$0xff] %vm1000, %v6855
        %6865 = vst.msk [vmem:[%s1201 + $0x61] sm:$0xff] %vm1000, %v6856
        %6866 = vst.msk [vmem:[%s1201 + $0x71] sm:$0xff] %vm1000, %v6857
        %v6867 = vld [vmem:[#allocation2] sm:$0xff]
        %v6868 = vld [vmem:[#allocation2 + $0x10] sm:$0xff]
        %v6869 = vld [vmem:[#allocation2 + $0x20] sm:$0xff]
        %v6870 = vld [vmem:[#allocation2 + $0x30] sm:$0xff]
        %v6871 = vld [vmem:[#allocation2 + $0x40] sm:$0xff]
        %v6872 = vld [vmem:[#allocation2 + $0x50] sm:$0xff]
        %v6873 = vld [vmem:[#allocation2 + $0x60] sm:$0xff]
        %v6874 = vld [vmem:[#allocation2 + $0x70] sm:$0xff]
        %v6875 = vld [vmem:[#allocation2 + $0x1] sm:$0xff]
        %v6876 = vld [vmem:[#allocation2 + $0x11] sm:$0xff]
        %v6877 = vld [vmem:[#allocation2 + $0x21] sm:$0xff]
        %v6878 = vld [vmem:[#allocation2 + $0x31] sm:$0xff]
        %v6879 = vld [vmem:[#allocation2 + $0x41] sm:$0xff]
        %v6880 = vld [vmem:[#allocation2 + $0x51] sm:$0xff]
        %v6881 = vld [vmem:[#allocation2 + $0x61] sm:$0xff]
        %v6882 = vld [vmem:[#allocation2 + $0x71] sm:$0xff]
        %v6883 = vld [vmem:[#allocation2 + $0x2] sm:$0xff]
        %v6884 = vld [vmem:[#allocation2 + $0x12] sm:$0xff]
        %v6885 = vld [vmem:[#allocation2 + $0x22] sm:$0xff]
        %v6886 = vld [vmem:[#allocation2 + $0x32] sm:$0xff]
        %v6887 = vld [vmem:[#allocation2 + $0x42] sm:$0xff]
        %v6888 = vld [vmem:[#allocation2 + $0x52] sm:$0xff]
        %v6889 = vld [vmem:[#allocation2 + $0x62] sm:$0xff]
        %v6890 = vld [vmem:[#allocation2 + $0x72] sm:$0xff]
        %6899 = vrot.lane.b32.xlu0 %v6875, 8
        %v6900 = vpop.permute.xlu0 %6899
        %6901 = vrot.lane.b32.xlu0 %v6876, 8
        %v6902 = vpop.permute.xlu0 %6901
        %6903 = vrot.lane.b32.xlu0 %v6877, 8
        %v6904 = vpop.permute.xlu0 %6903
        %6905 = vrot.lane.b32.xlu0 %v6878, 8
        %v6906 = vpop.permute.xlu0 %6905
        %6907 = vrot.lane.b32.xlu0 %v6879, 8
        %v6908 = vpop.permute.xlu0 %6907
        %6909 = vrot.lane.b32.xlu0 %v6880, 8
        %v6910 = vpop.permute.xlu0 %6909
        %6911 = vrot.lane.b32.xlu0 %v6881, 8
        %v6912 = vpop.permute.xlu0 %6911
        %6913 = vrot.lane.b32.xlu0 %v6882, 8
        %v6914 = vpop.permute.xlu0 %6913
        %6931 = vrot.lane.b32.xlu0 %v6883, 16
        %v6932 = vpop.permute.xlu0 %6931
        %6933 = vrot.lane.b32.xlu0 %v6884, 16
        %v6934 = vpop.permute.xlu0 %6933
        %6935 = vrot.lane.b32.xlu0 %v6885, 16
        %v6936 = vpop.permute.xlu0 %6935
        %6937 = vrot.lane.b32.xlu0 %v6886, 16
        %v6938 = vpop.permute.xlu0 %6937
        %6939 = vrot.lane.b32.xlu0 %v6887, 16
        %v6940 = vpop.permute.xlu0 %6939
        %6941 = vrot.lane.b32.xlu0 %v6888, 16
        %v6942 = vpop.permute.xlu0 %6941
        %6943 = vrot.lane.b32.xlu0 %v6889, 16
        %v6944 = vpop.permute.xlu0 %6943
        %6945 = vrot.lane.b32.xlu0 %v6890, 16
        %v6946 = vpop.permute.xlu0 %6945
        %v6955 = vsel %vm1000, %v6867, %v6900
        %v6956 = vsel %vm1000, %v6868, %v6902
        %v6957 = vsel %vm1000, %v6869, %v6904
        %v6958 = vsel %vm1000, %v6870, %v6906
        %v6959 = vsel %vm1000, %v6871, %v6908
        %v6960 = vsel %vm1000, %v6872, %v6910
        %v6961 = vsel %vm1000, %v6873, %v6912
        %v6962 = vsel %vm1000, %v6874, %v6914
        %v6963 = vsel %vm1048, %v6955, %v6932
        %v6964 = vsel %vm1048, %v6956, %v6934
        %v6965 = vsel %vm1048, %v6957, %v6936
        %v6966 = vsel %vm1048, %v6958, %v6938
        %v6967 = vsel %vm1048, %v6959, %v6940
        %v6968 = vsel %vm1048, %v6960, %v6942
        %v6969 = vsel %vm1048, %v6961, %v6944
        %v6970 = vsel %vm1048, %v6962, %v6946
        %v6971 = vpack.c.bf16 %v6964, %v6963
        %v6972 = vpack.c.bf16 %v6966, %v6965
        %v6973 = vpack.c.bf16 %v6968, %v6967
        %v6974 = vpack.c.bf16 %v6970, %v6969
        %v6975 = vld [vmem:[%s61] sm:$0xf]
        %v6976 = vld [vmem:[%s61 + $0x4] sm:$0xf]
        %v6977 = vld [vmem:[%s61 + $0x8] sm:$0xf]
        %v6978 = vld [vmem:[%s1201] sm:$0xff]
        %v6979 = vld [vmem:[%s1201 + $0x10] sm:$0xff]
        %v6980 = vld [vmem:[%s1201 + $0x20] sm:$0xff]
        %v6981 = vld [vmem:[%s1201 + $0x30] sm:$0xff]
        %v6982 = vld [vmem:[%s1201 + $0x40] sm:$0xff]
        %v6983 = vld [vmem:[%s1201 + $0x50] sm:$0xff]
        %v6984 = vld [vmem:[%s1201 + $0x60] sm:$0xff]
        %v6985 = vld [vmem:[%s1201 + $0x70] sm:$0xff]
        %v6986 = vld [vmem:[%s1201 + $0x1] sm:$0xff]
        %v6987 = vld [vmem:[%s1201 + $0x11] sm:$0xff]
        %v6988 = vld [vmem:[%s1201 + $0x21] sm:$0xff]
        %v6989 = vld [vmem:[%s1201 + $0x31] sm:$0xff]
        %v6990 = vld [vmem:[%s1201 + $0x41] sm:$0xff]
        %v6991 = vld [vmem:[%s1201 + $0x51] sm:$0xff]
        %v6992 = vld [vmem:[%s1201 + $0x61] sm:$0xff]
        %v6993 = vld [vmem:[%s1201 + $0x71] sm:$0xff]
        %v6994 = vld [vmem:[%s1201 + $0x2] sm:$0xff]
        %v6995 = vld [vmem:[%s1201 + $0x12] sm:$0xff]
        %v6996 = vld [vmem:[%s1201 + $0x22] sm:$0xff]
        %v6997 = vld [vmem:[%s1201 + $0x32] sm:$0xff]
        %v6998 = vld [vmem:[%s1201 + $0x42] sm:$0xff]
        %v6999 = vld [vmem:[%s1201 + $0x52] sm:$0xff]
        %v7000 = vld [vmem:[%s1201 + $0x62] sm:$0xff]
        %v7001 = vld [vmem:[%s1201 + $0x72] sm:$0xff]
        %7010 = vrot.lane.b32.xlu0 %v6986, 8
        %v7011 = vpop.permute.xlu0 %7010
        %7012 = vrot.lane.b32.xlu0 %v6987, 8
        %v7013 = vpop.permute.xlu0 %7012
        %7014 = vrot.lane.b32.xlu0 %v6988, 8
        %v7015 = vpop.permute.xlu0 %7014
        %7016 = vrot.lane.b32.xlu0 %v6989, 8
        %v7017 = vpop.permute.xlu0 %7016
        %7018 = vrot.lane.b32.xlu0 %v6990, 8
        %v7019 = vpop.permute.xlu0 %7018
        %7020 = vrot.lane.b32.xlu0 %v6991, 8
        %v7021 = vpop.permute.xlu0 %7020
        %7022 = vrot.lane.b32.xlu0 %v6992, 8
        %v7023 = vpop.permute.xlu0 %7022
        %7024 = vrot.lane.b32.xlu0 %v6993, 8
        %v7025 = vpop.permute.xlu0 %7024
        %7042 = vrot.lane.b32.xlu0 %v6994, 16
        %v7043 = vpop.permute.xlu0 %7042
        %7044 = vrot.lane.b32.xlu0 %v6995, 16
        %v7045 = vpop.permute.xlu0 %7044
        %7046 = vrot.lane.b32.xlu0 %v6996, 16
        %v7047 = vpop.permute.xlu0 %7046
        %7048 = vrot.lane.b32.xlu0 %v6997, 16
        %v7049 = vpop.permute.xlu0 %7048
        %7050 = vrot.lane.b32.xlu0 %v6998, 16
        %v7051 = vpop.permute.xlu0 %7050
        %7052 = vrot.lane.b32.xlu0 %v6999, 16
        %v7053 = vpop.permute.xlu0 %7052
        %7054 = vrot.lane.b32.xlu0 %v7000, 16
        %v7055 = vpop.permute.xlu0 %7054
        %7056 = vrot.lane.b32.xlu0 %v7001, 16
        %v7057 = vpop.permute.xlu0 %7056
        %v7066 = vsel %vm1000, %v6978, %v7011
        %v7067 = vsel %vm1000, %v6979, %v7013
        %v7068 = vsel %vm1000, %v6980, %v7015
        %v7069 = vsel %vm1000, %v6981, %v7017
        %v7070 = vsel %vm1000, %v6982, %v7019
        %v7071 = vsel %vm1000, %v6983, %v7021
        %v7072 = vsel %vm1000, %v6984, %v7023
        %v7073 = vsel %vm1000, %v6985, %v7025
        %v7074 = vsel %vm1048, %v7066, %v7043
        %v7075 = vsel %vm1048, %v7067, %v7045
        %v7076 = vsel %vm1048, %v7068, %v7047
        %v7077 = vsel %vm1048, %v7069, %v7049
        %v7078 = vsel %vm1048, %v7070, %v7051
        %v7079 = vsel %vm1048, %v7071, %v7053
        %v7080 = vsel %vm1048, %v7072, %v7055
        %v7081 = vsel %vm1048, %v7073, %v7057
        %v7082 = vpack.c.bf16 %v7075, %v7074
        %v7083 = vpack.c.bf16 %v7077, %v7076
        %v7084 = vpack.c.bf16 %v7079, %v7078
        %v7085 = vpack.c.bf16 %v7081, %v7080
        %s7086 = scalar_lea.vmem %s61, 12
        %v7087 = vld [vmem:[%s7086] sm:$0xf]
        %v7088 = vld [vmem:[%s7086 + $0x4] sm:$0xf]
        %v7089 = vld [vmem:[%s7086 + $0x8] sm:$0xf]
        %v7093 = vunpack.c.l.b16 %v7087
        %v7094 = vunpack.c.l.b16 %v7088
        %v7095 = vunpack.c.l.b16 %v7089
        %v7096 = vpack.c.b16 %v7094, %v7093
        %v7097 = vpack.c.b16 %v7095, %v7095
        %v7100 = vsel %vm1442, %v7082, 0
        %v7103 = vsel %vm1442, %v7083, 0
        %v7106 = vsel %vm1442, %v7084, 0
        %v7109 = vsel %vm1442, %v7085, 0
        %v7112 = vsel %vm1455, %v7097, 0
        %7114 = vmatprep.subr.bf16.mxu0 0
        %7115 = vmatpush1.bf16.msra.mxu0 %v7096
        %7116 = vmatprep.subr.bf16.mxu0 0
        %7117 = vmatpush1.bf16.msra.mxu0 %v7112
        %7118 = vmatprep.subr.bf16.mxu0 0
        %7119 = vmatpush1.bf16.msra.mxu0 0
        %7120 = vmatprep.subr.bf16.mxu0 0
        %7121 = vmatpush1.bf16.msra.mxu0 0
        %7122 = vmatprep.subr.bf16.mxu0 0
        %7123 = vmatpush1.bf16.msra.mxu0 0
        %7124 = vmatprep.subr.bf16.mxu0 0
        %7125 = vmatpush1.bf16.msra.mxu0 0
        %7126 = vmatprep.subr.bf16.mxu0 0
        %7127 = vmatpush1.bf16.msra.mxu0 0
        %7128 = vmatprep.subr.bf16.mxu0 0
        %7129 = vmatpush1.bf16.msra.mxu0 0
        %7130 = vmatprep.subr.bf16.mxu0 0
        %7131 = vmatpush1.bf16.msra.mxu0 0
        %7132 = vmatprep.subr.bf16.mxu0 0
        %7133 = vmatpush1.bf16.msra.mxu0 0
        %7134 = vmatprep.subr.bf16.mxu0 0
        %7135 = vmatpush1.bf16.msra.mxu0 0
        %7136 = vmatprep.subr.bf16.mxu0 0
        %7137 = vmatpush1.bf16.msra.mxu0 0
        %7138 = vmatprep.subr.bf16.mxu0 0
        %7139 = vmatpush1.bf16.msra.mxu0 0
        %7140 = vmatprep.subr.bf16.mxu0 0
        %7141 = vmatpush1.bf16.msra.mxu0 0
        %7142 = vmatprep.subr.bf16.mxu0 0
        %7143 = vmatpush1.bf16.msra.mxu0 0
        %7144 = vmatprep.subr.bf16.mxu0 0
        %7145 = vmatpush1.bf16.msra.mxu0 0
        %7146 = vmatprep.mubr.bf16.mxu0 0
        %7147 = vmatmul.mubr.bf16.gmra.mrb[0].mxu0 %v7100
        %v7148 = vpop.f32.mrb[0].mxu0
        %v7149 = vadd.f32 0.0, %v7148
        %v7150 = vpop.f32.mrb[0].mxu0
        %v7151 = vpop.f32.mrb[0].mxu0
        %v7152 = vadd.f32 0.0, %v7151
        %v7153 = vpop.f32.mrb[0].mxu0
        %7154 = vmatprep.mubr.bf16.mxu0 0
        %7155 = vmatmul.mubr.bf16.gmra.mrb[0].mxu0 %v7103
        %v7156 = vpop.f32.mrb[0].mxu0
        %v7157 = vadd.f32 0.0, %v7156
        %v7158 = vpop.f32.mrb[0].mxu0
        %v7159 = vpop.f32.mrb[0].mxu0
        %v7160 = vadd.f32 0.0, %v7159
        %v7161 = vpop.f32.mrb[0].mxu0
        %7162 = vmatprep.mubr.bf16.mxu0 0
        %7163 = vmatmul.mubr.bf16.gmra.mrb[0].mxu0 %v7106
        %v7164 = vpop.f32.mrb[0].mxu0
        %v7165 = vadd.f32 0.0, %v7164
        %v7166 = vpop.f32.mrb[0].mxu0
        %v7167 = vpop.f32.mrb[0].mxu0
        %v7168 = vadd.f32 0.0, %v7167
        %v7169 = vpop.f32.mrb[0].mxu0
        %7170 = vmatprep.mubr.bf16.mxu0 0
        %7171 = vmatmul.mubr.bf16.gmra.mrb[0].mxu0 %v7109
        %v7172 = vpop.f32.mrb[0].mxu0
        %v7173 = vadd.f32 0.0, %v7172
        %v7174 = vpop.f32.mrb[0].mxu0
        %v7175 = vpop.f32.mrb[0].mxu0
        %v7176 = vadd.f32 0.0, %v7175
        %v7177 = vpop.f32.mrb[0].mxu0
        %7178 = vdwg.mxu0
        %v7182 = vunpack.c.l.b16 %v6975
        %v7183 = vunpack.c.l.b16 %v6976
        %v7184 = vunpack.c.l.b16 %v6977
        %v7185 = vpack.c.b16 %v7183, %v7182
        %v7186 = vpack.c.b16 %v7184, %v7184
        %v7189 = vsel %vm1442, %v6971, 0
        %v7192 = vsel %vm1442, %v6972, 0
        %v7195 = vsel %vm1442, %v6973, 0
        %v7198 = vsel %vm1442, %v6974, 0
        %v7201 = vsel %vm1455, %v7186, 0
        %7203 = vmatprep.subr.bf16.mxu0 0
        %7204 = vmatpush1.bf16.msra.mxu0 %v7185
        %7205 = vmatprep.subr.bf16.mxu0 0
        %7206 = vmatpush1.bf16.msra.mxu0 %v7201
        %7207 = vmatprep.subr.bf16.mxu0 0
        %7208 = vmatpush1.bf16.msra.mxu0 0
        %7209 = vmatprep.subr.bf16.mxu0 0
        %7210 = vmatpush1.bf16.msra.mxu0 0
        %7211 = vmatprep.subr.bf16.mxu0 0
        %7212 = vmatpush1.bf16.msra.mxu0 0
        %7213 = vmatprep.subr.bf16.mxu0 0
        %7214 = vmatpush1.bf16.msra.mxu0 0
        %7215 = vmatprep.subr.bf16.mxu0 0
        %7216 = vmatpush1.bf16.msra.mxu0 0
        %7217 = vmatprep.subr.bf16.mxu0 0
        %7218 = vmatpush1.bf16.msra.mxu0 0
        %7219 = vmatprep.subr.bf16.mxu0 0
        %7220 = vmatpush1.bf16.msra.mxu0 0
        %7221 = vmatprep.subr.bf16.mxu0 0
        %7222 = vmatpush1.bf16.msra.mxu0 0
        %7223 = vmatprep.subr.bf16.mxu0 0
        %7224 = vmatpush1.bf16.msra.mxu0 0
        %7225 = vmatprep.subr.bf16.mxu0 0
        %7226 = vmatpush1.bf16.msra.mxu0 0
        %7227 = vmatprep.subr.bf16.mxu0 0
        %7228 = vmatpush1.bf16.msra.mxu0 0
        %7229 = vmatprep.subr.bf16.mxu0 0
        %7230 = vmatpush1.bf16.msra.mxu0 0
        %7231 = vmatprep.subr.bf16.mxu0 0
        %7232 = vmatpush1.bf16.msra.mxu0 0
        %7233 = vmatprep.subr.bf16.mxu0 0
        %7234 = vmatpush1.bf16.msra.mxu0 0
        %7235 = vmatprep.mubr.bf16.mxu0 0
        %7236 = vmatmul.mubr.bf16.gmra.mrb[0].mxu0 %v7189
        %v7237 = vpop.f32.mrb[0].mxu0
        %v7238 = vadd.f32 %v7149, %v7237
        %v7239 = vpop.f32.mrb[0].mxu0
        %v7240 = vpop.f32.mrb[0].mxu0
        %v7241 = vadd.f32 %v7152, %v7240
        %v7242 = vpop.f32.mrb[0].mxu0
        %7243 = vmatprep.mubr.bf16.mxu0 0
        %7244 = vmatmul.mubr.bf16.gmra.mrb[0].mxu0 %v7192
        %v7245 = vpop.f32.mrb[0].mxu0
        %v7246 = vadd.f32 %v7157, %v7245
        %v7247 = vpop.f32.mrb[0].mxu0
        %v7248 = vpop.f32.mrb[0].mxu0
        %v7249 = vadd.f32 %v7160, %v7248
        %v7250 = vpop.f32.mrb[0].mxu0
        %7251 = vmatprep.mubr.bf16.mxu0 0
        %7252 = vmatmul.mubr.bf16.gmra.mrb[0].mxu0 %v7195
        %v7253 = vpop.f32.mrb[0].mxu0
        %v7254 = vadd.f32 %v7165, %v7253
        %v7255 = vpop.f32.mrb[0].mxu0
        %v7256 = vpop.f32.mrb[0].mxu0
        %v7257 = vadd.f32 %v7168, %v7256
        %v7258 = vpop.f32.mrb[0].mxu0
        %7259 = vmatprep.mubr.bf16.mxu0 0
        %7260 = vmatmul.mubr.bf16.gmra.mrb[0].mxu0 %v7198
        %v7261 = vpop.f32.mrb[0].mxu0
        %v7262 = vadd.f32 %v7173, %v7261
        %v7263 = vpop.f32.mrb[0].mxu0
        %v7264 = vpop.f32.mrb[0].mxu0
        %v7265 = vadd.f32 %v7176, %v7264
        %v7266 = vpop.f32.mrb[0].mxu0
        %7267 = vdwg.mxu0
        %v7268 = vld [vmem:[%s1613] sm:$0xff]
        %v7269 = vld [vmem:[%s1613 + $0x10] sm:$0xff]
        %v7270 = vld [vmem:[%s1613 + $0x20] sm:$0xff]
        %v7271 = vld [vmem:[%s1613 + $0x30] sm:$0xff]
        %v7272 = vld [vmem:[%s1613 + $0x40] sm:$0xff]
        %v7273 = vld [vmem:[%s1613 + $0x50] sm:$0xff]
        %v7274 = vld [vmem:[%s1613 + $0x60] sm:$0xff]
        %v7275 = vld [vmem:[%s1613 + $0x70] sm:$0xff]
        %v7276 = vld [vmem:[%s1613 + $0x1] sm:$0xff]
        %v7277 = vld [vmem:[%s1613 + $0x11] sm:$0xff]
        %v7278 = vld [vmem:[%s1613 + $0x21] sm:$0xff]
        %v7279 = vld [vmem:[%s1613 + $0x31] sm:$0xff]
        %v7280 = vld [vmem:[%s1613 + $0x41] sm:$0xff]
        %v7281 = vld [vmem:[%s1613 + $0x51] sm:$0xff]
        %v7282 = vld [vmem:[%s1613 + $0x61] sm:$0xff]
        %v7283 = vld [vmem:[%s1613 + $0x71] sm:$0xff]
        %v7284 = vld [vmem:[%s1613 + $0x2] sm:$0xff]
        %v7285 = vld [vmem:[%s1613 + $0x12] sm:$0xff]
        %v7286 = vld [vmem:[%s1613 + $0x22] sm:$0xff]
        %v7287 = vld [vmem:[%s1613 + $0x32] sm:$0xff]
        %v7288 = vld [vmem:[%s1613 + $0x42] sm:$0xff]
        %v7289 = vld [vmem:[%s1613 + $0x52] sm:$0xff]
        %v7290 = vld [vmem:[%s1613 + $0x62] sm:$0xff]
        %v7291 = vld [vmem:[%s1613 + $0x72] sm:$0xff]
        %7300 = vrot.lane.b32.xlu0 %v7276, 8
        %v7301 = vpop.permute.xlu0 %7300
        %7302 = vrot.lane.b32.xlu0 %v7277, 8
        %v7303 = vpop.permute.xlu0 %7302
        %7304 = vrot.lane.b32.xlu0 %v7278, 8
        %v7305 = vpop.permute.xlu0 %7304
        %7306 = vrot.lane.b32.xlu0 %v7279, 8
        %v7307 = vpop.permute.xlu0 %7306
        %7308 = vrot.lane.b32.xlu0 %v7280, 8
        %v7309 = vpop.permute.xlu0 %7308
        %7310 = vrot.lane.b32.xlu0 %v7281, 8
        %v7311 = vpop.permute.xlu0 %7310
        %7312 = vrot.lane.b32.xlu0 %v7282, 8
        %v7313 = vpop.permute.xlu0 %7312
        %7314 = vrot.lane.b32.xlu0 %v7283, 8
        %v7315 = vpop.permute.xlu0 %7314
        %7332 = vrot.lane.b32.xlu0 %v7284, 16
        %v7333 = vpop.permute.xlu0 %7332
        %7334 = vrot.lane.b32.xlu0 %v7285, 16
        %v7335 = vpop.permute.xlu0 %7334
        %7336 = vrot.lane.b32.xlu0 %v7286, 16
        %v7337 = vpop.permute.xlu0 %7336
        %7338 = vrot.lane.b32.xlu0 %v7287, 16
        %v7339 = vpop.permute.xlu0 %7338
        %7340 = vrot.lane.b32.xlu0 %v7288, 16
        %v7341 = vpop.permute.xlu0 %7340
        %7342 = vrot.lane.b32.xlu0 %v7289, 16
        %v7343 = vpop.permute.xlu0 %7342
        %7344 = vrot.lane.b32.xlu0 %v7290, 16
        %v7345 = vpop.permute.xlu0 %7344
        %7346 = vrot.lane.b32.xlu0 %v7291, 16
        %v7347 = vpop.permute.xlu0 %7346
        %v7356 = vsel %vm1000, %v7268, %v7301
        %v7357 = vsel %vm1000, %v7269, %v7303
        %v7358 = vsel %vm1000, %v7270, %v7305
        %v7359 = vsel %vm1000, %v7271, %v7307
        %v7360 = vsel %vm1000, %v7272, %v7309
        %v7361 = vsel %vm1000, %v7273, %v7311
        %v7362 = vsel %vm1000, %v7274, %v7313
        %v7363 = vsel %vm1000, %v7275, %v7315
        %v7364 = vsel %vm1048, %v7356, %v7333
        %v7365 = vsel %vm1048, %v7357, %v7335
        %v7366 = vsel %vm1048, %v7358, %v7337
        %v7367 = vsel %vm1048, %v7359, %v7339
        %v7368 = vsel %vm1048, %v7360, %v7341
        %v7369 = vsel %vm1048, %v7361, %v7343
        %v7370 = vsel %vm1048, %v7362, %v7345
        %v7371 = vsel %vm1048, %v7363, %v7347
        %v7372 = vpack.c.bf16 %v7365, %v7364
        %v7373 = vpack.c.bf16 %v7367, %v7366
        %v7374 = vpack.c.bf16 %v7369, %v7368
        %v7375 = vpack.c.bf16 %v7371, %v7370
        %s7376 = scalar_lea.vmem %s61, 24
        %v7377 = vld [vmem:[%s7376] sm:$0xf]
        %v7378 = vld [vmem:[%s7376 + $0x4] sm:$0xf]
        %v7379 = vld [vmem:[%s7376 + $0x8] sm:$0xf]
        %v7383 = vunpack.c.l.b16 %v7377
        %v7384 = vunpack.c.l.b16 %v7378
        %v7385 = vunpack.c.l.b16 %v7379
        %v7386 = vpack.c.b16 %v7384, %v7383
        %v7387 = vpack.c.b16 %v7385, %v7385
        %v7390 = vsel %vm1442, %v7372, 0
        %v7393 = vsel %vm1442, %v7373, 0
        %v7396 = vsel %vm1442, %v7374, 0
        %v7399 = vsel %vm1442, %v7375, 0
        %v7402 = vsel %vm1455, %v7387, 0
        %7404 = vmatprep.subr.bf16.mxu0 0
        %7405 = vmatpush1.bf16.msra.mxu0 %v7386
        %7406 = vmatprep.subr.bf16.mxu0 0
        %7407 = vmatpush1.bf16.msra.mxu0 %v7402
        %7408 = vmatprep.subr.bf16.mxu0 0
        %7409 = vmatpush1.bf16.msra.mxu0 0
        %7410 = vmatprep.subr.bf16.mxu0 0
        %7411 = vmatpush1.bf16.msra.mxu0 0
        %7412 = vmatprep.subr.bf16.mxu0 0
        %7413 = vmatpush1.bf16.msra.mxu0 0
        %7414 = vmatprep.subr.bf16.mxu0 0
        %7415 = vmatpush1.bf16.msra.mxu0 0
        %7416 = vmatprep.subr.bf16.mxu0 0
        %7417 = vmatpush1.bf16.msra.mxu0 0
        %7418 = vmatprep.subr.bf16.mxu0 0
        %7419 = vmatpush1.bf16.msra.mxu0 0
        %7420 = vmatprep.subr.bf16.mxu0 0
        %7421 = vmatpush1.bf16.msra.mxu0 0
        %7422 = vmatprep.subr.bf16.mxu0 0
        %7423 = vmatpush1.bf16.msra.mxu0 0
        %7424 = vmatprep.subr.bf16.mxu0 0
        %7425 = vmatpush1.bf16.msra.mxu0 0
        %7426 = vmatprep.subr.bf16.mxu0 0
        %7427 = vmatpush1.bf16.msra.mxu0 0
        %7428 = vmatprep.subr.bf16.mxu0 0
        %7429 = vmatpush1.bf16.msra.mxu0 0
        %7430 = vmatprep.subr.bf16.mxu0 0
        %7431 = vmatpush1.bf16.msra.mxu0 0
        %7432 = vmatprep.subr.bf16.mxu0 0
        %7433 = vmatpush1.bf16.msra.mxu0 0
        %7434 = vmatprep.subr.bf16.mxu0 0
        %7435 = vmatpush1.bf16.msra.mxu0 0
        %7436 = vmatprep.mubr.bf16.mxu0 0
        %7437 = vmatmul.mubr.bf16.gmra.mrb[0].mxu0 %v7390
        %v7438 = vpop.f32.mrb[0].mxu0
        %v7439 = vadd.f32 0.0, %v7438
        %v7440 = vpop.f32.mrb[0].mxu0
        %v7441 = vpop.f32.mrb[0].mxu0
        %v7442 = vadd.f32 0.0, %v7441
        %v7443 = vpop.f32.mrb[0].mxu0
        %7444 = vmatprep.mubr.bf16.mxu0 0
        %7445 = vmatmul.mubr.bf16.gmra.mrb[0].mxu0 %v7393
        %v7446 = vpop.f32.mrb[0].mxu0
        %v7447 = vadd.f32 0.0, %v7446
        %v7448 = vpop.f32.mrb[0].mxu0
        %v7449 = vpop.f32.mrb[0].mxu0
        %v7450 = vadd.f32 0.0, %v7449
        %v7451 = vpop.f32.mrb[0].mxu0
        %7452 = vmatprep.mubr.bf16.mxu0 0
        %7453 = vmatmul.mubr.bf16.gmra.mrb[0].mxu0 %v7396
        %v7454 = vpop.f32.mrb[0].mxu0
        %v7455 = vadd.f32 0.0, %v7454
        %v7456 = vpop.f32.mrb[0].mxu0
        %v7457 = vpop.f32.mrb[0].mxu0
        %v7458 = vadd.f32 0.0, %v7457
        %v7459 = vpop.f32.mrb[0].mxu0
        %7460 = vmatprep.mubr.bf16.mxu0 0
        %7461 = vmatmul.mubr.bf16.gmra.mrb[0].mxu0 %v7399
        %v7462 = vpop.f32.mrb[0].mxu0
        %v7463 = vadd.f32 0.0, %v7462
        %v7464 = vpop.f32.mrb[0].mxu0
        %v7465 = vpop.f32.mrb[0].mxu0
        %v7466 = vadd.f32 0.0, %v7465
        %v7467 = vpop.f32.mrb[0].mxu0
        %7468 = vdwg.mxu0
        %v7469 = vadd.f32 %v7238, %v7439
        %v7470 = vadd.f32 %v7241, %v7442
        %v7471 = vadd.f32 %v7246, %v7447
        %v7472 = vadd.f32 %v7249, %v7450
        %v7473 = vadd.f32 %v7254, %v7455
        %v7474 = vadd.f32 %v7257, %v7458
        %v7475 = vadd.f32 %v7262, %v7463
        %v7476 = vadd.f32 %v7265, %v7466
        %v7478 = vlaneseq
        %v7479 = vshrl.u32 %v7478, 7
        %v7480 = vsub.s32 0, %v7479
        %v7481 = vrot.slane %v6858, %v7480
        %v7483 = vadd.f32 %v7469, %v7481
        %v7484 = vadd.f32 %v7470, %v7481
        %v7485 = vadd.f32 %v7471, %v7481
        %v7486 = vadd.f32 %v7472, %v7481
        %v7487 = vadd.f32 %v7473, %v7481
        %v7488 = vadd.f32 %v7474, %v7481
        %v7489 = vadd.f32 %v7475, %v7481
        %v7490 = vadd.f32 %v7476, %v7481
        %7491 = vst.msk [vmem:[%s990] sm:$0xff] %vm1048, %v7483
        %7492 = vst.msk [vmem:[%s990 + $0x8] sm:$0xff] %vm1048, %v7484
        %7493 = vst.msk [vmem:[%s990 + $0x10] sm:$0xff] %vm1048, %v7485
        %7494 = vst.msk [vmem:[%s990 + $0x18] sm:$0xff] %vm1048, %v7486
        %7495 = vst.msk [vmem:[%s990 + $0x20] sm:$0xff] %vm1048, %v7487
        %7496 = vst.msk [vmem:[%s990 + $0x28] sm:$0xff] %vm1048, %v7488
        %7497 = vst.msk [vmem:[%s990 + $0x30] sm:$0xff] %vm1048, %v7489
        %7498 = vst.msk [vmem:[%s990 + $0x38] sm:$0xff] %vm1048, %v7490
        %s7499 = sand.u32 %s769, 1
        %s7500 = scalar_lea.sflag [#allocation4], %s7499
        %s7501 = sand.u32 %s769, 1
        %s7502 = smul.addr %s7501, 64
        %s7503 = scalar_lea.vmem [#allocation3], %s7502
        // Predicated region
        $region149: #{mid_block_nchw.1} parent=147 // pred_check
          %p7504 = pneg %p779
        $region150: #{mid_block_nchw.1} parent=147 // pred_check_branch
          %7506 = sbr.rel (%p7504) target = $region152
        $region151: #{mid_block_nchw.1} parent=147 // pred_region
          %s7508 = ssub.s32 1024, 1024
          %7509 = vsyncadd %s7500, %s7508
          %s7510 = smul.addr %s79, 8
          %s7511 = smul.addr %s7510, 128
          %s7512 = scalar_lea.hbm %s65, %s7511
          %s7513 = sshll.u32 %s7503, 4
          %s7514 = int_to_ptr.vmem [resolvable:$true] %s7513
          %7519 = dma.vmem_to_hbm [thread:$0]  %s7514, 1024, %s7512, %s7500, 128, 128, 8
        $region152: #{mid_block_nchw.1} parent=147 // pred_fallthru
          _
      $region148: #{mid_block_nchw.1} parent=5 // pred_fallthru
        _
      %p7520 = scmp.le.s32.totalorder 2, %s74
      // Predicated region
      $region153: #{mid_block_nchw.1} parent=5 // pred_check
        %p7521 = pneg %p7520
      $region154: #{mid_block_nchw.1} parent=5 // pred_check_branch
        %7523 = sbr.rel (%p7521) target = $region156
      $region155: #{mid_block_nchw.1} parent=5 // pred_region
        %s7524 = ssub.s32 %s74, 2
        // Predicated region
        $region157: #{mid_block_nchw.1} parent=155 // pred_check
          %p7525 = pneg %p785
        $region158: #{mid_block_nchw.1} parent=155 // pred_check_branch
          %7527 = sbr.rel (%p7525) target = $region160
        $region159: #{mid_block_nchw.1} parent=155 // pred_region
          %s7528 = sand.u32 %s770, 1
          %s7529 = scalar_lea.sflag [#allocation4], %s7528
          %s7530 = sand.u32 %s770, 1
          %s7531 = smul.addr %s7530, 64
          %s7532 = scalar_lea.vmem [#allocation3], %s7531
          %7533 = dma.done %s7529, 1024
        $region160: #{mid_block_nchw.1} parent=155 // pred_fallthru
          _
      $region156: #{mid_block_nchw.1} parent=5 // pred_fallthru
        _
    $region6: #{mid_block_nchw.1} parent=1 // loop_footer
      %s78 = sadd.s32 1, %s74
    $region7: #{mid_block_nchw.1} parent=1 // loop_footer_branch
      %73 = sbr.rel target = $region3
    $region8: #{mid_block_nchw.1} parent=1 // loop_exit
      _
    %7534 = vsyncpa [#allocation4], 1
    %s7535 = scalar_lea.sflag [#allocation4], 1
    %7536 = vsyncpa %s7535, 1

</llo_original>
